<compile_context>
chip_gen: v5e
topology: v5e:2x2
jax: 0.10.0
libtpu: 0.0.40
codegen_flags: <defaults>
</compile_context>

<pallas_src>
import functools
import math

import jax
import jax.numpy as jnp
from jax import lax
from jax.experimental import pallas as pl
from jax.experimental.pallas import tpu as pltpu


# ----------------------------------------------------------------------------- helpers
def _round_up(x, m):
    return (x + m - 1) // m * m


def _gelu_exact(x):
    # torch.nn.GELU default (erf form)
    return 0.5 * x * (1.0 + lax.erf(x * (1.0 / math.sqrt(2.0))))


def _layernorm(x, g, b, eps=1e-6):
    mu = jnp.mean(x, axis=-1, keepdims=True)
    xc = x - mu
    var = jnp.mean(xc * xc, axis=-1, keepdims=True)
    return xc * lax.rsqrt(var + eps) * g + b


# ----------------------------------------------------------------------------- fused kernel
def _widenet_kernel(
    # data / constant scaffolds
    patches_ref, place_ref, base_ref, valid_ref, kbias_ref, tril_ref,
    lane_ref, slot_ref, pool_ref,
    # parameters
    patch_w_ref, patch_b_ref,
    qkv_w_ref, qkv_b_ref, proj_w_ref, proj_b_ref,
    ln1_g_ref, ln1_b_ref, ln2_g_ref, ln2_b_ref, gate_w_ref,
    ew1_ref, eb1_ref, ew2_ref, eb2_ref,
    norm_g_ref, norm_b_ref, cls_w_ref, cls_b_ref,
    # output
    out_ref,
    # scratch
    h_ref,
    *, B, S_pad, D, H, dk, E, depth, capacity):
    f32 = jnp.float32
    bf16 = jnp.bfloat16
    inner = H * dk
    nt = B * S_pad
    scale = 1.0 / math.sqrt(dk)

    # ---------------- patch embedding + [cls] + positional embedding ----------------
    # (padded token rows stay exactly zero; embed_dropout is identity at eval)
    emb = jnp.dot(patches_ref[...].astype(bf16), patch_w_ref[...],
                  preferred_element_type=f32) + patch_b_ref[...]
    h_ref[...] = base_ref[...] + jnp.dot(place_ref[...], emb,
                                         preferred_element_type=f32)

    valid = valid_ref[...]      # (nt, 1)     1.0 for real tokens, 0.0 for padding
    kbias = kbias_ref[...]      # (1, S_pad)  0 / -1e9 additive attention key mask
    tril = tril_ref[...]        # (nt, nt)    lower-triangular ones (cumsum on the MXU)
    lane = lane_ref[...]        # (nt, E)     expert-lane index (f32)
    slot = slot_ref[...]        # (nt, C_pad) capacity-slot index (f32)
    proj_w = proj_w_ref[...]    # (inner, D)  bf16
    proj_b = proj_b_ref[...]

    for blk in range(depth):
        # ====================== attention sub-block (pre-LN, residual) ==============
        h = h_ref[...]
        n1 = _layernorm(h, ln1_g_ref[blk], ln1_b_ref[blk])
        qkv = jnp.dot(n1.astype(bf16), qkv_w_ref[...],
                      preferred_element_type=f32) + qkv_b_ref[...]
        for b in range(B):
            r0 = b * S_pad
            qkv_rows = qkv[r0:r0 + S_pad, :]
            acc = jnp.zeros((S_pad, D), f32)
            for hd in range(H):
                q = qkv_rows[:, hd * dk:(hd + 1) * dk].astype(bf16)
                k = qkv_rows[:, inner + hd * dk:inner + (hd + 1) * dk].astype(bf16)
                v = qkv_rows[:, 2 * inner + hd * dk:2 * inner + (hd + 1) * dk].astype(bf16)
                # q @ k^T via dot_general contracting last dims (no in-kernel transpose)
                s = lax.dot_general(q, k, (((1,), (1,)), ((), ())),
                                    preferred_element_type=f32) * scale + kbias
                s = s - jnp.max(s, axis=-1, keepdims=True)
                p = jnp.exp(s)
                p = p * pl.reciprocal(jnp.sum(p, axis=-1, keepdims=True), approx=True)
                o = jnp.dot(p.astype(bf16), v, preferred_element_type=f32)
                # fold the output projection into the head loop: concat_h(o_h) @ Wp
                acc = acc + jnp.dot(o.astype(bf16), proj_w[hd * dk:(hd + 1) * dk, :],
                                    preferred_element_type=f32)
            # residual add (attention/proj dropout & DropPath are identity at eval)
            h_ref[r0:r0 + S_pad, :] = h[r0:r0 + S_pad, :] + acc + proj_b

        # ====================== MoE sub-block (Top2Router, eval mode) ===============
        h = h_ref[...]
        n2 = _layernorm(h, ln2_g_ref[blk], ln2_b_ref[blk])
        logits = jnp.dot(n2, gate_w_ref[blk], preferred_element_type=f32)   # (nt, E)
        logits = logits - jnp.max(logits, axis=-1, keepdims=True)
        ge = jnp.exp(logits)
        probs = ge / jnp.sum(ge, axis=-1, keepdims=True)

        # top-1 / top-2 experts (first-index tie-break == torch argmax + one_hot)
        m1 = jnp.max(probs, axis=-1, keepdims=True)
        idx1 = jnp.min(jnp.where(probs == m1, lane, float(E)), axis=-1, keepdims=True)
        mask1 = (lane == idx1).astype(f32) * valid          # padded tokens never routed
        probs_wo1 = jnp.where(lane == idx1, -1.0, probs)
        m2 = jnp.max(probs_wo1, axis=-1, keepdims=True)
        idx2 = jnp.min(jnp.where(probs_wo1 == m2, lane, float(E)), axis=-1, keepdims=True)
        mask2 = (lane == idx2).astype(f32) * valid

        # capacity ranks: cumsum over tokens == lower-triangular matmul on the MXU
        rank1 = jnp.dot(tril, mask1, preferred_element_type=f32) - 1.0
        rank2 = (jnp.dot(tril, mask2, preferred_element_type=f32) - 1.0
                 + jnp.sum(mask1, axis=0, keepdims=True))
        mask1 = mask1 * (rank1 < capacity).astype(f32)      # drop_tks=True
        mask2 = mask2 * (rank2 < capacity).astype(f32)
        pos1 = jnp.sum(mask1 * rank1, axis=-1, keepdims=True)
        pos2 = jnp.sum(mask2 * rank2, axis=-1, keepdims=True)
        sc1 = (slot == pos1).astype(f32)                    # (nt, C_pad) slot one-hot
        sc2 = (slot == pos2).astype(f32)
        # TODO(synk): MOE_CONTEXT load-balance aux loss is training-only bookkeeping with
        #             no effect on the logits; it is skipped at inference.

        n2d = n2 * valid
        moe = jnp.zeros((nt, D), f32)
        for e in range(E):                                   # static unroll over experts
            m1e = mask1[:, e:e + 1]
            m2e = mask2[:, e:e + 1]
            pe = probs[:, e:e + 1]
            sec_e = m1e * sc1 + m2e * sc2                    # (nt, C) 0/1 dispatch mask
            disp = jnp.dot(sec_e.T, n2d, preferred_element_type=f32)       # (C, D)
            hid = jnp.dot(disp.astype(bf16), ew1_ref[e],
                          preferred_element_type=f32) + eb1_ref[e]
            hid = _gelu_exact(hid)
            eout = jnp.dot(hid.astype(bf16), ew2_ref[e],
                           preferred_element_type=f32) + eb2_ref[e]        # (C, D)
            comb_e = (m1e * pe) * sc1 + (m2e * pe) * sc2     # gate-weighted combine
            moe = moe + jnp.dot(comb_e, eout, preferred_element_type=f32)
        h_ref[...] = h + moe

    # ---------------- final LayerNorm, masked mean-pool, classifier -----------------
    hf = _layernorm(h_ref[...], norm_g_ref[...], norm_b_ref[...])
    pooled = jnp.dot(pool_ref[...], hf, preferred_element_type=f32)        # (B, D)
    out_ref[...] = jnp.dot(pooled.astype(bf16), cls_w_ref[...],
                           preferred_element_type=f32) + cls_b_ref[...]


# ----------------------------------------------------------------------------- model
class Config:
    img_size = 16
    patch_size = 4
    in_chans = 3
    num_classes = 10
    depth = 2
    hidden_size = 32
    num_heads = 4
    d_kv = 8
    d_ff = 64
    num_experts = 4
    capacity_factor_eval = 2.0
    min_capacity = 4


def init_params(key, cfg):
    D = cfg.hidden_size
    p = cfg.patch_size
    nP = (cfg.img_size // p) ** 2
    inner = cfg.num_heads * cfg.d_kv
    E = cfg.num_experts
    keys = jax.random.split(key, 8)

    def nrm(k, shape, scale=0.02):
        return scale * jax.random.normal(k, shape, dtype=jnp.float32)

    return dict(
        # VanillaPatchEmbedding: conv weight (D, C, p, p) flattened to (C*p*p, D)
        patch_w=nrm(keys[0], (cfg.in_chans * p * p, D)).astype(jnp.bfloat16),
        patch_b=nrm(keys[1], (1, D)),
        cls_token=jnp.zeros((1, 1, D), jnp.float32),
        pos_embed=jnp.zeros((1, nP + 1, D), jnp.float32),
        # shared SelfAttentionForMoe (shared across depth -- "Widenet")
        qkv_w=nrm(keys[2], (D, 3 * inner)).astype(jnp.bfloat16),
        qkv_b=jnp.zeros((1, 3 * inner), jnp.float32),
        proj_w=nrm(keys[3], (inner, D)).astype(jnp.bfloat16),
        proj_b=jnp.zeros((1, D), jnp.float32),
        # shared FFN experts
        expert_w1=nrm(keys[4], (E, D, cfg.d_ff)).astype(jnp.bfloat16),
        expert_b1=jnp.zeros((E, 1, cfg.d_ff), jnp.float32),
        expert_w2=nrm(keys[5], (E, cfg.d_ff, D)).astype(jnp.bfloat16),
        expert_b2=jnp.zeros((E, 1, D), jnp.float32),
        # per-block LayerNorms + MoeLayer gates (Linear(D, E, bias=False))
        ln1_g=jnp.ones((cfg.depth, 1, D), jnp.float32),
        ln1_b=jnp.zeros((cfg.depth, 1, D), jnp.float32),
        ln2_g=jnp.ones((cfg.depth, 1, D), jnp.float32),
        ln2_b=jnp.zeros((cfg.depth, 1, D), jnp.float32),
        gate_w=nrm(keys[6], (cfg.depth, D, E)),
        # final norm + zero-init classifier
        norm_g=jnp.ones((1, D), jnp.float32),
        norm_b=jnp.zeros((1, D), jnp.float32),
        cls_w=jnp.zeros((D, cfg.num_classes), jnp.bfloat16),
        cls_b=jnp.zeros((1, cfg.num_classes), jnp.float32),
    )


def widenet_forward(params, x, cfg):
    B = x.shape[0]
    D = cfg.hidden_size
    p = cfg.patch_size
    nh = cfg.img_size // p
    nP = nh * nh
    S_real = nP + 1
    S_pad = _round_up(S_real, 8)            # pad tokens to a sublane multiple
    H, dk, E = cfg.num_heads, cfg.d_kv, cfg.num_experts
    nt = B * S_pad
    NC = cfg.num_classes

    # Top2Router eval capacity (computed from the REAL token count)
    nt_real = B * S_real
    capacity = int(math.floor(cfg.capacity_factor_eval * nt_real / E))
    capacity += capacity % 2
    capacity = max(capacity, cfg.min_capacity)
    C_pad = _round_up(capacity, 8)

    # ---- XLA glue: patch unfold (pure layout) --------------------------------------
    patches = x.reshape(B, cfg.in_chans, nh, p, nh, p)
    patches = patches.transpose(0, 2, 4, 1, 3, 5).reshape(B * nP, cfg.in_chans * p * p)

    # ---- constant scaffolds (tiny, constant-folded under jit) ----------------------
    base = params["pos_embed"][0]
    base = base.at[0, :].add(params["cls_token"][0, 0, :])
    base = jnp.pad(base, ((0, S_pad - S_real), (0, 0)))
    h_base = jnp.tile(base, (B, 1))                                         # (nt, D)

    r = jnp.arange(nt)
    c = jnp.arange(B * nP)
    place = ((r[:, None] // S_pad == c[None, :] // nP)
             & (r[:, None] % S_pad == c[None, :] % nP + 1)).astype(jnp.float32)
    valid = ((r % S_pad) < S_real).astype(jnp.float32)[:, None]             # (nt, 1)
    kbias = jnp.where(jnp.arange(S_pad) < S_real, 0.0, -1e9
                      ).astype(jnp.float32)[None, :]                        # (1, S_pad)
    tril = (r[None, :] <= r[:, None]).astype(jnp.float32)                   # (nt, nt)
    lane = jnp.tile(jnp.arange(E, dtype=jnp.float32)[None, :], (nt, 1))
    slot = jnp.tile(jnp.arange(C_pad, dtype=jnp.float32)[None, :], (nt, 1))
    pool = ((r[None, :] // S_pad == jnp.arange(B)[:, None])
            & ((r[None, :] % S_pad) < S_real)).astype(jnp.float32) / S_real  # (B, nt)

    kernel = functools.partial(
        _widenet_kernel, B=B, S_pad=S_pad, D=D, H=H, dk=dk, E=E,
        depth=cfg.depth, capacity=float(capacity))

    inputs = (
        patches, place, h_base, valid, kbias, tril, lane, slot, pool,
        params["patch_w"], params["patch_b"],
        params["qkv_w"], params["qkv_b"],
        params["proj_w"], params["proj_b"],
        params["ln1_g"], params["ln1_b"], params["ln2_g"], params["ln2_b"],
        params["gate_w"],
        params["expert_w1"], params["expert_b1"],
        params["expert_w2"], params["expert_b2"],
        params["norm_g"], params["norm_b"],
        params["cls_w"], params["cls_b"],
    )

    def fs(shape):
        n = len(shape)
        return pl.BlockSpec(shape, lambda i, n=n: (0,) * n)

    # TODO(synk): on v7x the two TensorCores stay idle/busy as one unit here -- the
    #             Top2 router couples all batch tokens (shared capacity), so the fused
    #             kernel cannot be sharded over a parallel grid axis without changing
    #             routing semantics.
    return pl.pallas_call(
        kernel,
        out_shape=jax.ShapeDtypeStruct((B, NC), jnp.float32),
        grid=(1,),
        in_specs=[fs(a.shape) for a in inputs],
        out_specs=pl.BlockSpec((B, NC), lambda i: (0, 0)),
        scratch_shapes=[pltpu.VMEM((nt, D), jnp.float32)],   # residual stream
        compiler_params=pltpu.CompilerParams(
            dimension_semantics=("arbitrary",)),
    )(*inputs)


if __name__ == "__main__":
    cfg = Config()
    key = jax.random.PRNGKey(0)
    pkey, xkey = jax.random.split(key)
    params = init_params(pkey, cfg)
    x = jax.random.normal(xkey, (2, cfg.in_chans, cfg.img_size, cfg.img_size),
                          dtype=jnp.float32)
    fwd = jax.jit(functools.partial(widenet_forward, cfg=cfg))
    logits = fwd(params, x)
    jax.block_until_ready(logits)
    assert logits.shape == (2, cfg.num_classes)
    assert bool(jnp.all(jnp.isfinite(logits)))
    print("KERNEL_OK")
</pallas_src>

<mosaic_0001>
module attributes {stable_mosaic.version = 11 : i64} {
  func.func @_widenet_kernel(%arg0: i32, %arg1: memref<32x48xf32, #tpu.memory_space<vmem>>, %arg2: memref<48x32xf32, #tpu.memory_space<vmem>>, %arg3: memref<48x32xf32, #tpu.memory_space<vmem>>, %arg4: memref<48x1xf32, #tpu.memory_space<vmem>>, %arg5: memref<1x24xf32, #tpu.memory_space<vmem>>, %arg6: memref<48x48xf32, #tpu.memory_space<vmem>>, %arg7: memref<48x4xf32, #tpu.memory_space<vmem>>, %arg8: memref<48x24xf32, #tpu.memory_space<vmem>>, %arg9: memref<2x48xf32, #tpu.memory_space<vmem>>, %arg10: memref<48x32xbf16, #tpu.memory_space<vmem>>, %arg11: memref<1x32xf32, #tpu.memory_space<vmem>>, %arg12: memref<32x96xbf16, #tpu.memory_space<vmem>>, %arg13: memref<1x96xf32, #tpu.memory_space<vmem>>, %arg14: memref<32x32xbf16, #tpu.memory_space<vmem>>, %arg15: memref<1x32xf32, #tpu.memory_space<vmem>>, %arg16: memref<2x1x32xf32, #tpu.memory_space<vmem>>, %arg17: memref<2x1x32xf32, #tpu.memory_space<vmem>>, %arg18: memref<2x1x32xf32, #tpu.memory_space<vmem>>, %arg19: memref<2x1x32xf32, #tpu.memory_space<vmem>>, %arg20: memref<2x32x4xf32, #tpu.memory_space<vmem>>, %arg21: memref<4x32x64xbf16, #tpu.memory_space<vmem>>, %arg22: memref<4x1x64xf32, #tpu.memory_space<vmem>>, %arg23: memref<4x64x32xbf16, #tpu.memory_space<vmem>>, %arg24: memref<4x1x32xf32, #tpu.memory_space<vmem>>, %arg25: memref<1x32xf32, #tpu.memory_space<vmem>>, %arg26: memref<1x32xf32, #tpu.memory_space<vmem>>, %arg27: memref<32x10xbf16, #tpu.memory_space<vmem>>, %arg28: memref<1x10xf32, #tpu.memory_space<vmem>>, %arg29: memref<2x10xf32, #tpu.memory_space<vmem>>, %arg30: memref<48x32xf32, #tpu.memory_space<vmem>>) attributes {dimension_semantics = [#tpu.dimension_semantics<arbitrary>], iteration_bounds = array<i64: 1>, scalar_prefetch = 0 : i64, scratch_operands = 1 : i64, tpu.core_type = #tpu.core_type<tc>, window_params = [{pipeline_mode = #tpu.pipeline_mode<synchronous>, transform_indices = @transform_0, window_bounds = array<i64: 32, 48>}, {pipeline_mode = #tpu.pipeline_mode<synchronous>, transform_indices = @transform_1, window_bounds = array<i64: 48, 32>}, {pipeline_mode = #tpu.pipeline_mode<synchronous>, transform_indices = @transform_2, window_bounds = array<i64: 48, 32>}, {pipeline_mode = #tpu.pipeline_mode<synchronous>, transform_indices = @transform_3, window_bounds = array<i64: 48, 1>}, {pipeline_mode = #tpu.pipeline_mode<synchronous>, transform_indices = @transform_4, window_bounds = array<i64: 1, 24>}, {pipeline_mode = #tpu.pipeline_mode<synchronous>, transform_indices = @transform_5, window_bounds = array<i64: 48, 48>}, {pipeline_mode = #tpu.pipeline_mode<synchronous>, transform_indices = @transform_6, window_bounds = array<i64: 48, 4>}, {pipeline_mode = #tpu.pipeline_mode<synchronous>, transform_indices = @transform_7, window_bounds = array<i64: 48, 24>}, {pipeline_mode = #tpu.pipeline_mode<synchronous>, transform_indices = @transform_8, window_bounds = array<i64: 2, 48>}, {pipeline_mode = #tpu.pipeline_mode<synchronous>, transform_indices = @transform_9, window_bounds = array<i64: 48, 32>}, {pipeline_mode = #tpu.pipeline_mode<synchronous>, transform_indices = @transform_10, window_bounds = array<i64: 1, 32>}, {pipeline_mode = #tpu.pipeline_mode<synchronous>, transform_indices = @transform_11, window_bounds = array<i64: 32, 96>}, {pipeline_mode = #tpu.pipeline_mode<synchronous>, transform_indices = @transform_12, window_bounds = array<i64: 1, 96>}, {pipeline_mode = #tpu.pipeline_mode<synchronous>, transform_indices = @transform_13, window_bounds = array<i64: 32, 32>}, {pipeline_mode = #tpu.pipeline_mode<synchronous>, transform_indices = @transform_14, window_bounds = array<i64: 1, 32>}, {pipeline_mode = #tpu.pipeline_mode<synchronous>, transform_indices = @transform_15, window_bounds = array<i64: 2, 1, 32>}, {pipeline_mode = #tpu.pipeline_mode<synchronous>, transform_indices = @transform_16, window_bounds = array<i64: 2, 1, 32>}, {pipeline_mode = #tpu.pipeline_mode<synchronous>, transform_indices = @transform_17, window_bounds = array<i64: 2, 1, 32>}, {pipeline_mode = #tpu.pipeline_mode<synchronous>, transform_indices = @transform_18, window_bounds = array<i64: 2, 1, 32>}, {pipeline_mode = #tpu.pipeline_mode<synchronous>, transform_indices = @transform_19, window_bounds = array<i64: 2, 32, 4>}, {pipeline_mode = #tpu.pipeline_mode<synchronous>, transform_indices = @transform_20, window_bounds = array<i64: 4, 32, 64>}, {pipeline_mode = #tpu.pipeline_mode<synchronous>, transform_indices = @transform_21, window_bounds = array<i64: 4, 1, 64>}, {pipeline_mode = #tpu.pipeline_mode<synchronous>, transform_indices = @transform_22, window_bounds = array<i64: 4, 64, 32>}, {pipeline_mode = #tpu.pipeline_mode<synchronous>, transform_indices = @transform_23, window_bounds = array<i64: 4, 1, 32>}, {pipeline_mode = #tpu.pipeline_mode<synchronous>, transform_indices = @transform_24, window_bounds = array<i64: 1, 32>}, {pipeline_mode = #tpu.pipeline_mode<synchronous>, transform_indices = @transform_25, window_bounds = array<i64: 1, 32>}, {pipeline_mode = #tpu.pipeline_mode<synchronous>, transform_indices = @transform_26, window_bounds = array<i64: 32, 10>}, {pipeline_mode = #tpu.pipeline_mode<synchronous>, transform_indices = @transform_27, window_bounds = array<i64: 1, 10>}, {pipeline_mode = #tpu.pipeline_mode<synchronous>, transform_indices = @transform_28, window_bounds = array<i64: 2, 10>}]} {
    %c0 = arith.constant 0 : index
    %c0_0 = arith.constant 0 : index
    %0 = vector.load %arg1[%c0, %c0_0] : memref<32x48xf32, #tpu.memory_space<vmem>>, vector<32x48xf32>
    %1 = arith.truncf %0 : vector<32x48xf32> to vector<32x48xbf16>
    %c0_1 = arith.constant 0 : index
    %c0_2 = arith.constant 0 : index
    %2 = vector.load %arg10[%c0_1, %c0_2] : memref<48x32xbf16, #tpu.memory_space<vmem>>, vector<48x32xbf16>
    %cst = arith.constant dense<0.000000e+00> : vector<32x32xf32>
    %3 = tpu.matmul %1, %2, %cst {dimension_numbers = #tpu.dot_dimension_numbers<[1], [0], [0], [1], [0, 0, 1, 1], [], []>} : vector<32x48xbf16>, vector<48x32xbf16>, vector<32x32xf32> -> vector<32x32xf32>
    %c0_3 = arith.constant 0 : index
    %c0_4 = arith.constant 0 : index
    %4 = vector.load %arg11[%c0_3, %c0_4] : memref<1x32xf32, #tpu.memory_space<vmem>>, vector<1x32xf32>
    %5 = vector.broadcast %4 : vector<1x32xf32> to vector<32x32xf32>
    %6 = arith.addf %3, %5 : vector<32x32xf32>
    %c0_5 = arith.constant 0 : index
    %c0_6 = arith.constant 0 : index
    %7 = vector.load %arg3[%c0_5, %c0_6] : memref<48x32xf32, #tpu.memory_space<vmem>>, vector<48x32xf32>
    %c0_7 = arith.constant 0 : index
    %c0_8 = arith.constant 0 : index
    %8 = vector.load %arg2[%c0_7, %c0_8] : memref<48x32xf32, #tpu.memory_space<vmem>>, vector<48x32xf32>
    %cst_9 = arith.constant dense<0.000000e+00> : vector<48x32xf32>
    %9 = tpu.matmul %8, %6, %cst_9 {dimension_numbers = #tpu.dot_dimension_numbers<[1], [0], [0], [1], [0, 0, 1, 1], [], []>} : vector<48x32xf32>, vector<32x32xf32>, vector<48x32xf32> -> vector<48x32xf32>
    %10 = arith.addf %7, %9 : vector<48x32xf32>
    %c0_10 = arith.constant 0 : index
    %c0_11 = arith.constant 0 : index
    %11 = vector.load %arg30[%c0_10, %c0_11] : memref<48x32xf32, #tpu.memory_space<vmem>>, vector<48x32xf32>
    tpu.vector_store %arg30[%c0_10, %c0_11], %10 {strides = array<i32>} : memref<48x32xf32, #tpu.memory_space<vmem>>, vector<48x32xf32>,
    %c0_12 = arith.constant 0 : index
    %c0_13 = arith.constant 0 : index
    %12 = vector.load %arg4[%c0_12, %c0_13] : memref<48x1xf32, #tpu.memory_space<vmem>>, vector<48x1xf32>
    %c0_14 = arith.constant 0 : index
    %c0_15 = arith.constant 0 : index
    %13 = vector.load %arg5[%c0_14, %c0_15] : memref<1x24xf32, #tpu.memory_space<vmem>>, vector<1x24xf32>
    %c0_16 = arith.constant 0 : index
    %c0_17 = arith.constant 0 : index
    %14 = vector.load %arg6[%c0_16, %c0_17] : memref<48x48xf32, #tpu.memory_space<vmem>>, vector<48x48xf32>
    %c0_18 = arith.constant 0 : index
    %c0_19 = arith.constant 0 : index
    %15 = vector.load %arg7[%c0_18, %c0_19] : memref<48x4xf32, #tpu.memory_space<vmem>>, vector<48x4xf32>
    %c0_20 = arith.constant 0 : index
    %c0_21 = arith.constant 0 : index
    %16 = vector.load %arg8[%c0_20, %c0_21] : memref<48x24xf32, #tpu.memory_space<vmem>>, vector<48x24xf32>
    %c0_22 = arith.constant 0 : index
    %c0_23 = arith.constant 0 : index
    %17 = vector.load %arg14[%c0_22, %c0_23] : memref<32x32xbf16, #tpu.memory_space<vmem>>, vector<32x32xbf16>
    %c0_24 = arith.constant 0 : index
    %c0_25 = arith.constant 0 : index
    %18 = vector.load %arg15[%c0_24, %c0_25] : memref<1x32xf32, #tpu.memory_space<vmem>>, vector<1x32xf32>
    %c0_26 = arith.constant 0 : index
    %c0_27 = arith.constant 0 : index
    %19 = vector.load %arg30[%c0_26, %c0_27] : memref<48x32xf32, #tpu.memory_space<vmem>>, vector<48x32xf32>
    %c0_28 = arith.constant 0 : index
    %c0_29 = arith.constant 0 : index
    %c0_30 = arith.constant 0 : index
    %20 = vector.load %arg16[%c0_28, %c0_29, %c0_30] : memref<2x1x32xf32, #tpu.memory_space<vmem>>, vector<1x1x32xf32>
    %21 = vector.shape_cast %20 : vector<1x1x32xf32> to vector<1x32xf32>
    %c0_31 = arith.constant 0 : index
    %c0_32 = arith.constant 0 : index
    %c0_33 = arith.constant 0 : index
    %22 = vector.load %arg17[%c0_31, %c0_32, %c0_33] : memref<2x1x32xf32, #tpu.memory_space<vmem>>, vector<1x1x32xf32>
    %23 = vector.shape_cast %22 : vector<1x1x32xf32> to vector<1x32xf32>
    %cst_34 = arith.constant dense<0.000000e+00> : vector<48xf32>
    %24 = vector.multi_reduction <add>, %19, %cst_34 [1] : vector<48x32xf32> to vector<48xf32>
    %25 = vector.shape_cast %24 : vector<48xf32> to vector<48x1xf32>
    %cst_35 = arith.constant 3.200000e+01 : f32
    %26 = vector.broadcast %cst_35 : f32 to vector<48x1xf32>
    %27 = arith.divf %25, %26 : vector<48x1xf32>
    %28 = vector.broadcast %27 : vector<48x1xf32> to vector<48x32xf32>
    %29 = arith.subf %19, %28 : vector<48x32xf32>
    %30 = arith.mulf %29, %29 : vector<48x32xf32>
    %cst_36 = arith.constant dense<0.000000e+00> : vector<48xf32>
    %31 = vector.multi_reduction <add>, %30, %cst_36 [1] : vector<48x32xf32> to vector<48xf32>
    %32 = vector.shape_cast %31 : vector<48xf32> to vector<48x1xf32>
    %cst_37 = arith.constant 3.200000e+01 : f32
    %33 = vector.broadcast %cst_37 : f32 to vector<48x1xf32>
    %34 = arith.divf %32, %33 : vector<48x1xf32>
    %cst_38 = arith.constant 9.99999997E-7 : f32
    %35 = vector.broadcast %cst_38 : f32 to vector<48x1xf32>
    %36 = arith.addf %34, %35 : vector<48x1xf32>
    %37 = math.rsqrt %36 : vector<48x1xf32>
    %38 = vector.broadcast %37 : vector<48x1xf32> to vector<48x32xf32>
    %39 = arith.mulf %29, %38 : vector<48x32xf32>
    %40 = vector.broadcast %21 : vector<1x32xf32> to vector<48x32xf32>
    %41 = arith.mulf %39, %40 : vector<48x32xf32>
    %42 = vector.broadcast %23 : vector<1x32xf32> to vector<48x32xf32>
    %43 = arith.addf %41, %42 : vector<48x32xf32>
    %44 = arith.truncf %43 : vector<48x32xf32> to vector<48x32xbf16>
    %c0_39 = arith.constant 0 : index
    %c0_40 = arith.constant 0 : index
    %45 = vector.load %arg12[%c0_39, %c0_40] : memref<32x96xbf16, #tpu.memory_space<vmem>>, vector<32x96xbf16>
    %cst_41 = arith.constant dense<0.000000e+00> : vector<48x96xf32>
    %46 = tpu.matmul %44, %45, %cst_41 {dimension_numbers = #tpu.dot_dimension_numbers<[1], [0], [0], [1], [0, 0, 1, 1], [], []>} : vector<48x32xbf16>, vector<32x96xbf16>, vector<48x96xf32> -> vector<48x96xf32>
    %c0_42 = arith.constant 0 : index
    %c0_43 = arith.constant 0 : index
    %47 = vector.load %arg13[%c0_42, %c0_43] : memref<1x96xf32, #tpu.memory_space<vmem>>, vector<1x96xf32>
    %48 = vector.broadcast %47 : vector<1x96xf32> to vector<48x96xf32>
    %49 = arith.addf %46, %48 : vector<48x96xf32>
    %50 = vector.extract_strided_slice %49 {offsets = [0, 0], sizes = [24, 96], strides = [1, 1]} : vector<48x96xf32> to vector<24x96xf32>
    %cst_44 = arith.constant 0.000000e+00 : f32
    %51 = vector.broadcast %cst_44 : f32 to vector<24x32xf32>
    %52 = vector.extract_strided_slice %50 {offsets = [0, 0], sizes = [24, 8], strides = [1, 1]} : vector<24x96xf32> to vector<24x8xf32>
    %53 = arith.truncf %52 : vector<24x8xf32> to vector<24x8xbf16>
    %54 = vector.extract_strided_slice %50 {offsets = [0, 32], sizes = [24, 8], strides = [1, 1]} : vector<24x96xf32> to vector<24x8xf32>
    %55 = arith.truncf %54 : vector<24x8xf32> to vector<24x8xbf16>
    %56 = vector.extract_strided_slice %50 {offsets = [0, 64], sizes = [24, 8], strides = [1, 1]} : vector<24x96xf32> to vector<24x8xf32>
    %57 = arith.truncf %56 : vector<24x8xf32> to vector<24x8xbf16>
    %cst_45 = arith.constant dense<0.000000e+00> : vector<24x24xf32>
    %58 = tpu.matmul %53, %55, %cst_45 {dimension_numbers = #tpu.dot_dimension_numbers<[1], [1], [0], [0], [0, 0, 1, 0], [], []>} : vector<24x8xbf16>, vector<24x8xbf16>, vector<24x24xf32> -> vector<24x24xf32>
    %cst_46 = arith.constant 0.353553385 : f32
    %59 = vector.broadcast %cst_46 : f32 to vector<24x24xf32>
    %60 = arith.mulf %58, %59 : vector<24x24xf32>
    %61 = vector.broadcast %13 : vector<1x24xf32> to vector<24x24xf32>
    %62 = arith.addf %60, %61 : vector<24x24xf32>
    %cst_47 = arith.constant dense<0xFF800000> : vector<24xf32>
    %63 = vector.multi_reduction <maximumf>, %62, %cst_47 [1] : vector<24x24xf32> to vector<24xf32>
    %64 = vector.shape_cast %63 : vector<24xf32> to vector<24x1xf32>
    %65 = vector.broadcast %64 : vector<24x1xf32> to vector<24x24xf32>
    %66 = arith.subf %62, %65 : vector<24x24xf32>
    %67 = math.exp %66 : vector<24x24xf32>
    %cst_48 = arith.constant dense<0.000000e+00> : vector<24xf32>
    %68 = vector.multi_reduction <add>, %67, %cst_48 [1] : vector<24x24xf32> to vector<24xf32>
    %69 = vector.shape_cast %68 : vector<24xf32> to vector<24x1xf32>
    %70 = tpu.reciprocal %69 {approx = true} : vector<24x1xf32> -> vector<24x1xf32>
    %71 = vector.broadcast %70 : vector<24x1xf32> to vector<24x24xf32>
    %72 = arith.mulf %67, %71 : vector<24x24xf32>
    %73 = arith.truncf %72 : vector<24x24xf32> to vector<24x24xbf16>
    %cst_49 = arith.constant dense<0.000000e+00> : vector<24x8xf32>
    %74 = tpu.matmul %73, %57, %cst_49 {dimension_numbers = #tpu.dot_dimension_numbers<[1], [0], [0], [1], [0, 0, 1, 1], [], []>} : vector<24x24xbf16>, vector<24x8xbf16>, vector<24x8xf32> -> vector<24x8xf32>
    %75 = arith.truncf %74 : vector<24x8xf32> to vector<24x8xbf16>
    %76 = vector.extract_strided_slice %17 {offsets = [0, 0], sizes = [8, 32], strides = [1, 1]} : vector<32x32xbf16> to vector<8x32xbf16>
    %cst_50 = arith.constant dense<0.000000e+00> : vector<24x32xf32>
    %77 = tpu.matmul %75, %76, %cst_50 {dimension_numbers = #tpu.dot_dimension_numbers<[1], [0], [0], [1], [0, 0, 1, 1], [], []>} : vector<24x8xbf16>, vector<8x32xbf16>, vector<24x32xf32> -> vector<24x32xf32>
    %78 = arith.addf %51, %77 : vector<24x32xf32>
    %79 = vector.extract_strided_slice %50 {offsets = [0, 8], sizes = [24, 8], strides = [1, 1]} : vector<24x96xf32> to vector<24x8xf32>
    %80 = arith.truncf %79 : vector<24x8xf32> to vector<24x8xbf16>
    %81 = vector.extract_strided_slice %50 {offsets = [0, 40], sizes = [24, 8], strides = [1, 1]} : vector<24x96xf32> to vector<24x8xf32>
    %82 = arith.truncf %81 : vector<24x8xf32> to vector<24x8xbf16>
    %83 = vector.extract_strided_slice %50 {offsets = [0, 72], sizes = [24, 8], strides = [1, 1]} : vector<24x96xf32> to vector<24x8xf32>
    %84 = arith.truncf %83 : vector<24x8xf32> to vector<24x8xbf16>
    %cst_51 = arith.constant dense<0.000000e+00> : vector<24x24xf32>
    %85 = tpu.matmul %80, %82, %cst_51 {dimension_numbers = #tpu.dot_dimension_numbers<[1], [1], [0], [0], [0, 0, 1, 0], [], []>} : vector<24x8xbf16>, vector<24x8xbf16>, vector<24x24xf32> -> vector<24x24xf32>
    %cst_52 = arith.constant 0.353553385 : f32
    %86 = vector.broadcast %cst_52 : f32 to vector<24x24xf32>
    %87 = arith.mulf %85, %86 : vector<24x24xf32>
    %88 = vector.broadcast %13 : vector<1x24xf32> to vector<24x24xf32>
    %89 = arith.addf %87, %88 : vector<24x24xf32>
    %cst_53 = arith.constant dense<0xFF800000> : vector<24xf32>
    %90 = vector.multi_reduction <maximumf>, %89, %cst_53 [1] : vector<24x24xf32> to vector<24xf32>
    %91 = vector.shape_cast %90 : vector<24xf32> to vector<24x1xf32>
    %92 = vector.broadcast %91 : vector<24x1xf32> to vector<24x24xf32>
    %93 = arith.subf %89, %92 : vector<24x24xf32>
    %94 = math.exp %93 : vector<24x24xf32>
    %cst_54 = arith.constant dense<0.000000e+00> : vector<24xf32>
    %95 = vector.multi_reduction <add>, %94, %cst_54 [1] : vector<24x24xf32> to vector<24xf32>
    %96 = vector.shape_cast %95 : vector<24xf32> to vector<24x1xf32>
    %97 = tpu.reciprocal %96 {approx = true} : vector<24x1xf32> -> vector<24x1xf32>
    %98 = vector.broadcast %97 : vector<24x1xf32> to vector<24x24xf32>
    %99 = arith.mulf %94, %98 : vector<24x24xf32>
    %100 = arith.truncf %99 : vector<24x24xf32> to vector<24x24xbf16>
    %cst_55 = arith.constant dense<0.000000e+00> : vector<24x8xf32>
    %101 = tpu.matmul %100, %84, %cst_55 {dimension_numbers = #tpu.dot_dimension_numbers<[1], [0], [0], [1], [0, 0, 1, 1], [], []>} : vector<24x24xbf16>, vector<24x8xbf16>, vector<24x8xf32> -> vector<24x8xf32>
    %102 = arith.truncf %101 : vector<24x8xf32> to vector<24x8xbf16>
    %103 = vector.extract_strided_slice %17 {offsets = [8, 0], sizes = [8, 32], strides = [1, 1]} : vector<32x32xbf16> to vector<8x32xbf16>
    %cst_56 = arith.constant dense<0.000000e+00> : vector<24x32xf32>
    %104 = tpu.matmul %102, %103, %cst_56 {dimension_numbers = #tpu.dot_dimension_numbers<[1], [0], [0], [1], [0, 0, 1, 1], [], []>} : vector<24x8xbf16>, vector<8x32xbf16>, vector<24x32xf32> -> vector<24x32xf32>
    %105 = arith.addf %78, %104 : vector<24x32xf32>
    %106 = vector.extract_strided_slice %50 {offsets = [0, 16], sizes = [24, 8], strides = [1, 1]} : vector<24x96xf32> to vector<24x8xf32>
    %107 = arith.truncf %106 : vector<24x8xf32> to vector<24x8xbf16>
    %108 = vector.extract_strided_slice %50 {offsets = [0, 48], sizes = [24, 8], strides = [1, 1]} : vector<24x96xf32> to vector<24x8xf32>
    %109 = arith.truncf %108 : vector<24x8xf32> to vector<24x8xbf16>
    %110 = vector.extract_strided_slice %50 {offsets = [0, 80], sizes = [24, 8], strides = [1, 1]} : vector<24x96xf32> to vector<24x8xf32>
    %111 = arith.truncf %110 : vector<24x8xf32> to vector<24x8xbf16>
    %cst_57 = arith.constant dense<0.000000e+00> : vector<24x24xf32>
    %112 = tpu.matmul %107, %109, %cst_57 {dimension_numbers = #tpu.dot_dimension_numbers<[1], [1], [0], [0], [0, 0, 1, 0], [], []>} : vector<24x8xbf16>, vector<24x8xbf16>, vector<24x24xf32> -> vector<24x24xf32>
    %cst_58 = arith.constant 0.353553385 : f32
    %113 = vector.broadcast %cst_58 : f32 to vector<24x24xf32>
    %114 = arith.mulf %112, %113 : vector<24x24xf32>
    %115 = vector.broadcast %13 : vector<1x24xf32> to vector<24x24xf32>
    %116 = arith.addf %114, %115 : vector<24x24xf32>
    %cst_59 = arith.constant dense<0xFF800000> : vector<24xf32>
    %117 = vector.multi_reduction <maximumf>, %116, %cst_59 [1] : vector<24x24xf32> to vector<24xf32>
    %118 = vector.shape_cast %117 : vector<24xf32> to vector<24x1xf32>
    %119 = vector.broadcast %118 : vector<24x1xf32> to vector<24x24xf32>
    %120 = arith.subf %116, %119 : vector<24x24xf32>
    %121 = math.exp %120 : vector<24x24xf32>
    %cst_60 = arith.constant dense<0.000000e+00> : vector<24xf32>
    %122 = vector.multi_reduction <add>, %121, %cst_60 [1] : vector<24x24xf32> to vector<24xf32>
    %123 = vector.shape_cast %122 : vector<24xf32> to vector<24x1xf32>
    %124 = tpu.reciprocal %123 {approx = true} : vector<24x1xf32> -> vector<24x1xf32>
    %125 = vector.broadcast %124 : vector<24x1xf32> to vector<24x24xf32>
    %126 = arith.mulf %121, %125 : vector<24x24xf32>
    %127 = arith.truncf %126 : vector<24x24xf32> to vector<24x24xbf16>
    %cst_61 = arith.constant dense<0.000000e+00> : vector<24x8xf32>
    %128 = tpu.matmul %127, %111, %cst_61 {dimension_numbers = #tpu.dot_dimension_numbers<[1], [0], [0], [1], [0, 0, 1, 1], [], []>} : vector<24x24xbf16>, vector<24x8xbf16>, vector<24x8xf32> -> vector<24x8xf32>
    %129 = arith.truncf %128 : vector<24x8xf32> to vector<24x8xbf16>
    %130 = vector.extract_strided_slice %17 {offsets = [16, 0], sizes = [8, 32], strides = [1, 1]} : vector<32x32xbf16> to vector<8x32xbf16>
    %cst_62 = arith.constant dense<0.000000e+00> : vector<24x32xf32>
    %131 = tpu.matmul %129, %130, %cst_62 {dimension_numbers = #tpu.dot_dimension_numbers<[1], [0], [0], [1], [0, 0, 1, 1], [], []>} : vector<24x8xbf16>, vector<8x32xbf16>, vector<24x32xf32> -> vector<24x32xf32>
    %132 = arith.addf %105, %131 : vector<24x32xf32>
    %133 = vector.extract_strided_slice %50 {offsets = [0, 24], sizes = [24, 8], strides = [1, 1]} : vector<24x96xf32> to vector<24x8xf32>
    %134 = arith.truncf %133 : vector<24x8xf32> to vector<24x8xbf16>
    %135 = vector.extract_strided_slice %50 {offsets = [0, 56], sizes = [24, 8], strides = [1, 1]} : vector<24x96xf32> to vector<24x8xf32>
    %136 = arith.truncf %135 : vector<24x8xf32> to vector<24x8xbf16>
    %137 = vector.extract_strided_slice %50 {offsets = [0, 88], sizes = [24, 8], strides = [1, 1]} : vector<24x96xf32> to vector<24x8xf32>
    %138 = arith.truncf %137 : vector<24x8xf32> to vector<24x8xbf16>
    %cst_63 = arith.constant dense<0.000000e+00> : vector<24x24xf32>
    %139 = tpu.matmul %134, %136, %cst_63 {dimension_numbers = #tpu.dot_dimension_numbers<[1], [1], [0], [0], [0, 0, 1, 0], [], []>} : vector<24x8xbf16>, vector<24x8xbf16>, vector<24x24xf32> -> vector<24x24xf32>
    %cst_64 = arith.constant 0.353553385 : f32
    %140 = vector.broadcast %cst_64 : f32 to vector<24x24xf32>
    %141 = arith.mulf %139, %140 : vector<24x24xf32>
    %142 = vector.broadcast %13 : vector<1x24xf32> to vector<24x24xf32>
    %143 = arith.addf %141, %142 : vector<24x24xf32>
    %cst_65 = arith.constant dense<0xFF800000> : vector<24xf32>
    %144 = vector.multi_reduction <maximumf>, %143, %cst_65 [1] : vector<24x24xf32> to vector<24xf32>
    %145 = vector.shape_cast %144 : vector<24xf32> to vector<24x1xf32>
    %146 = vector.broadcast %145 : vector<24x1xf32> to vector<24x24xf32>
    %147 = arith.subf %143, %146 : vector<24x24xf32>
    %148 = math.exp %147 : vector<24x24xf32>
    %cst_66 = arith.constant dense<0.000000e+00> : vector<24xf32>
    %149 = vector.multi_reduction <add>, %148, %cst_66 [1] : vector<24x24xf32> to vector<24xf32>
    %150 = vector.shape_cast %149 : vector<24xf32> to vector<24x1xf32>
    %151 = tpu.reciprocal %150 {approx = true} : vector<24x1xf32> -> vector<24x1xf32>
    %152 = vector.broadcast %151 : vector<24x1xf32> to vector<24x24xf32>
    %153 = arith.mulf %148, %152 : vector<24x24xf32>
    %154 = arith.truncf %153 : vector<24x24xf32> to vector<24x24xbf16>
    %cst_67 = arith.constant dense<0.000000e+00> : vector<24x8xf32>
    %155 = tpu.matmul %154, %138, %cst_67 {dimension_numbers = #tpu.dot_dimension_numbers<[1], [0], [0], [1], [0, 0, 1, 1], [], []>} : vector<24x24xbf16>, vector<24x8xbf16>, vector<24x8xf32> -> vector<24x8xf32>
    %156 = arith.truncf %155 : vector<24x8xf32> to vector<24x8xbf16>
    %157 = vector.extract_strided_slice %17 {offsets = [24, 0], sizes = [8, 32], strides = [1, 1]} : vector<32x32xbf16> to vector<8x32xbf16>
    %cst_68 = arith.constant dense<0.000000e+00> : vector<24x32xf32>
    %158 = tpu.matmul %156, %157, %cst_68 {dimension_numbers = #tpu.dot_dimension_numbers<[1], [0], [0], [1], [0, 0, 1, 1], [], []>} : vector<24x8xbf16>, vector<8x32xbf16>, vector<24x32xf32> -> vector<24x32xf32>
    %159 = arith.addf %132, %158 : vector<24x32xf32>
    %160 = vector.extract_strided_slice %19 {offsets = [0, 0], sizes = [24, 32], strides = [1, 1]} : vector<48x32xf32> to vector<24x32xf32>
    %161 = arith.addf %160, %159 : vector<24x32xf32>
    %162 = vector.broadcast %18 : vector<1x32xf32> to vector<24x32xf32>
    %163 = arith.addf %161, %162 : vector<24x32xf32>
    %c0_69 = arith.constant 0 : index
    %c0_70 = arith.constant 0 : index
    %164 = vector.load %arg30[%c0_69, %c0_70] : memref<48x32xf32, #tpu.memory_space<vmem>>, vector<24x32xf32>
    tpu.vector_store %arg30[%c0_69, %c0_70], %163 {strides = array<i32>} : memref<48x32xf32, #tpu.memory_space<vmem>>, vector<24x32xf32>,
    %165 = vector.extract_strided_slice %49 {offsets = [24, 0], sizes = [24, 96], strides = [1, 1]} : vector<48x96xf32> to vector<24x96xf32>
    %cst_71 = arith.constant 0.000000e+00 : f32
    %166 = vector.broadcast %cst_71 : f32 to vector<24x32xf32>
    %167 = vector.extract_strided_slice %165 {offsets = [0, 0], sizes = [24, 8], strides = [1, 1]} : vector<24x96xf32> to vector<24x8xf32>
    %168 = arith.truncf %167 : vector<24x8xf32> to vector<24x8xbf16>
    %169 = vector.extract_strided_slice %165 {offsets = [0, 32], sizes = [24, 8], strides = [1, 1]} : vector<24x96xf32> to vector<24x8xf32>
    %170 = arith.truncf %169 : vector<24x8xf32> to vector<24x8xbf16>
    %171 = vector.extract_strided_slice %165 {offsets = [0, 64], sizes = [24, 8], strides = [1, 1]} : vector<24x96xf32> to vector<24x8xf32>
    %172 = arith.truncf %171 : vector<24x8xf32> to vector<24x8xbf16>
    %cst_72 = arith.constant dense<0.000000e+00> : vector<24x24xf32>
    %173 = tpu.matmul %168, %170, %cst_72 {dimension_numbers = #tpu.dot_dimension_numbers<[1], [1], [0], [0], [0, 0, 1, 0], [], []>} : vector<24x8xbf16>, vector<24x8xbf16>, vector<24x24xf32> -> vector<24x24xf32>
    %cst_73 = arith.constant 0.353553385 : f32
    %174 = vector.broadcast %cst_73 : f32 to vector<24x24xf32>
    %175 = arith.mulf %173, %174 : vector<24x24xf32>
    %176 = vector.broadcast %13 : vector<1x24xf32> to vector<24x24xf32>
    %177 = arith.addf %175, %176 : vector<24x24xf32>
    %cst_74 = arith.constant dense<0xFF800000> : vector<24xf32>
    %178 = vector.multi_reduction <maximumf>, %177, %cst_74 [1] : vector<24x24xf32> to vector<24xf32>
    %179 = vector.shape_cast %178 : vector<24xf32> to vector<24x1xf32>
    %180 = vector.broadcast %179 : vector<24x1xf32> to vector<24x24xf32>
    %181 = arith.subf %177, %180 : vector<24x24xf32>
    %182 = math.exp %181 : vector<24x24xf32>
    %cst_75 = arith.constant dense<0.000000e+00> : vector<24xf32>
    %183 = vector.multi_reduction <add>, %182, %cst_75 [1] : vector<24x24xf32> to vector<24xf32>
    %184 = vector.shape_cast %183 : vector<24xf32> to vector<24x1xf32>
    %185 = tpu.reciprocal %184 {approx = true} : vector<24x1xf32> -> vector<24x1xf32>
    %186 = vector.broadcast %185 : vector<24x1xf32> to vector<24x24xf32>
    %187 = arith.mulf %182, %186 : vector<24x24xf32>
    %188 = arith.truncf %187 : vector<24x24xf32> to vector<24x24xbf16>
    %cst_76 = arith.constant dense<0.000000e+00> : vector<24x8xf32>
    %189 = tpu.matmul %188, %172, %cst_76 {dimension_numbers = #tpu.dot_dimension_numbers<[1], [0], [0], [1], [0, 0, 1, 1], [], []>} : vector<24x24xbf16>, vector<24x8xbf16>, vector<24x8xf32> -> vector<24x8xf32>
    %190 = arith.truncf %189 : vector<24x8xf32> to vector<24x8xbf16>
    %191 = vector.extract_strided_slice %17 {offsets = [0, 0], sizes = [8, 32], strides = [1, 1]} : vector<32x32xbf16> to vector<8x32xbf16>
    %cst_77 = arith.constant dense<0.000000e+00> : vector<24x32xf32>
    %192 = tpu.matmul %190, %191, %cst_77 {dimension_numbers = #tpu.dot_dimension_numbers<[1], [0], [0], [1], [0, 0, 1, 1], [], []>} : vector<24x8xbf16>, vector<8x32xbf16>, vector<24x32xf32> -> vector<24x32xf32>
    %193 = arith.addf %166, %192 : vector<24x32xf32>
    %194 = vector.extract_strided_slice %165 {offsets = [0, 8], sizes = [24, 8], strides = [1, 1]} : vector<24x96xf32> to vector<24x8xf32>
    %195 = arith.truncf %194 : vector<24x8xf32> to vector<24x8xbf16>
    %196 = vector.extract_strided_slice %165 {offsets = [0, 40], sizes = [24, 8], strides = [1, 1]} : vector<24x96xf32> to vector<24x8xf32>
    %197 = arith.truncf %196 : vector<24x8xf32> to vector<24x8xbf16>
    %198 = vector.extract_strided_slice %165 {offsets = [0, 72], sizes = [24, 8], strides = [1, 1]} : vector<24x96xf32> to vector<24x8xf32>
    %199 = arith.truncf %198 : vector<24x8xf32> to vector<24x8xbf16>
    %cst_78 = arith.constant dense<0.000000e+00> : vector<24x24xf32>
    %200 = tpu.matmul %195, %197, %cst_78 {dimension_numbers = #tpu.dot_dimension_numbers<[1], [1], [0], [0], [0, 0, 1, 0], [], []>} : vector<24x8xbf16>, vector<24x8xbf16>, vector<24x24xf32> -> vector<24x24xf32>
    %cst_79 = arith.constant 0.353553385 : f32
    %201 = vector.broadcast %cst_79 : f32 to vector<24x24xf32>
    %202 = arith.mulf %200, %201 : vector<24x24xf32>
    %203 = vector.broadcast %13 : vector<1x24xf32> to vector<24x24xf32>
    %204 = arith.addf %202, %203 : vector<24x24xf32>
    %cst_80 = arith.constant dense<0xFF800000> : vector<24xf32>
    %205 = vector.multi_reduction <maximumf>, %204, %cst_80 [1] : vector<24x24xf32> to vector<24xf32>
    %206 = vector.shape_cast %205 : vector<24xf32> to vector<24x1xf32>
    %207 = vector.broadcast %206 : vector<24x1xf32> to vector<24x24xf32>
    %208 = arith.subf %204, %207 : vector<24x24xf32>
    %209 = math.exp %208 : vector<24x24xf32>
    %cst_81 = arith.constant dense<0.000000e+00> : vector<24xf32>
    %210 = vector.multi_reduction <add>, %209, %cst_81 [1] : vector<24x24xf32> to vector<24xf32>
    %211 = vector.shape_cast %210 : vector<24xf32> to vector<24x1xf32>
    %212 = tpu.reciprocal %211 {approx = true} : vector<24x1xf32> -> vector<24x1xf32>
    %213 = vector.broadcast %212 : vector<24x1xf32> to vector<24x24xf32>
    %214 = arith.mulf %209, %213 : vector<24x24xf32>
    %215 = arith.truncf %214 : vector<24x24xf32> to vector<24x24xbf16>
    %cst_82 = arith.constant dense<0.000000e+00> : vector<24x8xf32>
    %216 = tpu.matmul %215, %199, %cst_82 {dimension_numbers = #tpu.dot_dimension_numbers<[1], [0], [0], [1], [0, 0, 1, 1], [], []>} : vector<24x24xbf16>, vector<24x8xbf16>, vector<24x8xf32> -> vector<24x8xf32>
    %217 = arith.truncf %216 : vector<24x8xf32> to vector<24x8xbf16>
    %218 = vector.extract_strided_slice %17 {offsets = [8, 0], sizes = [8, 32], strides = [1, 1]} : vector<32x32xbf16> to vector<8x32xbf16>
    %cst_83 = arith.constant dense<0.000000e+00> : vector<24x32xf32>
    %219 = tpu.matmul %217, %218, %cst_83 {dimension_numbers = #tpu.dot_dimension_numbers<[1], [0], [0], [1], [0, 0, 1, 1], [], []>} : vector<24x8xbf16>, vector<8x32xbf16>, vector<24x32xf32> -> vector<24x32xf32>
    %220 = arith.addf %193, %219 : vector<24x32xf32>
    %221 = vector.extract_strided_slice %165 {offsets = [0, 16], sizes = [24, 8], strides = [1, 1]} : vector<24x96xf32> to vector<24x8xf32>
    %222 = arith.truncf %221 : vector<24x8xf32> to vector<24x8xbf16>
    %223 = vector.extract_strided_slice %165 {offsets = [0, 48], sizes = [24, 8], strides = [1, 1]} : vector<24x96xf32> to vector<24x8xf32>
    %224 = arith.truncf %223 : vector<24x8xf32> to vector<24x8xbf16>
    %225 = vector.extract_strided_slice %165 {offsets = [0, 80], sizes = [24, 8], strides = [1, 1]} : vector<24x96xf32> to vector<24x8xf32>
    %226 = arith.truncf %225 : vector<24x8xf32> to vector<24x8xbf16>
    %cst_84 = arith.constant dense<0.000000e+00> : vector<24x24xf32>
    %227 = tpu.matmul %222, %224, %cst_84 {dimension_numbers = #tpu.dot_dimension_numbers<[1], [1], [0], [0], [0, 0, 1, 0], [], []>} : vector<24x8xbf16>, vector<24x8xbf16>, vector<24x24xf32> -> vector<24x24xf32>
    %cst_85 = arith.constant 0.353553385 : f32
    %228 = vector.broadcast %cst_85 : f32 to vector<24x24xf32>
    %229 = arith.mulf %227, %228 : vector<24x24xf32>
    %230 = vector.broadcast %13 : vector<1x24xf32> to vector<24x24xf32>
    %231 = arith.addf %229, %230 : vector<24x24xf32>
    %cst_86 = arith.constant dense<0xFF800000> : vector<24xf32>
    %232 = vector.multi_reduction <maximumf>, %231, %cst_86 [1] : vector<24x24xf32> to vector<24xf32>
    %233 = vector.shape_cast %232 : vector<24xf32> to vector<24x1xf32>
    %234 = vector.broadcast %233 : vector<24x1xf32> to vector<24x24xf32>
    %235 = arith.subf %231, %234 : vector<24x24xf32>
    %236 = math.exp %235 : vector<24x24xf32>
    %cst_87 = arith.constant dense<0.000000e+00> : vector<24xf32>
    %237 = vector.multi_reduction <add>, %236, %cst_87 [1] : vector<24x24xf32> to vector<24xf32>
    %238 = vector.shape_cast %237 : vector<24xf32> to vector<24x1xf32>
    %239 = tpu.reciprocal %238 {approx = true} : vector<24x1xf32> -> vector<24x1xf32>
    %240 = vector.broadcast %239 : vector<24x1xf32> to vector<24x24xf32>
    %241 = arith.mulf %236, %240 : vector<24x24xf32>
    %242 = arith.truncf %241 : vector<24x24xf32> to vector<24x24xbf16>
    %cst_88 = arith.constant dense<0.000000e+00> : vector<24x8xf32>
    %243 = tpu.matmul %242, %226, %cst_88 {dimension_numbers = #tpu.dot_dimension_numbers<[1], [0], [0], [1], [0, 0, 1, 1], [], []>} : vector<24x24xbf16>, vector<24x8xbf16>, vector<24x8xf32> -> vector<24x8xf32>
    %244 = arith.truncf %243 : vector<24x8xf32> to vector<24x8xbf16>
    %245 = vector.extract_strided_slice %17 {offsets = [16, 0], sizes = [8, 32], strides = [1, 1]} : vector<32x32xbf16> to vector<8x32xbf16>
    %cst_89 = arith.constant dense<0.000000e+00> : vector<24x32xf32>
    %246 = tpu.matmul %244, %245, %cst_89 {dimension_numbers = #tpu.dot_dimension_numbers<[1], [0], [0], [1], [0, 0, 1, 1], [], []>} : vector<24x8xbf16>, vector<8x32xbf16>, vector<24x32xf32> -> vector<24x32xf32>
    %247 = arith.addf %220, %246 : vector<24x32xf32>
    %248 = vector.extract_strided_slice %165 {offsets = [0, 24], sizes = [24, 8], strides = [1, 1]} : vector<24x96xf32> to vector<24x8xf32>
    %249 = arith.truncf %248 : vector<24x8xf32> to vector<24x8xbf16>
    %250 = vector.extract_strided_slice %165 {offsets = [0, 56], sizes = [24, 8], strides = [1, 1]} : vector<24x96xf32> to vector<24x8xf32>
    %251 = arith.truncf %250 : vector<24x8xf32> to vector<24x8xbf16>
    %252 = vector.extract_strided_slice %165 {offsets = [0, 88], sizes = [24, 8], strides = [1, 1]} : vector<24x96xf32> to vector<24x8xf32>
    %253 = arith.truncf %252 : vector<24x8xf32> to vector<24x8xbf16>
    %cst_90 = arith.constant dense<0.000000e+00> : vector<24x24xf32>
    %254 = tpu.matmul %249, %251, %cst_90 {dimension_numbers = #tpu.dot_dimension_numbers<[1], [1], [0], [0], [0, 0, 1, 0], [], []>} : vector<24x8xbf16>, vector<24x8xbf16>, vector<24x24xf32> -> vector<24x24xf32>
    %cst_91 = arith.constant 0.353553385 : f32
    %255 = vector.broadcast %cst_91 : f32 to vector<24x24xf32>
    %256 = arith.mulf %254, %255 : vector<24x24xf32>
    %257 = vector.broadcast %13 : vector<1x24xf32> to vector<24x24xf32>
    %258 = arith.addf %256, %257 : vector<24x24xf32>
    %cst_92 = arith.constant dense<0xFF800000> : vector<24xf32>
    %259 = vector.multi_reduction <maximumf>, %258, %cst_92 [1] : vector<24x24xf32> to vector<24xf32>
    %260 = vector.shape_cast %259 : vector<24xf32> to vector<24x1xf32>
    %261 = vector.broadcast %260 : vector<24x1xf32> to vector<24x24xf32>
    %262 = arith.subf %258, %261 : vector<24x24xf32>
    %263 = math.exp %262 : vector<24x24xf32>
    %cst_93 = arith.constant dense<0.000000e+00> : vector<24xf32>
    %264 = vector.multi_reduction <add>, %263, %cst_93 [1] : vector<24x24xf32> to vector<24xf32>
    %265 = vector.shape_cast %264 : vector<24xf32> to vector<24x1xf32>
    %266 = tpu.reciprocal %265 {approx = true} : vector<24x1xf32> -> vector<24x1xf32>
    %267 = vector.broadcast %266 : vector<24x1xf32> to vector<24x24xf32>
    %268 = arith.mulf %263, %267 : vector<24x24xf32>
    %269 = arith.truncf %268 : vector<24x24xf32> to vector<24x24xbf16>
    %cst_94 = arith.constant dense<0.000000e+00> : vector<24x8xf32>
    %270 = tpu.matmul %269, %253, %cst_94 {dimension_numbers = #tpu.dot_dimension_numbers<[1], [0], [0], [1], [0, 0, 1, 1], [], []>} : vector<24x24xbf16>, vector<24x8xbf16>, vector<24x8xf32> -> vector<24x8xf32>
    %271 = arith.truncf %270 : vector<24x8xf32> to vector<24x8xbf16>
    %272 = vector.extract_strided_slice %17 {offsets = [24, 0], sizes = [8, 32], strides = [1, 1]} : vector<32x32xbf16> to vector<8x32xbf16>
    %cst_95 = arith.constant dense<0.000000e+00> : vector<24x32xf32>
    %273 = tpu.matmul %271, %272, %cst_95 {dimension_numbers = #tpu.dot_dimension_numbers<[1], [0], [0], [1], [0, 0, 1, 1], [], []>} : vector<24x8xbf16>, vector<8x32xbf16>, vector<24x32xf32> -> vector<24x32xf32>
    %274 = arith.addf %247, %273 : vector<24x32xf32>
    %275 = vector.extract_strided_slice %19 {offsets = [24, 0], sizes = [24, 32], strides = [1, 1]} : vector<48x32xf32> to vector<24x32xf32>
    %276 = arith.addf %275, %274 : vector<24x32xf32>
    %277 = vector.broadcast %18 : vector<1x32xf32> to vector<24x32xf32>
    %278 = arith.addf %276, %277 : vector<24x32xf32>
    %c24 = arith.constant 24 : index
    %c0_96 = arith.constant 0 : index
    %279 = vector.load %arg30[%c24, %c0_96] : memref<48x32xf32, #tpu.memory_space<vmem>>, vector<24x32xf32>
    tpu.vector_store %arg30[%c24, %c0_96], %278 {strides = array<i32>} : memref<48x32xf32, #tpu.memory_space<vmem>>, vector<24x32xf32>,
    %c0_97 = arith.constant 0 : index
    %c0_98 = arith.constant 0 : index
    %280 = vector.load %arg30[%c0_97, %c0_98] : memref<48x32xf32, #tpu.memory_space<vmem>>, vector<48x32xf32>
    %c0_99 = arith.constant 0 : index
    %c0_100 = arith.constant 0 : index
    %c0_101 = arith.constant 0 : index
    %281 = vector.load %arg18[%c0_99, %c0_100, %c0_101] : memref<2x1x32xf32, #tpu.memory_space<vmem>>, vector<1x1x32xf32>
    %282 = vector.shape_cast %281 : vector<1x1x32xf32> to vector<1x32xf32>
    %c0_102 = arith.constant 0 : index
    %c0_103 = arith.constant 0 : index
    %c0_104 = arith.constant 0 : index
    %283 = vector.load %arg19[%c0_102, %c0_103, %c0_104] : memref<2x1x32xf32, #tpu.memory_space<vmem>>, vector<1x1x32xf32>
    %284 = vector.shape_cast %283 : vector<1x1x32xf32> to vector<1x32xf32>
    %cst_105 = arith.constant dense<0.000000e+00> : vector<48xf32>
    %285 = vector.multi_reduction <add>, %280, %cst_105 [1] : vector<48x32xf32> to vector<48xf32>
    %286 = vector.shape_cast %285 : vector<48xf32> to vector<48x1xf32>
    %cst_106 = arith.constant 3.200000e+01 : f32
    %287 = vector.broadcast %cst_106 : f32 to vector<48x1xf32>
    %288 = arith.divf %286, %287 : vector<48x1xf32>
    %289 = vector.broadcast %288 : vector<48x1xf32> to vector<48x32xf32>
    %290 = arith.subf %280, %289 : vector<48x32xf32>
    %291 = arith.mulf %290, %290 : vector<48x32xf32>
    %cst_107 = arith.constant dense<0.000000e+00> : vector<48xf32>
    %292 = vector.multi_reduction <add>, %291, %cst_107 [1] : vector<48x32xf32> to vector<48xf32>
    %293 = vector.shape_cast %292 : vector<48xf32> to vector<48x1xf32>
    %cst_108 = arith.constant 3.200000e+01 : f32
    %294 = vector.broadcast %cst_108 : f32 to vector<48x1xf32>
    %295 = arith.divf %293, %294 : vector<48x1xf32>
    %cst_109 = arith.constant 9.99999997E-7 : f32
    %296 = vector.broadcast %cst_109 : f32 to vector<48x1xf32>
    %297 = arith.addf %295, %296 : vector<48x1xf32>
    %298 = math.rsqrt %297 : vector<48x1xf32>
    %299 = vector.broadcast %298 : vector<48x1xf32> to vector<48x32xf32>
    %300 = arith.mulf %290, %299 : vector<48x32xf32>
    %301 = vector.broadcast %282 : vector<1x32xf32> to vector<48x32xf32>
    %302 = arith.mulf %300, %301 : vector<48x32xf32>
    %303 = vector.broadcast %284 : vector<1x32xf32> to vector<48x32xf32>
    %304 = arith.addf %302, %303 : vector<48x32xf32>
    %c0_110 = arith.constant 0 : index
    %c0_111 = arith.constant 0 : index
    %c0_112 = arith.constant 0 : index
    %305 = vector.load %arg20[%c0_110, %c0_111, %c0_112] : memref<2x32x4xf32, #tpu.memory_space<vmem>>, vector<1x32x4xf32>
    %306 = vector.shape_cast %305 : vector<1x32x4xf32> to vector<32x4xf32>
    %cst_113 = arith.constant dense<0.000000e+00> : vector<48x4xf32>
    %307 = tpu.matmul %304, %306, %cst_113 {dimension_numbers = #tpu.dot_dimension_numbers<[1], [0], [0], [1], [0, 0, 1, 1], [], []>} : vector<48x32xf32>, vector<32x4xf32>, vector<48x4xf32> -> vector<48x4xf32>
    %cst_114 = arith.constant dense<0xFF800000> : vector<48xf32>
    %308 = vector.multi_reduction <maximumf>, %307, %cst_114 [1] : vector<48x4xf32> to vector<48xf32>
    %309 = vector.shape_cast %308 : vector<48xf32> to vector<48x1xf32>
    %310 = vector.broadcast %309 : vector<48x1xf32> to vector<48x4xf32>
    %311 = arith.subf %307, %310 : vector<48x4xf32>
    %312 = math.exp %311 : vector<48x4xf32>
    %cst_115 = arith.constant dense<0.000000e+00> : vector<48xf32>
    %313 = vector.multi_reduction <add>, %312, %cst_115 [1] : vector<48x4xf32> to vector<48xf32>
    %314 = vector.shape_cast %313 : vector<48xf32> to vector<48x1xf32>
    %315 = vector.broadcast %314 : vector<48x1xf32> to vector<48x4xf32>
    %316 = arith.divf %312, %315 : vector<48x4xf32>
    %cst_116 = arith.constant dense<0xFF800000> : vector<48xf32>
    %317 = vector.multi_reduction <maximumf>, %316, %cst_116 [1] : vector<48x4xf32> to vector<48xf32>
    %318 = vector.shape_cast %317 : vector<48xf32> to vector<48x1xf32>
    %319 = vector.broadcast %318 : vector<48x1xf32> to vector<48x4xf32>
    %320 = arith.cmpf oeq, %316, %319 : vector<48x4xf32>
    %cst_117 = arith.constant 4.000000e+00 : f32
    %321 = vector.broadcast %cst_117 : f32 to vector<48x4xf32>
    %322 = arith.select %320, %15, %321 : vector<48x4xi1>, vector<48x4xf32>
    %cst_118 = arith.constant dense<0x7F800000> : vector<48xf32>
    %323 = vector.multi_reduction <minimumf>, %322, %cst_118 [1] : vector<48x4xf32> to vector<48xf32>
    %324 = vector.shape_cast %323 : vector<48xf32> to vector<48x1xf32>
    %325 = vector.broadcast %324 : vector<48x1xf32> to vector<48x4xf32>
    %326 = arith.cmpf oeq, %15, %325 : vector<48x4xf32>
    %327 = arith.extui %326 : vector<48x4xi1> to vector<48x4xi32>
    %328 = arith.sitofp %327 : vector<48x4xi32> to vector<48x4xf32>
    %329 = vector.broadcast %12 : vector<48x1xf32> to vector<48x4xf32>
    %330 = arith.mulf %328, %329 : vector<48x4xf32>
    %331 = vector.broadcast %324 : vector<48x1xf32> to vector<48x4xf32>
    %332 = arith.cmpf oeq, %15, %331 : vector<48x4xf32>
    %cst_119 = arith.constant -1.000000e+00 : f32
    %333 = vector.broadcast %cst_119 : f32 to vector<48x4xf32>
    %334 = arith.select %332, %333, %316 : vector<48x4xi1>, vector<48x4xf32>
    %cst_120 = arith.constant dense<0xFF800000> : vector<48xf32>
    %335 = vector.multi_reduction <maximumf>, %334, %cst_120 [1] : vector<48x4xf32> to vector<48xf32>
    %336 = vector.shape_cast %335 : vector<48xf32> to vector<48x1xf32>
    %337 = vector.broadcast %336 : vector<48x1xf32> to vector<48x4xf32>
    %338 = arith.cmpf oeq, %334, %337 : vector<48x4xf32>
    %cst_121 = arith.constant 4.000000e+00 : f32
    %339 = vector.broadcast %cst_121 : f32 to vector<48x4xf32>
    %340 = arith.select %338, %15, %339 : vector<48x4xi1>, vector<48x4xf32>
    %cst_122 = arith.constant dense<0x7F800000> : vector<48xf32>
    %341 = vector.multi_reduction <minimumf>, %340, %cst_122 [1] : vector<48x4xf32> to vector<48xf32>
    %342 = vector.shape_cast %341 : vector<48xf32> to vector<48x1xf32>
    %343 = vector.broadcast %342 : vector<48x1xf32> to vector<48x4xf32>
    %344 = arith.cmpf oeq, %15, %343 : vector<48x4xf32>
    %345 = arith.extui %344 : vector<48x4xi1> to vector<48x4xi32>
    %346 = arith.sitofp %345 : vector<48x4xi32> to vector<48x4xf32>
    %347 = vector.broadcast %12 : vector<48x1xf32> to vector<48x4xf32>
    %348 = arith.mulf %346, %347 : vector<48x4xf32>
    %cst_123 = arith.constant dense<0.000000e+00> : vector<48x4xf32>
    %349 = tpu.matmul %14, %330, %cst_123 {dimension_numbers = #tpu.dot_dimension_numbers<[1], [0], [0], [1], [0, 0, 1, 1], [], []>} : vector<48x48xf32>, vector<48x4xf32>, vector<48x4xf32> -> vector<48x4xf32>
    %cst_124 = arith.constant 1.000000e+00 : f32
    %350 = vector.broadcast %cst_124 : f32 to vector<48x4xf32>
    %351 = arith.subf %349, %350 : vector<48x4xf32>
    %cst_125 = arith.constant dense<0.000000e+00> : vector<48x4xf32>
    %352 = tpu.matmul %14, %348, %cst_125 {dimension_numbers = #tpu.dot_dimension_numbers<[1], [0], [0], [1], [0, 0, 1, 1], [], []>} : vector<48x48xf32>, vector<48x4xf32>, vector<48x4xf32> -> vector<48x4xf32>
    %cst_126 = arith.constant 1.000000e+00 : f32
    %353 = vector.broadcast %cst_126 : f32 to vector<48x4xf32>
    %354 = arith.subf %352, %353 : vector<48x4xf32>
    %cst_127 = arith.constant dense<0.000000e+00> : vector<4xf32>
    %355 = vector.multi_reduction <add>, %330, %cst_127 [0] : vector<48x4xf32> to vector<4xf32>
    %356 = vector.shape_cast %355 : vector<4xf32> to vector<1x4xf32>
    %357 = vector.broadcast %356 : vector<1x4xf32> to vector<48x4xf32>
    %358 = arith.addf %354, %357 : vector<48x4xf32>
    %cst_128 = arith.constant 1.800000e+01 : f32
    %359 = vector.broadcast %cst_128 : f32 to vector<48x4xf32>
    %360 = arith.cmpf olt, %351, %359 : vector<48x4xf32>
    %361 = arith.extui %360 : vector<48x4xi1> to vector<48x4xi32>
    %362 = arith.sitofp %361 : vector<48x4xi32> to vector<48x4xf32>
    %363 = arith.mulf %330, %362 : vector<48x4xf32>
    %cst_129 = arith.constant 1.800000e+01 : f32
    %364 = vector.broadcast %cst_129 : f32 to vector<48x4xf32>
    %365 = arith.cmpf olt, %358, %364 : vector<48x4xf32>
    %366 = arith.extui %365 : vector<48x4xi1> to vector<48x4xi32>
    %367 = arith.sitofp %366 : vector<48x4xi32> to vector<48x4xf32>
    %368 = arith.mulf %348, %367 : vector<48x4xf32>
    %369 = arith.mulf %363, %351 : vector<48x4xf32>
    %cst_130 = arith.constant dense<0.000000e+00> : vector<48xf32>
    %370 = vector.multi_reduction <add>, %369, %cst_130 [1] : vector<48x4xf32> to vector<48xf32>
    %371 = vector.shape_cast %370 : vector<48xf32> to vector<48x1xf32>
    %372 = arith.mulf %368, %358 : vector<48x4xf32>
    %cst_131 = arith.constant dense<0.000000e+00> : vector<48xf32>
    %373 = vector.multi_reduction <add>, %372, %cst_131 [1] : vector<48x4xf32> to vector<48xf32>
    %374 = vector.shape_cast %373 : vector<48xf32> to vector<48x1xf32>
    %375 = vector.broadcast %371 : vector<48x1xf32> to vector<48x24xf32>
    %376 = arith.cmpf oeq, %16, %375 : vector<48x24xf32>
    %377 = arith.extui %376 : vector<48x24xi1> to vector<48x24xi32>
    %378 = arith.sitofp %377 : vector<48x24xi32> to vector<48x24xf32>
    %379 = vector.broadcast %374 : vector<48x1xf32> to vector<48x24xf32>
    %380 = arith.cmpf oeq, %16, %379 : vector<48x24xf32>
    %381 = arith.extui %380 : vector<48x24xi1> to vector<48x24xi32>
    %382 = arith.sitofp %381 : vector<48x24xi32> to vector<48x24xf32>
    %383 = vector.broadcast %12 : vector<48x1xf32> to vector<48x32xf32>
    %384 = arith.mulf %304, %383 : vector<48x32xf32>
    %cst_132 = arith.constant 0.000000e+00 : f32
    %385 = vector.broadcast %cst_132 : f32 to vector<48x32xf32>
    %386 = vector.extract_strided_slice %363 {offsets = [0, 0], sizes = [48, 1], strides = [1, 1]} : vector<48x4xf32> to vector<48x1xf32>
    %387 = vector.extract_strided_slice %368 {offsets = [0, 0], sizes = [48, 1], strides = [1, 1]} : vector<48x4xf32> to vector<48x1xf32>
    %388 = vector.extract_strided_slice %316 {offsets = [0, 0], sizes = [48, 1], strides = [1, 1]} : vector<48x4xf32> to vector<48x1xf32>
    %389 = vector.broadcast %386 : vector<48x1xf32> to vector<48x24xf32>
    %390 = arith.mulf %389, %378 : vector<48x24xf32>
    %391 = vector.broadcast %387 : vector<48x1xf32> to vector<48x24xf32>
    %392 = arith.mulf %391, %382 : vector<48x24xf32>
    %393 = arith.addf %390, %392 : vector<48x24xf32>
    %394 = tpu.transpose %393, [1, 0] : vector<48x24xf32> -> vector<24x48xf32>
    %cst_133 = arith.constant dense<0.000000e+00> : vector<24x32xf32>
    %395 = tpu.matmul %394, %384, %cst_133 {dimension_numbers = #tpu.dot_dimension_numbers<[1], [0], [0], [1], [0, 0, 1, 1], [], []>} : vector<24x48xf32>, vector<48x32xf32>, vector<24x32xf32> -> vector<24x32xf32>
    %396 = arith.truncf %395 : vector<24x32xf32> to vector<24x32xbf16>
    %c0_134 = arith.constant 0 : index
    %c0_135 = arith.constant 0 : index
    %c0_136 = arith.constant 0 : index
    %397 = vector.load %arg21[%c0_134, %c0_135, %c0_136] : memref<4x32x64xbf16, #tpu.memory_space<vmem>>, vector<1x32x64xbf16>
    %398 = vector.shape_cast %397 : vector<1x32x64xbf16> to vector<32x64xbf16>
    %cst_137 = arith.constant dense<0.000000e+00> : vector<24x64xf32>
    %399 = tpu.matmul %396, %398, %cst_137 {dimension_numbers = #tpu.dot_dimension_numbers<[1], [0], [0], [1], [0, 0, 1, 1], [], []>} : vector<24x32xbf16>, vector<32x64xbf16>, vector<24x64xf32> -> vector<24x64xf32>
    %c0_138 = arith.constant 0 : index
    %c0_139 = arith.constant 0 : index
    %c0_140 = arith.constant 0 : index
    %400 = vector.load %arg22[%c0_138, %c0_139, %c0_140] : memref<4x1x64xf32, #tpu.memory_space<vmem>>, vector<1x1x64xf32>
    %401 = vector.shape_cast %400 : vector<1x1x64xf32> to vector<1x64xf32>
    %402 = vector.broadcast %401 : vector<1x64xf32> to vector<24x64xf32>
    %403 = arith.addf %399, %402 : vector<24x64xf32>
    %cst_141 = arith.constant 5.000000e-01 : f32
    %404 = vector.broadcast %cst_141 : f32 to vector<24x64xf32>
    %405 = arith.mulf %404, %403 : vector<24x64xf32>
    %cst_142 = arith.constant 0.707106769 : f32
    %406 = vector.broadcast %cst_142 : f32 to vector<24x64xf32>
    %407 = arith.mulf %403, %406 : vector<24x64xf32>
    %408 = math.erf %407 : vector<24x64xf32>
    %cst_143 = arith.constant 1.000000e+00 : f32
    %409 = vector.broadcast %cst_143 : f32 to vector<24x64xf32>
    %410 = arith.addf %409, %408 : vector<24x64xf32>
    %411 = arith.mulf %405, %410 : vector<24x64xf32>
    %412 = arith.truncf %411 : vector<24x64xf32> to vector<24x64xbf16>
    %c0_144 = arith.constant 0 : index
    %c0_145 = arith.constant 0 : index
    %c0_146 = arith.constant 0 : index
    %413 = vector.load %arg23[%c0_144, %c0_145, %c0_146] : memref<4x64x32xbf16, #tpu.memory_space<vmem>>, vector<1x64x32xbf16>
    %414 = vector.shape_cast %413 : vector<1x64x32xbf16> to vector<64x32xbf16>
    %cst_147 = arith.constant dense<0.000000e+00> : vector<24x32xf32>
    %415 = tpu.matmul %412, %414, %cst_147 {dimension_numbers = #tpu.dot_dimension_numbers<[1], [0], [0], [1], [0, 0, 1, 1], [], []>} : vector<24x64xbf16>, vector<64x32xbf16>, vector<24x32xf32> -> vector<24x32xf32>
    %c0_148 = arith.constant 0 : index
    %c0_149 = arith.constant 0 : index
    %c0_150 = arith.constant 0 : index
    %416 = vector.load %arg24[%c0_148, %c0_149, %c0_150] : memref<4x1x32xf32, #tpu.memory_space<vmem>>, vector<1x1x32xf32>
    %417 = vector.shape_cast %416 : vector<1x1x32xf32> to vector<1x32xf32>
    %418 = vector.broadcast %417 : vector<1x32xf32> to vector<24x32xf32>
    %419 = arith.addf %415, %418 : vector<24x32xf32>
    %420 = arith.mulf %386, %388 : vector<48x1xf32>
    %421 = vector.broadcast %420 : vector<48x1xf32> to vector<48x24xf32>
    %422 = arith.mulf %421, %378 : vector<48x24xf32>
    %423 = arith.mulf %387, %388 : vector<48x1xf32>
    %424 = vector.broadcast %423 : vector<48x1xf32> to vector<48x24xf32>
    %425 = arith.mulf %424, %382 : vector<48x24xf32>
    %426 = arith.addf %422, %425 : vector<48x24xf32>
    %cst_151 = arith.constant dense<0.000000e+00> : vector<48x32xf32>
    %427 = tpu.matmul %426, %419, %cst_151 {dimension_numbers = #tpu.dot_dimension_numbers<[1], [0], [0], [1], [0, 0, 1, 1], [], []>} : vector<48x24xf32>, vector<24x32xf32>, vector<48x32xf32> -> vector<48x32xf32>
    %428 = arith.addf %385, %427 : vector<48x32xf32>
    %429 = vector.extract_strided_slice %363 {offsets = [0, 1], sizes = [48, 1], strides = [1, 1]} : vector<48x4xf32> to vector<48x1xf32>
    %430 = vector.extract_strided_slice %368 {offsets = [0, 1], sizes = [48, 1], strides = [1, 1]} : vector<48x4xf32> to vector<48x1xf32>
    %431 = vector.extract_strided_slice %316 {offsets = [0, 1], sizes = [48, 1], strides = [1, 1]} : vector<48x4xf32> to vector<48x1xf32>
    %432 = vector.broadcast %429 : vector<48x1xf32> to vector<48x24xf32>
    %433 = arith.mulf %432, %378 : vector<48x24xf32>
    %434 = vector.broadcast %430 : vector<48x1xf32> to vector<48x24xf32>
    %435 = arith.mulf %434, %382 : vector<48x24xf32>
    %436 = arith.addf %433, %435 : vector<48x24xf32>
    %437 = tpu.transpose %436, [1, 0] : vector<48x24xf32> -> vector<24x48xf32>
    %cst_152 = arith.constant dense<0.000000e+00> : vector<24x32xf32>
    %438 = tpu.matmul %437, %384, %cst_152 {dimension_numbers = #tpu.dot_dimension_numbers<[1], [0], [0], [1], [0, 0, 1, 1], [], []>} : vector<24x48xf32>, vector<48x32xf32>, vector<24x32xf32> -> vector<24x32xf32>
    %439 = arith.truncf %438 : vector<24x32xf32> to vector<24x32xbf16>
    %c1 = arith.constant 1 : index
    %c0_153 = arith.constant 0 : index
    %c0_154 = arith.constant 0 : index
    %440 = vector.load %arg21[%c1, %c0_153, %c0_154] : memref<4x32x64xbf16, #tpu.memory_space<vmem>>, vector<1x32x64xbf16>
    %441 = vector.shape_cast %440 : vector<1x32x64xbf16> to vector<32x64xbf16>
    %cst_155 = arith.constant dense<0.000000e+00> : vector<24x64xf32>
    %442 = tpu.matmul %439, %441, %cst_155 {dimension_numbers = #tpu.dot_dimension_numbers<[1], [0], [0], [1], [0, 0, 1, 1], [], []>} : vector<24x32xbf16>, vector<32x64xbf16>, vector<24x64xf32> -> vector<24x64xf32>
    %c1_156 = arith.constant 1 : index
    %c0_157 = arith.constant 0 : index
    %c0_158 = arith.constant 0 : index
    %443 = vector.load %arg22[%c1_156, %c0_157, %c0_158] : memref<4x1x64xf32, #tpu.memory_space<vmem>>, vector<1x1x64xf32>
    %444 = vector.shape_cast %443 : vector<1x1x64xf32> to vector<1x64xf32>
    %445 = vector.broadcast %444 : vector<1x64xf32> to vector<24x64xf32>
    %446 = arith.addf %442, %445 : vector<24x64xf32>
    %cst_159 = arith.constant 5.000000e-01 : f32
    %447 = vector.broadcast %cst_159 : f32 to vector<24x64xf32>
    %448 = arith.mulf %447, %446 : vector<24x64xf32>
    %cst_160 = arith.constant 0.707106769 : f32
    %449 = vector.broadcast %cst_160 : f32 to vector<24x64xf32>
    %450 = arith.mulf %446, %449 : vector<24x64xf32>
    %451 = math.erf %450 : vector<24x64xf32>
    %cst_161 = arith.constant 1.000000e+00 : f32
    %452 = vector.broadcast %cst_161 : f32 to vector<24x64xf32>
    %453 = arith.addf %452, %451 : vector<24x64xf32>
    %454 = arith.mulf %448, %453 : vector<24x64xf32>
    %455 = arith.truncf %454 : vector<24x64xf32> to vector<24x64xbf16>
    %c1_162 = arith.constant 1 : index
    %c0_163 = arith.constant 0 : index
    %c0_164 = arith.constant 0 : index
    %456 = vector.load %arg23[%c1_162, %c0_163, %c0_164] : memref<4x64x32xbf16, #tpu.memory_space<vmem>>, vector<1x64x32xbf16>
    %457 = vector.shape_cast %456 : vector<1x64x32xbf16> to vector<64x32xbf16>
    %cst_165 = arith.constant dense<0.000000e+00> : vector<24x32xf32>
    %458 = tpu.matmul %455, %457, %cst_165 {dimension_numbers = #tpu.dot_dimension_numbers<[1], [0], [0], [1], [0, 0, 1, 1], [], []>} : vector<24x64xbf16>, vector<64x32xbf16>, vector<24x32xf32> -> vector<24x32xf32>
    %c1_166 = arith.constant 1 : index
    %c0_167 = arith.constant 0 : index
    %c0_168 = arith.constant 0 : index
    %459 = vector.load %arg24[%c1_166, %c0_167, %c0_168] : memref<4x1x32xf32, #tpu.memory_space<vmem>>, vector<1x1x32xf32>
    %460 = vector.shape_cast %459 : vector<1x1x32xf32> to vector<1x32xf32>
    %461 = vector.broadcast %460 : vector<1x32xf32> to vector<24x32xf32>
    %462 = arith.addf %458, %461 : vector<24x32xf32>
    %463 = arith.mulf %429, %431 : vector<48x1xf32>
    %464 = vector.broadcast %463 : vector<48x1xf32> to vector<48x24xf32>
    %465 = arith.mulf %464, %378 : vector<48x24xf32>
    %466 = arith.mulf %430, %431 : vector<48x1xf32>
    %467 = vector.broadcast %466 : vector<48x1xf32> to vector<48x24xf32>
    %468 = arith.mulf %467, %382 : vector<48x24xf32>
    %469 = arith.addf %465, %468 : vector<48x24xf32>
    %cst_169 = arith.constant dense<0.000000e+00> : vector<48x32xf32>
    %470 = tpu.matmul %469, %462, %cst_169 {dimension_numbers = #tpu.dot_dimension_numbers<[1], [0], [0], [1], [0, 0, 1, 1], [], []>} : vector<48x24xf32>, vector<24x32xf32>, vector<48x32xf32> -> vector<48x32xf32>
    %471 = arith.addf %428, %470 : vector<48x32xf32>
    %472 = vector.extract_strided_slice %363 {offsets = [0, 2], sizes = [48, 1], strides = [1, 1]} : vector<48x4xf32> to vector<48x1xf32>
    %473 = vector.extract_strided_slice %368 {offsets = [0, 2], sizes = [48, 1], strides = [1, 1]} : vector<48x4xf32> to vector<48x1xf32>
    %474 = vector.extract_strided_slice %316 {offsets = [0, 2], sizes = [48, 1], strides = [1, 1]} : vector<48x4xf32> to vector<48x1xf32>
    %475 = vector.broadcast %472 : vector<48x1xf32> to vector<48x24xf32>
    %476 = arith.mulf %475, %378 : vector<48x24xf32>
    %477 = vector.broadcast %473 : vector<48x1xf32> to vector<48x24xf32>
    %478 = arith.mulf %477, %382 : vector<48x24xf32>
    %479 = arith.addf %476, %478 : vector<48x24xf32>
    %480 = tpu.transpose %479, [1, 0] : vector<48x24xf32> -> vector<24x48xf32>
    %cst_170 = arith.constant dense<0.000000e+00> : vector<24x32xf32>
    %481 = tpu.matmul %480, %384, %cst_170 {dimension_numbers = #tpu.dot_dimension_numbers<[1], [0], [0], [1], [0, 0, 1, 1], [], []>} : vector<24x48xf32>, vector<48x32xf32>, vector<24x32xf32> -> vector<24x32xf32>
    %482 = arith.truncf %481 : vector<24x32xf32> to vector<24x32xbf16>
    %c2 = arith.constant 2 : index
    %c0_171 = arith.constant 0 : index
    %c0_172 = arith.constant 0 : index
    %483 = vector.load %arg21[%c2, %c0_171, %c0_172] : memref<4x32x64xbf16, #tpu.memory_space<vmem>>, vector<1x32x64xbf16>
    %484 = vector.shape_cast %483 : vector<1x32x64xbf16> to vector<32x64xbf16>
    %cst_173 = arith.constant dense<0.000000e+00> : vector<24x64xf32>
    %485 = tpu.matmul %482, %484, %cst_173 {dimension_numbers = #tpu.dot_dimension_numbers<[1], [0], [0], [1], [0, 0, 1, 1], [], []>} : vector<24x32xbf16>, vector<32x64xbf16>, vector<24x64xf32> -> vector<24x64xf32>
    %c2_174 = arith.constant 2 : index
    %c0_175 = arith.constant 0 : index
    %c0_176 = arith.constant 0 : index
    %486 = vector.load %arg22[%c2_174, %c0_175, %c0_176] : memref<4x1x64xf32, #tpu.memory_space<vmem>>, vector<1x1x64xf32>
    %487 = vector.shape_cast %486 : vector<1x1x64xf32> to vector<1x64xf32>
    %488 = vector.broadcast %487 : vector<1x64xf32> to vector<24x64xf32>
    %489 = arith.addf %485, %488 : vector<24x64xf32>
    %cst_177 = arith.constant 5.000000e-01 : f32
    %490 = vector.broadcast %cst_177 : f32 to vector<24x64xf32>
    %491 = arith.mulf %490, %489 : vector<24x64xf32>
    %cst_178 = arith.constant 0.707106769 : f32
    %492 = vector.broadcast %cst_178 : f32 to vector<24x64xf32>
    %493 = arith.mulf %489, %492 : vector<24x64xf32>
    %494 = math.erf %493 : vector<24x64xf32>
    %cst_179 = arith.constant 1.000000e+00 : f32
    %495 = vector.broadcast %cst_179 : f32 to vector<24x64xf32>
    %496 = arith.addf %495, %494 : vector<24x64xf32>
    %497 = arith.mulf %491, %496 : vector<24x64xf32>
    %498 = arith.truncf %497 : vector<24x64xf32> to vector<24x64xbf16>
    %c2_180 = arith.constant 2 : index
    %c0_181 = arith.constant 0 : index
    %c0_182 = arith.constant 0 : index
    %499 = vector.load %arg23[%c2_180, %c0_181, %c0_182] : memref<4x64x32xbf16, #tpu.memory_space<vmem>>, vector<1x64x32xbf16>
    %500 = vector.shape_cast %499 : vector<1x64x32xbf16> to vector<64x32xbf16>
    %cst_183 = arith.constant dense<0.000000e+00> : vector<24x32xf32>
    %501 = tpu.matmul %498, %500, %cst_183 {dimension_numbers = #tpu.dot_dimension_numbers<[1], [0], [0], [1], [0, 0, 1, 1], [], []>} : vector<24x64xbf16>, vector<64x32xbf16>, vector<24x32xf32> -> vector<24x32xf32>
    %c2_184 = arith.constant 2 : index
    %c0_185 = arith.constant 0 : index
    %c0_186 = arith.constant 0 : index
    %502 = vector.load %arg24[%c2_184, %c0_185, %c0_186] : memref<4x1x32xf32, #tpu.memory_space<vmem>>, vector<1x1x32xf32>
    %503 = vector.shape_cast %502 : vector<1x1x32xf32> to vector<1x32xf32>
    %504 = vector.broadcast %503 : vector<1x32xf32> to vector<24x32xf32>
    %505 = arith.addf %501, %504 : vector<24x32xf32>
    %506 = arith.mulf %472, %474 : vector<48x1xf32>
    %507 = vector.broadcast %506 : vector<48x1xf32> to vector<48x24xf32>
    %508 = arith.mulf %507, %378 : vector<48x24xf32>
    %509 = arith.mulf %473, %474 : vector<48x1xf32>
    %510 = vector.broadcast %509 : vector<48x1xf32> to vector<48x24xf32>
    %511 = arith.mulf %510, %382 : vector<48x24xf32>
    %512 = arith.addf %508, %511 : vector<48x24xf32>
    %cst_187 = arith.constant dense<0.000000e+00> : vector<48x32xf32>
    %513 = tpu.matmul %512, %505, %cst_187 {dimension_numbers = #tpu.dot_dimension_numbers<[1], [0], [0], [1], [0, 0, 1, 1], [], []>} : vector<48x24xf32>, vector<24x32xf32>, vector<48x32xf32> -> vector<48x32xf32>
    %514 = arith.addf %471, %513 : vector<48x32xf32>
    %515 = vector.extract_strided_slice %363 {offsets = [0, 3], sizes = [48, 1], strides = [1, 1]} : vector<48x4xf32> to vector<48x1xf32>
    %516 = vector.extract_strided_slice %368 {offsets = [0, 3], sizes = [48, 1], strides = [1, 1]} : vector<48x4xf32> to vector<48x1xf32>
    %517 = vector.extract_strided_slice %316 {offsets = [0, 3], sizes = [48, 1], strides = [1, 1]} : vector<48x4xf32> to vector<48x1xf32>
    %518 = vector.broadcast %515 : vector<48x1xf32> to vector<48x24xf32>
    %519 = arith.mulf %518, %378 : vector<48x24xf32>
    %520 = vector.broadcast %516 : vector<48x1xf32> to vector<48x24xf32>
    %521 = arith.mulf %520, %382 : vector<48x24xf32>
    %522 = arith.addf %519, %521 : vector<48x24xf32>
    %523 = tpu.transpose %522, [1, 0] : vector<48x24xf32> -> vector<24x48xf32>
    %cst_188 = arith.constant dense<0.000000e+00> : vector<24x32xf32>
    %524 = tpu.matmul %523, %384, %cst_188 {dimension_numbers = #tpu.dot_dimension_numbers<[1], [0], [0], [1], [0, 0, 1, 1], [], []>} : vector<24x48xf32>, vector<48x32xf32>, vector<24x32xf32> -> vector<24x32xf32>
    %525 = arith.truncf %524 : vector<24x32xf32> to vector<24x32xbf16>
    %c3 = arith.constant 3 : index
    %c0_189 = arith.constant 0 : index
    %c0_190 = arith.constant 0 : index
    %526 = vector.load %arg21[%c3, %c0_189, %c0_190] : memref<4x32x64xbf16, #tpu.memory_space<vmem>>, vector<1x32x64xbf16>
    %527 = vector.shape_cast %526 : vector<1x32x64xbf16> to vector<32x64xbf16>
    %cst_191 = arith.constant dense<0.000000e+00> : vector<24x64xf32>
    %528 = tpu.matmul %525, %527, %cst_191 {dimension_numbers = #tpu.dot_dimension_numbers<[1], [0], [0], [1], [0, 0, 1, 1], [], []>} : vector<24x32xbf16>, vector<32x64xbf16>, vector<24x64xf32> -> vector<24x64xf32>
    %c3_192 = arith.constant 3 : index
    %c0_193 = arith.constant 0 : index
    %c0_194 = arith.constant 0 : index
    %529 = vector.load %arg22[%c3_192, %c0_193, %c0_194] : memref<4x1x64xf32, #tpu.memory_space<vmem>>, vector<1x1x64xf32>
    %530 = vector.shape_cast %529 : vector<1x1x64xf32> to vector<1x64xf32>
    %531 = vector.broadcast %530 : vector<1x64xf32> to vector<24x64xf32>
    %532 = arith.addf %528, %531 : vector<24x64xf32>
    %cst_195 = arith.constant 5.000000e-01 : f32
    %533 = vector.broadcast %cst_195 : f32 to vector<24x64xf32>
    %534 = arith.mulf %533, %532 : vector<24x64xf32>
    %cst_196 = arith.constant 0.707106769 : f32
    %535 = vector.broadcast %cst_196 : f32 to vector<24x64xf32>
    %536 = arith.mulf %532, %535 : vector<24x64xf32>
    %537 = math.erf %536 : vector<24x64xf32>
    %cst_197 = arith.constant 1.000000e+00 : f32
    %538 = vector.broadcast %cst_197 : f32 to vector<24x64xf32>
    %539 = arith.addf %538, %537 : vector<24x64xf32>
    %540 = arith.mulf %534, %539 : vector<24x64xf32>
    %541 = arith.truncf %540 : vector<24x64xf32> to vector<24x64xbf16>
    %c3_198 = arith.constant 3 : index
    %c0_199 = arith.constant 0 : index
    %c0_200 = arith.constant 0 : index
    %542 = vector.load %arg23[%c3_198, %c0_199, %c0_200] : memref<4x64x32xbf16, #tpu.memory_space<vmem>>, vector<1x64x32xbf16>
    %543 = vector.shape_cast %542 : vector<1x64x32xbf16> to vector<64x32xbf16>
    %cst_201 = arith.constant dense<0.000000e+00> : vector<24x32xf32>
    %544 = tpu.matmul %541, %543, %cst_201 {dimension_numbers = #tpu.dot_dimension_numbers<[1], [0], [0], [1], [0, 0, 1, 1], [], []>} : vector<24x64xbf16>, vector<64x32xbf16>, vector<24x32xf32> -> vector<24x32xf32>
    %c3_202 = arith.constant 3 : index
    %c0_203 = arith.constant 0 : index
    %c0_204 = arith.constant 0 : index
    %545 = vector.load %arg24[%c3_202, %c0_203, %c0_204] : memref<4x1x32xf32, #tpu.memory_space<vmem>>, vector<1x1x32xf32>
    %546 = vector.shape_cast %545 : vector<1x1x32xf32> to vector<1x32xf32>
    %547 = vector.broadcast %546 : vector<1x32xf32> to vector<24x32xf32>
    %548 = arith.addf %544, %547 : vector<24x32xf32>
    %549 = arith.mulf %515, %517 : vector<48x1xf32>
    %550 = vector.broadcast %549 : vector<48x1xf32> to vector<48x24xf32>
    %551 = arith.mulf %550, %378 : vector<48x24xf32>
    %552 = arith.mulf %516, %517 : vector<48x1xf32>
    %553 = vector.broadcast %552 : vector<48x1xf32> to vector<48x24xf32>
    %554 = arith.mulf %553, %382 : vector<48x24xf32>
    %555 = arith.addf %551, %554 : vector<48x24xf32>
    %cst_205 = arith.constant dense<0.000000e+00> : vector<48x32xf32>
    %556 = tpu.matmul %555, %548, %cst_205 {dimension_numbers = #tpu.dot_dimension_numbers<[1], [0], [0], [1], [0, 0, 1, 1], [], []>} : vector<48x24xf32>, vector<24x32xf32>, vector<48x32xf32> -> vector<48x32xf32>
    %557 = arith.addf %514, %556 : vector<48x32xf32>
    %558 = arith.addf %280, %557 : vector<48x32xf32>
    %c0_206 = arith.constant 0 : index
    %c0_207 = arith.constant 0 : index
    %559 = vector.load %arg30[%c0_206, %c0_207] : memref<48x32xf32, #tpu.memory_space<vmem>>, vector<48x32xf32>
    tpu.vector_store %arg30[%c0_206, %c0_207], %558 {strides = array<i32>} : memref<48x32xf32, #tpu.memory_space<vmem>>, vector<48x32xf32>,
    %c0_208 = arith.constant 0 : index
    %c0_209 = arith.constant 0 : index
    %560 = vector.load %arg30[%c0_208, %c0_209] : memref<48x32xf32, #tpu.memory_space<vmem>>, vector<48x32xf32>
    %c1_210 = arith.constant 1 : index
    %c0_211 = arith.constant 0 : index
    %c0_212 = arith.constant 0 : index
    %561 = vector.load %arg16[%c1_210, %c0_211, %c0_212] : memref<2x1x32xf32, #tpu.memory_space<vmem>>, vector<1x1x32xf32>
    %562 = vector.shape_cast %561 : vector<1x1x32xf32> to vector<1x32xf32>
    %c1_213 = arith.constant 1 : index
    %c0_214 = arith.constant 0 : index
    %c0_215 = arith.constant 0 : index
    %563 = vector.load %arg17[%c1_213, %c0_214, %c0_215] : memref<2x1x32xf32, #tpu.memory_space<vmem>>, vector<1x1x32xf32>
    %564 = vector.shape_cast %563 : vector<1x1x32xf32> to vector<1x32xf32>
    %cst_216 = arith.constant dense<0.000000e+00> : vector<48xf32>
    %565 = vector.multi_reduction <add>, %560, %cst_216 [1] : vector<48x32xf32> to vector<48xf32>
    %566 = vector.shape_cast %565 : vector<48xf32> to vector<48x1xf32>
    %cst_217 = arith.constant 3.200000e+01 : f32
    %567 = vector.broadcast %cst_217 : f32 to vector<48x1xf32>
    %568 = arith.divf %566, %567 : vector<48x1xf32>
    %569 = vector.broadcast %568 : vector<48x1xf32> to vector<48x32xf32>
    %570 = arith.subf %560, %569 : vector<48x32xf32>
    %571 = arith.mulf %570, %570 : vector<48x32xf32>
    %cst_218 = arith.constant dense<0.000000e+00> : vector<48xf32>
    %572 = vector.multi_reduction <add>, %571, %cst_218 [1] : vector<48x32xf32> to vector<48xf32>
    %573 = vector.shape_cast %572 : vector<48xf32> to vector<48x1xf32>
    %cst_219 = arith.constant 3.200000e+01 : f32
    %574 = vector.broadcast %cst_219 : f32 to vector<48x1xf32>
    %575 = arith.divf %573, %574 : vector<48x1xf32>
    %cst_220 = arith.constant 9.99999997E-7 : f32
    %576 = vector.broadcast %cst_220 : f32 to vector<48x1xf32>
    %577 = arith.addf %575, %576 : vector<48x1xf32>
    %578 = math.rsqrt %577 : vector<48x1xf32>
    %579 = vector.broadcast %578 : vector<48x1xf32> to vector<48x32xf32>
    %580 = arith.mulf %570, %579 : vector<48x32xf32>
    %581 = vector.broadcast %562 : vector<1x32xf32> to vector<48x32xf32>
    %582 = arith.mulf %580, %581 : vector<48x32xf32>
    %583 = vector.broadcast %564 : vector<1x32xf32> to vector<48x32xf32>
    %584 = arith.addf %582, %583 : vector<48x32xf32>
    %585 = arith.truncf %584 : vector<48x32xf32> to vector<48x32xbf16>
    %c0_221 = arith.constant 0 : index
    %c0_222 = arith.constant 0 : index
    %586 = vector.load %arg12[%c0_221, %c0_222] : memref<32x96xbf16, #tpu.memory_space<vmem>>, vector<32x96xbf16>
    %cst_223 = arith.constant dense<0.000000e+00> : vector<48x96xf32>
    %587 = tpu.matmul %585, %586, %cst_223 {dimension_numbers = #tpu.dot_dimension_numbers<[1], [0], [0], [1], [0, 0, 1, 1], [], []>} : vector<48x32xbf16>, vector<32x96xbf16>, vector<48x96xf32> -> vector<48x96xf32>
    %c0_224 = arith.constant 0 : index
    %c0_225 = arith.constant 0 : index
    %588 = vector.load %arg13[%c0_224, %c0_225] : memref<1x96xf32, #tpu.memory_space<vmem>>, vector<1x96xf32>
    %589 = vector.broadcast %588 : vector<1x96xf32> to vector<48x96xf32>
    %590 = arith.addf %587, %589 : vector<48x96xf32>
    %591 = vector.extract_strided_slice %590 {offsets = [0, 0], sizes = [24, 96], strides = [1, 1]} : vector<48x96xf32> to vector<24x96xf32>
    %cst_226 = arith.constant 0.000000e+00 : f32
    %592 = vector.broadcast %cst_226 : f32 to vector<24x32xf32>
    %593 = vector.extract_strided_slice %591 {offsets = [0, 0], sizes = [24, 8], strides = [1, 1]} : vector<24x96xf32> to vector<24x8xf32>
    %594 = arith.truncf %593 : vector<24x8xf32> to vector<24x8xbf16>
    %595 = vector.extract_strided_slice %591 {offsets = [0, 32], sizes = [24, 8], strides = [1, 1]} : vector<24x96xf32> to vector<24x8xf32>
    %596 = arith.truncf %595 : vector<24x8xf32> to vector<24x8xbf16>
    %597 = vector.extract_strided_slice %591 {offsets = [0, 64], sizes = [24, 8], strides = [1, 1]} : vector<24x96xf32> to vector<24x8xf32>
    %598 = arith.truncf %597 : vector<24x8xf32> to vector<24x8xbf16>
    %cst_227 = arith.constant dense<0.000000e+00> : vector<24x24xf32>
    %599 = tpu.matmul %594, %596, %cst_227 {dimension_numbers = #tpu.dot_dimension_numbers<[1], [1], [0], [0], [0, 0, 1, 0], [], []>} : vector<24x8xbf16>, vector<24x8xbf16>, vector<24x24xf32> -> vector<24x24xf32>
    %cst_228 = arith.constant 0.353553385 : f32
    %600 = vector.broadcast %cst_228 : f32 to vector<24x24xf32>
    %601 = arith.mulf %599, %600 : vector<24x24xf32>
    %602 = vector.broadcast %13 : vector<1x24xf32> to vector<24x24xf32>
    %603 = arith.addf %601, %602 : vector<24x24xf32>
    %cst_229 = arith.constant dense<0xFF800000> : vector<24xf32>
    %604 = vector.multi_reduction <maximumf>, %603, %cst_229 [1] : vector<24x24xf32> to vector<24xf32>
    %605 = vector.shape_cast %604 : vector<24xf32> to vector<24x1xf32>
    %606 = vector.broadcast %605 : vector<24x1xf32> to vector<24x24xf32>
    %607 = arith.subf %603, %606 : vector<24x24xf32>
    %608 = math.exp %607 : vector<24x24xf32>
    %cst_230 = arith.constant dense<0.000000e+00> : vector<24xf32>
    %609 = vector.multi_reduction <add>, %608, %cst_230 [1] : vector<24x24xf32> to vector<24xf32>
    %610 = vector.shape_cast %609 : vector<24xf32> to vector<24x1xf32>
    %611 = tpu.reciprocal %610 {approx = true} : vector<24x1xf32> -> vector<24x1xf32>
    %612 = vector.broadcast %611 : vector<24x1xf32> to vector<24x24xf32>
    %613 = arith.mulf %608, %612 : vector<24x24xf32>
    %614 = arith.truncf %613 : vector<24x24xf32> to vector<24x24xbf16>
    %cst_231 = arith.constant dense<0.000000e+00> : vector<24x8xf32>
    %615 = tpu.matmul %614, %598, %cst_231 {dimension_numbers = #tpu.dot_dimension_numbers<[1], [0], [0], [1], [0, 0, 1, 1], [], []>} : vector<24x24xbf16>, vector<24x8xbf16>, vector<24x8xf32> -> vector<24x8xf32>
    %616 = arith.truncf %615 : vector<24x8xf32> to vector<24x8xbf16>
    %617 = vector.extract_strided_slice %17 {offsets = [0, 0], sizes = [8, 32], strides = [1, 1]} : vector<32x32xbf16> to vector<8x32xbf16>
    %cst_232 = arith.constant dense<0.000000e+00> : vector<24x32xf32>
    %618 = tpu.matmul %616, %617, %cst_232 {dimension_numbers = #tpu.dot_dimension_numbers<[1], [0], [0], [1], [0, 0, 1, 1], [], []>} : vector<24x8xbf16>, vector<8x32xbf16>, vector<24x32xf32> -> vector<24x32xf32>
    %619 = arith.addf %592, %618 : vector<24x32xf32>
    %620 = vector.extract_strided_slice %591 {offsets = [0, 8], sizes = [24, 8], strides = [1, 1]} : vector<24x96xf32> to vector<24x8xf32>
    %621 = arith.truncf %620 : vector<24x8xf32> to vector<24x8xbf16>
    %622 = vector.extract_strided_slice %591 {offsets = [0, 40], sizes = [24, 8], strides = [1, 1]} : vector<24x96xf32> to vector<24x8xf32>
    %623 = arith.truncf %622 : vector<24x8xf32> to vector<24x8xbf16>
    %624 = vector.extract_strided_slice %591 {offsets = [0, 72], sizes = [24, 8], strides = [1, 1]} : vector<24x96xf32> to vector<24x8xf32>
    %625 = arith.truncf %624 : vector<24x8xf32> to vector<24x8xbf16>
    %cst_233 = arith.constant dense<0.000000e+00> : vector<24x24xf32>
    %626 = tpu.matmul %621, %623, %cst_233 {dimension_numbers = #tpu.dot_dimension_numbers<[1], [1], [0], [0], [0, 0, 1, 0], [], []>} : vector<24x8xbf16>, vector<24x8xbf16>, vector<24x24xf32> -> vector<24x24xf32>
    %cst_234 = arith.constant 0.353553385 : f32
    %627 = vector.broadcast %cst_234 : f32 to vector<24x24xf32>
    %628 = arith.mulf %626, %627 : vector<24x24xf32>
    %629 = vector.broadcast %13 : vector<1x24xf32> to vector<24x24xf32>
    %630 = arith.addf %628, %629 : vector<24x24xf32>
    %cst_235 = arith.constant dense<0xFF800000> : vector<24xf32>
    %631 = vector.multi_reduction <maximumf>, %630, %cst_235 [1] : vector<24x24xf32> to vector<24xf32>
    %632 = vector.shape_cast %631 : vector<24xf32> to vector<24x1xf32>
    %633 = vector.broadcast %632 : vector<24x1xf32> to vector<24x24xf32>
    %634 = arith.subf %630, %633 : vector<24x24xf32>
    %635 = math.exp %634 : vector<24x24xf32>
    %cst_236 = arith.constant dense<0.000000e+00> : vector<24xf32>
    %636 = vector.multi_reduction <add>, %635, %cst_236 [1] : vector<24x24xf32> to vector<24xf32>
    %637 = vector.shape_cast %636 : vector<24xf32> to vector<24x1xf32>
    %638 = tpu.reciprocal %637 {approx = true} : vector<24x1xf32> -> vector<24x1xf32>
    %639 = vector.broadcast %638 : vector<24x1xf32> to vector<24x24xf32>
    %640 = arith.mulf %635, %639 : vector<24x24xf32>
    %641 = arith.truncf %640 : vector<24x24xf32> to vector<24x24xbf16>
    %cst_237 = arith.constant dense<0.000000e+00> : vector<24x8xf32>
    %642 = tpu.matmul %641, %625, %cst_237 {dimension_numbers = #tpu.dot_dimension_numbers<[1], [0], [0], [1], [0, 0, 1, 1], [], []>} : vector<24x24xbf16>, vector<24x8xbf16>, vector<24x8xf32> -> vector<24x8xf32>
    %643 = arith.truncf %642 : vector<24x8xf32> to vector<24x8xbf16>
    %644 = vector.extract_strided_slice %17 {offsets = [8, 0], sizes = [8, 32], strides = [1, 1]} : vector<32x32xbf16> to vector<8x32xbf16>
    %cst_238 = arith.constant dense<0.000000e+00> : vector<24x32xf32>
    %645 = tpu.matmul %643, %644, %cst_238 {dimension_numbers = #tpu.dot_dimension_numbers<[1], [0], [0], [1], [0, 0, 1, 1], [], []>} : vector<24x8xbf16>, vector<8x32xbf16>, vector<24x32xf32> -> vector<24x32xf32>
    %646 = arith.addf %619, %645 : vector<24x32xf32>
    %647 = vector.extract_strided_slice %591 {offsets = [0, 16], sizes = [24, 8], strides = [1, 1]} : vector<24x96xf32> to vector<24x8xf32>
    %648 = arith.truncf %647 : vector<24x8xf32> to vector<24x8xbf16>
    %649 = vector.extract_strided_slice %591 {offsets = [0, 48], sizes = [24, 8], strides = [1, 1]} : vector<24x96xf32> to vector<24x8xf32>
    %650 = arith.truncf %649 : vector<24x8xf32> to vector<24x8xbf16>
    %651 = vector.extract_strided_slice %591 {offsets = [0, 80], sizes = [24, 8], strides = [1, 1]} : vector<24x96xf32> to vector<24x8xf32>
    %652 = arith.truncf %651 : vector<24x8xf32> to vector<24x8xbf16>
    %cst_239 = arith.constant dense<0.000000e+00> : vector<24x24xf32>
    %653 = tpu.matmul %648, %650, %cst_239 {dimension_numbers = #tpu.dot_dimension_numbers<[1], [1], [0], [0], [0, 0, 1, 0], [], []>} : vector<24x8xbf16>, vector<24x8xbf16>, vector<24x24xf32> -> vector<24x24xf32>
    %cst_240 = arith.constant 0.353553385 : f32
    %654 = vector.broadcast %cst_240 : f32 to vector<24x24xf32>
    %655 = arith.mulf %653, %654 : vector<24x24xf32>
    %656 = vector.broadcast %13 : vector<1x24xf32> to vector<24x24xf32>
    %657 = arith.addf %655, %656 : vector<24x24xf32>
    %cst_241 = arith.constant dense<0xFF800000> : vector<24xf32>
    %658 = vector.multi_reduction <maximumf>, %657, %cst_241 [1] : vector<24x24xf32> to vector<24xf32>
    %659 = vector.shape_cast %658 : vector<24xf32> to vector<24x1xf32>
    %660 = vector.broadcast %659 : vector<24x1xf32> to vector<24x24xf32>
    %661 = arith.subf %657, %660 : vector<24x24xf32>
    %662 = math.exp %661 : vector<24x24xf32>
    %cst_242 = arith.constant dense<0.000000e+00> : vector<24xf32>
    %663 = vector.multi_reduction <add>, %662, %cst_242 [1] : vector<24x24xf32> to vector<24xf32>
    %664 = vector.shape_cast %663 : vector<24xf32> to vector<24x1xf32>
    %665 = tpu.reciprocal %664 {approx = true} : vector<24x1xf32> -> vector<24x1xf32>
    %666 = vector.broadcast %665 : vector<24x1xf32> to vector<24x24xf32>
    %667 = arith.mulf %662, %666 : vector<24x24xf32>
    %668 = arith.truncf %667 : vector<24x24xf32> to vector<24x24xbf16>
    %cst_243 = arith.constant dense<0.000000e+00> : vector<24x8xf32>
    %669 = tpu.matmul %668, %652, %cst_243 {dimension_numbers = #tpu.dot_dimension_numbers<[1], [0], [0], [1], [0, 0, 1, 1], [], []>} : vector<24x24xbf16>, vector<24x8xbf16>, vector<24x8xf32> -> vector<24x8xf32>
    %670 = arith.truncf %669 : vector<24x8xf32> to vector<24x8xbf16>
    %671 = vector.extract_strided_slice %17 {offsets = [16, 0], sizes = [8, 32], strides = [1, 1]} : vector<32x32xbf16> to vector<8x32xbf16>
    %cst_244 = arith.constant dense<0.000000e+00> : vector<24x32xf32>
    %672 = tpu.matmul %670, %671, %cst_244 {dimension_numbers = #tpu.dot_dimension_numbers<[1], [0], [0], [1], [0, 0, 1, 1], [], []>} : vector<24x8xbf16>, vector<8x32xbf16>, vector<24x32xf32> -> vector<24x32xf32>
    %673 = arith.addf %646, %672 : vector<24x32xf32>
    %674 = vector.extract_strided_slice %591 {offsets = [0, 24], sizes = [24, 8], strides = [1, 1]} : vector<24x96xf32> to vector<24x8xf32>
    %675 = arith.truncf %674 : vector<24x8xf32> to vector<24x8xbf16>
    %676 = vector.extract_strided_slice %591 {offsets = [0, 56], sizes = [24, 8], strides = [1, 1]} : vector<24x96xf32> to vector<24x8xf32>
    %677 = arith.truncf %676 : vector<24x8xf32> to vector<24x8xbf16>
    %678 = vector.extract_strided_slice %591 {offsets = [0, 88], sizes = [24, 8], strides = [1, 1]} : vector<24x96xf32> to vector<24x8xf32>
    %679 = arith.truncf %678 : vector<24x8xf32> to vector<24x8xbf16>
    %cst_245 = arith.constant dense<0.000000e+00> : vector<24x24xf32>
    %680 = tpu.matmul %675, %677, %cst_245 {dimension_numbers = #tpu.dot_dimension_numbers<[1], [1], [0], [0], [0, 0, 1, 0], [], []>} : vector<24x8xbf16>, vector<24x8xbf16>, vector<24x24xf32> -> vector<24x24xf32>
    %cst_246 = arith.constant 0.353553385 : f32
    %681 = vector.broadcast %cst_246 : f32 to vector<24x24xf32>
    %682 = arith.mulf %680, %681 : vector<24x24xf32>
    %683 = vector.broadcast %13 : vector<1x24xf32> to vector<24x24xf32>
    %684 = arith.addf %682, %683 : vector<24x24xf32>
    %cst_247 = arith.constant dense<0xFF800000> : vector<24xf32>
    %685 = vector.multi_reduction <maximumf>, %684, %cst_247 [1] : vector<24x24xf32> to vector<24xf32>
    %686 = vector.shape_cast %685 : vector<24xf32> to vector<24x1xf32>
    %687 = vector.broadcast %686 : vector<24x1xf32> to vector<24x24xf32>
    %688 = arith.subf %684, %687 : vector<24x24xf32>
    %689 = math.exp %688 : vector<24x24xf32>
    %cst_248 = arith.constant dense<0.000000e+00> : vector<24xf32>
    %690 = vector.multi_reduction <add>, %689, %cst_248 [1] : vector<24x24xf32> to vector<24xf32>
    %691 = vector.shape_cast %690 : vector<24xf32> to vector<24x1xf32>
    %692 = tpu.reciprocal %691 {approx = true} : vector<24x1xf32> -> vector<24x1xf32>
    %693 = vector.broadcast %692 : vector<24x1xf32> to vector<24x24xf32>
    %694 = arith.mulf %689, %693 : vector<24x24xf32>
    %695 = arith.truncf %694 : vector<24x24xf32> to vector<24x24xbf16>
    %cst_249 = arith.constant dense<0.000000e+00> : vector<24x8xf32>
    %696 = tpu.matmul %695, %679, %cst_249 {dimension_numbers = #tpu.dot_dimension_numbers<[1], [0], [0], [1], [0, 0, 1, 1], [], []>} : vector<24x24xbf16>, vector<24x8xbf16>, vector<24x8xf32> -> vector<24x8xf32>
    %697 = arith.truncf %696 : vector<24x8xf32> to vector<24x8xbf16>
    %698 = vector.extract_strided_slice %17 {offsets = [24, 0], sizes = [8, 32], strides = [1, 1]} : vector<32x32xbf16> to vector<8x32xbf16>
    %cst_250 = arith.constant dense<0.000000e+00> : vector<24x32xf32>
    %699 = tpu.matmul %697, %698, %cst_250 {dimension_numbers = #tpu.dot_dimension_numbers<[1], [0], [0], [1], [0, 0, 1, 1], [], []>} : vector<24x8xbf16>, vector<8x32xbf16>, vector<24x32xf32> -> vector<24x32xf32>
    %700 = arith.addf %673, %699 : vector<24x32xf32>
    %701 = vector.extract_strided_slice %560 {offsets = [0, 0], sizes = [24, 32], strides = [1, 1]} : vector<48x32xf32> to vector<24x32xf32>
    %702 = arith.addf %701, %700 : vector<24x32xf32>
    %703 = vector.broadcast %18 : vector<1x32xf32> to vector<24x32xf32>
    %704 = arith.addf %702, %703 : vector<24x32xf32>
    %c0_251 = arith.constant 0 : index
    %c0_252 = arith.constant 0 : index
    %705 = vector.load %arg30[%c0_251, %c0_252] : memref<48x32xf32, #tpu.memory_space<vmem>>, vector<24x32xf32>
    tpu.vector_store %arg30[%c0_251, %c0_252], %704 {strides = array<i32>} : memref<48x32xf32, #tpu.memory_space<vmem>>, vector<24x32xf32>,
    %706 = vector.extract_strided_slice %590 {offsets = [24, 0], sizes = [24, 96], strides = [1, 1]} : vector<48x96xf32> to vector<24x96xf32>
    %cst_253 = arith.constant 0.000000e+00 : f32
    %707 = vector.broadcast %cst_253 : f32 to vector<24x32xf32>
    %708 = vector.extract_strided_slice %706 {offsets = [0, 0], sizes = [24, 8], strides = [1, 1]} : vector<24x96xf32> to vector<24x8xf32>
    %709 = arith.truncf %708 : vector<24x8xf32> to vector<24x8xbf16>
    %710 = vector.extract_strided_slice %706 {offsets = [0, 32], sizes = [24, 8], strides = [1, 1]} : vector<24x96xf32> to vector<24x8xf32>
    %711 = arith.truncf %710 : vector<24x8xf32> to vector<24x8xbf16>
    %712 = vector.extract_strided_slice %706 {offsets = [0, 64], sizes = [24, 8], strides = [1, 1]} : vector<24x96xf32> to vector<24x8xf32>
    %713 = arith.truncf %712 : vector<24x8xf32> to vector<24x8xbf16>
    %cst_254 = arith.constant dense<0.000000e+00> : vector<24x24xf32>
    %714 = tpu.matmul %709, %711, %cst_254 {dimension_numbers = #tpu.dot_dimension_numbers<[1], [1], [0], [0], [0, 0, 1, 0], [], []>} : vector<24x8xbf16>, vector<24x8xbf16>, vector<24x24xf32> -> vector<24x24xf32>
    %cst_255 = arith.constant 0.353553385 : f32
    %715 = vector.broadcast %cst_255 : f32 to vector<24x24xf32>
    %716 = arith.mulf %714, %715 : vector<24x24xf32>
    %717 = vector.broadcast %13 : vector<1x24xf32> to vector<24x24xf32>
    %718 = arith.addf %716, %717 : vector<24x24xf32>
    %cst_256 = arith.constant dense<0xFF800000> : vector<24xf32>
    %719 = vector.multi_reduction <maximumf>, %718, %cst_256 [1] : vector<24x24xf32> to vector<24xf32>
    %720 = vector.shape_cast %719 : vector<24xf32> to vector<24x1xf32>
    %721 = vector.broadcast %720 : vector<24x1xf32> to vector<24x24xf32>
    %722 = arith.subf %718, %721 : vector<24x24xf32>
    %723 = math.exp %722 : vector<24x24xf32>
    %cst_257 = arith.constant dense<0.000000e+00> : vector<24xf32>
    %724 = vector.multi_reduction <add>, %723, %cst_257 [1] : vector<24x24xf32> to vector<24xf32>
    %725 = vector.shape_cast %724 : vector<24xf32> to vector<24x1xf32>
    %726 = tpu.reciprocal %725 {approx = true} : vector<24x1xf32> -> vector<24x1xf32>
    %727 = vector.broadcast %726 : vector<24x1xf32> to vector<24x24xf32>
    %728 = arith.mulf %723, %727 : vector<24x24xf32>
    %729 = arith.truncf %728 : vector<24x24xf32> to vector<24x24xbf16>
    %cst_258 = arith.constant dense<0.000000e+00> : vector<24x8xf32>
    %730 = tpu.matmul %729, %713, %cst_258 {dimension_numbers = #tpu.dot_dimension_numbers<[1], [0], [0], [1], [0, 0, 1, 1], [], []>} : vector<24x24xbf16>, vector<24x8xbf16>, vector<24x8xf32> -> vector<24x8xf32>
    %731 = arith.truncf %730 : vector<24x8xf32> to vector<24x8xbf16>
    %732 = vector.extract_strided_slice %17 {offsets = [0, 0], sizes = [8, 32], strides = [1, 1]} : vector<32x32xbf16> to vector<8x32xbf16>
    %cst_259 = arith.constant dense<0.000000e+00> : vector<24x32xf32>
    %733 = tpu.matmul %731, %732, %cst_259 {dimension_numbers = #tpu.dot_dimension_numbers<[1], [0], [0], [1], [0, 0, 1, 1], [], []>} : vector<24x8xbf16>, vector<8x32xbf16>, vector<24x32xf32> -> vector<24x32xf32>
    %734 = arith.addf %707, %733 : vector<24x32xf32>
    %735 = vector.extract_strided_slice %706 {offsets = [0, 8], sizes = [24, 8], strides = [1, 1]} : vector<24x96xf32> to vector<24x8xf32>
    %736 = arith.truncf %735 : vector<24x8xf32> to vector<24x8xbf16>
    %737 = vector.extract_strided_slice %706 {offsets = [0, 40], sizes = [24, 8], strides = [1, 1]} : vector<24x96xf32> to vector<24x8xf32>
    %738 = arith.truncf %737 : vector<24x8xf32> to vector<24x8xbf16>
    %739 = vector.extract_strided_slice %706 {offsets = [0, 72], sizes = [24, 8], strides = [1, 1]} : vector<24x96xf32> to vector<24x8xf32>
    %740 = arith.truncf %739 : vector<24x8xf32> to vector<24x8xbf16>
    %cst_260 = arith.constant dense<0.000000e+00> : vector<24x24xf32>
    %741 = tpu.matmul %736, %738, %cst_260 {dimension_numbers = #tpu.dot_dimension_numbers<[1], [1], [0], [0], [0, 0, 1, 0], [], []>} : vector<24x8xbf16>, vector<24x8xbf16>, vector<24x24xf32> -> vector<24x24xf32>
    %cst_261 = arith.constant 0.353553385 : f32
    %742 = vector.broadcast %cst_261 : f32 to vector<24x24xf32>
    %743 = arith.mulf %741, %742 : vector<24x24xf32>
    %744 = vector.broadcast %13 : vector<1x24xf32> to vector<24x24xf32>
    %745 = arith.addf %743, %744 : vector<24x24xf32>
    %cst_262 = arith.constant dense<0xFF800000> : vector<24xf32>
    %746 = vector.multi_reduction <maximumf>, %745, %cst_262 [1] : vector<24x24xf32> to vector<24xf32>
    %747 = vector.shape_cast %746 : vector<24xf32> to vector<24x1xf32>
    %748 = vector.broadcast %747 : vector<24x1xf32> to vector<24x24xf32>
    %749 = arith.subf %745, %748 : vector<24x24xf32>
    %750 = math.exp %749 : vector<24x24xf32>
    %cst_263 = arith.constant dense<0.000000e+00> : vector<24xf32>
    %751 = vector.multi_reduction <add>, %750, %cst_263 [1] : vector<24x24xf32> to vector<24xf32>
    %752 = vector.shape_cast %751 : vector<24xf32> to vector<24x1xf32>
    %753 = tpu.reciprocal %752 {approx = true} : vector<24x1xf32> -> vector<24x1xf32>
    %754 = vector.broadcast %753 : vector<24x1xf32> to vector<24x24xf32>
    %755 = arith.mulf %750, %754 : vector<24x24xf32>
    %756 = arith.truncf %755 : vector<24x24xf32> to vector<24x24xbf16>
    %cst_264 = arith.constant dense<0.000000e+00> : vector<24x8xf32>
    %757 = tpu.matmul %756, %740, %cst_264 {dimension_numbers = #tpu.dot_dimension_numbers<[1], [0], [0], [1], [0, 0, 1, 1], [], []>} : vector<24x24xbf16>, vector<24x8xbf16>, vector<24x8xf32> -> vector<24x8xf32>
    %758 = arith.truncf %757 : vector<24x8xf32> to vector<24x8xbf16>
    %759 = vector.extract_strided_slice %17 {offsets = [8, 0], sizes = [8, 32], strides = [1, 1]} : vector<32x32xbf16> to vector<8x32xbf16>
    %cst_265 = arith.constant dense<0.000000e+00> : vector<24x32xf32>
    %760 = tpu.matmul %758, %759, %cst_265 {dimension_numbers = #tpu.dot_dimension_numbers<[1], [0], [0], [1], [0, 0, 1, 1], [], []>} : vector<24x8xbf16>, vector<8x32xbf16>, vector<24x32xf32> -> vector<24x32xf32>
    %761 = arith.addf %734, %760 : vector<24x32xf32>
    %762 = vector.extract_strided_slice %706 {offsets = [0, 16], sizes = [24, 8], strides = [1, 1]} : vector<24x96xf32> to vector<24x8xf32>
    %763 = arith.truncf %762 : vector<24x8xf32> to vector<24x8xbf16>
    %764 = vector.extract_strided_slice %706 {offsets = [0, 48], sizes = [24, 8], strides = [1, 1]} : vector<24x96xf32> to vector<24x8xf32>
    %765 = arith.truncf %764 : vector<24x8xf32> to vector<24x8xbf16>
    %766 = vector.extract_strided_slice %706 {offsets = [0, 80], sizes = [24, 8], strides = [1, 1]} : vector<24x96xf32> to vector<24x8xf32>
    %767 = arith.truncf %766 : vector<24x8xf32> to vector<24x8xbf16>
    %cst_266 = arith.constant dense<0.000000e+00> : vector<24x24xf32>
    %768 = tpu.matmul %763, %765, %cst_266 {dimension_numbers = #tpu.dot_dimension_numbers<[1], [1], [0], [0], [0, 0, 1, 0], [], []>} : vector<24x8xbf16>, vector<24x8xbf16>, vector<24x24xf32> -> vector<24x24xf32>
    %cst_267 = arith.constant 0.353553385 : f32
    %769 = vector.broadcast %cst_267 : f32 to vector<24x24xf32>
    %770 = arith.mulf %768, %769 : vector<24x24xf32>
    %771 = vector.broadcast %13 : vector<1x24xf32> to vector<24x24xf32>
    %772 = arith.addf %770, %771 : vector<24x24xf32>
    %cst_268 = arith.constant dense<0xFF800000> : vector<24xf32>
    %773 = vector.multi_reduction <maximumf>, %772, %cst_268 [1] : vector<24x24xf32> to vector<24xf32>
    %774 = vector.shape_cast %773 : vector<24xf32> to vector<24x1xf32>
    %775 = vector.broadcast %774 : vector<24x1xf32> to vector<24x24xf32>
    %776 = arith.subf %772, %775 : vector<24x24xf32>
    %777 = math.exp %776 : vector<24x24xf32>
    %cst_269 = arith.constant dense<0.000000e+00> : vector<24xf32>
    %778 = vector.multi_reduction <add>, %777, %cst_269 [1] : vector<24x24xf32> to vector<24xf32>
    %779 = vector.shape_cast %778 : vector<24xf32> to vector<24x1xf32>
    %780 = tpu.reciprocal %779 {approx = true} : vector<24x1xf32> -> vector<24x1xf32>
    %781 = vector.broadcast %780 : vector<24x1xf32> to vector<24x24xf32>
    %782 = arith.mulf %777, %781 : vector<24x24xf32>
    %783 = arith.truncf %782 : vector<24x24xf32> to vector<24x24xbf16>
    %cst_270 = arith.constant dense<0.000000e+00> : vector<24x8xf32>
    %784 = tpu.matmul %783, %767, %cst_270 {dimension_numbers = #tpu.dot_dimension_numbers<[1], [0], [0], [1], [0, 0, 1, 1], [], []>} : vector<24x24xbf16>, vector<24x8xbf16>, vector<24x8xf32> -> vector<24x8xf32>
    %785 = arith.truncf %784 : vector<24x8xf32> to vector<24x8xbf16>
    %786 = vector.extract_strided_slice %17 {offsets = [16, 0], sizes = [8, 32], strides = [1, 1]} : vector<32x32xbf16> to vector<8x32xbf16>
    %cst_271 = arith.constant dense<0.000000e+00> : vector<24x32xf32>
    %787 = tpu.matmul %785, %786, %cst_271 {dimension_numbers = #tpu.dot_dimension_numbers<[1], [0], [0], [1], [0, 0, 1, 1], [], []>} : vector<24x8xbf16>, vector<8x32xbf16>, vector<24x32xf32> -> vector<24x32xf32>
    %788 = arith.addf %761, %787 : vector<24x32xf32>
    %789 = vector.extract_strided_slice %706 {offsets = [0, 24], sizes = [24, 8], strides = [1, 1]} : vector<24x96xf32> to vector<24x8xf32>
    %790 = arith.truncf %789 : vector<24x8xf32> to vector<24x8xbf16>
    %791 = vector.extract_strided_slice %706 {offsets = [0, 56], sizes = [24, 8], strides = [1, 1]} : vector<24x96xf32> to vector<24x8xf32>
    %792 = arith.truncf %791 : vector<24x8xf32> to vector<24x8xbf16>
    %793 = vector.extract_strided_slice %706 {offsets = [0, 88], sizes = [24, 8], strides = [1, 1]} : vector<24x96xf32> to vector<24x8xf32>
    %794 = arith.truncf %793 : vector<24x8xf32> to vector<24x8xbf16>
    %cst_272 = arith.constant dense<0.000000e+00> : vector<24x24xf32>
    %795 = tpu.matmul %790, %792, %cst_272 {dimension_numbers = #tpu.dot_dimension_numbers<[1], [1], [0], [0], [0, 0, 1, 0], [], []>} : vector<24x8xbf16>, vector<24x8xbf16>, vector<24x24xf32> -> vector<24x24xf32>
    %cst_273 = arith.constant 0.353553385 : f32
    %796 = vector.broadcast %cst_273 : f32 to vector<24x24xf32>
    %797 = arith.mulf %795, %796 : vector<24x24xf32>
    %798 = vector.broadcast %13 : vector<1x24xf32> to vector<24x24xf32>
    %799 = arith.addf %797, %798 : vector<24x24xf32>
    %cst_274 = arith.constant dense<0xFF800000> : vector<24xf32>
    %800 = vector.multi_reduction <maximumf>, %799, %cst_274 [1] : vector<24x24xf32> to vector<24xf32>
    %801 = vector.shape_cast %800 : vector<24xf32> to vector<24x1xf32>
    %802 = vector.broadcast %801 : vector<24x1xf32> to vector<24x24xf32>
    %803 = arith.subf %799, %802 : vector<24x24xf32>
    %804 = math.exp %803 : vector<24x24xf32>
    %cst_275 = arith.constant dense<0.000000e+00> : vector<24xf32>
    %805 = vector.multi_reduction <add>, %804, %cst_275 [1] : vector<24x24xf32> to vector<24xf32>
    %806 = vector.shape_cast %805 : vector<24xf32> to vector<24x1xf32>
    %807 = tpu.reciprocal %806 {approx = true} : vector<24x1xf32> -> vector<24x1xf32>
    %808 = vector.broadcast %807 : vector<24x1xf32> to vector<24x24xf32>
    %809 = arith.mulf %804, %808 : vector<24x24xf32>
    %810 = arith.truncf %809 : vector<24x24xf32> to vector<24x24xbf16>
    %cst_276 = arith.constant dense<0.000000e+00> : vector<24x8xf32>
    %811 = tpu.matmul %810, %794, %cst_276 {dimension_numbers = #tpu.dot_dimension_numbers<[1], [0], [0], [1], [0, 0, 1, 1], [], []>} : vector<24x24xbf16>, vector<24x8xbf16>, vector<24x8xf32> -> vector<24x8xf32>
    %812 = arith.truncf %811 : vector<24x8xf32> to vector<24x8xbf16>
    %813 = vector.extract_strided_slice %17 {offsets = [24, 0], sizes = [8, 32], strides = [1, 1]} : vector<32x32xbf16> to vector<8x32xbf16>
    %cst_277 = arith.constant dense<0.000000e+00> : vector<24x32xf32>
    %814 = tpu.matmul %812, %813, %cst_277 {dimension_numbers = #tpu.dot_dimension_numbers<[1], [0], [0], [1], [0, 0, 1, 1], [], []>} : vector<24x8xbf16>, vector<8x32xbf16>, vector<24x32xf32> -> vector<24x32xf32>
    %815 = arith.addf %788, %814 : vector<24x32xf32>
    %816 = vector.extract_strided_slice %560 {offsets = [24, 0], sizes = [24, 32], strides = [1, 1]} : vector<48x32xf32> to vector<24x32xf32>
    %817 = arith.addf %816, %815 : vector<24x32xf32>
    %818 = vector.broadcast %18 : vector<1x32xf32> to vector<24x32xf32>
    %819 = arith.addf %817, %818 : vector<24x32xf32>
    %c24_278 = arith.constant 24 : index
    %c0_279 = arith.constant 0 : index
    %820 = vector.load %arg30[%c24_278, %c0_279] : memref<48x32xf32, #tpu.memory_space<vmem>>, vector<24x32xf32>
    tpu.vector_store %arg30[%c24_278, %c0_279], %819 {strides = array<i32>} : memref<48x32xf32, #tpu.memory_space<vmem>>, vector<24x32xf32>,
    %c0_280 = arith.constant 0 : index
    %c0_281 = arith.constant 0 : index
    %821 = vector.load %arg30[%c0_280, %c0_281] : memref<48x32xf32, #tpu.memory_space<vmem>>, vector<48x32xf32>
    %c1_282 = arith.constant 1 : index
    %c0_283 = arith.constant 0 : index
    %c0_284 = arith.constant 0 : index
    %822 = vector.load %arg18[%c1_282, %c0_283, %c0_284] : memref<2x1x32xf32, #tpu.memory_space<vmem>>, vector<1x1x32xf32>
    %823 = vector.shape_cast %822 : vector<1x1x32xf32> to vector<1x32xf32>
    %c1_285 = arith.constant 1 : index
    %c0_286 = arith.constant 0 : index
    %c0_287 = arith.constant 0 : index
    %824 = vector.load %arg19[%c1_285, %c0_286, %c0_287] : memref<2x1x32xf32, #tpu.memory_space<vmem>>, vector<1x1x32xf32>
    %825 = vector.shape_cast %824 : vector<1x1x32xf32> to vector<1x32xf32>
    %cst_288 = arith.constant dense<0.000000e+00> : vector<48xf32>
    %826 = vector.multi_reduction <add>, %821, %cst_288 [1] : vector<48x32xf32> to vector<48xf32>
    %827 = vector.shape_cast %826 : vector<48xf32> to vector<48x1xf32>
    %cst_289 = arith.constant 3.200000e+01 : f32
    %828 = vector.broadcast %cst_289 : f32 to vector<48x1xf32>
    %829 = arith.divf %827, %828 : vector<48x1xf32>
    %830 = vector.broadcast %829 : vector<48x1xf32> to vector<48x32xf32>
    %831 = arith.subf %821, %830 : vector<48x32xf32>
    %832 = arith.mulf %831, %831 : vector<48x32xf32>
    %cst_290 = arith.constant dense<0.000000e+00> : vector<48xf32>
    %833 = vector.multi_reduction <add>, %832, %cst_290 [1] : vector<48x32xf32> to vector<48xf32>
    %834 = vector.shape_cast %833 : vector<48xf32> to vector<48x1xf32>
    %cst_291 = arith.constant 3.200000e+01 : f32
    %835 = vector.broadcast %cst_291 : f32 to vector<48x1xf32>
    %836 = arith.divf %834, %835 : vector<48x1xf32>
    %cst_292 = arith.constant 9.99999997E-7 : f32
    %837 = vector.broadcast %cst_292 : f32 to vector<48x1xf32>
    %838 = arith.addf %836, %837 : vector<48x1xf32>
    %839 = math.rsqrt %838 : vector<48x1xf32>
    %840 = vector.broadcast %839 : vector<48x1xf32> to vector<48x32xf32>
    %841 = arith.mulf %831, %840 : vector<48x32xf32>
    %842 = vector.broadcast %823 : vector<1x32xf32> to vector<48x32xf32>
    %843 = arith.mulf %841, %842 : vector<48x32xf32>
    %844 = vector.broadcast %825 : vector<1x32xf32> to vector<48x32xf32>
    %845 = arith.addf %843, %844 : vector<48x32xf32>
    %c1_293 = arith.constant 1 : index
    %c0_294 = arith.constant 0 : index
    %c0_295 = arith.constant 0 : index
    %846 = vector.load %arg20[%c1_293, %c0_294, %c0_295] : memref<2x32x4xf32, #tpu.memory_space<vmem>>, vector<1x32x4xf32>
    %847 = vector.shape_cast %846 : vector<1x32x4xf32> to vector<32x4xf32>
    %cst_296 = arith.constant dense<0.000000e+00> : vector<48x4xf32>
    %848 = tpu.matmul %845, %847, %cst_296 {dimension_numbers = #tpu.dot_dimension_numbers<[1], [0], [0], [1], [0, 0, 1, 1], [], []>} : vector<48x32xf32>, vector<32x4xf32>, vector<48x4xf32> -> vector<48x4xf32>
    %cst_297 = arith.constant dense<0xFF800000> : vector<48xf32>
    %849 = vector.multi_reduction <maximumf>, %848, %cst_297 [1] : vector<48x4xf32> to vector<48xf32>
    %850 = vector.shape_cast %849 : vector<48xf32> to vector<48x1xf32>
    %851 = vector.broadcast %850 : vector<48x1xf32> to vector<48x4xf32>
    %852 = arith.subf %848, %851 : vector<48x4xf32>
    %853 = math.exp %852 : vector<48x4xf32>
    %cst_298 = arith.constant dense<0.000000e+00> : vector<48xf32>
    %854 = vector.multi_reduction <add>, %853, %cst_298 [1] : vector<48x4xf32> to vector<48xf32>
    %855 = vector.shape_cast %854 : vector<48xf32> to vector<48x1xf32>
    %856 = vector.broadcast %855 : vector<48x1xf32> to vector<48x4xf32>
    %857 = arith.divf %853, %856 : vector<48x4xf32>
    %cst_299 = arith.constant dense<0xFF800000> : vector<48xf32>
    %858 = vector.multi_reduction <maximumf>, %857, %cst_299 [1] : vector<48x4xf32> to vector<48xf32>
    %859 = vector.shape_cast %858 : vector<48xf32> to vector<48x1xf32>
    %860 = vector.broadcast %859 : vector<48x1xf32> to vector<48x4xf32>
    %861 = arith.cmpf oeq, %857, %860 : vector<48x4xf32>
    %cst_300 = arith.constant 4.000000e+00 : f32
    %862 = vector.broadcast %cst_300 : f32 to vector<48x4xf32>
    %863 = arith.select %861, %15, %862 : vector<48x4xi1>, vector<48x4xf32>
    %cst_301 = arith.constant dense<0x7F800000> : vector<48xf32>
    %864 = vector.multi_reduction <minimumf>, %863, %cst_301 [1] : vector<48x4xf32> to vector<48xf32>
    %865 = vector.shape_cast %864 : vector<48xf32> to vector<48x1xf32>
    %866 = vector.broadcast %865 : vector<48x1xf32> to vector<48x4xf32>
    %867 = arith.cmpf oeq, %15, %866 : vector<48x4xf32>
    %868 = arith.extui %867 : vector<48x4xi1> to vector<48x4xi32>
    %869 = arith.sitofp %868 : vector<48x4xi32> to vector<48x4xf32>
    %870 = vector.broadcast %12 : vector<48x1xf32> to vector<48x4xf32>
    %871 = arith.mulf %869, %870 : vector<48x4xf32>
    %872 = vector.broadcast %865 : vector<48x1xf32> to vector<48x4xf32>
    %873 = arith.cmpf oeq, %15, %872 : vector<48x4xf32>
    %cst_302 = arith.constant -1.000000e+00 : f32
    %874 = vector.broadcast %cst_302 : f32 to vector<48x4xf32>
    %875 = arith.select %873, %874, %857 : vector<48x4xi1>, vector<48x4xf32>
    %cst_303 = arith.constant dense<0xFF800000> : vector<48xf32>
    %876 = vector.multi_reduction <maximumf>, %875, %cst_303 [1] : vector<48x4xf32> to vector<48xf32>
    %877 = vector.shape_cast %876 : vector<48xf32> to vector<48x1xf32>
    %878 = vector.broadcast %877 : vector<48x1xf32> to vector<48x4xf32>
    %879 = arith.cmpf oeq, %875, %878 : vector<48x4xf32>
    %cst_304 = arith.constant 4.000000e+00 : f32
    %880 = vector.broadcast %cst_304 : f32 to vector<48x4xf32>
    %881 = arith.select %879, %15, %880 : vector<48x4xi1>, vector<48x4xf32>
    %cst_305 = arith.constant dense<0x7F800000> : vector<48xf32>
    %882 = vector.multi_reduction <minimumf>, %881, %cst_305 [1] : vector<48x4xf32> to vector<48xf32>
    %883 = vector.shape_cast %882 : vector<48xf32> to vector<48x1xf32>
    %884 = vector.broadcast %883 : vector<48x1xf32> to vector<48x4xf32>
    %885 = arith.cmpf oeq, %15, %884 : vector<48x4xf32>
    %886 = arith.extui %885 : vector<48x4xi1> to vector<48x4xi32>
    %887 = arith.sitofp %886 : vector<48x4xi32> to vector<48x4xf32>
    %888 = vector.broadcast %12 : vector<48x1xf32> to vector<48x4xf32>
    %889 = arith.mulf %887, %888 : vector<48x4xf32>
    %cst_306 = arith.constant dense<0.000000e+00> : vector<48x4xf32>
    %890 = tpu.matmul %14, %871, %cst_306 {dimension_numbers = #tpu.dot_dimension_numbers<[1], [0], [0], [1], [0, 0, 1, 1], [], []>} : vector<48x48xf32>, vector<48x4xf32>, vector<48x4xf32> -> vector<48x4xf32>
    %cst_307 = arith.constant 1.000000e+00 : f32
    %891 = vector.broadcast %cst_307 : f32 to vector<48x4xf32>
    %892 = arith.subf %890, %891 : vector<48x4xf32>
    %cst_308 = arith.constant dense<0.000000e+00> : vector<48x4xf32>
    %893 = tpu.matmul %14, %889, %cst_308 {dimension_numbers = #tpu.dot_dimension_numbers<[1], [0], [0], [1], [0, 0, 1, 1], [], []>} : vector<48x48xf32>, vector<48x4xf32>, vector<48x4xf32> -> vector<48x4xf32>
    %cst_309 = arith.constant 1.000000e+00 : f32
    %894 = vector.broadcast %cst_309 : f32 to vector<48x4xf32>
    %895 = arith.subf %893, %894 : vector<48x4xf32>
    %cst_310 = arith.constant dense<0.000000e+00> : vector<4xf32>
    %896 = vector.multi_reduction <add>, %871, %cst_310 [0] : vector<48x4xf32> to vector<4xf32>
    %897 = vector.shape_cast %896 : vector<4xf32> to vector<1x4xf32>
    %898 = vector.broadcast %897 : vector<1x4xf32> to vector<48x4xf32>
    %899 = arith.addf %895, %898 : vector<48x4xf32>
    %cst_311 = arith.constant 1.800000e+01 : f32
    %900 = vector.broadcast %cst_311 : f32 to vector<48x4xf32>
    %901 = arith.cmpf olt, %892, %900 : vector<48x4xf32>
    %902 = arith.extui %901 : vector<48x4xi1> to vector<48x4xi32>
    %903 = arith.sitofp %902 : vector<48x4xi32> to vector<48x4xf32>
    %904 = arith.mulf %871, %903 : vector<48x4xf32>
    %cst_312 = arith.constant 1.800000e+01 : f32
    %905 = vector.broadcast %cst_312 : f32 to vector<48x4xf32>
    %906 = arith.cmpf olt, %899, %905 : vector<48x4xf32>
    %907 = arith.extui %906 : vector<48x4xi1> to vector<48x4xi32>
    %908 = arith.sitofp %907 : vector<48x4xi32> to vector<48x4xf32>
    %909 = arith.mulf %889, %908 : vector<48x4xf32>
    %910 = arith.mulf %904, %892 : vector<48x4xf32>
    %cst_313 = arith.constant dense<0.000000e+00> : vector<48xf32>
    %911 = vector.multi_reduction <add>, %910, %cst_313 [1] : vector<48x4xf32> to vector<48xf32>
    %912 = vector.shape_cast %911 : vector<48xf32> to vector<48x1xf32>
    %913 = arith.mulf %909, %899 : vector<48x4xf32>
    %cst_314 = arith.constant dense<0.000000e+00> : vector<48xf32>
    %914 = vector.multi_reduction <add>, %913, %cst_314 [1] : vector<48x4xf32> to vector<48xf32>
    %915 = vector.shape_cast %914 : vector<48xf32> to vector<48x1xf32>
    %916 = vector.broadcast %912 : vector<48x1xf32> to vector<48x24xf32>
    %917 = arith.cmpf oeq, %16, %916 : vector<48x24xf32>
    %918 = arith.extui %917 : vector<48x24xi1> to vector<48x24xi32>
    %919 = arith.sitofp %918 : vector<48x24xi32> to vector<48x24xf32>
    %920 = vector.broadcast %915 : vector<48x1xf32> to vector<48x24xf32>
    %921 = arith.cmpf oeq, %16, %920 : vector<48x24xf32>
    %922 = arith.extui %921 : vector<48x24xi1> to vector<48x24xi32>
    %923 = arith.sitofp %922 : vector<48x24xi32> to vector<48x24xf32>
    %924 = vector.broadcast %12 : vector<48x1xf32> to vector<48x32xf32>
    %925 = arith.mulf %845, %924 : vector<48x32xf32>
    %cst_315 = arith.constant 0.000000e+00 : f32
    %926 = vector.broadcast %cst_315 : f32 to vector<48x32xf32>
    %927 = vector.extract_strided_slice %904 {offsets = [0, 0], sizes = [48, 1], strides = [1, 1]} : vector<48x4xf32> to vector<48x1xf32>
    %928 = vector.extract_strided_slice %909 {offsets = [0, 0], sizes = [48, 1], strides = [1, 1]} : vector<48x4xf32> to vector<48x1xf32>
    %929 = vector.extract_strided_slice %857 {offsets = [0, 0], sizes = [48, 1], strides = [1, 1]} : vector<48x4xf32> to vector<48x1xf32>
    %930 = vector.broadcast %927 : vector<48x1xf32> to vector<48x24xf32>
    %931 = arith.mulf %930, %919 : vector<48x24xf32>
    %932 = vector.broadcast %928 : vector<48x1xf32> to vector<48x24xf32>
    %933 = arith.mulf %932, %923 : vector<48x24xf32>
    %934 = arith.addf %931, %933 : vector<48x24xf32>
    %935 = tpu.transpose %934, [1, 0] : vector<48x24xf32> -> vector<24x48xf32>
    %cst_316 = arith.constant dense<0.000000e+00> : vector<24x32xf32>
    %936 = tpu.matmul %935, %925, %cst_316 {dimension_numbers = #tpu.dot_dimension_numbers<[1], [0], [0], [1], [0, 0, 1, 1], [], []>} : vector<24x48xf32>, vector<48x32xf32>, vector<24x32xf32> -> vector<24x32xf32>
    %937 = arith.truncf %936 : vector<24x32xf32> to vector<24x32xbf16>
    %c0_317 = arith.constant 0 : index
    %c0_318 = arith.constant 0 : index
    %c0_319 = arith.constant 0 : index
    %938 = vector.load %arg21[%c0_317, %c0_318, %c0_319] : memref<4x32x64xbf16, #tpu.memory_space<vmem>>, vector<1x32x64xbf16>
    %939 = vector.shape_cast %938 : vector<1x32x64xbf16> to vector<32x64xbf16>
    %cst_320 = arith.constant dense<0.000000e+00> : vector<24x64xf32>
    %940 = tpu.matmul %937, %939, %cst_320 {dimension_numbers = #tpu.dot_dimension_numbers<[1], [0], [0], [1], [0, 0, 1, 1], [], []>} : vector<24x32xbf16>, vector<32x64xbf16>, vector<24x64xf32> -> vector<24x64xf32>
    %c0_321 = arith.constant 0 : index
    %c0_322 = arith.constant 0 : index
    %c0_323 = arith.constant 0 : index
    %941 = vector.load %arg22[%c0_321, %c0_322, %c0_323] : memref<4x1x64xf32, #tpu.memory_space<vmem>>, vector<1x1x64xf32>
    %942 = vector.shape_cast %941 : vector<1x1x64xf32> to vector<1x64xf32>
    %943 = vector.broadcast %942 : vector<1x64xf32> to vector<24x64xf32>
    %944 = arith.addf %940, %943 : vector<24x64xf32>
    %cst_324 = arith.constant 5.000000e-01 : f32
    %945 = vector.broadcast %cst_324 : f32 to vector<24x64xf32>
    %946 = arith.mulf %945, %944 : vector<24x64xf32>
    %cst_325 = arith.constant 0.707106769 : f32
    %947 = vector.broadcast %cst_325 : f32 to vector<24x64xf32>
    %948 = arith.mulf %944, %947 : vector<24x64xf32>
    %949 = math.erf %948 : vector<24x64xf32>
    %cst_326 = arith.constant 1.000000e+00 : f32
    %950 = vector.broadcast %cst_326 : f32 to vector<24x64xf32>
    %951 = arith.addf %950, %949 : vector<24x64xf32>
    %952 = arith.mulf %946, %951 : vector<24x64xf32>
    %953 = arith.truncf %952 : vector<24x64xf32> to vector<24x64xbf16>
    %c0_327 = arith.constant 0 : index
    %c0_328 = arith.constant 0 : index
    %c0_329 = arith.constant 0 : index
    %954 = vector.load %arg23[%c0_327, %c0_328, %c0_329] : memref<4x64x32xbf16, #tpu.memory_space<vmem>>, vector<1x64x32xbf16>
    %955 = vector.shape_cast %954 : vector<1x64x32xbf16> to vector<64x32xbf16>
    %cst_330 = arith.constant dense<0.000000e+00> : vector<24x32xf32>
    %956 = tpu.matmul %953, %955, %cst_330 {dimension_numbers = #tpu.dot_dimension_numbers<[1], [0], [0], [1], [0, 0, 1, 1], [], []>} : vector<24x64xbf16>, vector<64x32xbf16>, vector<24x32xf32> -> vector<24x32xf32>
    %c0_331 = arith.constant 0 : index
    %c0_332 = arith.constant 0 : index
    %c0_333 = arith.constant 0 : index
    %957 = vector.load %arg24[%c0_331, %c0_332, %c0_333] : memref<4x1x32xf32, #tpu.memory_space<vmem>>, vector<1x1x32xf32>
    %958 = vector.shape_cast %957 : vector<1x1x32xf32> to vector<1x32xf32>
    %959 = vector.broadcast %958 : vector<1x32xf32> to vector<24x32xf32>
    %960 = arith.addf %956, %959 : vector<24x32xf32>
    %961 = arith.mulf %927, %929 : vector<48x1xf32>
    %962 = vector.broadcast %961 : vector<48x1xf32> to vector<48x24xf32>
    %963 = arith.mulf %962, %919 : vector<48x24xf32>
    %964 = arith.mulf %928, %929 : vector<48x1xf32>
    %965 = vector.broadcast %964 : vector<48x1xf32> to vector<48x24xf32>
    %966 = arith.mulf %965, %923 : vector<48x24xf32>
    %967 = arith.addf %963, %966 : vector<48x24xf32>
    %cst_334 = arith.constant dense<0.000000e+00> : vector<48x32xf32>
    %968 = tpu.matmul %967, %960, %cst_334 {dimension_numbers = #tpu.dot_dimension_numbers<[1], [0], [0], [1], [0, 0, 1, 1], [], []>} : vector<48x24xf32>, vector<24x32xf32>, vector<48x32xf32> -> vector<48x32xf32>
    %969 = arith.addf %926, %968 : vector<48x32xf32>
    %970 = vector.extract_strided_slice %904 {offsets = [0, 1], sizes = [48, 1], strides = [1, 1]} : vector<48x4xf32> to vector<48x1xf32>
    %971 = vector.extract_strided_slice %909 {offsets = [0, 1], sizes = [48, 1], strides = [1, 1]} : vector<48x4xf32> to vector<48x1xf32>
    %972 = vector.extract_strided_slice %857 {offsets = [0, 1], sizes = [48, 1], strides = [1, 1]} : vector<48x4xf32> to vector<48x1xf32>
    %973 = vector.broadcast %970 : vector<48x1xf32> to vector<48x24xf32>
    %974 = arith.mulf %973, %919 : vector<48x24xf32>
    %975 = vector.broadcast %971 : vector<48x1xf32> to vector<48x24xf32>
    %976 = arith.mulf %975, %923 : vector<48x24xf32>
    %977 = arith.addf %974, %976 : vector<48x24xf32>
    %978 = tpu.transpose %977, [1, 0] : vector<48x24xf32> -> vector<24x48xf32>
    %cst_335 = arith.constant dense<0.000000e+00> : vector<24x32xf32>
    %979 = tpu.matmul %978, %925, %cst_335 {dimension_numbers = #tpu.dot_dimension_numbers<[1], [0], [0], [1], [0, 0, 1, 1], [], []>} : vector<24x48xf32>, vector<48x32xf32>, vector<24x32xf32> -> vector<24x32xf32>
    %980 = arith.truncf %979 : vector<24x32xf32> to vector<24x32xbf16>
    %c1_336 = arith.constant 1 : index
    %c0_337 = arith.constant 0 : index
    %c0_338 = arith.constant 0 : index
    %981 = vector.load %arg21[%c1_336, %c0_337, %c0_338] : memref<4x32x64xbf16, #tpu.memory_space<vmem>>, vector<1x32x64xbf16>
    %982 = vector.shape_cast %981 : vector<1x32x64xbf16> to vector<32x64xbf16>
    %cst_339 = arith.constant dense<0.000000e+00> : vector<24x64xf32>
    %983 = tpu.matmul %980, %982, %cst_339 {dimension_numbers = #tpu.dot_dimension_numbers<[1], [0], [0], [1], [0, 0, 1, 1], [], []>} : vector<24x32xbf16>, vector<32x64xbf16>, vector<24x64xf32> -> vector<24x64xf32>
    %c1_340 = arith.constant 1 : index
    %c0_341 = arith.constant 0 : index
    %c0_342 = arith.constant 0 : index
    %984 = vector.load %arg22[%c1_340, %c0_341, %c0_342] : memref<4x1x64xf32, #tpu.memory_space<vmem>>, vector<1x1x64xf32>
    %985 = vector.shape_cast %984 : vector<1x1x64xf32> to vector<1x64xf32>
    %986 = vector.broadcast %985 : vector<1x64xf32> to vector<24x64xf32>
    %987 = arith.addf %983, %986 : vector<24x64xf32>
    %cst_343 = arith.constant 5.000000e-01 : f32
    %988 = vector.broadcast %cst_343 : f32 to vector<24x64xf32>
    %989 = arith.mulf %988, %987 : vector<24x64xf32>
    %cst_344 = arith.constant 0.707106769 : f32
    %990 = vector.broadcast %cst_344 : f32 to vector<24x64xf32>
    %991 = arith.mulf %987, %990 : vector<24x64xf32>
    %992 = math.erf %991 : vector<24x64xf32>
    %cst_345 = arith.constant 1.000000e+00 : f32
    %993 = vector.broadcast %cst_345 : f32 to vector<24x64xf32>
    %994 = arith.addf %993, %992 : vector<24x64xf32>
    %995 = arith.mulf %989, %994 : vector<24x64xf32>
    %996 = arith.truncf %995 : vector<24x64xf32> to vector<24x64xbf16>
    %c1_346 = arith.constant 1 : index
    %c0_347 = arith.constant 0 : index
    %c0_348 = arith.constant 0 : index
    %997 = vector.load %arg23[%c1_346, %c0_347, %c0_348] : memref<4x64x32xbf16, #tpu.memory_space<vmem>>, vector<1x64x32xbf16>
    %998 = vector.shape_cast %997 : vector<1x64x32xbf16> to vector<64x32xbf16>
    %cst_349 = arith.constant dense<0.000000e+00> : vector<24x32xf32>
    %999 = tpu.matmul %996, %998, %cst_349 {dimension_numbers = #tpu.dot_dimension_numbers<[1], [0], [0], [1], [0, 0, 1, 1], [], []>} : vector<24x64xbf16>, vector<64x32xbf16>, vector<24x32xf32> -> vector<24x32xf32>
    %c1_350 = arith.constant 1 : index
    %c0_351 = arith.constant 0 : index
    %c0_352 = arith.constant 0 : index
    %1000 = vector.load %arg24[%c1_350, %c0_351, %c0_352] : memref<4x1x32xf32, #tpu.memory_space<vmem>>, vector<1x1x32xf32>
    %1001 = vector.shape_cast %1000 : vector<1x1x32xf32> to vector<1x32xf32>
    %1002 = vector.broadcast %1001 : vector<1x32xf32> to vector<24x32xf32>
    %1003 = arith.addf %999, %1002 : vector<24x32xf32>
    %1004 = arith.mulf %970, %972 : vector<48x1xf32>
    %1005 = vector.broadcast %1004 : vector<48x1xf32> to vector<48x24xf32>
    %1006 = arith.mulf %1005, %919 : vector<48x24xf32>
    %1007 = arith.mulf %971, %972 : vector<48x1xf32>
    %1008 = vector.broadcast %1007 : vector<48x1xf32> to vector<48x24xf32>
    %1009 = arith.mulf %1008, %923 : vector<48x24xf32>
    %1010 = arith.addf %1006, %1009 : vector<48x24xf32>
    %cst_353 = arith.constant dense<0.000000e+00> : vector<48x32xf32>
    %1011 = tpu.matmul %1010, %1003, %cst_353 {dimension_numbers = #tpu.dot_dimension_numbers<[1], [0], [0], [1], [0, 0, 1, 1], [], []>} : vector<48x24xf32>, vector<24x32xf32>, vector<48x32xf32> -> vector<48x32xf32>
    %1012 = arith.addf %969, %1011 : vector<48x32xf32>
    %1013 = vector.extract_strided_slice %904 {offsets = [0, 2], sizes = [48, 1], strides = [1, 1]} : vector<48x4xf32> to vector<48x1xf32>
    %1014 = vector.extract_strided_slice %909 {offsets = [0, 2], sizes = [48, 1], strides = [1, 1]} : vector<48x4xf32> to vector<48x1xf32>
    %1015 = vector.extract_strided_slice %857 {offsets = [0, 2], sizes = [48, 1], strides = [1, 1]} : vector<48x4xf32> to vector<48x1xf32>
    %1016 = vector.broadcast %1013 : vector<48x1xf32> to vector<48x24xf32>
    %1017 = arith.mulf %1016, %919 : vector<48x24xf32>
    %1018 = vector.broadcast %1014 : vector<48x1xf32> to vector<48x24xf32>
    %1019 = arith.mulf %1018, %923 : vector<48x24xf32>
    %1020 = arith.addf %1017, %1019 : vector<48x24xf32>
    %1021 = tpu.transpose %1020, [1, 0] : vector<48x24xf32> -> vector<24x48xf32>
    %cst_354 = arith.constant dense<0.000000e+00> : vector<24x32xf32>
    %1022 = tpu.matmul %1021, %925, %cst_354 {dimension_numbers = #tpu.dot_dimension_numbers<[1], [0], [0], [1], [0, 0, 1, 1], [], []>} : vector<24x48xf32>, vector<48x32xf32>, vector<24x32xf32> -> vector<24x32xf32>
    %1023 = arith.truncf %1022 : vector<24x32xf32> to vector<24x32xbf16>
    %c2_355 = arith.constant 2 : index
    %c0_356 = arith.constant 0 : index
    %c0_357 = arith.constant 0 : index
    %1024 = vector.load %arg21[%c2_355, %c0_356, %c0_357] : memref<4x32x64xbf16, #tpu.memory_space<vmem>>, vector<1x32x64xbf16>
    %1025 = vector.shape_cast %1024 : vector<1x32x64xbf16> to vector<32x64xbf16>
    %cst_358 = arith.constant dense<0.000000e+00> : vector<24x64xf32>
    %1026 = tpu.matmul %1023, %1025, %cst_358 {dimension_numbers = #tpu.dot_dimension_numbers<[1], [0], [0], [1], [0, 0, 1, 1], [], []>} : vector<24x32xbf16>, vector<32x64xbf16>, vector<24x64xf32> -> vector<24x64xf32>
    %c2_359 = arith.constant 2 : index
    %c0_360 = arith.constant 0 : index
    %c0_361 = arith.constant 0 : index
    %1027 = vector.load %arg22[%c2_359, %c0_360, %c0_361] : memref<4x1x64xf32, #tpu.memory_space<vmem>>, vector<1x1x64xf32>
    %1028 = vector.shape_cast %1027 : vector<1x1x64xf32> to vector<1x64xf32>
    %1029 = vector.broadcast %1028 : vector<1x64xf32> to vector<24x64xf32>
    %1030 = arith.addf %1026, %1029 : vector<24x64xf32>
    %cst_362 = arith.constant 5.000000e-01 : f32
    %1031 = vector.broadcast %cst_362 : f32 to vector<24x64xf32>
    %1032 = arith.mulf %1031, %1030 : vector<24x64xf32>
    %cst_363 = arith.constant 0.707106769 : f32
    %1033 = vector.broadcast %cst_363 : f32 to vector<24x64xf32>
    %1034 = arith.mulf %1030, %1033 : vector<24x64xf32>
    %1035 = math.erf %1034 : vector<24x64xf32>
    %cst_364 = arith.constant 1.000000e+00 : f32
    %1036 = vector.broadcast %cst_364 : f32 to vector<24x64xf32>
    %1037 = arith.addf %1036, %1035 : vector<24x64xf32>
    %1038 = arith.mulf %1032, %1037 : vector<24x64xf32>
    %1039 = arith.truncf %1038 : vector<24x64xf32> to vector<24x64xbf16>
    %c2_365 = arith.constant 2 : index
    %c0_366 = arith.constant 0 : index
    %c0_367 = arith.constant 0 : index
    %1040 = vector.load %arg23[%c2_365, %c0_366, %c0_367] : memref<4x64x32xbf16, #tpu.memory_space<vmem>>, vector<1x64x32xbf16>
    %1041 = vector.shape_cast %1040 : vector<1x64x32xbf16> to vector<64x32xbf16>
    %cst_368 = arith.constant dense<0.000000e+00> : vector<24x32xf32>
    %1042 = tpu.matmul %1039, %1041, %cst_368 {dimension_numbers = #tpu.dot_dimension_numbers<[1], [0], [0], [1], [0, 0, 1, 1], [], []>} : vector<24x64xbf16>, vector<64x32xbf16>, vector<24x32xf32> -> vector<24x32xf32>
    %c2_369 = arith.constant 2 : index
    %c0_370 = arith.constant 0 : index
    %c0_371 = arith.constant 0 : index
    %1043 = vector.load %arg24[%c2_369, %c0_370, %c0_371] : memref<4x1x32xf32, #tpu.memory_space<vmem>>, vector<1x1x32xf32>
    %1044 = vector.shape_cast %1043 : vector<1x1x32xf32> to vector<1x32xf32>
    %1045 = vector.broadcast %1044 : vector<1x32xf32> to vector<24x32xf32>
    %1046 = arith.addf %1042, %1045 : vector<24x32xf32>
    %1047 = arith.mulf %1013, %1015 : vector<48x1xf32>
    %1048 = vector.broadcast %1047 : vector<48x1xf32> to vector<48x24xf32>
    %1049 = arith.mulf %1048, %919 : vector<48x24xf32>
    %1050 = arith.mulf %1014, %1015 : vector<48x1xf32>
    %1051 = vector.broadcast %1050 : vector<48x1xf32> to vector<48x24xf32>
    %1052 = arith.mulf %1051, %923 : vector<48x24xf32>
    %1053 = arith.addf %1049, %1052 : vector<48x24xf32>
    %cst_372 = arith.constant dense<0.000000e+00> : vector<48x32xf32>
    %1054 = tpu.matmul %1053, %1046, %cst_372 {dimension_numbers = #tpu.dot_dimension_numbers<[1], [0], [0], [1], [0, 0, 1, 1], [], []>} : vector<48x24xf32>, vector<24x32xf32>, vector<48x32xf32> -> vector<48x32xf32>
    %1055 = arith.addf %1012, %1054 : vector<48x32xf32>
    %1056 = vector.extract_strided_slice %904 {offsets = [0, 3], sizes = [48, 1], strides = [1, 1]} : vector<48x4xf32> to vector<48x1xf32>
    %1057 = vector.extract_strided_slice %909 {offsets = [0, 3], sizes = [48, 1], strides = [1, 1]} : vector<48x4xf32> to vector<48x1xf32>
    %1058 = vector.extract_strided_slice %857 {offsets = [0, 3], sizes = [48, 1], strides = [1, 1]} : vector<48x4xf32> to vector<48x1xf32>
    %1059 = vector.broadcast %1056 : vector<48x1xf32> to vector<48x24xf32>
    %1060 = arith.mulf %1059, %919 : vector<48x24xf32>
    %1061 = vector.broadcast %1057 : vector<48x1xf32> to vector<48x24xf32>
    %1062 = arith.mulf %1061, %923 : vector<48x24xf32>
    %1063 = arith.addf %1060, %1062 : vector<48x24xf32>
    %1064 = tpu.transpose %1063, [1, 0] : vector<48x24xf32> -> vector<24x48xf32>
    %cst_373 = arith.constant dense<0.000000e+00> : vector<24x32xf32>
    %1065 = tpu.matmul %1064, %925, %cst_373 {dimension_numbers = #tpu.dot_dimension_numbers<[1], [0], [0], [1], [0, 0, 1, 1], [], []>} : vector<24x48xf32>, vector<48x32xf32>, vector<24x32xf32> -> vector<24x32xf32>
    %1066 = arith.truncf %1065 : vector<24x32xf32> to vector<24x32xbf16>
    %c3_374 = arith.constant 3 : index
    %c0_375 = arith.constant 0 : index
    %c0_376 = arith.constant 0 : index
    %1067 = vector.load %arg21[%c3_374, %c0_375, %c0_376] : memref<4x32x64xbf16, #tpu.memory_space<vmem>>, vector<1x32x64xbf16>
    %1068 = vector.shape_cast %1067 : vector<1x32x64xbf16> to vector<32x64xbf16>
    %cst_377 = arith.constant dense<0.000000e+00> : vector<24x64xf32>
    %1069 = tpu.matmul %1066, %1068, %cst_377 {dimension_numbers = #tpu.dot_dimension_numbers<[1], [0], [0], [1], [0, 0, 1, 1], [], []>} : vector<24x32xbf16>, vector<32x64xbf16>, vector<24x64xf32> -> vector<24x64xf32>
    %c3_378 = arith.constant 3 : index
    %c0_379 = arith.constant 0 : index
    %c0_380 = arith.constant 0 : index
    %1070 = vector.load %arg22[%c3_378, %c0_379, %c0_380] : memref<4x1x64xf32, #tpu.memory_space<vmem>>, vector<1x1x64xf32>
    %1071 = vector.shape_cast %1070 : vector<1x1x64xf32> to vector<1x64xf32>
    %1072 = vector.broadcast %1071 : vector<1x64xf32> to vector<24x64xf32>
    %1073 = arith.addf %1069, %1072 : vector<24x64xf32>
    %cst_381 = arith.constant 5.000000e-01 : f32
    %1074 = vector.broadcast %cst_381 : f32 to vector<24x64xf32>
    %1075 = arith.mulf %1074, %1073 : vector<24x64xf32>
    %cst_382 = arith.constant 0.707106769 : f32
    %1076 = vector.broadcast %cst_382 : f32 to vector<24x64xf32>
    %1077 = arith.mulf %1073, %1076 : vector<24x64xf32>
    %1078 = math.erf %1077 : vector<24x64xf32>
    %cst_383 = arith.constant 1.000000e+00 : f32
    %1079 = vector.broadcast %cst_383 : f32 to vector<24x64xf32>
    %1080 = arith.addf %1079, %1078 : vector<24x64xf32>
    %1081 = arith.mulf %1075, %1080 : vector<24x64xf32>
    %1082 = arith.truncf %1081 : vector<24x64xf32> to vector<24x64xbf16>
    %c3_384 = arith.constant 3 : index
    %c0_385 = arith.constant 0 : index
    %c0_386 = arith.constant 0 : index
    %1083 = vector.load %arg23[%c3_384, %c0_385, %c0_386] : memref<4x64x32xbf16, #tpu.memory_space<vmem>>, vector<1x64x32xbf16>
    %1084 = vector.shape_cast %1083 : vector<1x64x32xbf16> to vector<64x32xbf16>
    %cst_387 = arith.constant dense<0.000000e+00> : vector<24x32xf32>
    %1085 = tpu.matmul %1082, %1084, %cst_387 {dimension_numbers = #tpu.dot_dimension_numbers<[1], [0], [0], [1], [0, 0, 1, 1], [], []>} : vector<24x64xbf16>, vector<64x32xbf16>, vector<24x32xf32> -> vector<24x32xf32>
    %c3_388 = arith.constant 3 : index
    %c0_389 = arith.constant 0 : index
    %c0_390 = arith.constant 0 : index
    %1086 = vector.load %arg24[%c3_388, %c0_389, %c0_390] : memref<4x1x32xf32, #tpu.memory_space<vmem>>, vector<1x1x32xf32>
    %1087 = vector.shape_cast %1086 : vector<1x1x32xf32> to vector<1x32xf32>
    %1088 = vector.broadcast %1087 : vector<1x32xf32> to vector<24x32xf32>
    %1089 = arith.addf %1085, %1088 : vector<24x32xf32>
    %1090 = arith.mulf %1056, %1058 : vector<48x1xf32>
    %1091 = vector.broadcast %1090 : vector<48x1xf32> to vector<48x24xf32>
    %1092 = arith.mulf %1091, %919 : vector<48x24xf32>
    %1093 = arith.mulf %1057, %1058 : vector<48x1xf32>
    %1094 = vector.broadcast %1093 : vector<48x1xf32> to vector<48x24xf32>
    %1095 = arith.mulf %1094, %923 : vector<48x24xf32>
    %1096 = arith.addf %1092, %1095 : vector<48x24xf32>
    %cst_391 = arith.constant dense<0.000000e+00> : vector<48x32xf32>
    %1097 = tpu.matmul %1096, %1089, %cst_391 {dimension_numbers = #tpu.dot_dimension_numbers<[1], [0], [0], [1], [0, 0, 1, 1], [], []>} : vector<48x24xf32>, vector<24x32xf32>, vector<48x32xf32> -> vector<48x32xf32>
    %1098 = arith.addf %1055, %1097 : vector<48x32xf32>
    %1099 = arith.addf %821, %1098 : vector<48x32xf32>
    %c0_392 = arith.constant 0 : index
    %c0_393 = arith.constant 0 : index
    %1100 = vector.load %arg30[%c0_392, %c0_393] : memref<48x32xf32, #tpu.memory_space<vmem>>, vector<48x32xf32>
    tpu.vector_store %arg30[%c0_392, %c0_393], %1099 {strides = array<i32>} : memref<48x32xf32, #tpu.memory_space<vmem>>, vector<48x32xf32>,
    %c0_394 = arith.constant 0 : index
    %c0_395 = arith.constant 0 : index
    %1101 = vector.load %arg30[%c0_394, %c0_395] : memref<48x32xf32, #tpu.memory_space<vmem>>, vector<48x32xf32>
    %c0_396 = arith.constant 0 : index
    %c0_397 = arith.constant 0 : index
    %1102 = vector.load %arg25[%c0_396, %c0_397] : memref<1x32xf32, #tpu.memory_space<vmem>>, vector<1x32xf32>
    %c0_398 = arith.constant 0 : index
    %c0_399 = arith.constant 0 : index
    %1103 = vector.load %arg26[%c0_398, %c0_399] : memref<1x32xf32, #tpu.memory_space<vmem>>, vector<1x32xf32>
    %cst_400 = arith.constant dense<0.000000e+00> : vector<48xf32>
    %1104 = vector.multi_reduction <add>, %1101, %cst_400 [1] : vector<48x32xf32> to vector<48xf32>
    %1105 = vector.shape_cast %1104 : vector<48xf32> to vector<48x1xf32>
    %cst_401 = arith.constant 3.200000e+01 : f32
    %1106 = vector.broadcast %cst_401 : f32 to vector<48x1xf32>
    %1107 = arith.divf %1105, %1106 : vector<48x1xf32>
    %1108 = vector.broadcast %1107 : vector<48x1xf32> to vector<48x32xf32>
    %1109 = arith.subf %1101, %1108 : vector<48x32xf32>
    %1110 = arith.mulf %1109, %1109 : vector<48x32xf32>
    %cst_402 = arith.constant dense<0.000000e+00> : vector<48xf32>
    %1111 = vector.multi_reduction <add>, %1110, %cst_402 [1] : vector<48x32xf32> to vector<48xf32>
    %1112 = vector.shape_cast %1111 : vector<48xf32> to vector<48x1xf32>
    %cst_403 = arith.constant 3.200000e+01 : f32
    %1113 = vector.broadcast %cst_403 : f32 to vector<48x1xf32>
    %1114 = arith.divf %1112, %1113 : vector<48x1xf32>
    %cst_404 = arith.constant 9.99999997E-7 : f32
    %1115 = vector.broadcast %cst_404 : f32 to vector<48x1xf32>
    %1116 = arith.addf %1114, %1115 : vector<48x1xf32>
    %1117 = math.rsqrt %1116 : vector<48x1xf32>
    %1118 = vector.broadcast %1117 : vector<48x1xf32> to vector<48x32xf32>
    %1119 = arith.mulf %1109, %1118 : vector<48x32xf32>
    %1120 = vector.broadcast %1102 : vector<1x32xf32> to vector<48x32xf32>
    %1121 = arith.mulf %1119, %1120 : vector<48x32xf32>
    %1122 = vector.broadcast %1103 : vector<1x32xf32> to vector<48x32xf32>
    %1123 = arith.addf %1121, %1122 : vector<48x32xf32>
    %c0_405 = arith.constant 0 : index
    %c0_406 = arith.constant 0 : index
    %1124 = vector.load %arg9[%c0_405, %c0_406] : memref<2x48xf32, #tpu.memory_space<vmem>>, vector<2x48xf32>
    %cst_407 = arith.constant dense<0.000000e+00> : vector<2x32xf32>
    %1125 = tpu.matmul %1124, %1123, %cst_407 {dimension_numbers = #tpu.dot_dimension_numbers<[1], [0], [0], [1], [0, 0, 1, 1], [], []>} : vector<2x48xf32>, vector<48x32xf32>, vector<2x32xf32> -> vector<2x32xf32>
    %1126 = arith.truncf %1125 : vector<2x32xf32> to vector<2x32xbf16>
    %c0_408 = arith.constant 0 : index
    %c0_409 = arith.constant 0 : index
    %1127 = vector.load %arg27[%c0_408, %c0_409] : memref<32x10xbf16, #tpu.memory_space<vmem>>, vector<32x10xbf16>
    %cst_410 = arith.constant dense<0.000000e+00> : vector<2x10xf32>
    %1128 = tpu.matmul %1126, %1127, %cst_410 {dimension_numbers = #tpu.dot_dimension_numbers<[1], [0], [0], [1], [0, 0, 1, 1], [], []>} : vector<2x32xbf16>, vector<32x10xbf16>, vector<2x10xf32> -> vector<2x10xf32>
    %c0_411 = arith.constant 0 : index
    %c0_412 = arith.constant 0 : index
    %1129 = vector.load %arg28[%c0_411, %c0_412] : memref<1x10xf32, #tpu.memory_space<vmem>>, vector<1x10xf32>
    %1130 = vector.broadcast %1129 : vector<1x10xf32> to vector<2x10xf32>
    %1131 = arith.addf %1128, %1130 : vector<2x10xf32>
    %c0_413 = arith.constant 0 : index
    %c0_414 = arith.constant 0 : index
    %1132 = vector.load %arg29[%c0_413, %c0_414] : memref<2x10xf32, #tpu.memory_space<vmem>>, vector<2x10xf32>
    tpu.vector_store %arg29[%c0_413, %c0_414], %1131 {strides = array<i32>} : memref<2x10xf32, #tpu.memory_space<vmem>>, vector<2x10xf32>,
    return
  }
  func.func @transform_0(%arg0: i32) -> (i32, i32) {
    %c0_i32 = arith.constant 0 : i32
    %c0_i32_0 = arith.constant 0 : i32
    %c0_i32_1 = arith.constant 0 : i32
    return %c0_i32, %c0_i32_0 : i32, i32
  }
  func.func @transform_1(%arg0: i32) -> (i32, i32) {
    %c0_i32 = arith.constant 0 : i32
    %c0_i32_0 = arith.constant 0 : i32
    %c0_i32_1 = arith.constant 0 : i32
    return %c0_i32, %c0_i32_0 : i32, i32
  }
  func.func @transform_2(%arg0: i32) -> (i32, i32) {
    %c0_i32 = arith.constant 0 : i32
    %c0_i32_0 = arith.constant 0 : i32
    %c0_i32_1 = arith.constant 0 : i32
    return %c0_i32, %c0_i32_0 : i32, i32
  }
  func.func @transform_3(%arg0: i32) -> (i32, i32) {
    %c0_i32 = arith.constant 0 : i32
    %c0_i32_0 = arith.constant 0 : i32
    %c0_i32_1 = arith.constant 0 : i32
    return %c0_i32, %c0_i32_0 : i32, i32
  }
  func.func @transform_4(%arg0: i32) -> (i32, i32) {
    %c0_i32 = arith.constant 0 : i32
    %c0_i32_0 = arith.constant 0 : i32
    %c0_i32_1 = arith.constant 0 : i32
    return %c0_i32, %c0_i32_0 : i32, i32
  }
  func.func @transform_5(%arg0: i32) -> (i32, i32) {
    %c0_i32 = arith.constant 0 : i32
    %c0_i32_0 = arith.constant 0 : i32
    %c0_i32_1 = arith.constant 0 : i32
    return %c0_i32, %c0_i32_0 : i32, i32
  }
  func.func @transform_6(%arg0: i32) -> (i32, i32) {
    %c0_i32 = arith.constant 0 : i32
    %c0_i32_0 = arith.constant 0 : i32
    %c0_i32_1 = arith.constant 0 : i32
    return %c0_i32, %c0_i32_0 : i32, i32
  }
  func.func @transform_7(%arg0: i32) -> (i32, i32) {
    %c0_i32 = arith.constant 0 : i32
    %c0_i32_0 = arith.constant 0 : i32
    %c0_i32_1 = arith.constant 0 : i32
    return %c0_i32, %c0_i32_0 : i32, i32
  }
  func.func @transform_8(%arg0: i32) -> (i32, i32) {
    %c0_i32 = arith.constant 0 : i32
    %c0_i32_0 = arith.constant 0 : i32
    %c0_i32_1 = arith.constant 0 : i32
    return %c0_i32, %c0_i32_0 : i32, i32
  }
  func.func @transform_9(%arg0: i32) -> (i32, i32) {
    %c0_i32 = arith.constant 0 : i32
    %c0_i32_0 = arith.constant 0 : i32
    %c0_i32_1 = arith.constant 0 : i32
    return %c0_i32, %c0_i32_0 : i32, i32
  }
  func.func @transform_10(%arg0: i32) -> (i32, i32) {
    %c0_i32 = arith.constant 0 : i32
    %c0_i32_0 = arith.constant 0 : i32
    %c0_i32_1 = arith.constant 0 : i32
    return %c0_i32, %c0_i32_0 : i32, i32
  }
  func.func @transform_11(%arg0: i32) -> (i32, i32) {
    %c0_i32 = arith.constant 0 : i32
    %c0_i32_0 = arith.constant 0 : i32
    %c0_i32_1 = arith.constant 0 : i32
    return %c0_i32, %c0_i32_0 : i32, i32
  }
  func.func @transform_12(%arg0: i32) -> (i32, i32) {
    %c0_i32 = arith.constant 0 : i32
    %c0_i32_0 = arith.constant 0 : i32
    %c0_i32_1 = arith.constant 0 : i32
    return %c0_i32, %c0_i32_0 : i32, i32
  }
  func.func @transform_13(%arg0: i32) -> (i32, i32) {
    %c0_i32 = arith.constant 0 : i32
    %c0_i32_0 = arith.constant 0 : i32
    %c0_i32_1 = arith.constant 0 : i32
    return %c0_i32, %c0_i32_0 : i32, i32
  }
  func.func @transform_14(%arg0: i32) -> (i32, i32) {
    %c0_i32 = arith.constant 0 : i32
    %c0_i32_0 = arith.constant 0 : i32
    %c0_i32_1 = arith.constant 0 : i32
    return %c0_i32, %c0_i32_0 : i32, i32
  }
  func.func @transform_15(%arg0: i32) -> (i32, i32, i32) {
    %c0_i32 = arith.constant 0 : i32
    %c0_i32_0 = arith.constant 0 : i32
    %c0_i32_1 = arith.constant 0 : i32
    %c0_i32_2 = arith.constant 0 : i32
    return %c0_i32, %c0_i32_0, %c0_i32_1 : i32, i32, i32
  }
  func.func @transform_16(%arg0: i32) -> (i32, i32, i32) {
    %c0_i32 = arith.constant 0 : i32
    %c0_i32_0 = arith.constant 0 : i32
    %c0_i32_1 = arith.constant 0 : i32
    %c0_i32_2 = arith.constant 0 : i32
    return %c0_i32, %c0_i32_0, %c0_i32_1 : i32, i32, i32
  }
  func.func @transform_17(%arg0: i32) -> (i32, i32, i32) {
    %c0_i32 = arith.constant 0 : i32
    %c0_i32_0 = arith.constant 0 : i32
    %c0_i32_1 = arith.constant 0 : i32
    %c0_i32_2 = arith.constant 0 : i32
    return %c0_i32, %c0_i32_0, %c0_i32_1 : i32, i32, i32
  }
  func.func @transform_18(%arg0: i32) -> (i32, i32, i32) {
    %c0_i32 = arith.constant 0 : i32
    %c0_i32_0 = arith.constant 0 : i32
    %c0_i32_1 = arith.constant 0 : i32
    %c0_i32_2 = arith.constant 0 : i32
    return %c0_i32, %c0_i32_0, %c0_i32_1 : i32, i32, i32
  }
  func.func @transform_19(%arg0: i32) -> (i32, i32, i32) {
    %c0_i32 = arith.constant 0 : i32
    %c0_i32_0 = arith.constant 0 : i32
    %c0_i32_1 = arith.constant 0 : i32
    %c0_i32_2 = arith.constant 0 : i32
    return %c0_i32, %c0_i32_0, %c0_i32_1 : i32, i32, i32
  }
  func.func @transform_20(%arg0: i32) -> (i32, i32, i32) {
    %c0_i32 = arith.constant 0 : i32
    %c0_i32_0 = arith.constant 0 : i32
    %c0_i32_1 = arith.constant 0 : i32
    %c0_i32_2 = arith.constant 0 : i32
    return %c0_i32, %c0_i32_0, %c0_i32_1 : i32, i32, i32
  }
  func.func @transform_21(%arg0: i32) -> (i32, i32, i32) {
    %c0_i32 = arith.constant 0 : i32
    %c0_i32_0 = arith.constant 0 : i32
    %c0_i32_1 = arith.constant 0 : i32
    %c0_i32_2 = arith.constant 0 : i32
    return %c0_i32, %c0_i32_0, %c0_i32_1 : i32, i32, i32
  }
  func.func @transform_22(%arg0: i32) -> (i32, i32, i32) {
    %c0_i32 = arith.constant 0 : i32
    %c0_i32_0 = arith.constant 0 : i32
    %c0_i32_1 = arith.constant 0 : i32
    %c0_i32_2 = arith.constant 0 : i32
    return %c0_i32, %c0_i32_0, %c0_i32_1 : i32, i32, i32
  }
  func.func @transform_23(%arg0: i32) -> (i32, i32, i32) {
    %c0_i32 = arith.constant 0 : i32
    %c0_i32_0 = arith.constant 0 : i32
    %c0_i32_1 = arith.constant 0 : i32
    %c0_i32_2 = arith.constant 0 : i32
    return %c0_i32, %c0_i32_0, %c0_i32_1 : i32, i32, i32
  }
  func.func @transform_24(%arg0: i32) -> (i32, i32) {
    %c0_i32 = arith.constant 0 : i32
    %c0_i32_0 = arith.constant 0 : i32
    %c0_i32_1 = arith.constant 0 : i32
    return %c0_i32, %c0_i32_0 : i32, i32
  }
  func.func @transform_25(%arg0: i32) -> (i32, i32) {
    %c0_i32 = arith.constant 0 : i32
    %c0_i32_0 = arith.constant 0 : i32
    %c0_i32_1 = arith.constant 0 : i32
    return %c0_i32, %c0_i32_0 : i32, i32
  }
  func.func @transform_26(%arg0: i32) -> (i32, i32) {
    %c0_i32 = arith.constant 0 : i32
    %c0_i32_0 = arith.constant 0 : i32
    %c0_i32_1 = arith.constant 0 : i32
    return %c0_i32, %c0_i32_0 : i32, i32
  }
  func.func @transform_27(%arg0: i32) -> (i32, i32) {
    %c0_i32 = arith.constant 0 : i32
    %c0_i32_0 = arith.constant 0 : i32
    %c0_i32_1 = arith.constant 0 : i32
    return %c0_i32, %c0_i32_0 : i32, i32
  }
  func.func @transform_28(%arg0: i32) -> (i32, i32) {
    %c0_i32 = arith.constant 0 : i32
    %c0_i32_0 = arith.constant 0 : i32
    %c0_i32_1 = arith.constant 0 : i32
    return %c0_i32, %c0_i32_0 : i32, i32
  }
}

</mosaic_0001>

<llo_original>
// kernel: widenet_forward.1
$region0: #{widenet_forward.1}
  #allocation0 [shape = 'u32[]', space=smem, size = 0x4, offset = 0x4, fixed_abs, tag = 'smem constant byte address 0x4 - core index']
  #allocation1 [shape = 'u32[72,128]{1,0:T(1,128)}', space=vmem, size = 0x9000, scoped, tag = 'internal scratch']
  #allocation2 [shape = 'f32[48,32]{1,0:T(8,128)}', space=vmem, size = 0x6000, scoped, tag = 'scratch operand']
  %s0 = inlined_call_operand.vmem [shape: f32[32,48], index: 0, kind: input, shape index: {}]
  %s1 = inlined_call_operand.vmem [shape: f32[48,32], index: 1, kind: input, shape index: {}]
  %s2 = inlined_call_operand.vmem [shape: f32[48,32], index: 2, kind: input, shape index: {}]
  %s3 = inlined_call_operand.vmem [shape: f32[48,1], index: 3, kind: input, shape index: {}]
  %s4 = inlined_call_operand.vmem [shape: f32[1,24], index: 4, kind: input, shape index: {}]
  %s5 = inlined_call_operand.vmem [shape: f32[48,48], index: 5, kind: input, shape index: {}]
  %s6 = inlined_call_operand.vmem [shape: f32[48,4], index: 6, kind: input, shape index: {}]
  %s7 = inlined_call_operand.vmem [shape: f32[48,24], index: 7, kind: input, shape index: {}]
  %s8 = inlined_call_operand.vmem [shape: f32[2,48], index: 8, kind: input, shape index: {}]
  %s9 = inlined_call_operand.vmem [shape: bf16[48,32], index: 9, kind: input, shape index: {}]
  %s10 = inlined_call_operand.vmem [shape: f32[1,32], index: 10, kind: input, shape index: {}]
  %s11 = inlined_call_operand.vmem [shape: bf16[32,96], index: 11, kind: input, shape index: {}]
  %s12 = inlined_call_operand.vmem [shape: f32[1,96], index: 12, kind: input, shape index: {}]
  %s13 = inlined_call_operand.vmem [shape: bf16[32,32], index: 13, kind: input, shape index: {}]
  %s14 = inlined_call_operand.vmem [shape: f32[1,32], index: 14, kind: input, shape index: {}]
  %s15 = inlined_call_operand.vmem [shape: f32[2,1,32], index: 15, kind: input, shape index: {}]
  %s16 = inlined_call_operand.vmem [shape: f32[2,1,32], index: 16, kind: input, shape index: {}]
  %s17 = inlined_call_operand.vmem [shape: f32[2,1,32], index: 17, kind: input, shape index: {}]
  %s18 = inlined_call_operand.vmem [shape: f32[2,1,32], index: 18, kind: input, shape index: {}]
  %s19 = inlined_call_operand.vmem [shape: f32[2,32,4], index: 19, kind: input, shape index: {}]
  %s20 = inlined_call_operand.vmem [shape: bf16[4,32,64], index: 20, kind: input, shape index: {}]
  %s21 = inlined_call_operand.vmem [shape: f32[4,1,64], index: 21, kind: input, shape index: {}]
  %s22 = inlined_call_operand.vmem [shape: bf16[4,64,32], index: 22, kind: input, shape index: {}]
  %s23 = inlined_call_operand.vmem [shape: f32[4,1,32], index: 23, kind: input, shape index: {}]
  %s24 = inlined_call_operand.vmem [shape: f32[1,32], index: 24, kind: input, shape index: {}]
  %s25 = inlined_call_operand.vmem [shape: f32[1,32], index: 25, kind: input, shape index: {}]
  %s26 = inlined_call_operand.vmem [shape: bf16[32,10], index: 26, kind: input, shape index: {}]
  %s27 = inlined_call_operand.vmem [shape: f32[1,10], index: 27, kind: input, shape index: {}]
  %s28 = inlined_call_operand.hbm [shape: f32[2,10], index: 28, kind: output, shape index: {}]
  %s29 = sld [smem:[#allocation0]]
  $region122: #{widenet_forward.1} parent=0
    _
  %s31 = ssub.s32 1, %s29
  %s32 = scalar_select 0, %s31, %s29
  $region1: #{widenet_forward.1} parent=0
    #allocation3 [shape = 'u8[1024]{0}', space=vmem, size = 0x400, scoped, tag = 'output window, operand 0, single buffered']
    #allocation4 [shape = 's32[1]{0}', space=sflag, size = 0x4, scoped, tag = 'scoped memory for widenet_forward.1']
    %33 = vsyncpa [#allocation4], 0
    // Predicated region
    $region2: #{widenet_forward.1} parent=1 // pred_check
      _
    $region3: #{widenet_forward.1} parent=1 // pred_check_branch
      %35 = sbr.rel (0) target = $region5
    $region4: #{widenet_forward.1} parent=1 // pred_region
      _
    $region5: #{widenet_forward.1} parent=1 // pred_fallthru
      _
    // Predicated region
    $region6: #{widenet_forward.1} parent=1 // pred_check
      _
    $region7: #{widenet_forward.1} parent=1 // pred_check_branch
      %37 = sbr.rel (0) target = $region9
    $region8: #{widenet_forward.1} parent=1 // pred_region
      _
    $region9: #{widenet_forward.1} parent=1 // pred_fallthru
      _
    // Predicated region
    $region10: #{widenet_forward.1} parent=1 // pred_check
      _
    $region11: #{widenet_forward.1} parent=1 // pred_check_branch
      %39 = sbr.rel (0) target = $region13
    $region12: #{widenet_forward.1} parent=1 // pred_region
      _
    $region13: #{widenet_forward.1} parent=1 // pred_fallthru
      _
    // Predicated region
    $region14: #{widenet_forward.1} parent=1 // pred_check
      _
    $region15: #{widenet_forward.1} parent=1 // pred_check_branch
      %41 = sbr.rel (0) target = $region17
    $region16: #{widenet_forward.1} parent=1 // pred_region
      _
    $region17: #{widenet_forward.1} parent=1 // pred_fallthru
      _
    // Predicated region
    $region18: #{widenet_forward.1} parent=1 // pred_check
      _
    $region19: #{widenet_forward.1} parent=1 // pred_check_branch
      %43 = sbr.rel (0) target = $region21
    $region20: #{widenet_forward.1} parent=1 // pred_region
      _
    $region21: #{widenet_forward.1} parent=1 // pred_fallthru
      _
    // Predicated region
    $region22: #{widenet_forward.1} parent=1 // pred_check
      _
    $region23: #{widenet_forward.1} parent=1 // pred_check_branch
      %45 = sbr.rel (0) target = $region25
    $region24: #{widenet_forward.1} parent=1 // pred_region
      _
    $region25: #{widenet_forward.1} parent=1 // pred_fallthru
      _
    // Predicated region
    $region26: #{widenet_forward.1} parent=1 // pred_check
      _
    $region27: #{widenet_forward.1} parent=1 // pred_check_branch
      %47 = sbr.rel (0) target = $region29
    $region28: #{widenet_forward.1} parent=1 // pred_region
      _
    $region29: #{widenet_forward.1} parent=1 // pred_fallthru
      _
    // Predicated region
    $region30: #{widenet_forward.1} parent=1 // pred_check
      _
    $region31: #{widenet_forward.1} parent=1 // pred_check_branch
      %49 = sbr.rel (0) target = $region33
    $region32: #{widenet_forward.1} parent=1 // pred_region
      _
    $region33: #{widenet_forward.1} parent=1 // pred_fallthru
      _
    // Predicated region
    $region34: #{widenet_forward.1} parent=1 // pred_check
      _
    $region35: #{widenet_forward.1} parent=1 // pred_check_branch
      %51 = sbr.rel (0) target = $region37
    $region36: #{widenet_forward.1} parent=1 // pred_region
      _
    $region37: #{widenet_forward.1} parent=1 // pred_fallthru
      _
    // Predicated region
    $region38: #{widenet_forward.1} parent=1 // pred_check
      _
    $region39: #{widenet_forward.1} parent=1 // pred_check_branch
      %53 = sbr.rel (0) target = $region41
    $region40: #{widenet_forward.1} parent=1 // pred_region
      _
    $region41: #{widenet_forward.1} parent=1 // pred_fallthru
      _
    // Predicated region
    $region42: #{widenet_forward.1} parent=1 // pred_check
      _
    $region43: #{widenet_forward.1} parent=1 // pred_check_branch
      %55 = sbr.rel (0) target = $region45
    $region44: #{widenet_forward.1} parent=1 // pred_region
      _
    $region45: #{widenet_forward.1} parent=1 // pred_fallthru
      _
    // Predicated region
    $region46: #{widenet_forward.1} parent=1 // pred_check
      _
    $region47: #{widenet_forward.1} parent=1 // pred_check_branch
      %57 = sbr.rel (0) target = $region49
    $region48: #{widenet_forward.1} parent=1 // pred_region
      _
    $region49: #{widenet_forward.1} parent=1 // pred_fallthru
      _
    // Predicated region
    $region50: #{widenet_forward.1} parent=1 // pred_check
      _
    $region51: #{widenet_forward.1} parent=1 // pred_check_branch
      %59 = sbr.rel (0) target = $region53
    $region52: #{widenet_forward.1} parent=1 // pred_region
      _
    $region53: #{widenet_forward.1} parent=1 // pred_fallthru
      _
    // Predicated region
    $region54: #{widenet_forward.1} parent=1 // pred_check
      _
    $region55: #{widenet_forward.1} parent=1 // pred_check_branch
      %61 = sbr.rel (0) target = $region57
    $region56: #{widenet_forward.1} parent=1 // pred_region
      _
    $region57: #{widenet_forward.1} parent=1 // pred_fallthru
      _
    // Predicated region
    $region58: #{widenet_forward.1} parent=1 // pred_check
      _
    $region59: #{widenet_forward.1} parent=1 // pred_check_branch
      %63 = sbr.rel (0) target = $region61
    $region60: #{widenet_forward.1} parent=1 // pred_region
      _
    $region61: #{widenet_forward.1} parent=1 // pred_fallthru
      _
    // Predicated region
    $region62: #{widenet_forward.1} parent=1 // pred_check
      _
    $region63: #{widenet_forward.1} parent=1 // pred_check_branch
      %65 = sbr.rel (0) target = $region65
    $region64: #{widenet_forward.1} parent=1 // pred_region
      _
    $region65: #{widenet_forward.1} parent=1 // pred_fallthru
      _
    // Predicated region
    $region66: #{widenet_forward.1} parent=1 // pred_check
      _
    $region67: #{widenet_forward.1} parent=1 // pred_check_branch
      %67 = sbr.rel (0) target = $region69
    $region68: #{widenet_forward.1} parent=1 // pred_region
      _
    $region69: #{widenet_forward.1} parent=1 // pred_fallthru
      _
    // Predicated region
    $region70: #{widenet_forward.1} parent=1 // pred_check
      _
    $region71: #{widenet_forward.1} parent=1 // pred_check_branch
      %69 = sbr.rel (0) target = $region73
    $region72: #{widenet_forward.1} parent=1 // pred_region
      _
    $region73: #{widenet_forward.1} parent=1 // pred_fallthru
      _
    // Predicated region
    $region74: #{widenet_forward.1} parent=1 // pred_check
      _
    $region75: #{widenet_forward.1} parent=1 // pred_check_branch
      %71 = sbr.rel (0) target = $region77
    $region76: #{widenet_forward.1} parent=1 // pred_region
      _
    $region77: #{widenet_forward.1} parent=1 // pred_fallthru
      _
    // Predicated region
    $region78: #{widenet_forward.1} parent=1 // pred_check
      _
    $region79: #{widenet_forward.1} parent=1 // pred_check_branch
      %73 = sbr.rel (0) target = $region81
    $region80: #{widenet_forward.1} parent=1 // pred_region
      _
    $region81: #{widenet_forward.1} parent=1 // pred_fallthru
      _
    // Predicated region
    $region82: #{widenet_forward.1} parent=1 // pred_check
      _
    $region83: #{widenet_forward.1} parent=1 // pred_check_branch
      %75 = sbr.rel (0) target = $region85
    $region84: #{widenet_forward.1} parent=1 // pred_region
      _
    $region85: #{widenet_forward.1} parent=1 // pred_fallthru
      _
    // Predicated region
    $region86: #{widenet_forward.1} parent=1 // pred_check
      _
    $region87: #{widenet_forward.1} parent=1 // pred_check_branch
      %77 = sbr.rel (0) target = $region89
    $region88: #{widenet_forward.1} parent=1 // pred_region
      _
    $region89: #{widenet_forward.1} parent=1 // pred_fallthru
      _
    // Predicated region
    $region90: #{widenet_forward.1} parent=1 // pred_check
      _
    $region91: #{widenet_forward.1} parent=1 // pred_check_branch
      %79 = sbr.rel (0) target = $region93
    $region92: #{widenet_forward.1} parent=1 // pred_region
      _
    $region93: #{widenet_forward.1} parent=1 // pred_fallthru
      _
    // Predicated region
    $region94: #{widenet_forward.1} parent=1 // pred_check
      _
    $region95: #{widenet_forward.1} parent=1 // pred_check_branch
      %81 = sbr.rel (0) target = $region97
    $region96: #{widenet_forward.1} parent=1 // pred_region
      _
    $region97: #{widenet_forward.1} parent=1 // pred_fallthru
      _
    // Predicated region
    $region98: #{widenet_forward.1} parent=1 // pred_check
      _
    $region99: #{widenet_forward.1} parent=1 // pred_check_branch
      %83 = sbr.rel (0) target = $region101
    $region100: #{widenet_forward.1} parent=1 // pred_region
      _
    $region101: #{widenet_forward.1} parent=1 // pred_fallthru
      _
    // Predicated region
    $region102: #{widenet_forward.1} parent=1 // pred_check
      _
    $region103: #{widenet_forward.1} parent=1 // pred_check_branch
      %85 = sbr.rel (0) target = $region105
    $region104: #{widenet_forward.1} parent=1 // pred_region
      _
    $region105: #{widenet_forward.1} parent=1 // pred_fallthru
      _
    // Predicated region
    $region106: #{widenet_forward.1} parent=1 // pred_check
      _
    $region107: #{widenet_forward.1} parent=1 // pred_check_branch
      %87 = sbr.rel (0) target = $region109
    $region108: #{widenet_forward.1} parent=1 // pred_region
      _
    $region109: #{widenet_forward.1} parent=1 // pred_fallthru
      _
    // Predicated region
    $region110: #{widenet_forward.1} parent=1 // pred_check
      _
    $region111: #{widenet_forward.1} parent=1 // pred_check_branch
      %89 = sbr.rel (0) target = $region113
    $region112: #{widenet_forward.1} parent=1 // pred_region
      _
    $region113: #{widenet_forward.1} parent=1 // pred_fallthru
      _
    %v91 = vld [vmem:[%s0] sm:$0xff]
    %v92 = vld [vmem:[%s0 + $0x8] sm:$0xff]
    %v93 = vld [vmem:[%s0 + $0x10] sm:$0xff]
    %v94 = vld [vmem:[%s0 + $0x18] sm:$0xff]
    %v95 = vpack.c.bf16 %v92, %v91
    %v96 = vpack.c.bf16 %v94, %v93
    %v97 = vld [vmem:[%s9] sm:$0xf]
    %v98 = vld [vmem:[%s9 + $0x4] sm:$0xf]
    %v99 = vld [vmem:[%s9 + $0x8] sm:$0xf]
    %v100 = vld [vmem:[%s9 + $0xc] sm:$0xf]
    %v101 = vld [vmem:[%s9 + $0x10] sm:$0xf]
    %v102 = vld [vmem:[%s9 + $0x14] sm:$0xf]
    %v103 = vld [vmem:[%s10] sm:$0x1]
    %v105 = vperm.slane %v103, 0
    %v113 = vunpack.c.l.b16 %v97
    %v114 = vunpack.c.l.b16 %v98
    %v115 = vunpack.c.l.b16 %v99
    %v116 = vunpack.c.l.b16 %v100
    %v117 = vunpack.c.l.b16 %v101
    %v118 = vunpack.c.l.b16 %v102
    %v119 = vpack.c.b16 %v114, %v113
    %v120 = vpack.c.b16 %v116, %v115
    %v121 = vpack.c.b16 %v118, %v117
    %vm125 = vcmask 392192
    %v127 = vsel %vm125, %v95, 0
    %v130 = vsel %vm125, %v96, 0
    %132 = vmatpush.bf16.msra.mxu0 0
    %133 = vmatpush.bf16.msra.mxu0 0
    %134 = vmatpush.bf16.msra.mxu0 0
    %135 = vmatpush.bf16.msra.mxu0 0
    %136 = vmatpush.bf16.msra.mxu0 0
    %137 = vmatpush.bf16.msra.mxu0 %v121
    %138 = vmatpush.bf16.msra.mxu0 %v120
    %139 = vmatpush.bf16.msra.mxu0 %v119
    %140 = vmatmul.bf16.gmra.mxu0 %v127
    %v141 = vpop.f32.mrf.mxu0
    %v142 = vadd.f32 %v105, %v141
    %v143 = vpop.f32.mrf.mxu0
    %v144 = vadd.f32 %v105, %v143
    %145 = vmatmul.bf16.gmra.mxu0 %v130
    %v146 = vpop.f32.mrf.mxu0
    %v147 = vadd.f32 %v105, %v146
    %v148 = vpop.f32.mrf.mxu0
    %v149 = vadd.f32 %v105, %v148
    %150 = vdwg.mxu0
    %v151 = vld [vmem:[%s2] sm:$0xff]
    %v152 = vld [vmem:[%s2 + $0x8] sm:$0xff]
    %v153 = vld [vmem:[%s2 + $0x10] sm:$0xff]
    %v154 = vld [vmem:[%s2 + $0x18] sm:$0xff]
    %v155 = vld [vmem:[%s2 + $0x20] sm:$0xff]
    %v156 = vld [vmem:[%s2 + $0x28] sm:$0xff]
    %v157 = vld [vmem:[%s1] sm:$0xff]
    %v158 = vld [vmem:[%s1 + $0x8] sm:$0xff]
    %v159 = vld [vmem:[%s1 + $0x10] sm:$0xff]
    %v160 = vld [vmem:[%s1 + $0x18] sm:$0xff]
    %v161 = vld [vmem:[%s1 + $0x20] sm:$0xff]
    %v162 = vld [vmem:[%s1 + $0x28] sm:$0xff]
    %vm163 = vcmask 261120
    %v165 = vsel %vm163, %v157, 0
    %v168 = vsel %vm163, %v158, 0
    %v171 = vsel %vm163, %v159, 0
    %v174 = vsel %vm163, %v160, 0
    %v177 = vsel %vm163, %v161, 0
    %v180 = vsel %vm163, %v162, 0
    %182 = vmatpush.msra.mxu0 0.0
    %183 = vmatpush.msra.mxu0 0.0
    %184 = vmatpush.msra.mxu0 0.0
    %185 = vmatpush.msra.mxu0 0.0
    %186 = vmatpush.msra.mxu0 0.0
    %187 = vmatpush.msra.mxu0 0.0
    %188 = vmatpush.msra.mxu0 0.0
    %189 = vmatpush.msra.mxu0 0.0
    %190 = vmatpush.msra.mxu0 0.0
    %191 = vmatpush.msra.mxu0 0.0
    %192 = vmatpush.msra.mxu0 0.0
    %193 = vmatpush.msra.mxu0 0.0
    %194 = vmatpush.msra.mxu0 %v149
    %195 = vmatpush.msra.mxu0 %v147
    %196 = vmatpush.msra.mxu0 %v144
    %197 = vmatpush.msra.mxu0 %v142
    %198 = vmatmul.f32.gmra.mxu0 %v165
    %v199 = vpop.f32.mrf.mxu0
    %v200 = vadd.f32 0.0, %v199
    %201 = vmatmul.f32.gmra.mxu0 %v168
    %v202 = vpop.f32.mrf.mxu0
    %v203 = vadd.f32 0.0, %v202
    %204 = vmatmul.f32.gmra.mxu0 %v171
    %v205 = vpop.f32.mrf.mxu0
    %v206 = vadd.f32 0.0, %v205
    %207 = vmatmul.f32.gmra.mxu0 %v174
    %v208 = vpop.f32.mrf.mxu0
    %v209 = vadd.f32 0.0, %v208
    %210 = vmatmul.f32.gmra.mxu0 %v177
    %v211 = vpop.f32.mrf.mxu0
    %v212 = vadd.f32 0.0, %v211
    %213 = vmatmul.f32.gmra.mxu0 %v180
    %v214 = vpop.f32.mrf.mxu0
    %v215 = vadd.f32 0.0, %v214
    %216 = vdwg.mxu0
    %v217 = vadd.f32 %v151, %v200
    %v218 = vadd.f32 %v152, %v203
    %v219 = vadd.f32 %v153, %v206
    %v220 = vadd.f32 %v154, %v209
    %v221 = vadd.f32 %v155, %v212
    %v222 = vadd.f32 %v156, %v215
    %223 = vst.msk [vmem:[#allocation2] sm:$0xff] %vm163, %v217
    %224 = vst.msk [vmem:[#allocation2 + $0x8] sm:$0xff] %vm163, %v218
    %225 = vst.msk [vmem:[#allocation2 + $0x10] sm:$0xff] %vm163, %v219
    %226 = vst.msk [vmem:[#allocation2 + $0x18] sm:$0xff] %vm163, %v220
    %227 = vst.msk [vmem:[#allocation2 + $0x20] sm:$0xff] %vm163, %v221
    %228 = vst.msk [vmem:[#allocation2 + $0x28] sm:$0xff] %vm163, %v222
    %v229 = vld [vmem:[%s3] sm:$0xff]
    %v230 = vld [vmem:[%s3 + $0x8] sm:$0xff]
    %v231 = vld [vmem:[%s3 + $0x10] sm:$0xff]
    %v232 = vld [vmem:[%s3 + $0x18] sm:$0xff]
    %v233 = vld [vmem:[%s3 + $0x20] sm:$0xff]
    %v234 = vld [vmem:[%s3 + $0x28] sm:$0xff]
    %v235 = vld [vmem:[%s4] sm:$0x1]
    %v236 = vld [vmem:[%s5] sm:$0xff]
    %v237 = vld [vmem:[%s5 + $0x8] sm:$0xff]
    %v238 = vld [vmem:[%s5 + $0x10] sm:$0xff]
    %v239 = vld [vmem:[%s5 + $0x18] sm:$0xff]
    %v240 = vld [vmem:[%s5 + $0x20] sm:$0xff]
    %v241 = vld [vmem:[%s5 + $0x28] sm:$0xff]
    %v242 = vld [vmem:[%s6] sm:$0xff]
    %v243 = vld [vmem:[%s6 + $0x8] sm:$0xff]
    %v244 = vld [vmem:[%s6 + $0x10] sm:$0xff]
    %v245 = vld [vmem:[%s6 + $0x18] sm:$0xff]
    %v246 = vld [vmem:[%s6 + $0x20] sm:$0xff]
    %v247 = vld [vmem:[%s6 + $0x28] sm:$0xff]
    %v248 = vld [vmem:[%s7] sm:$0xff]
    %v249 = vld [vmem:[%s7 + $0x8] sm:$0xff]
    %v250 = vld [vmem:[%s7 + $0x10] sm:$0xff]
    %v251 = vld [vmem:[%s7 + $0x18] sm:$0xff]
    %v252 = vld [vmem:[%s7 + $0x20] sm:$0xff]
    %v253 = vld [vmem:[%s7 + $0x28] sm:$0xff]
    %v254 = vld [vmem:[%s13] sm:$0xf]
    %v255 = vld [vmem:[%s13 + $0x4] sm:$0xf]
    %v256 = vld [vmem:[%s13 + $0x8] sm:$0xf]
    %v257 = vld [vmem:[%s13 + $0xc] sm:$0xf]
    %v258 = vld [vmem:[%s14] sm:$0x1]
    %v259 = vld [vmem:[#allocation2] sm:$0xff]
    %v260 = vld [vmem:[#allocation2 + $0x8] sm:$0xff]
    %v261 = vld [vmem:[#allocation2 + $0x10] sm:$0xff]
    %v262 = vld [vmem:[#allocation2 + $0x18] sm:$0xff]
    %v263 = vld [vmem:[#allocation2 + $0x20] sm:$0xff]
    %v264 = vld [vmem:[#allocation2 + $0x28] sm:$0xff]
    %v265 = vld [vmem:[%s15] sm:$0x1]
    %v266 = vld [vmem:[%s16] sm:$0x1]
    %v267 = vsel %vm163, %v259, 0.0
    %268 = vadd.xlane.f32.xlu0 %v267
    %v269 = vpop.xlane.xlu0 %268
    %v270 = vsel %vm163, %v260, 0.0
    %271 = vadd.xlane.f32.xlu0 %v270
    %v272 = vpop.xlane.xlu0 %271
    %v273 = vsel %vm163, %v261, 0.0
    %274 = vadd.xlane.f32.xlu0 %v273
    %v275 = vpop.xlane.xlu0 %274
    %v276 = vsel %vm163, %v262, 0.0
    %277 = vadd.xlane.f32.xlu0 %v276
    %v278 = vpop.xlane.xlu0 %277
    %v279 = vsel %vm163, %v263, 0.0
    %280 = vadd.xlane.f32.xlu0 %v279
    %v281 = vpop.xlane.xlu0 %280
    %v282 = vsel %vm163, %v264, 0.0
    %283 = vadd.xlane.f32.xlu0 %v282
    %v284 = vpop.xlane.xlu0 %283
    %v285 = vrcp.pop 32.0
    %v286 = vmul.f32 32.0, %v285
    %v287 = vsub.f32 1.0, %v286
    %v288 = vmul.f32 %v285, %v287
    %v289 = vadd.f32 %v285, %v288
    %vm290 = vweird.f32 %v285
    %v291 = vsel %vm290, %v285, %v289
    %v292 = vmul.f32 %v269, %v291
    %v293 = vmul.f32 %v272, %v291
    %v294 = vmul.f32 %v275, %v291
    %v295 = vmul.f32 %v278, %v291
    %v296 = vmul.f32 %v281, %v291
    %v297 = vmul.f32 %v284, %v291
    %v298 = vsub.f32 %v259, %v292
    %v299 = vsub.f32 %v260, %v293
    %v300 = vsub.f32 %v261, %v294
    %v301 = vsub.f32 %v262, %v295
    %v302 = vsub.f32 %v263, %v296
    %v303 = vsub.f32 %v264, %v297
    %v304 = vmul.f32 %v298, %v298
    %v305 = vmul.f32 %v299, %v299
    %v306 = vmul.f32 %v300, %v300
    %v307 = vmul.f32 %v301, %v301
    %v308 = vmul.f32 %v302, %v302
    %v309 = vmul.f32 %v303, %v303
    %v310 = vsel %vm163, %v304, 0.0
    %311 = vadd.xlane.f32.xlu0 %v310
    %v312 = vpop.xlane.xlu0 %311
    %v313 = vsel %vm163, %v305, 0.0
    %314 = vadd.xlane.f32.xlu0 %v313
    %v315 = vpop.xlane.xlu0 %314
    %v316 = vsel %vm163, %v306, 0.0
    %317 = vadd.xlane.f32.xlu0 %v316
    %v318 = vpop.xlane.xlu0 %317
    %v319 = vsel %vm163, %v307, 0.0
    %320 = vadd.xlane.f32.xlu0 %v319
    %v321 = vpop.xlane.xlu0 %320
    %v322 = vsel %vm163, %v308, 0.0
    %323 = vadd.xlane.f32.xlu0 %v322
    %v324 = vpop.xlane.xlu0 %323
    %v325 = vsel %vm163, %v309, 0.0
    %326 = vadd.xlane.f32.xlu0 %v325
    %v327 = vpop.xlane.xlu0 %326
    %v328 = vmul.f32 %v312, %v291
    %v329 = vmul.f32 %v315, %v291
    %v330 = vmul.f32 %v318, %v291
    %v331 = vmul.f32 %v321, %v291
    %v332 = vmul.f32 %v324, %v291
    %v333 = vmul.f32 %v327, %v291
    %v334 = vadd.f32 %v328, 1e-06
    %v335 = vadd.f32 %v329, 1e-06
    %v336 = vadd.f32 %v330, 1e-06
    %v337 = vadd.f32 %v331, 1e-06
    %v338 = vadd.f32 %v332, 1e-06
    %v339 = vadd.f32 %v333, 1e-06
    %v340 = vrsqrt.pop %v334
    %v341 = vmul.f32 %v340, %v334
    %v342 = vmul.f32 %v341, %v340
    %v343 = vmul.f32 0.5, %v342
    %v344 = vsub.f32 1.5, %v343
    %v345 = vmul.f32 %v340, %v344
    %vm346 = vweird.f32 %v334
    %vm347 = vweird.f32 %v340
    %vm348 = vmor %vm346, %vm347
    %v349 = vsel %vm348, %v340, %v345
    %v350 = vrsqrt.pop %v335
    %v351 = vmul.f32 %v350, %v335
    %v352 = vmul.f32 %v351, %v350
    %v353 = vmul.f32 0.5, %v352
    %v354 = vsub.f32 1.5, %v353
    %v355 = vmul.f32 %v350, %v354
    %vm356 = vweird.f32 %v335
    %vm357 = vweird.f32 %v350
    %vm358 = vmor %vm356, %vm357
    %v359 = vsel %vm358, %v350, %v355
    %v360 = vrsqrt.pop %v336
    %v361 = vmul.f32 %v360, %v336
    %v362 = vmul.f32 %v361, %v360
    %v363 = vmul.f32 0.5, %v362
    %v364 = vsub.f32 1.5, %v363
    %v365 = vmul.f32 %v360, %v364
    %vm366 = vweird.f32 %v336
    %vm367 = vweird.f32 %v360
    %vm368 = vmor %vm366, %vm367
    %v369 = vsel %vm368, %v360, %v365
    %v370 = vrsqrt.pop %v337
    %v371 = vmul.f32 %v370, %v337
    %v372 = vmul.f32 %v371, %v370
    %v373 = vmul.f32 0.5, %v372
    %v374 = vsub.f32 1.5, %v373
    %v375 = vmul.f32 %v370, %v374
    %vm376 = vweird.f32 %v337
    %vm377 = vweird.f32 %v370
    %vm378 = vmor %vm376, %vm377
    %v379 = vsel %vm378, %v370, %v375
    %v380 = vrsqrt.pop %v338
    %v381 = vmul.f32 %v380, %v338
    %v382 = vmul.f32 %v381, %v380
    %v383 = vmul.f32 0.5, %v382
    %v384 = vsub.f32 1.5, %v383
    %v385 = vmul.f32 %v380, %v384
    %vm386 = vweird.f32 %v338
    %vm387 = vweird.f32 %v380
    %vm388 = vmor %vm386, %vm387
    %v389 = vsel %vm388, %v380, %v385
    %v390 = vrsqrt.pop %v339
    %v391 = vmul.f32 %v390, %v339
    %v392 = vmul.f32 %v391, %v390
    %v393 = vmul.f32 0.5, %v392
    %v394 = vsub.f32 1.5, %v393
    %v395 = vmul.f32 %v390, %v394
    %vm396 = vweird.f32 %v339
    %vm397 = vweird.f32 %v390
    %vm398 = vmor %vm396, %vm397
    %v399 = vsel %vm398, %v390, %v395
    %v400 = vmul.f32 %v298, %v349
    %v401 = vmul.f32 %v299, %v359
    %v402 = vmul.f32 %v300, %v369
    %v403 = vmul.f32 %v301, %v379
    %v404 = vmul.f32 %v302, %v389
    %v405 = vmul.f32 %v303, %v399
    %v407 = vperm.slane %v265, 0
    %v409 = vmul.f32 %v400, %v407
    %v410 = vmul.f32 %v401, %v407
    %v411 = vmul.f32 %v402, %v407
    %v412 = vmul.f32 %v403, %v407
    %v413 = vmul.f32 %v404, %v407
    %v414 = vmul.f32 %v405, %v407
    %v416 = vperm.slane %v266, 0
    %v418 = vadd.f32 %v409, %v416
    %v419 = vadd.f32 %v410, %v416
    %v420 = vadd.f32 %v411, %v416
    %v421 = vadd.f32 %v412, %v416
    %v422 = vadd.f32 %v413, %v416
    %v423 = vadd.f32 %v414, %v416
    %v424 = vpack.c.bf16 %v419, %v418
    %v425 = vpack.c.bf16 %v421, %v420
    %v426 = vpack.c.bf16 %v423, %v422
    %v427 = vld [vmem:[%s11] sm:$0xf]
    %v428 = vld [vmem:[%s11 + $0x4] sm:$0xf]
    %v429 = vld [vmem:[%s11 + $0x8] sm:$0xf]
    %v430 = vld [vmem:[%s11 + $0xc] sm:$0xf]
    %v431 = vld [vmem:[%s12] sm:$0x1]
    %v433 = vperm.slane %v431, 0
    %v439 = vunpack.c.l.b16 %v427
    %v440 = vunpack.c.l.b16 %v428
    %v441 = vunpack.c.l.b16 %v429
    %v442 = vunpack.c.l.b16 %v430
    %v443 = vpack.c.b16 %v440, %v439
    %v444 = vpack.c.b16 %v442, %v441
    %v448 = vsel %vm163, %v424, 0
    %v451 = vsel %vm163, %v425, 0
    %v454 = vsel %vm163, %v426, 0
    %456 = vmatpush.bf16.msra.mxu0 0
    %457 = vmatpush.bf16.msra.mxu0 0
    %458 = vmatpush.bf16.msra.mxu0 0
    %459 = vmatpush.bf16.msra.mxu0 0
    %460 = vmatpush.bf16.msra.mxu0 0
    %461 = vmatpush.bf16.msra.mxu0 0
    %462 = vmatpush.bf16.msra.mxu0 %v444
    %463 = vmatpush.bf16.msra.mxu0 %v443
    %464 = vmatmul.bf16.gmra.mxu0 %v448
    %v465 = vpop.f32.mrf.mxu0
    %v466 = vadd.f32 %v433, %v465
    %v467 = vpop.f32.mrf.mxu0
    %v468 = vadd.f32 %v433, %v467
    %469 = vmatmul.bf16.gmra.mxu0 %v451
    %v470 = vpop.f32.mrf.mxu0
    %v471 = vadd.f32 %v433, %v470
    %v472 = vpop.f32.mrf.mxu0
    %v473 = vadd.f32 %v433, %v472
    %474 = vmatmul.bf16.gmra.mxu0 %v454
    %v475 = vpop.f32.mrf.mxu0
    %v476 = vadd.f32 %v433, %v475
    %v477 = vpop.f32.mrf.mxu0
    %v478 = vadd.f32 %v433, %v477
    %479 = vdwg.mxu0
    %v480 = vpack.c.bf16 %v468, %v466
    %v481 = vpack.c.bf16 %v471, %v471
    %484 = vrot.lane.b32.xlu0 %v480, 96
    %v485 = vpop.permute.xlu0 %484
    %486 = vrot.lane.b32.xlu0 %v481, 96
    %v487 = vpop.permute.xlu0 %486
    %vm488 = vcmask 64512
    %v490 = vsel %vm488, %v480, 0
    %v493 = vsel %vm488, %v481, 0
    %v496 = vsel %vm488, %v485, 0
    %v499 = vsel %vm488, %v487, 0
    %501 = vmatpush.bf16.xpose.msra.mxu0 0
    %502 = vmatpush.bf16.xpose.msra.mxu0 0
    %503 = vmatpush.bf16.xpose.msra.mxu0 0
    %504 = vmatpush.bf16.xpose.msra.mxu0 0
    %505 = vmatpush.bf16.xpose.msra.mxu0 0
    %506 = vmatpush.bf16.xpose.msra.mxu0 0
    %507 = vmatpush.bf16.xpose.msra.mxu0 %v499
    %508 = vmatpush.bf16.xpose.msra.mxu0 %v496
    %509 = vmatmul.bf16.gmra.mxu0 %v490
    %v510 = vpop.f32.mrf.mxu0
    %v511 = vadd.f32 0.0, %v510
    %v512 = vpop.f32.mrf.mxu0
    %v513 = vadd.f32 0.0, %v512
    %514 = vmatmul.bf16.gmra.mxu0 %v493
    %v515 = vpop.f32.mrf.mxu0
    %v516 = vadd.f32 0.0, %v515
    %v517 = vpop.f32.mrf.mxu0
    %518 = vdwg.mxu0
    %v519 = vmul.f32 %v511, 0.35355338
    %v520 = vmul.f32 %v513, 0.35355338
    %v521 = vmul.f32 %v516, 0.35355338
    %v523 = vperm.slane %v235, 0
    %v525 = vadd.f32 %v519, %v523
    %v526 = vadd.f32 %v520, %v523
    %v527 = vadd.f32 %v521, %v523
    %vm528 = vcmask 195584
    %v529 = vsel %vm528, %v525, -inf
    %530 = vmax.xlane.f32.xlu0 %v529
    %v531 = vpop.xlane.xlu0 %530
    %v532 = vsel %vm528, %v526, -inf
    %533 = vmax.xlane.f32.xlu0 %v532
    %v534 = vpop.xlane.xlu0 %533
    %v535 = vsel %vm528, %v527, -inf
    %536 = vmax.xlane.f32.xlu0 %v535
    %v537 = vpop.xlane.xlu0 %536
    %v538 = vsub.f32 %v525, %v531
    %v539 = vsub.f32 %v526, %v534
    %v540 = vsub.f32 %v527, %v537
    %v541 = vmul.f32 %v538, 1.442695
    %v542 = vpow.pop %v541
    %v543 = vmul.f32 %v539, 1.442695
    %v544 = vpow.pop %v543
    %v545 = vmul.f32 %v540, 1.442695
    %v546 = vpow.pop %v545
    %v547 = vsel %vm528, %v542, 0.0
    %548 = vadd.xlane.f32.xlu0 %v547
    %v549 = vpop.xlane.xlu0 %548
    %v550 = vsel %vm528, %v544, 0.0
    %551 = vadd.xlane.f32.xlu0 %v550
    %v552 = vpop.xlane.xlu0 %551
    %v553 = vsel %vm528, %v546, 0.0
    %554 = vadd.xlane.f32.xlu0 %v553
    %v555 = vpop.xlane.xlu0 %554
    %v556 = vrcp.pop %v549
    %v557 = vrcp.pop %v552
    %v558 = vrcp.pop %v555
    %v559 = vmul.f32 %v542, %v556
    %v560 = vmul.f32 %v544, %v557
    %v561 = vmul.f32 %v546, %v558
    %v562 = vpack.c.bf16 %v560, %v559
    %v563 = vpack.c.bf16 %v561, %v561
    %564 = vrot.lane.b32.xlu0 %v480, 64
    %v565 = vpop.permute.xlu0 %564
    %566 = vrot.lane.b32.xlu0 %v481, 64
    %v567 = vpop.permute.xlu0 %566
    %v570 = vsel %vm528, %v562, 0
    %v573 = vsel %vm528, %v563, 0
    %vm575 = vcmask 1043456
    %v577 = vsel %vm575, %v567, 0
    %579 = vmatpush.bf16.msra.mxu0 0
    %580 = vmatpush.bf16.msra.mxu0 0
    %581 = vmatpush.bf16.msra.mxu0 0
    %582 = vmatpush.bf16.msra.mxu0 0
    %583 = vmatpush.bf16.msra.mxu0 0
    %584 = vmatpush.bf16.msra.mxu0 0
    %585 = vmatpush.bf16.msra.mxu0 %v577
    %586 = vmatpush.bf16.msra.mxu0 %v565
    %587 = vmatmul.bf16.gmra.mxu0 %v570
    %v588 = vpop.f32.mrf.mxu0
    %v589 = vadd.f32 0.0, %v588
    %v590 = vpop.f32.mrf.mxu0
    %v591 = vadd.f32 0.0, %v590
    %592 = vmatmul.bf16.gmra.mxu0 %v573
    %v593 = vpop.f32.mrf.mxu0
    %v594 = vadd.f32 0.0, %v593
    %v595 = vpop.f32.mrf.mxu0
    %596 = vdwg.mxu0
    %v597 = vpack.c.bf16 %v591, %v589
    %v598 = vpack.c.bf16 %v594, %v594
    %599 = vrot.lane.b32.xlu0 %v480, 120
    %v600 = vpop.permute.xlu0 %599
    %601 = vrot.lane.b32.xlu0 %v481, 120
    %v602 = vpop.permute.xlu0 %601
    %603 = vrot.lane.b32.xlu0 %v480, 88
    %v604 = vpop.permute.xlu0 %603
    %605 = vrot.lane.b32.xlu0 %v481, 88
    %v606 = vpop.permute.xlu0 %605
    %v608 = vsel %vm488, %v600, 0
    %v611 = vsel %vm488, %v602, 0
    %v614 = vsel %vm488, %v604, 0
    %v617 = vsel %vm488, %v606, 0
    %619 = vmatpush.bf16.xpose.msra.mxu0 0
    %620 = vmatpush.bf16.xpose.msra.mxu0 0
    %621 = vmatpush.bf16.xpose.msra.mxu0 0
    %622 = vmatpush.bf16.xpose.msra.mxu0 0
    %623 = vmatpush.bf16.xpose.msra.mxu0 0
    %624 = vmatpush.bf16.xpose.msra.mxu0 0
    %625 = vmatpush.bf16.xpose.msra.mxu0 %v617
    %626 = vmatpush.bf16.xpose.msra.mxu0 %v614
    %627 = vmatmul.bf16.gmra.mxu0 %v608
    %v628 = vpop.f32.mrf.mxu0
    %v629 = vadd.f32 0.0, %v628
    %v630 = vpop.f32.mrf.mxu0
    %v631 = vadd.f32 0.0, %v630
    %632 = vmatmul.bf16.gmra.mxu0 %v611
    %v633 = vpop.f32.mrf.mxu0
    %v634 = vadd.f32 0.0, %v633
    %v635 = vpop.f32.mrf.mxu0
    %636 = vdwg.mxu0
    %v637 = vmul.f32 %v629, 0.35355338
    %v638 = vmul.f32 %v631, 0.35355338
    %v639 = vmul.f32 %v634, 0.35355338
    %v640 = vadd.f32 %v637, %v523
    %v641 = vadd.f32 %v638, %v523
    %v642 = vadd.f32 %v639, %v523
    %v643 = vsel %vm528, %v640, -inf
    %644 = vmax.xlane.f32.xlu0 %v643
    %v645 = vpop.xlane.xlu0 %644
    %v646 = vsel %vm528, %v641, -inf
    %647 = vmax.xlane.f32.xlu0 %v646
    %v648 = vpop.xlane.xlu0 %647
    %v649 = vsel %vm528, %v642, -inf
    %650 = vmax.xlane.f32.xlu0 %v649
    %v651 = vpop.xlane.xlu0 %650
    %v652 = vsub.f32 %v640, %v645
    %v653 = vsub.f32 %v641, %v648
    %v654 = vsub.f32 %v642, %v651
    %v655 = vmul.f32 %v652, 1.442695
    %v656 = vpow.pop %v655
    %v657 = vmul.f32 %v653, 1.442695
    %v658 = vpow.pop %v657
    %v659 = vmul.f32 %v654, 1.442695
    %v660 = vpow.pop %v659
    %v661 = vsel %vm528, %v656, 0.0
    %662 = vadd.xlane.f32.xlu0 %v661
    %v663 = vpop.xlane.xlu0 %662
    %v664 = vsel %vm528, %v658, 0.0
    %665 = vadd.xlane.f32.xlu0 %v664
    %v666 = vpop.xlane.xlu0 %665
    %v667 = vsel %vm528, %v660, 0.0
    %668 = vadd.xlane.f32.xlu0 %v667
    %v669 = vpop.xlane.xlu0 %668
    %v670 = vrcp.pop %v663
    %v671 = vrcp.pop %v666
    %v672 = vrcp.pop %v669
    %v673 = vmul.f32 %v656, %v670
    %v674 = vmul.f32 %v658, %v671
    %v675 = vmul.f32 %v660, %v672
    %v676 = vpack.c.bf16 %v674, %v673
    %v677 = vpack.c.bf16 %v675, %v675
    %678 = vrot.lane.b32.xlu0 %v480, 56
    %v679 = vpop.permute.xlu0 %678
    %680 = vrot.lane.b32.xlu0 %v481, 56
    %v681 = vpop.permute.xlu0 %680
    %v684 = vsel %vm528, %v676, 0
    %v687 = vsel %vm528, %v677, 0
    %v690 = vsel %vm575, %v681, 0
    %692 = vmatpush.bf16.msra.mxu0 0
    %693 = vmatpush.bf16.msra.mxu0 0
    %694 = vmatpush.bf16.msra.mxu0 0
    %695 = vmatpush.bf16.msra.mxu0 0
    %696 = vmatpush.bf16.msra.mxu0 0
    %697 = vmatpush.bf16.msra.mxu0 0
    %698 = vmatpush.bf16.msra.mxu0 %v690
    %699 = vmatpush.bf16.msra.mxu0 %v679
    %700 = vmatmul.bf16.gmra.mxu0 %v684
    %v701 = vpop.f32.mrf.mxu0
    %v702 = vadd.f32 0.0, %v701
    %v703 = vpop.f32.mrf.mxu0
    %v704 = vadd.f32 0.0, %v703
    %705 = vmatmul.bf16.gmra.mxu0 %v687
    %v706 = vpop.f32.mrf.mxu0
    %v707 = vadd.f32 0.0, %v706
    %v708 = vpop.f32.mrf.mxu0
    %709 = vdwg.mxu0
    %v710 = vpack.c.bf16 %v704, %v702
    %v711 = vpack.c.bf16 %v707, %v707
    %v713 = vsel %vm488, %v710, 0
    %v716 = vsel %vm488, %v711, 0
    %v719 = vsel %vm575, %v255, 0
    %721 = vmatpush.bf16.msra.mxu0 0
    %722 = vmatpush.bf16.msra.mxu0 0
    %723 = vmatpush.bf16.msra.mxu0 0
    %724 = vmatpush.bf16.msra.mxu0 0
    %725 = vmatpush.bf16.msra.mxu0 0
    %726 = vmatpush.bf16.msra.mxu0 0
    %727 = vmatpush.bf16.msra.mxu0 0
    %728 = vmatpush.bf16.msra.mxu0 %v719
    %729 = vmatmul.bf16.gmra.mxu0 %v713
    %v730 = vpop.f32.mrf.mxu0
    %v731 = vadd.f32 0.0, %v730
    %v732 = vpop.f32.mrf.mxu0
    %v733 = vadd.f32 0.0, %v732
    %734 = vmatmul.bf16.gmra.mxu0 %v716
    %v735 = vpop.f32.mrf.mxu0
    %v736 = vadd.f32 0.0, %v735
    %v737 = vpop.f32.mrf.mxu0
    %738 = vdwg.mxu0
    %v740 = vsel %vm488, %v597, 0
    %v743 = vsel %vm488, %v598, 0
    %v746 = vsel %vm575, %v254, 0
    %748 = vmatpush.bf16.msra.mxu0 0
    %749 = vmatpush.bf16.msra.mxu0 0
    %750 = vmatpush.bf16.msra.mxu0 0
    %751 = vmatpush.bf16.msra.mxu0 0
    %752 = vmatpush.bf16.msra.mxu0 0
    %753 = vmatpush.bf16.msra.mxu0 0
    %754 = vmatpush.bf16.msra.mxu0 0
    %755 = vmatpush.bf16.msra.mxu0 %v746
    %756 = vmatmul.bf16.gmra.mxu0 %v740
    %v757 = vpop.f32.mrf.mxu0
    %v758 = vadd.f32 %v731, %v757
    %v759 = vpop.f32.mrf.mxu0
    %v760 = vadd.f32 %v733, %v759
    %761 = vmatmul.bf16.gmra.mxu0 %v743
    %v762 = vpop.f32.mrf.mxu0
    %v763 = vadd.f32 %v736, %v762
    %v764 = vpop.f32.mrf.mxu0
    %765 = vdwg.mxu0
    %766 = vrot.lane.b32.xlu0 %v480, 112
    %v767 = vpop.permute.xlu0 %766
    %768 = vrot.lane.b32.xlu0 %v481, 112
    %v769 = vpop.permute.xlu0 %768
    %770 = vrot.lane.b32.xlu0 %v480, 80
    %v771 = vpop.permute.xlu0 %770
    %772 = vrot.lane.b32.xlu0 %v481, 80
    %v773 = vpop.permute.xlu0 %772
    %v775 = vsel %vm488, %v767, 0
    %v778 = vsel %vm488, %v769, 0
    %v781 = vsel %vm488, %v771, 0
    %v784 = vsel %vm488, %v773, 0
    %786 = vmatpush.bf16.xpose.msra.mxu0 0
    %787 = vmatpush.bf16.xpose.msra.mxu0 0
    %788 = vmatpush.bf16.xpose.msra.mxu0 0
    %789 = vmatpush.bf16.xpose.msra.mxu0 0
    %790 = vmatpush.bf16.xpose.msra.mxu0 0
    %791 = vmatpush.bf16.xpose.msra.mxu0 0
    %792 = vmatpush.bf16.xpose.msra.mxu0 %v784
    %793 = vmatpush.bf16.xpose.msra.mxu0 %v781
    %794 = vmatmul.bf16.gmra.mxu0 %v775
    %v795 = vpop.f32.mrf.mxu0
    %v796 = vadd.f32 0.0, %v795
    %v797 = vpop.f32.mrf.mxu0
    %v798 = vadd.f32 0.0, %v797
    %799 = vmatmul.bf16.gmra.mxu0 %v778
    %v800 = vpop.f32.mrf.mxu0
    %v801 = vadd.f32 0.0, %v800
    %v802 = vpop.f32.mrf.mxu0
    %803 = vdwg.mxu0
    %v804 = vmul.f32 %v796, 0.35355338
    %v805 = vmul.f32 %v798, 0.35355338
    %v806 = vmul.f32 %v801, 0.35355338
    %v807 = vadd.f32 %v804, %v523
    %v808 = vadd.f32 %v805, %v523
    %v809 = vadd.f32 %v806, %v523
    %v810 = vsel %vm528, %v807, -inf
    %811 = vmax.xlane.f32.xlu0 %v810
    %v812 = vpop.xlane.xlu0 %811
    %v813 = vsel %vm528, %v808, -inf
    %814 = vmax.xlane.f32.xlu0 %v813
    %v815 = vpop.xlane.xlu0 %814
    %v816 = vsel %vm528, %v809, -inf
    %817 = vmax.xlane.f32.xlu0 %v816
    %v818 = vpop.xlane.xlu0 %817
    %v819 = vsub.f32 %v807, %v812
    %v820 = vsub.f32 %v808, %v815
    %v821 = vsub.f32 %v809, %v818
    %v822 = vmul.f32 %v819, 1.442695
    %v823 = vpow.pop %v822
    %v824 = vmul.f32 %v820, 1.442695
    %v825 = vpow.pop %v824
    %v826 = vmul.f32 %v821, 1.442695
    %v827 = vpow.pop %v826
    %v828 = vsel %vm528, %v823, 0.0
    %829 = vadd.xlane.f32.xlu0 %v828
    %v830 = vpop.xlane.xlu0 %829
    %v831 = vsel %vm528, %v825, 0.0
    %832 = vadd.xlane.f32.xlu0 %v831
    %v833 = vpop.xlane.xlu0 %832
    %v834 = vsel %vm528, %v827, 0.0
    %835 = vadd.xlane.f32.xlu0 %v834
    %v836 = vpop.xlane.xlu0 %835
    %v837 = vrcp.pop %v830
    %v838 = vrcp.pop %v833
    %v839 = vrcp.pop %v836
    %v840 = vmul.f32 %v823, %v837
    %v841 = vmul.f32 %v825, %v838
    %v842 = vmul.f32 %v827, %v839
    %v843 = vpack.c.bf16 %v841, %v840
    %v844 = vpack.c.bf16 %v842, %v842
    %845 = vrot.lane.b32.xlu0 %v480, 48
    %v846 = vpop.permute.xlu0 %845
    %847 = vrot.lane.b32.xlu0 %v481, 48
    %v848 = vpop.permute.xlu0 %847
    %v851 = vsel %vm528, %v843, 0
    %v854 = vsel %vm528, %v844, 0
    %v857 = vsel %vm575, %v848, 0
    %859 = vmatpush.bf16.msra.mxu0 0
    %860 = vmatpush.bf16.msra.mxu0 0
    %861 = vmatpush.bf16.msra.mxu0 0
    %862 = vmatpush.bf16.msra.mxu0 0
    %863 = vmatpush.bf16.msra.mxu0 0
    %864 = vmatpush.bf16.msra.mxu0 0
    %865 = vmatpush.bf16.msra.mxu0 %v857
    %866 = vmatpush.bf16.msra.mxu0 %v846
    %867 = vmatmul.bf16.gmra.mxu0 %v851
    %v868 = vpop.f32.mrf.mxu0
    %v869 = vadd.f32 0.0, %v868
    %v870 = vpop.f32.mrf.mxu0
    %v871 = vadd.f32 0.0, %v870
    %872 = vmatmul.bf16.gmra.mxu0 %v854
    %v873 = vpop.f32.mrf.mxu0
    %v874 = vadd.f32 0.0, %v873
    %v875 = vpop.f32.mrf.mxu0
    %876 = vdwg.mxu0
    %v877 = vpack.c.bf16 %v871, %v869
    %v878 = vpack.c.bf16 %v874, %v874
    %v880 = vsel %vm488, %v877, 0
    %v883 = vsel %vm488, %v878, 0
    %v886 = vsel %vm575, %v256, 0
    %888 = vmatpush.bf16.msra.mxu0 0
    %889 = vmatpush.bf16.msra.mxu0 0
    %890 = vmatpush.bf16.msra.mxu0 0
    %891 = vmatpush.bf16.msra.mxu0 0
    %892 = vmatpush.bf16.msra.mxu0 0
    %893 = vmatpush.bf16.msra.mxu0 0
    %894 = vmatpush.bf16.msra.mxu0 0
    %895 = vmatpush.bf16.msra.mxu0 %v886
    %896 = vmatmul.bf16.gmra.mxu0 %v880
    %v897 = vpop.f32.mrf.mxu0
    %v898 = vadd.f32 0.0, %v897
    %v899 = vpop.f32.mrf.mxu0
    %v900 = vadd.f32 0.0, %v899
    %901 = vmatmul.bf16.gmra.mxu0 %v883
    %v902 = vpop.f32.mrf.mxu0
    %v903 = vadd.f32 0.0, %v902
    %v904 = vpop.f32.mrf.mxu0
    %905 = vdwg.mxu0
    %v906 = vadd.f32 %v758, %v898
    %v907 = vadd.f32 %v760, %v900
    %v908 = vadd.f32 %v763, %v903
    %909 = vrot.lane.b32.xlu0 %v480, 104
    %v910 = vpop.permute.xlu0 %909
    %911 = vrot.lane.b32.xlu0 %v481, 104
    %v912 = vpop.permute.xlu0 %911
    %913 = vrot.lane.b32.xlu0 %v480, 72
    %v914 = vpop.permute.xlu0 %913
    %915 = vrot.lane.b32.xlu0 %v481, 72
    %v916 = vpop.permute.xlu0 %915
    %v918 = vsel %vm488, %v910, 0
    %v921 = vsel %vm488, %v912, 0
    %v924 = vsel %vm488, %v914, 0
    %v927 = vsel %vm488, %v916, 0
    %929 = vmatpush.bf16.xpose.msra.mxu0 0
    %930 = vmatpush.bf16.xpose.msra.mxu0 0
    %931 = vmatpush.bf16.xpose.msra.mxu0 0
    %932 = vmatpush.bf16.xpose.msra.mxu0 0
    %933 = vmatpush.bf16.xpose.msra.mxu0 0
    %934 = vmatpush.bf16.xpose.msra.mxu0 0
    %935 = vmatpush.bf16.xpose.msra.mxu0 %v927
    %936 = vmatpush.bf16.xpose.msra.mxu0 %v924
    %937 = vmatmul.bf16.gmra.mxu0 %v918
    %v938 = vpop.f32.mrf.mxu0
    %v939 = vadd.f32 0.0, %v938
    %v940 = vpop.f32.mrf.mxu0
    %v941 = vadd.f32 0.0, %v940
    %942 = vmatmul.bf16.gmra.mxu0 %v921
    %v943 = vpop.f32.mrf.mxu0
    %v944 = vadd.f32 0.0, %v943
    %v945 = vpop.f32.mrf.mxu0
    %946 = vdwg.mxu0
    %v947 = vmul.f32 %v939, 0.35355338
    %v948 = vmul.f32 %v941, 0.35355338
    %v949 = vmul.f32 %v944, 0.35355338
    %v950 = vadd.f32 %v947, %v523
    %v951 = vadd.f32 %v948, %v523
    %v952 = vadd.f32 %v949, %v523
    %v953 = vsel %vm528, %v950, -inf
    %954 = vmax.xlane.f32.xlu0 %v953
    %v955 = vpop.xlane.xlu0 %954
    %v956 = vsel %vm528, %v951, -inf
    %957 = vmax.xlane.f32.xlu0 %v956
    %v958 = vpop.xlane.xlu0 %957
    %v959 = vsel %vm528, %v952, -inf
    %960 = vmax.xlane.f32.xlu0 %v959
    %v961 = vpop.xlane.xlu0 %960
    %v962 = vsub.f32 %v950, %v955
    %v963 = vsub.f32 %v951, %v958
    %v964 = vsub.f32 %v952, %v961
    %v965 = vmul.f32 %v962, 1.442695
    %v966 = vpow.pop %v965
    %v967 = vmul.f32 %v963, 1.442695
    %v968 = vpow.pop %v967
    %v969 = vmul.f32 %v964, 1.442695
    %v970 = vpow.pop %v969
    %v971 = vsel %vm528, %v966, 0.0
    %972 = vadd.xlane.f32.xlu0 %v971
    %v973 = vpop.xlane.xlu0 %972
    %v974 = vsel %vm528, %v968, 0.0
    %975 = vadd.xlane.f32.xlu0 %v974
    %v976 = vpop.xlane.xlu0 %975
    %v977 = vsel %vm528, %v970, 0.0
    %978 = vadd.xlane.f32.xlu0 %v977
    %v979 = vpop.xlane.xlu0 %978
    %v980 = vrcp.pop %v973
    %v981 = vrcp.pop %v976
    %v982 = vrcp.pop %v979
    %v983 = vmul.f32 %v966, %v980
    %v984 = vmul.f32 %v968, %v981
    %v985 = vmul.f32 %v970, %v982
    %v986 = vpack.c.bf16 %v984, %v983
    %v987 = vpack.c.bf16 %v985, %v985
    %988 = vrot.lane.b32.xlu0 %v480, 40
    %v989 = vpop.permute.xlu0 %988
    %990 = vrot.lane.b32.xlu0 %v481, 40
    %v991 = vpop.permute.xlu0 %990
    %v994 = vsel %vm528, %v986, 0
    %v997 = vsel %vm528, %v987, 0
    %v1000 = vsel %vm575, %v991, 0
    %1002 = vmatpush.bf16.msra.mxu0 0
    %1003 = vmatpush.bf16.msra.mxu0 0
    %1004 = vmatpush.bf16.msra.mxu0 0
    %1005 = vmatpush.bf16.msra.mxu0 0
    %1006 = vmatpush.bf16.msra.mxu0 0
    %1007 = vmatpush.bf16.msra.mxu0 0
    %1008 = vmatpush.bf16.msra.mxu0 %v1000
    %1009 = vmatpush.bf16.msra.mxu0 %v989
    %1010 = vmatmul.bf16.gmra.mxu0 %v994
    %v1011 = vpop.f32.mrf.mxu0
    %v1012 = vadd.f32 0.0, %v1011
    %v1013 = vpop.f32.mrf.mxu0
    %v1014 = vadd.f32 0.0, %v1013
    %1015 = vmatmul.bf16.gmra.mxu0 %v997
    %v1016 = vpop.f32.mrf.mxu0
    %v1017 = vadd.f32 0.0, %v1016
    %v1018 = vpop.f32.mrf.mxu0
    %1019 = vdwg.mxu0
    %v1020 = vpack.c.bf16 %v1014, %v1012
    %v1021 = vpack.c.bf16 %v1017, %v1017
    %v1023 = vsel %vm488, %v1020, 0
    %v1026 = vsel %vm488, %v1021, 0
    %v1029 = vsel %vm575, %v257, 0
    %1031 = vmatpush.bf16.msra.mxu0 0
    %1032 = vmatpush.bf16.msra.mxu0 0
    %1033 = vmatpush.bf16.msra.mxu0 0
    %1034 = vmatpush.bf16.msra.mxu0 0
    %1035 = vmatpush.bf16.msra.mxu0 0
    %1036 = vmatpush.bf16.msra.mxu0 0
    %1037 = vmatpush.bf16.msra.mxu0 0
    %1038 = vmatpush.bf16.msra.mxu0 %v1029
    %1039 = vmatmul.bf16.gmra.mxu0 %v1023
    %v1040 = vpop.f32.mrf.mxu0
    %v1041 = vadd.f32 0.0, %v1040
    %v1042 = vpop.f32.mrf.mxu0
    %v1043 = vadd.f32 0.0, %v1042
    %1044 = vmatmul.bf16.gmra.mxu0 %v1026
    %v1045 = vpop.f32.mrf.mxu0
    %v1046 = vadd.f32 0.0, %v1045
    %v1047 = vpop.f32.mrf.mxu0
    %1048 = vdwg.mxu0
    %v1049 = vadd.f32 %v906, %v1041
    %v1050 = vadd.f32 %v907, %v1043
    %v1051 = vadd.f32 %v908, %v1046
    %v1052 = vadd.f32 %v259, %v1049
    %v1053 = vadd.f32 %v260, %v1050
    %v1054 = vadd.f32 %v261, %v1051
    %v1056 = vperm.slane %v258, 0
    %v1058 = vadd.f32 %v1052, %v1056
    %v1059 = vadd.f32 %v1053, %v1056
    %v1060 = vadd.f32 %v1054, %v1056
    %1061 = vst.msk [vmem:[#allocation2] sm:$0xff] %vm163, %v1058
    %1062 = vst.msk [vmem:[#allocation2 + $0x8] sm:$0xff] %vm163, %v1059
    %1063 = vst.msk [vmem:[#allocation2 + $0x10] sm:$0xff] %vm163, %v1060
    %v1064 = vpack.c.bf16 %v476, %v473
    %v1065 = vpack.c.bf16 %v478, %v478
    %1068 = vrot.lane.b32.xlu0 %v1064, 96
    %v1069 = vpop.permute.xlu0 %1068
    %1070 = vrot.lane.b32.xlu0 %v1065, 96
    %v1071 = vpop.permute.xlu0 %1070
    %v1073 = vsel %vm488, %v1064, 0
    %v1076 = vsel %vm488, %v1065, 0
    %v1079 = vsel %vm488, %v1069, 0
    %v1082 = vsel %vm488, %v1071, 0
    %1084 = vmatpush.bf16.xpose.msra.mxu0 0
    %1085 = vmatpush.bf16.xpose.msra.mxu0 0
    %1086 = vmatpush.bf16.xpose.msra.mxu0 0
    %1087 = vmatpush.bf16.xpose.msra.mxu0 0
    %1088 = vmatpush.bf16.xpose.msra.mxu0 0
    %1089 = vmatpush.bf16.xpose.msra.mxu0 0
    %1090 = vmatpush.bf16.xpose.msra.mxu0 %v1082
    %1091 = vmatpush.bf16.xpose.msra.mxu0 %v1079
    %1092 = vmatmul.bf16.gmra.mxu0 %v1073
    %v1093 = vpop.f32.mrf.mxu0
    %v1094 = vadd.f32 0.0, %v1093
    %v1095 = vpop.f32.mrf.mxu0
    %v1096 = vadd.f32 0.0, %v1095
    %1097 = vmatmul.bf16.gmra.mxu0 %v1076
    %v1098 = vpop.f32.mrf.mxu0
    %v1099 = vadd.f32 0.0, %v1098
    %v1100 = vpop.f32.mrf.mxu0
    %1101 = vdwg.mxu0
    %v1102 = vmul.f32 %v1094, 0.35355338
    %v1103 = vmul.f32 %v1096, 0.35355338
    %v1104 = vmul.f32 %v1099, 0.35355338
    %v1105 = vadd.f32 %v1102, %v523
    %v1106 = vadd.f32 %v1103, %v523
    %v1107 = vadd.f32 %v1104, %v523
    %v1108 = vsel %vm528, %v1105, -inf
    %1109 = vmax.xlane.f32.xlu0 %v1108
    %v1110 = vpop.xlane.xlu0 %1109
    %v1111 = vsel %vm528, %v1106, -inf
    %1112 = vmax.xlane.f32.xlu0 %v1111
    %v1113 = vpop.xlane.xlu0 %1112
    %v1114 = vsel %vm528, %v1107, -inf
    %1115 = vmax.xlane.f32.xlu0 %v1114
    %v1116 = vpop.xlane.xlu0 %1115
    %v1117 = vsub.f32 %v1105, %v1110
    %v1118 = vsub.f32 %v1106, %v1113
    %v1119 = vsub.f32 %v1107, %v1116
    %v1120 = vmul.f32 %v1117, 1.442695
    %v1121 = vpow.pop %v1120
    %v1122 = vmul.f32 %v1118, 1.442695
    %v1123 = vpow.pop %v1122
    %v1124 = vmul.f32 %v1119, 1.442695
    %v1125 = vpow.pop %v1124
    %v1126 = vsel %vm528, %v1121, 0.0
    %1127 = vadd.xlane.f32.xlu0 %v1126
    %v1128 = vpop.xlane.xlu0 %1127
    %v1129 = vsel %vm528, %v1123, 0.0
    %1130 = vadd.xlane.f32.xlu0 %v1129
    %v1131 = vpop.xlane.xlu0 %1130
    %v1132 = vsel %vm528, %v1125, 0.0
    %1133 = vadd.xlane.f32.xlu0 %v1132
    %v1134 = vpop.xlane.xlu0 %1133
    %v1135 = vrcp.pop %v1128
    %v1136 = vrcp.pop %v1131
    %v1137 = vrcp.pop %v1134
    %v1138 = vmul.f32 %v1121, %v1135
    %v1139 = vmul.f32 %v1123, %v1136
    %v1140 = vmul.f32 %v1125, %v1137
    %v1141 = vpack.c.bf16 %v1139, %v1138
    %v1142 = vpack.c.bf16 %v1140, %v1140
    %1143 = vrot.lane.b32.xlu0 %v1064, 64
    %v1144 = vpop.permute.xlu0 %1143
    %1145 = vrot.lane.b32.xlu0 %v1065, 64
    %v1146 = vpop.permute.xlu0 %1145
    %v1149 = vsel %vm528, %v1141, 0
    %v1152 = vsel %vm528, %v1142, 0
    %v1155 = vsel %vm575, %v1146, 0
    %1157 = vmatpush.bf16.msra.mxu0 0
    %1158 = vmatpush.bf16.msra.mxu0 0
    %1159 = vmatpush.bf16.msra.mxu0 0
    %1160 = vmatpush.bf16.msra.mxu0 0
    %1161 = vmatpush.bf16.msra.mxu0 0
    %1162 = vmatpush.bf16.msra.mxu0 0
    %1163 = vmatpush.bf16.msra.mxu0 %v1155
    %1164 = vmatpush.bf16.msra.mxu0 %v1144
    %1165 = vmatmul.bf16.gmra.mxu0 %v1149
    %v1166 = vpop.f32.mrf.mxu0
    %v1167 = vadd.f32 0.0, %v1166
    %v1168 = vpop.f32.mrf.mxu0
    %v1169 = vadd.f32 0.0, %v1168
    %1170 = vmatmul.bf16.gmra.mxu0 %v1152
    %v1171 = vpop.f32.mrf.mxu0
    %v1172 = vadd.f32 0.0, %v1171
    %v1173 = vpop.f32.mrf.mxu0
    %1174 = vdwg.mxu0
    %v1175 = vpack.c.bf16 %v1169, %v1167
    %v1176 = vpack.c.bf16 %v1172, %v1172
    %1177 = vrot.lane.b32.xlu0 %v1064, 120
    %v1178 = vpop.permute.xlu0 %1177
    %1179 = vrot.lane.b32.xlu0 %v1065, 120
    %v1180 = vpop.permute.xlu0 %1179
    %1181 = vrot.lane.b32.xlu0 %v1064, 88
    %v1182 = vpop.permute.xlu0 %1181
    %1183 = vrot.lane.b32.xlu0 %v1065, 88
    %v1184 = vpop.permute.xlu0 %1183
    %v1186 = vsel %vm488, %v1178, 0
    %v1189 = vsel %vm488, %v1180, 0
    %v1192 = vsel %vm488, %v1182, 0
    %v1195 = vsel %vm488, %v1184, 0
    %1197 = vmatpush.bf16.xpose.msra.mxu0 0
    %1198 = vmatpush.bf16.xpose.msra.mxu0 0
    %1199 = vmatpush.bf16.xpose.msra.mxu0 0
    %1200 = vmatpush.bf16.xpose.msra.mxu0 0
    %1201 = vmatpush.bf16.xpose.msra.mxu0 0
    %1202 = vmatpush.bf16.xpose.msra.mxu0 0
    %1203 = vmatpush.bf16.xpose.msra.mxu0 %v1195
    %1204 = vmatpush.bf16.xpose.msra.mxu0 %v1192
    %1205 = vmatmul.bf16.gmra.mxu0 %v1186
    %v1206 = vpop.f32.mrf.mxu0
    %v1207 = vadd.f32 0.0, %v1206
    %v1208 = vpop.f32.mrf.mxu0
    %v1209 = vadd.f32 0.0, %v1208
    %1210 = vmatmul.bf16.gmra.mxu0 %v1189
    %v1211 = vpop.f32.mrf.mxu0
    %v1212 = vadd.f32 0.0, %v1211
    %v1213 = vpop.f32.mrf.mxu0
    %1214 = vdwg.mxu0
    %v1215 = vmul.f32 %v1207, 0.35355338
    %v1216 = vmul.f32 %v1209, 0.35355338
    %v1217 = vmul.f32 %v1212, 0.35355338
    %v1218 = vadd.f32 %v1215, %v523
    %v1219 = vadd.f32 %v1216, %v523
    %v1220 = vadd.f32 %v1217, %v523
    %v1221 = vsel %vm528, %v1218, -inf
    %1222 = vmax.xlane.f32.xlu0 %v1221
    %v1223 = vpop.xlane.xlu0 %1222
    %v1224 = vsel %vm528, %v1219, -inf
    %1225 = vmax.xlane.f32.xlu0 %v1224
    %v1226 = vpop.xlane.xlu0 %1225
    %v1227 = vsel %vm528, %v1220, -inf
    %1228 = vmax.xlane.f32.xlu0 %v1227
    %v1229 = vpop.xlane.xlu0 %1228
    %v1230 = vsub.f32 %v1218, %v1223
    %v1231 = vsub.f32 %v1219, %v1226
    %v1232 = vsub.f32 %v1220, %v1229
    %v1233 = vmul.f32 %v1230, 1.442695
    %v1234 = vpow.pop %v1233
    %v1235 = vmul.f32 %v1231, 1.442695
    %v1236 = vpow.pop %v1235
    %v1237 = vmul.f32 %v1232, 1.442695
    %v1238 = vpow.pop %v1237
    %v1239 = vsel %vm528, %v1234, 0.0
    %1240 = vadd.xlane.f32.xlu0 %v1239
    %v1241 = vpop.xlane.xlu0 %1240
    %v1242 = vsel %vm528, %v1236, 0.0
    %1243 = vadd.xlane.f32.xlu0 %v1242
    %v1244 = vpop.xlane.xlu0 %1243
    %v1245 = vsel %vm528, %v1238, 0.0
    %1246 = vadd.xlane.f32.xlu0 %v1245
    %v1247 = vpop.xlane.xlu0 %1246
    %v1248 = vrcp.pop %v1241
    %v1249 = vrcp.pop %v1244
    %v1250 = vrcp.pop %v1247
    %v1251 = vmul.f32 %v1234, %v1248
    %v1252 = vmul.f32 %v1236, %v1249
    %v1253 = vmul.f32 %v1238, %v1250
    %v1254 = vpack.c.bf16 %v1252, %v1251
    %v1255 = vpack.c.bf16 %v1253, %v1253
    %1256 = vrot.lane.b32.xlu0 %v1064, 56
    %v1257 = vpop.permute.xlu0 %1256
    %1258 = vrot.lane.b32.xlu0 %v1065, 56
    %v1259 = vpop.permute.xlu0 %1258
    %v1262 = vsel %vm528, %v1254, 0
    %v1265 = vsel %vm528, %v1255, 0
    %v1268 = vsel %vm575, %v1259, 0
    %1270 = vmatpush.bf16.msra.mxu0 0
    %1271 = vmatpush.bf16.msra.mxu0 0
    %1272 = vmatpush.bf16.msra.mxu0 0
    %1273 = vmatpush.bf16.msra.mxu0 0
    %1274 = vmatpush.bf16.msra.mxu0 0
    %1275 = vmatpush.bf16.msra.mxu0 0
    %1276 = vmatpush.bf16.msra.mxu0 %v1268
    %1277 = vmatpush.bf16.msra.mxu0 %v1257
    %1278 = vmatmul.bf16.gmra.mxu0 %v1262
    %v1279 = vpop.f32.mrf.mxu0
    %v1280 = vadd.f32 0.0, %v1279
    %v1281 = vpop.f32.mrf.mxu0
    %v1282 = vadd.f32 0.0, %v1281
    %1283 = vmatmul.bf16.gmra.mxu0 %v1265
    %v1284 = vpop.f32.mrf.mxu0
    %v1285 = vadd.f32 0.0, %v1284
    %v1286 = vpop.f32.mrf.mxu0
    %1287 = vdwg.mxu0
    %v1288 = vpack.c.bf16 %v1282, %v1280
    %v1289 = vpack.c.bf16 %v1285, %v1285
    %v1291 = vsel %vm488, %v1288, 0
    %v1294 = vsel %vm488, %v1289, 0
    %1296 = vmatpush.bf16.msra.mxu0 0
    %1297 = vmatpush.bf16.msra.mxu0 0
    %1298 = vmatpush.bf16.msra.mxu0 0
    %1299 = vmatpush.bf16.msra.mxu0 0
    %1300 = vmatpush.bf16.msra.mxu0 0
    %1301 = vmatpush.bf16.msra.mxu0 0
    %1302 = vmatpush.bf16.msra.mxu0 0
    %1303 = vmatpush.bf16.msra.mxu0 %v719
    %1304 = vmatmul.bf16.gmra.mxu0 %v1291
    %v1305 = vpop.f32.mrf.mxu0
    %v1306 = vadd.f32 0.0, %v1305
    %v1307 = vpop.f32.mrf.mxu0
    %v1308 = vadd.f32 0.0, %v1307
    %1309 = vmatmul.bf16.gmra.mxu0 %v1294
    %v1310 = vpop.f32.mrf.mxu0
    %v1311 = vadd.f32 0.0, %v1310
    %v1312 = vpop.f32.mrf.mxu0
    %1313 = vdwg.mxu0
    %v1315 = vsel %vm488, %v1175, 0
    %v1318 = vsel %vm488, %v1176, 0
    %1320 = vmatpush.bf16.msra.mxu0 0
    %1321 = vmatpush.bf16.msra.mxu0 0
    %1322 = vmatpush.bf16.msra.mxu0 0
    %1323 = vmatpush.bf16.msra.mxu0 0
    %1324 = vmatpush.bf16.msra.mxu0 0
    %1325 = vmatpush.bf16.msra.mxu0 0
    %1326 = vmatpush.bf16.msra.mxu0 0
    %1327 = vmatpush.bf16.msra.mxu0 %v746
    %1328 = vmatmul.bf16.gmra.mxu0 %v1315
    %v1329 = vpop.f32.mrf.mxu0
    %v1330 = vadd.f32 %v1306, %v1329
    %v1331 = vpop.f32.mrf.mxu0
    %v1332 = vadd.f32 %v1308, %v1331
    %1333 = vmatmul.bf16.gmra.mxu0 %v1318
    %v1334 = vpop.f32.mrf.mxu0
    %v1335 = vadd.f32 %v1311, %v1334
    %v1336 = vpop.f32.mrf.mxu0
    %1337 = vdwg.mxu0
    %1338 = vrot.lane.b32.xlu0 %v1064, 112
    %v1339 = vpop.permute.xlu0 %1338
    %1340 = vrot.lane.b32.xlu0 %v1065, 112
    %v1341 = vpop.permute.xlu0 %1340
    %1342 = vrot.lane.b32.xlu0 %v1064, 80
    %v1343 = vpop.permute.xlu0 %1342
    %1344 = vrot.lane.b32.xlu0 %v1065, 80
    %v1345 = vpop.permute.xlu0 %1344
    %v1347 = vsel %vm488, %v1339, 0
    %v1350 = vsel %vm488, %v1341, 0
    %v1353 = vsel %vm488, %v1343, 0
    %v1356 = vsel %vm488, %v1345, 0
    %1358 = vmatpush.bf16.xpose.msra.mxu0 0
    %1359 = vmatpush.bf16.xpose.msra.mxu0 0
    %1360 = vmatpush.bf16.xpose.msra.mxu0 0
    %1361 = vmatpush.bf16.xpose.msra.mxu0 0
    %1362 = vmatpush.bf16.xpose.msra.mxu0 0
    %1363 = vmatpush.bf16.xpose.msra.mxu0 0
    %1364 = vmatpush.bf16.xpose.msra.mxu0 %v1356
    %1365 = vmatpush.bf16.xpose.msra.mxu0 %v1353
    %1366 = vmatmul.bf16.gmra.mxu0 %v1347
    %v1367 = vpop.f32.mrf.mxu0
    %v1368 = vadd.f32 0.0, %v1367
    %v1369 = vpop.f32.mrf.mxu0
    %v1370 = vadd.f32 0.0, %v1369
    %1371 = vmatmul.bf16.gmra.mxu0 %v1350
    %v1372 = vpop.f32.mrf.mxu0
    %v1373 = vadd.f32 0.0, %v1372
    %v1374 = vpop.f32.mrf.mxu0
    %1375 = vdwg.mxu0
    %v1376 = vmul.f32 %v1368, 0.35355338
    %v1377 = vmul.f32 %v1370, 0.35355338
    %v1378 = vmul.f32 %v1373, 0.35355338
    %v1379 = vadd.f32 %v1376, %v523
    %v1380 = vadd.f32 %v1377, %v523
    %v1381 = vadd.f32 %v1378, %v523
    %v1382 = vsel %vm528, %v1379, -inf
    %1383 = vmax.xlane.f32.xlu0 %v1382
    %v1384 = vpop.xlane.xlu0 %1383
    %v1385 = vsel %vm528, %v1380, -inf
    %1386 = vmax.xlane.f32.xlu0 %v1385
    %v1387 = vpop.xlane.xlu0 %1386
    %v1388 = vsel %vm528, %v1381, -inf
    %1389 = vmax.xlane.f32.xlu0 %v1388
    %v1390 = vpop.xlane.xlu0 %1389
    %v1391 = vsub.f32 %v1379, %v1384
    %v1392 = vsub.f32 %v1380, %v1387
    %v1393 = vsub.f32 %v1381, %v1390
    %v1394 = vmul.f32 %v1391, 1.442695
    %v1395 = vpow.pop %v1394
    %v1396 = vmul.f32 %v1392, 1.442695
    %v1397 = vpow.pop %v1396
    %v1398 = vmul.f32 %v1393, 1.442695
    %v1399 = vpow.pop %v1398
    %v1400 = vsel %vm528, %v1395, 0.0
    %1401 = vadd.xlane.f32.xlu0 %v1400
    %v1402 = vpop.xlane.xlu0 %1401
    %v1403 = vsel %vm528, %v1397, 0.0
    %1404 = vadd.xlane.f32.xlu0 %v1403
    %v1405 = vpop.xlane.xlu0 %1404
    %v1406 = vsel %vm528, %v1399, 0.0
    %1407 = vadd.xlane.f32.xlu0 %v1406
    %v1408 = vpop.xlane.xlu0 %1407
    %v1409 = vrcp.pop %v1402
    %v1410 = vrcp.pop %v1405
    %v1411 = vrcp.pop %v1408
    %v1412 = vmul.f32 %v1395, %v1409
    %v1413 = vmul.f32 %v1397, %v1410
    %v1414 = vmul.f32 %v1399, %v1411
    %v1415 = vpack.c.bf16 %v1413, %v1412
    %v1416 = vpack.c.bf16 %v1414, %v1414
    %1417 = vrot.lane.b32.xlu0 %v1064, 48
    %v1418 = vpop.permute.xlu0 %1417
    %1419 = vrot.lane.b32.xlu0 %v1065, 48
    %v1420 = vpop.permute.xlu0 %1419
    %v1423 = vsel %vm528, %v1415, 0
    %v1426 = vsel %vm528, %v1416, 0
    %v1429 = vsel %vm575, %v1420, 0
    %1431 = vmatpush.bf16.msra.mxu0 0
    %1432 = vmatpush.bf16.msra.mxu0 0
    %1433 = vmatpush.bf16.msra.mxu0 0
    %1434 = vmatpush.bf16.msra.mxu0 0
    %1435 = vmatpush.bf16.msra.mxu0 0
    %1436 = vmatpush.bf16.msra.mxu0 0
    %1437 = vmatpush.bf16.msra.mxu0 %v1429
    %1438 = vmatpush.bf16.msra.mxu0 %v1418
    %1439 = vmatmul.bf16.gmra.mxu0 %v1423
    %v1440 = vpop.f32.mrf.mxu0
    %v1441 = vadd.f32 0.0, %v1440
    %v1442 = vpop.f32.mrf.mxu0
    %v1443 = vadd.f32 0.0, %v1442
    %1444 = vmatmul.bf16.gmra.mxu0 %v1426
    %v1445 = vpop.f32.mrf.mxu0
    %v1446 = vadd.f32 0.0, %v1445
    %v1447 = vpop.f32.mrf.mxu0
    %1448 = vdwg.mxu0
    %v1449 = vpack.c.bf16 %v1443, %v1441
    %v1450 = vpack.c.bf16 %v1446, %v1446
    %v1452 = vsel %vm488, %v1449, 0
    %v1455 = vsel %vm488, %v1450, 0
    %1457 = vmatpush.bf16.msra.mxu0 0
    %1458 = vmatpush.bf16.msra.mxu0 0
    %1459 = vmatpush.bf16.msra.mxu0 0
    %1460 = vmatpush.bf16.msra.mxu0 0
    %1461 = vmatpush.bf16.msra.mxu0 0
    %1462 = vmatpush.bf16.msra.mxu0 0
    %1463 = vmatpush.bf16.msra.mxu0 0
    %1464 = vmatpush.bf16.msra.mxu0 %v886
    %1465 = vmatmul.bf16.gmra.mxu0 %v1452
    %v1466 = vpop.f32.mrf.mxu0
    %v1467 = vadd.f32 0.0, %v1466
    %v1468 = vpop.f32.mrf.mxu0
    %v1469 = vadd.f32 0.0, %v1468
    %1470 = vmatmul.bf16.gmra.mxu0 %v1455
    %v1471 = vpop.f32.mrf.mxu0
    %v1472 = vadd.f32 0.0, %v1471
    %v1473 = vpop.f32.mrf.mxu0
    %1474 = vdwg.mxu0
    %v1475 = vadd.f32 %v1330, %v1467
    %v1476 = vadd.f32 %v1332, %v1469
    %v1477 = vadd.f32 %v1335, %v1472
    %1478 = vrot.lane.b32.xlu0 %v1064, 104
    %v1479 = vpop.permute.xlu0 %1478
    %1480 = vrot.lane.b32.xlu0 %v1065, 104
    %v1481 = vpop.permute.xlu0 %1480
    %1482 = vrot.lane.b32.xlu0 %v1064, 72
    %v1483 = vpop.permute.xlu0 %1482
    %1484 = vrot.lane.b32.xlu0 %v1065, 72
    %v1485 = vpop.permute.xlu0 %1484
    %v1487 = vsel %vm488, %v1479, 0
    %v1490 = vsel %vm488, %v1481, 0
    %v1493 = vsel %vm488, %v1483, 0
    %v1496 = vsel %vm488, %v1485, 0
    %1498 = vmatpush.bf16.xpose.msra.mxu0 0
    %1499 = vmatpush.bf16.xpose.msra.mxu0 0
    %1500 = vmatpush.bf16.xpose.msra.mxu0 0
    %1501 = vmatpush.bf16.xpose.msra.mxu0 0
    %1502 = vmatpush.bf16.xpose.msra.mxu0 0
    %1503 = vmatpush.bf16.xpose.msra.mxu0 0
    %1504 = vmatpush.bf16.xpose.msra.mxu0 %v1496
    %1505 = vmatpush.bf16.xpose.msra.mxu0 %v1493
    %1506 = vmatmul.bf16.gmra.mxu0 %v1487
    %v1507 = vpop.f32.mrf.mxu0
    %v1508 = vadd.f32 0.0, %v1507
    %v1509 = vpop.f32.mrf.mxu0
    %v1510 = vadd.f32 0.0, %v1509
    %1511 = vmatmul.bf16.gmra.mxu0 %v1490
    %v1512 = vpop.f32.mrf.mxu0
    %v1513 = vadd.f32 0.0, %v1512
    %v1514 = vpop.f32.mrf.mxu0
    %1515 = vdwg.mxu0
    %v1516 = vmul.f32 %v1508, 0.35355338
    %v1517 = vmul.f32 %v1510, 0.35355338
    %v1518 = vmul.f32 %v1513, 0.35355338
    %v1519 = vadd.f32 %v1516, %v523
    %v1520 = vadd.f32 %v1517, %v523
    %v1521 = vadd.f32 %v1518, %v523
    %v1522 = vsel %vm528, %v1519, -inf
    %1523 = vmax.xlane.f32.xlu0 %v1522
    %v1524 = vpop.xlane.xlu0 %1523
    %v1525 = vsel %vm528, %v1520, -inf
    %1526 = vmax.xlane.f32.xlu0 %v1525
    %v1527 = vpop.xlane.xlu0 %1526
    %v1528 = vsel %vm528, %v1521, -inf
    %1529 = vmax.xlane.f32.xlu0 %v1528
    %v1530 = vpop.xlane.xlu0 %1529
    %v1531 = vsub.f32 %v1519, %v1524
    %v1532 = vsub.f32 %v1520, %v1527
    %v1533 = vsub.f32 %v1521, %v1530
    %v1534 = vmul.f32 %v1531, 1.442695
    %v1535 = vpow.pop %v1534
    %v1536 = vmul.f32 %v1532, 1.442695
    %v1537 = vpow.pop %v1536
    %v1538 = vmul.f32 %v1533, 1.442695
    %v1539 = vpow.pop %v1538
    %v1540 = vsel %vm528, %v1535, 0.0
    %1541 = vadd.xlane.f32.xlu0 %v1540
    %v1542 = vpop.xlane.xlu0 %1541
    %v1543 = vsel %vm528, %v1537, 0.0
    %1544 = vadd.xlane.f32.xlu0 %v1543
    %v1545 = vpop.xlane.xlu0 %1544
    %v1546 = vsel %vm528, %v1539, 0.0
    %1547 = vadd.xlane.f32.xlu0 %v1546
    %v1548 = vpop.xlane.xlu0 %1547
    %v1549 = vrcp.pop %v1542
    %v1550 = vrcp.pop %v1545
    %v1551 = vrcp.pop %v1548
    %v1552 = vmul.f32 %v1535, %v1549
    %v1553 = vmul.f32 %v1537, %v1550
    %v1554 = vmul.f32 %v1539, %v1551
    %v1555 = vpack.c.bf16 %v1553, %v1552
    %v1556 = vpack.c.bf16 %v1554, %v1554
    %1557 = vrot.lane.b32.xlu0 %v1064, 40
    %v1558 = vpop.permute.xlu0 %1557
    %1559 = vrot.lane.b32.xlu0 %v1065, 40
    %v1560 = vpop.permute.xlu0 %1559
    %v1563 = vsel %vm528, %v1555, 0
    %v1566 = vsel %vm528, %v1556, 0
    %v1569 = vsel %vm575, %v1560, 0
    %1571 = vmatpush.bf16.msra.mxu0 0
    %1572 = vmatpush.bf16.msra.mxu0 0
    %1573 = vmatpush.bf16.msra.mxu0 0
    %1574 = vmatpush.bf16.msra.mxu0 0
    %1575 = vmatpush.bf16.msra.mxu0 0
    %1576 = vmatpush.bf16.msra.mxu0 0
    %1577 = vmatpush.bf16.msra.mxu0 %v1569
    %1578 = vmatpush.bf16.msra.mxu0 %v1558
    %1579 = vmatmul.bf16.gmra.mxu0 %v1563
    %v1580 = vpop.f32.mrf.mxu0
    %v1581 = vadd.f32 0.0, %v1580
    %v1582 = vpop.f32.mrf.mxu0
    %v1583 = vadd.f32 0.0, %v1582
    %1584 = vmatmul.bf16.gmra.mxu0 %v1566
    %v1585 = vpop.f32.mrf.mxu0
    %v1586 = vadd.f32 0.0, %v1585
    %v1587 = vpop.f32.mrf.mxu0
    %1588 = vdwg.mxu0
    %v1589 = vpack.c.bf16 %v1583, %v1581
    %v1590 = vpack.c.bf16 %v1586, %v1586
    %v1592 = vsel %vm488, %v1589, 0
    %v1595 = vsel %vm488, %v1590, 0
    %1597 = vmatpush.bf16.msra.mxu0 0
    %1598 = vmatpush.bf16.msra.mxu0 0
    %1599 = vmatpush.bf16.msra.mxu0 0
    %1600 = vmatpush.bf16.msra.mxu0 0
    %1601 = vmatpush.bf16.msra.mxu0 0
    %1602 = vmatpush.bf16.msra.mxu0 0
    %1603 = vmatpush.bf16.msra.mxu0 0
    %1604 = vmatpush.bf16.msra.mxu0 %v1029
    %1605 = vmatmul.bf16.gmra.mxu0 %v1592
    %v1606 = vpop.f32.mrf.mxu0
    %v1607 = vadd.f32 0.0, %v1606
    %v1608 = vpop.f32.mrf.mxu0
    %v1609 = vadd.f32 0.0, %v1608
    %1610 = vmatmul.bf16.gmra.mxu0 %v1595
    %v1611 = vpop.f32.mrf.mxu0
    %v1612 = vadd.f32 0.0, %v1611
    %v1613 = vpop.f32.mrf.mxu0
    %1614 = vdwg.mxu0
    %v1615 = vadd.f32 %v1475, %v1607
    %v1616 = vadd.f32 %v1476, %v1609
    %v1617 = vadd.f32 %v1477, %v1612
    %v1618 = vadd.f32 %v262, %v1615
    %v1619 = vadd.f32 %v263, %v1616
    %v1620 = vadd.f32 %v264, %v1617
    %v1621 = vadd.f32 %v1618, %v1056
    %v1622 = vadd.f32 %v1619, %v1056
    %v1623 = vadd.f32 %v1620, %v1056
    %1624 = vst.msk [vmem:[#allocation2 + $0x18] sm:$0xff] %vm163, %v1621
    %1625 = vst.msk [vmem:[#allocation2 + $0x20] sm:$0xff] %vm163, %v1622
    %1626 = vst.msk [vmem:[#allocation2 + $0x28] sm:$0xff] %vm163, %v1623
    %v1627 = vld [vmem:[#allocation2] sm:$0xff]
    %v1628 = vld [vmem:[#allocation2 + $0x8] sm:$0xff]
    %v1629 = vld [vmem:[#allocation2 + $0x10] sm:$0xff]
    %v1630 = vld [vmem:[#allocation2 + $0x18] sm:$0xff]
    %v1631 = vld [vmem:[#allocation2 + $0x20] sm:$0xff]
    %v1632 = vld [vmem:[#allocation2 + $0x28] sm:$0xff]
    %v1633 = vld [vmem:[%s17] sm:$0x1]
    %v1634 = vld [vmem:[%s18] sm:$0x1]
    %v1635 = vsel %vm163, %v1627, 0.0
    %1636 = vadd.xlane.f32.xlu0 %v1635
    %v1637 = vpop.xlane.xlu0 %1636
    %v1638 = vsel %vm163, %v1628, 0.0
    %1639 = vadd.xlane.f32.xlu0 %v1638
    %v1640 = vpop.xlane.xlu0 %1639
    %v1641 = vsel %vm163, %v1629, 0.0
    %1642 = vadd.xlane.f32.xlu0 %v1641
    %v1643 = vpop.xlane.xlu0 %1642
    %v1644 = vsel %vm163, %v1630, 0.0
    %1645 = vadd.xlane.f32.xlu0 %v1644
    %v1646 = vpop.xlane.xlu0 %1645
    %v1647 = vsel %vm163, %v1631, 0.0
    %1648 = vadd.xlane.f32.xlu0 %v1647
    %v1649 = vpop.xlane.xlu0 %1648
    %v1650 = vsel %vm163, %v1632, 0.0
    %1651 = vadd.xlane.f32.xlu0 %v1650
    %v1652 = vpop.xlane.xlu0 %1651
    %v1653 = vmul.f32 %v1637, %v291
    %v1654 = vmul.f32 %v1640, %v291
    %v1655 = vmul.f32 %v1643, %v291
    %v1656 = vmul.f32 %v1646, %v291
    %v1657 = vmul.f32 %v1649, %v291
    %v1658 = vmul.f32 %v1652, %v291
    %v1659 = vsub.f32 %v1627, %v1653
    %v1660 = vsub.f32 %v1628, %v1654
    %v1661 = vsub.f32 %v1629, %v1655
    %v1662 = vsub.f32 %v1630, %v1656
    %v1663 = vsub.f32 %v1631, %v1657
    %v1664 = vsub.f32 %v1632, %v1658
    %v1665 = vmul.f32 %v1659, %v1659
    %v1666 = vmul.f32 %v1660, %v1660
    %v1667 = vmul.f32 %v1661, %v1661
    %v1668 = vmul.f32 %v1662, %v1662
    %v1669 = vmul.f32 %v1663, %v1663
    %v1670 = vmul.f32 %v1664, %v1664
    %v1671 = vsel %vm163, %v1665, 0.0
    %1672 = vadd.xlane.f32.xlu0 %v1671
    %v1673 = vpop.xlane.xlu0 %1672
    %v1674 = vsel %vm163, %v1666, 0.0
    %1675 = vadd.xlane.f32.xlu0 %v1674
    %v1676 = vpop.xlane.xlu0 %1675
    %v1677 = vsel %vm163, %v1667, 0.0
    %1678 = vadd.xlane.f32.xlu0 %v1677
    %v1679 = vpop.xlane.xlu0 %1678
    %v1680 = vsel %vm163, %v1668, 0.0
    %1681 = vadd.xlane.f32.xlu0 %v1680
    %v1682 = vpop.xlane.xlu0 %1681
    %v1683 = vsel %vm163, %v1669, 0.0
    %1684 = vadd.xlane.f32.xlu0 %v1683
    %v1685 = vpop.xlane.xlu0 %1684
    %v1686 = vsel %vm163, %v1670, 0.0
    %1687 = vadd.xlane.f32.xlu0 %v1686
    %v1688 = vpop.xlane.xlu0 %1687
    %v1689 = vmul.f32 %v1673, %v291
    %v1690 = vmul.f32 %v1676, %v291
    %v1691 = vmul.f32 %v1679, %v291
    %v1692 = vmul.f32 %v1682, %v291
    %v1693 = vmul.f32 %v1685, %v291
    %v1694 = vmul.f32 %v1688, %v291
    %v1695 = vadd.f32 %v1689, 1e-06
    %v1696 = vadd.f32 %v1690, 1e-06
    %v1697 = vadd.f32 %v1691, 1e-06
    %v1698 = vadd.f32 %v1692, 1e-06
    %v1699 = vadd.f32 %v1693, 1e-06
    %v1700 = vadd.f32 %v1694, 1e-06
    %v1701 = vrsqrt.pop %v1695
    %v1702 = vmul.f32 %v1701, %v1695
    %v1703 = vmul.f32 %v1702, %v1701
    %v1704 = vmul.f32 0.5, %v1703
    %v1705 = vsub.f32 1.5, %v1704
    %v1706 = vmul.f32 %v1701, %v1705
    %vm1707 = vweird.f32 %v1695
    %vm1708 = vweird.f32 %v1701
    %vm1709 = vmor %vm1707, %vm1708
    %v1710 = vsel %vm1709, %v1701, %v1706
    %v1711 = vrsqrt.pop %v1696
    %v1712 = vmul.f32 %v1711, %v1696
    %v1713 = vmul.f32 %v1712, %v1711
    %v1714 = vmul.f32 0.5, %v1713
    %v1715 = vsub.f32 1.5, %v1714
    %v1716 = vmul.f32 %v1711, %v1715
    %vm1717 = vweird.f32 %v1696
    %vm1718 = vweird.f32 %v1711
    %vm1719 = vmor %vm1717, %vm1718
    %v1720 = vsel %vm1719, %v1711, %v1716
    %v1721 = vrsqrt.pop %v1697
    %v1722 = vmul.f32 %v1721, %v1697
    %v1723 = vmul.f32 %v1722, %v1721
    %v1724 = vmul.f32 0.5, %v1723
    %v1725 = vsub.f32 1.5, %v1724
    %v1726 = vmul.f32 %v1721, %v1725
    %vm1727 = vweird.f32 %v1697
    %vm1728 = vweird.f32 %v1721
    %vm1729 = vmor %vm1727, %vm1728
    %v1730 = vsel %vm1729, %v1721, %v1726
    %v1731 = vrsqrt.pop %v1698
    %v1732 = vmul.f32 %v1731, %v1698
    %v1733 = vmul.f32 %v1732, %v1731
    %v1734 = vmul.f32 0.5, %v1733
    %v1735 = vsub.f32 1.5, %v1734
    %v1736 = vmul.f32 %v1731, %v1735
    %vm1737 = vweird.f32 %v1698
    %vm1738 = vweird.f32 %v1731
    %vm1739 = vmor %vm1737, %vm1738
    %v1740 = vsel %vm1739, %v1731, %v1736
    %v1741 = vrsqrt.pop %v1699
    %v1742 = vmul.f32 %v1741, %v1699
    %v1743 = vmul.f32 %v1742, %v1741
    %v1744 = vmul.f32 0.5, %v1743
    %v1745 = vsub.f32 1.5, %v1744
    %v1746 = vmul.f32 %v1741, %v1745
    %vm1747 = vweird.f32 %v1699
    %vm1748 = vweird.f32 %v1741
    %vm1749 = vmor %vm1747, %vm1748
    %v1750 = vsel %vm1749, %v1741, %v1746
    %v1751 = vrsqrt.pop %v1700
    %v1752 = vmul.f32 %v1751, %v1700
    %v1753 = vmul.f32 %v1752, %v1751
    %v1754 = vmul.f32 0.5, %v1753
    %v1755 = vsub.f32 1.5, %v1754
    %v1756 = vmul.f32 %v1751, %v1755
    %vm1757 = vweird.f32 %v1700
    %vm1758 = vweird.f32 %v1751
    %vm1759 = vmor %vm1757, %vm1758
    %v1760 = vsel %vm1759, %v1751, %v1756
    %v1761 = vmul.f32 %v1659, %v1710
    %v1762 = vmul.f32 %v1660, %v1720
    %v1763 = vmul.f32 %v1661, %v1730
    %v1764 = vmul.f32 %v1662, %v1740
    %v1765 = vmul.f32 %v1663, %v1750
    %v1766 = vmul.f32 %v1664, %v1760
    %v1768 = vperm.slane %v1633, 0
    %v1770 = vmul.f32 %v1761, %v1768
    %v1771 = vmul.f32 %v1762, %v1768
    %v1772 = vmul.f32 %v1763, %v1768
    %v1773 = vmul.f32 %v1764, %v1768
    %v1774 = vmul.f32 %v1765, %v1768
    %v1775 = vmul.f32 %v1766, %v1768
    %v1777 = vperm.slane %v1634, 0
    %v1779 = vadd.f32 %v1770, %v1777
    %v1780 = vadd.f32 %v1771, %v1777
    %v1781 = vadd.f32 %v1772, %v1777
    %v1782 = vadd.f32 %v1773, %v1777
    %v1783 = vadd.f32 %v1774, %v1777
    %v1784 = vadd.f32 %v1775, %v1777
    %v1785 = vld [vmem:[%s19] sm:$0xff]
    %v1786 = vld [vmem:[%s19 + $0x8] sm:$0xff]
    %v1787 = vld [vmem:[%s19 + $0x10] sm:$0xff]
    %v1788 = vld [vmem:[%s19 + $0x18] sm:$0xff]
    %v1790 = vsel %vm163, %v1779, 0
    %v1793 = vsel %vm163, %v1780, 0
    %v1796 = vsel %vm163, %v1781, 0
    %v1799 = vsel %vm163, %v1782, 0
    %v1802 = vsel %vm163, %v1783, 0
    %v1805 = vsel %vm163, %v1784, 0
    %1807 = vmatpush.msra.mxu0 0.0
    %1808 = vmatpush.msra.mxu0 0.0
    %1809 = vmatpush.msra.mxu0 0.0
    %1810 = vmatpush.msra.mxu0 0.0
    %1811 = vmatpush.msra.mxu0 0.0
    %1812 = vmatpush.msra.mxu0 0.0
    %1813 = vmatpush.msra.mxu0 0.0
    %1814 = vmatpush.msra.mxu0 0.0
    %1815 = vmatpush.msra.mxu0 0.0
    %1816 = vmatpush.msra.mxu0 0.0
    %1817 = vmatpush.msra.mxu0 0.0
    %1818 = vmatpush.msra.mxu0 0.0
    %1819 = vmatpush.msra.mxu0 %v1788
    %1820 = vmatpush.msra.mxu0 %v1787
    %1821 = vmatpush.msra.mxu0 %v1786
    %1822 = vmatpush.msra.mxu0 %v1785
    %1823 = vmatmul.f32.gmra.mxu0 %v1790
    %v1824 = vpop.f32.mrf.mxu0
    %v1825 = vadd.f32 0.0, %v1824
    %1826 = vmatmul.f32.gmra.mxu0 %v1793
    %v1827 = vpop.f32.mrf.mxu0
    %v1828 = vadd.f32 0.0, %v1827
    %1829 = vmatmul.f32.gmra.mxu0 %v1796
    %v1830 = vpop.f32.mrf.mxu0
    %v1831 = vadd.f32 0.0, %v1830
    %1832 = vmatmul.f32.gmra.mxu0 %v1799
    %v1833 = vpop.f32.mrf.mxu0
    %v1834 = vadd.f32 0.0, %v1833
    %1835 = vmatmul.f32.gmra.mxu0 %v1802
    %v1836 = vpop.f32.mrf.mxu0
    %v1837 = vadd.f32 0.0, %v1836
    %1838 = vmatmul.f32.gmra.mxu0 %v1805
    %v1839 = vpop.f32.mrf.mxu0
    %v1840 = vadd.f32 0.0, %v1839
    %1841 = vdwg.mxu0
    %vm1842 = vcmask 31744
    %v1843 = vsel %vm1842, %v1825, -inf
    %1844 = vmax.xlane.f32.xlu0 %v1843
    %v1845 = vpop.xlane.xlu0 %1844
    %v1846 = vsel %vm1842, %v1828, -inf
    %1847 = vmax.xlane.f32.xlu0 %v1846
    %v1848 = vpop.xlane.xlu0 %1847
    %v1849 = vsel %vm1842, %v1831, -inf
    %1850 = vmax.xlane.f32.xlu0 %v1849
    %v1851 = vpop.xlane.xlu0 %1850
    %v1852 = vsel %vm1842, %v1834, -inf
    %1853 = vmax.xlane.f32.xlu0 %v1852
    %v1854 = vpop.xlane.xlu0 %1853
    %v1855 = vsel %vm1842, %v1837, -inf
    %1856 = vmax.xlane.f32.xlu0 %v1855
    %v1857 = vpop.xlane.xlu0 %1856
    %v1858 = vsel %vm1842, %v1840, -inf
    %1859 = vmax.xlane.f32.xlu0 %v1858
    %v1860 = vpop.xlane.xlu0 %1859
    %v1861 = vsub.f32 %v1825, %v1845
    %v1862 = vsub.f32 %v1828, %v1848
    %v1863 = vsub.f32 %v1831, %v1851
    %v1864 = vsub.f32 %v1834, %v1854
    %v1865 = vsub.f32 %v1837, %v1857
    %v1866 = vsub.f32 %v1840, %v1860
    %v1867 = vmul.f32 %v1861, 1.442695
    %v1868 = vpow.pop %v1867
    %v1869 = vmul.f32 %v1862, 1.442695
    %v1870 = vpow.pop %v1869
    %v1871 = vmul.f32 %v1863, 1.442695
    %v1872 = vpow.pop %v1871
    %v1873 = vmul.f32 %v1864, 1.442695
    %v1874 = vpow.pop %v1873
    %v1875 = vmul.f32 %v1865, 1.442695
    %v1876 = vpow.pop %v1875
    %v1877 = vmul.f32 %v1866, 1.442695
    %v1878 = vpow.pop %v1877
    %v1879 = vsel %vm1842, %v1868, 0.0
    %1880 = vadd.xlane.f32.xlu0 %v1879
    %v1881 = vpop.xlane.xlu0 %1880
    %v1882 = vsel %vm1842, %v1870, 0.0
    %1883 = vadd.xlane.f32.xlu0 %v1882
    %v1884 = vpop.xlane.xlu0 %1883
    %v1885 = vsel %vm1842, %v1872, 0.0
    %1886 = vadd.xlane.f32.xlu0 %v1885
    %v1887 = vpop.xlane.xlu0 %1886
    %v1888 = vsel %vm1842, %v1874, 0.0
    %1889 = vadd.xlane.f32.xlu0 %v1888
    %v1890 = vpop.xlane.xlu0 %1889
    %v1891 = vsel %vm1842, %v1876, 0.0
    %1892 = vadd.xlane.f32.xlu0 %v1891
    %v1893 = vpop.xlane.xlu0 %1892
    %v1894 = vsel %vm1842, %v1878, 0.0
    %1895 = vadd.xlane.f32.xlu0 %v1894
    %v1896 = vpop.xlane.xlu0 %1895
    %v1897 = vrcp.pop %v1881
    %v1898 = vmul.f32 %v1881, %v1897
    %v1899 = vsub.f32 1.0, %v1898
    %v1900 = vmul.f32 %v1897, %v1899
    %v1901 = vadd.f32 %v1897, %v1900
    %vm1902 = vweird.f32 %v1881
    %vm1903 = vweird.f32 %v1897
    %vm1904 = vmor %vm1902, %vm1903
    %v1905 = vsel %vm1904, %v1897, %v1901
    %v1906 = vand.u32 2147483647, %v1881
    %vm1907 = vcmp.eq.f32.partialorder %v1906, 8.507059e+37
    %v1908 = vand.u32 %v1881, 2147483648
    %v1909 = vor.u32 1.1754944e-38, %v1908
    %v1910 = vsel %vm1907, %v1909, %v1905
    %v1911 = vmul.f32 %v1868, %v1910
    %v1912 = vrcp.pop %v1884
    %v1913 = vmul.f32 %v1884, %v1912
    %v1914 = vsub.f32 1.0, %v1913
    %v1915 = vmul.f32 %v1912, %v1914
    %v1916 = vadd.f32 %v1912, %v1915
    %vm1917 = vweird.f32 %v1884
    %vm1918 = vweird.f32 %v1912
    %vm1919 = vmor %vm1917, %vm1918
    %v1920 = vsel %vm1919, %v1912, %v1916
    %v1921 = vand.u32 2147483647, %v1884
    %vm1922 = vcmp.eq.f32.partialorder %v1921, 8.507059e+37
    %v1923 = vand.u32 %v1884, 2147483648
    %v1924 = vor.u32 1.1754944e-38, %v1923
    %v1925 = vsel %vm1922, %v1924, %v1920
    %v1926 = vmul.f32 %v1870, %v1925
    %v1927 = vrcp.pop %v1887
    %v1928 = vmul.f32 %v1887, %v1927
    %v1929 = vsub.f32 1.0, %v1928
    %v1930 = vmul.f32 %v1927, %v1929
    %v1931 = vadd.f32 %v1927, %v1930
    %vm1932 = vweird.f32 %v1887
    %vm1933 = vweird.f32 %v1927
    %vm1934 = vmor %vm1932, %vm1933
    %v1935 = vsel %vm1934, %v1927, %v1931
    %v1936 = vand.u32 2147483647, %v1887
    %vm1937 = vcmp.eq.f32.partialorder %v1936, 8.507059e+37
    %v1938 = vand.u32 %v1887, 2147483648
    %v1939 = vor.u32 1.1754944e-38, %v1938
    %v1940 = vsel %vm1937, %v1939, %v1935
    %v1941 = vmul.f32 %v1872, %v1940
    %v1942 = vrcp.pop %v1890
    %v1943 = vmul.f32 %v1890, %v1942
    %v1944 = vsub.f32 1.0, %v1943
    %v1945 = vmul.f32 %v1942, %v1944
    %v1946 = vadd.f32 %v1942, %v1945
    %vm1947 = vweird.f32 %v1890
    %vm1948 = vweird.f32 %v1942
    %vm1949 = vmor %vm1947, %vm1948
    %v1950 = vsel %vm1949, %v1942, %v1946
    %v1951 = vand.u32 2147483647, %v1890
    %vm1952 = vcmp.eq.f32.partialorder %v1951, 8.507059e+37
    %v1953 = vand.u32 %v1890, 2147483648
    %v1954 = vor.u32 1.1754944e-38, %v1953
    %v1955 = vsel %vm1952, %v1954, %v1950
    %v1956 = vmul.f32 %v1874, %v1955
    %v1957 = vrcp.pop %v1893
    %v1958 = vmul.f32 %v1893, %v1957
    %v1959 = vsub.f32 1.0, %v1958
    %v1960 = vmul.f32 %v1957, %v1959
    %v1961 = vadd.f32 %v1957, %v1960
    %vm1962 = vweird.f32 %v1893
    %vm1963 = vweird.f32 %v1957
    %vm1964 = vmor %vm1962, %vm1963
    %v1965 = vsel %vm1964, %v1957, %v1961
    %v1966 = vand.u32 2147483647, %v1893
    %vm1967 = vcmp.eq.f32.partialorder %v1966, 8.507059e+37
    %v1968 = vand.u32 %v1893, 2147483648
    %v1969 = vor.u32 1.1754944e-38, %v1968
    %v1970 = vsel %vm1967, %v1969, %v1965
    %v1971 = vmul.f32 %v1876, %v1970
    %v1972 = vrcp.pop %v1896
    %v1973 = vmul.f32 %v1896, %v1972
    %v1974 = vsub.f32 1.0, %v1973
    %v1975 = vmul.f32 %v1972, %v1974
    %v1976 = vadd.f32 %v1972, %v1975
    %vm1977 = vweird.f32 %v1896
    %vm1978 = vweird.f32 %v1972
    %vm1979 = vmor %vm1977, %vm1978
    %v1980 = vsel %vm1979, %v1972, %v1976
    %v1981 = vand.u32 2147483647, %v1896
    %vm1982 = vcmp.eq.f32.partialorder %v1981, 8.507059e+37
    %v1983 = vand.u32 %v1896, 2147483648
    %v1984 = vor.u32 1.1754944e-38, %v1983
    %v1985 = vsel %vm1982, %v1984, %v1980
    %v1986 = vmul.f32 %v1878, %v1985
    %v1987 = vsel %vm1842, %v1911, -inf
    %1988 = vmax.xlane.f32.xlu0 %v1987
    %v1989 = vpop.xlane.xlu0 %1988
    %v1990 = vsel %vm1842, %v1926, -inf
    %1991 = vmax.xlane.f32.xlu0 %v1990
    %v1992 = vpop.xlane.xlu0 %1991
    %v1993 = vsel %vm1842, %v1941, -inf
    %1994 = vmax.xlane.f32.xlu0 %v1993
    %v1995 = vpop.xlane.xlu0 %1994
    %v1996 = vsel %vm1842, %v1956, -inf
    %1997 = vmax.xlane.f32.xlu0 %v1996
    %v1998 = vpop.xlane.xlu0 %1997
    %v1999 = vsel %vm1842, %v1971, -inf
    %2000 = vmax.xlane.f32.xlu0 %v1999
    %v2001 = vpop.xlane.xlu0 %2000
    %v2002 = vsel %vm1842, %v1986, -inf
    %2003 = vmax.xlane.f32.xlu0 %v2002
    %v2004 = vpop.xlane.xlu0 %2003
    %vm2005 = vcmp.eq.f32.partialorder %v1911, %v1989
    %vm2006 = vcmp.eq.f32.partialorder %v1926, %v1992
    %vm2007 = vcmp.eq.f32.partialorder %v1941, %v1995
    %vm2008 = vcmp.eq.f32.partialorder %v1956, %v1998
    %vm2009 = vcmp.eq.f32.partialorder %v1971, %v2001
    %vm2010 = vcmp.eq.f32.partialorder %v1986, %v2004
    %v2011 = vsel %vm2005, %v242, 4.0
    %v2012 = vsel %vm2006, %v243, 4.0
    %v2013 = vsel %vm2007, %v244, 4.0
    %v2014 = vsel %vm2008, %v245, 4.0
    %v2015 = vsel %vm2009, %v246, 4.0
    %v2016 = vsel %vm2010, %v247, 4.0
    %v2017 = vsel %vm1842, %v2011, inf
    %2018 = vmin.xlane.f32.xlu0 %v2017
    %v2019 = vpop.xlane.xlu0 %2018
    %v2020 = vsel %vm1842, %v2012, inf
    %2021 = vmin.xlane.f32.xlu0 %v2020
    %v2022 = vpop.xlane.xlu0 %2021
    %v2023 = vsel %vm1842, %v2013, inf
    %2024 = vmin.xlane.f32.xlu0 %v2023
    %v2025 = vpop.xlane.xlu0 %2024
    %v2026 = vsel %vm1842, %v2014, inf
    %2027 = vmin.xlane.f32.xlu0 %v2026
    %v2028 = vpop.xlane.xlu0 %2027
    %v2029 = vsel %vm1842, %v2015, inf
    %2030 = vmin.xlane.f32.xlu0 %v2029
    %v2031 = vpop.xlane.xlu0 %2030
    %v2032 = vsel %vm1842, %v2016, inf
    %2033 = vmin.xlane.f32.xlu0 %v2032
    %v2034 = vpop.xlane.xlu0 %2033
    %vm2035 = vcmp.eq.f32.partialorder %v242, %v2019
    %vm2036 = vcmp.eq.f32.partialorder %v243, %v2022
    %vm2037 = vcmp.eq.f32.partialorder %v244, %v2025
    %vm2038 = vcmp.eq.f32.partialorder %v245, %v2028
    %vm2039 = vcmp.eq.f32.partialorder %v246, %v2031
    %vm2040 = vcmp.eq.f32.partialorder %v247, %v2034
    %v2041 = vsel %vm2035, 1, 0
    %v2042 = vsel %vm2036, 1, 0
    %v2043 = vsel %vm2037, 1, 0
    %v2044 = vsel %vm2038, 1, 0
    %v2045 = vsel %vm2039, 1, 0
    %v2046 = vsel %vm2040, 1, 0
    %v2047 = vcvt.s32.f32 %v2041
    %v2048 = vcvt.s32.f32 %v2042
    %v2049 = vcvt.s32.f32 %v2043
    %v2050 = vcvt.s32.f32 %v2044
    %v2051 = vcvt.s32.f32 %v2045
    %v2052 = vcvt.s32.f32 %v2046
    %2054 = vset.pattern.permute.xlu0 0
    %2055 = vperm.xlu0 %2054, %v229
    %v2056 = vpop.permute.xlu0 %2055
    %2059 = vset.pattern.permute.xlu0 0
    %2060 = vperm.xlu0 %2059, %v230
    %v2061 = vpop.permute.xlu0 %2060
    %2064 = vset.pattern.permute.xlu0 0
    %2065 = vperm.xlu0 %2064, %v231
    %v2066 = vpop.permute.xlu0 %2065
    %2069 = vset.pattern.permute.xlu0 0
    %2070 = vperm.xlu0 %2069, %v232
    %v2071 = vpop.permute.xlu0 %2070
    %2074 = vset.pattern.permute.xlu0 0
    %2075 = vperm.xlu0 %2074, %v233
    %v2076 = vpop.permute.xlu0 %2075
    %2079 = vset.pattern.permute.xlu0 0
    %2080 = vperm.xlu0 %2079, %v234
    %v2081 = vpop.permute.xlu0 %2080
    %v2083 = vmul.f32 %v2047, %v2056
    %v2084 = vmul.f32 %v2048, %v2061
    %v2085 = vmul.f32 %v2049, %v2066
    %v2086 = vmul.f32 %v2050, %v2071
    %v2087 = vmul.f32 %v2051, %v2076
    %v2088 = vmul.f32 %v2052, %v2081
    %v2089 = vsel %vm2035, -1.0, %v1911
    %v2090 = vsel %vm2036, -1.0, %v1926
    %v2091 = vsel %vm2037, -1.0, %v1941
    %v2092 = vsel %vm2038, -1.0, %v1956
    %v2093 = vsel %vm2039, -1.0, %v1971
    %v2094 = vsel %vm2040, -1.0, %v1986
    %v2095 = vsel %vm1842, %v2089, -inf
    %2096 = vmax.xlane.f32.xlu0 %v2095
    %v2097 = vpop.xlane.xlu0 %2096
    %v2098 = vsel %vm1842, %v2090, -inf
    %2099 = vmax.xlane.f32.xlu0 %v2098
    %v2100 = vpop.xlane.xlu0 %2099
    %v2101 = vsel %vm1842, %v2091, -inf
    %2102 = vmax.xlane.f32.xlu0 %v2101
    %v2103 = vpop.xlane.xlu0 %2102
    %v2104 = vsel %vm1842, %v2092, -inf
    %2105 = vmax.xlane.f32.xlu0 %v2104
    %v2106 = vpop.xlane.xlu0 %2105
    %v2107 = vsel %vm1842, %v2093, -inf
    %2108 = vmax.xlane.f32.xlu0 %v2107
    %v2109 = vpop.xlane.xlu0 %2108
    %v2110 = vsel %vm1842, %v2094, -inf
    %2111 = vmax.xlane.f32.xlu0 %v2110
    %v2112 = vpop.xlane.xlu0 %2111
    %vm2113 = vcmp.eq.f32.partialorder %v2089, %v2097
    %vm2114 = vcmp.eq.f32.partialorder %v2090, %v2100
    %vm2115 = vcmp.eq.f32.partialorder %v2091, %v2103
    %vm2116 = vcmp.eq.f32.partialorder %v2092, %v2106
    %vm2117 = vcmp.eq.f32.partialorder %v2093, %v2109
    %vm2118 = vcmp.eq.f32.partialorder %v2094, %v2112
    %v2119 = vsel %vm2113, %v242, 4.0
    %v2120 = vsel %vm2114, %v243, 4.0
    %v2121 = vsel %vm2115, %v244, 4.0
    %v2122 = vsel %vm2116, %v245, 4.0
    %v2123 = vsel %vm2117, %v246, 4.0
    %v2124 = vsel %vm2118, %v247, 4.0
    %v2125 = vsel %vm1842, %v2119, inf
    %2126 = vmin.xlane.f32.xlu0 %v2125
    %v2127 = vpop.xlane.xlu0 %2126
    %v2128 = vsel %vm1842, %v2120, inf
    %2129 = vmin.xlane.f32.xlu0 %v2128
    %v2130 = vpop.xlane.xlu0 %2129
    %v2131 = vsel %vm1842, %v2121, inf
    %2132 = vmin.xlane.f32.xlu0 %v2131
    %v2133 = vpop.xlane.xlu0 %2132
    %v2134 = vsel %vm1842, %v2122, inf
    %2135 = vmin.xlane.f32.xlu0 %v2134
    %v2136 = vpop.xlane.xlu0 %2135
    %v2137 = vsel %vm1842, %v2123, inf
    %2138 = vmin.xlane.f32.xlu0 %v2137
    %v2139 = vpop.xlane.xlu0 %2138
    %v2140 = vsel %vm1842, %v2124, inf
    %2141 = vmin.xlane.f32.xlu0 %v2140
    %v2142 = vpop.xlane.xlu0 %2141
    %vm2143 = vcmp.eq.f32.partialorder %v242, %v2127
    %vm2144 = vcmp.eq.f32.partialorder %v243, %v2130
    %vm2145 = vcmp.eq.f32.partialorder %v244, %v2133
    %vm2146 = vcmp.eq.f32.partialorder %v245, %v2136
    %vm2147 = vcmp.eq.f32.partialorder %v246, %v2139
    %vm2148 = vcmp.eq.f32.partialorder %v247, %v2142
    %v2149 = vsel %vm2143, 1, 0
    %v2150 = vsel %vm2144, 1, 0
    %v2151 = vsel %vm2145, 1, 0
    %v2152 = vsel %vm2146, 1, 0
    %v2153 = vsel %vm2147, 1, 0
    %v2154 = vsel %vm2148, 1, 0
    %v2155 = vcvt.s32.f32 %v2149
    %v2156 = vcvt.s32.f32 %v2150
    %v2157 = vcvt.s32.f32 %v2151
    %v2158 = vcvt.s32.f32 %v2152
    %v2159 = vcvt.s32.f32 %v2153
    %v2160 = vcvt.s32.f32 %v2154
    %v2161 = vmul.f32 %v2155, %v2056
    %v2162 = vmul.f32 %v2156, %v2061
    %v2163 = vmul.f32 %v2157, %v2066
    %v2164 = vmul.f32 %v2158, %v2071
    %v2165 = vmul.f32 %v2159, %v2076
    %v2166 = vmul.f32 %v2160, %v2081
    %v2168 = vsel %vm125, %v236, 0
    %v2171 = vsel %vm125, %v237, 0
    %v2174 = vsel %vm125, %v238, 0
    %v2177 = vsel %vm125, %v239, 0
    %v2180 = vsel %vm125, %v240, 0
    %v2183 = vsel %vm125, %v241, 0
    %2185 = vmatpush.msra.mxu0 0.0
    %2186 = vmatpush.msra.mxu0 0.0
    %2187 = vmatpush.msra.mxu0 0.0
    %2188 = vmatpush.msra.mxu0 0.0
    %2189 = vmatpush.msra.mxu0 0.0
    %2190 = vmatpush.msra.mxu0 0.0
    %2191 = vmatpush.msra.mxu0 0.0
    %2192 = vmatpush.msra.mxu0 0.0
    %2193 = vmatpush.msra.mxu0 0.0
    %2194 = vmatpush.msra.mxu0 0.0
    %2195 = vmatpush.msra.mxu0 %v2088
    %2196 = vmatpush.msra.mxu0 %v2087
    %2197 = vmatpush.msra.mxu0 %v2086
    %2198 = vmatpush.msra.mxu0 %v2085
    %2199 = vmatpush.msra.mxu0 %v2084
    %2200 = vmatpush.msra.mxu0 %v2083
    %2201 = vmatmul.f32.gmra.mxu0 %v2168
    %v2202 = vpop.f32.mrf.mxu0
    %v2203 = vadd.f32 0.0, %v2202
    %2204 = vmatmul.f32.gmra.mxu0 %v2171
    %v2205 = vpop.f32.mrf.mxu0
    %v2206 = vadd.f32 0.0, %v2205
    %2207 = vmatmul.f32.gmra.mxu0 %v2174
    %v2208 = vpop.f32.mrf.mxu0
    %v2209 = vadd.f32 0.0, %v2208
    %2210 = vmatmul.f32.gmra.mxu0 %v2177
    %v2211 = vpop.f32.mrf.mxu0
    %v2212 = vadd.f32 0.0, %v2211
    %2213 = vmatmul.f32.gmra.mxu0 %v2180
    %v2214 = vpop.f32.mrf.mxu0
    %v2215 = vadd.f32 0.0, %v2214
    %2216 = vmatmul.f32.gmra.mxu0 %v2183
    %v2217 = vpop.f32.mrf.mxu0
    %v2218 = vadd.f32 0.0, %v2217
    %2219 = vdwg.mxu0
    %v2220 = vsub.f32 %v2203, 1.0
    %v2221 = vsub.f32 %v2206, 1.0
    %v2222 = vsub.f32 %v2209, 1.0
    %v2223 = vsub.f32 %v2212, 1.0
    %v2224 = vsub.f32 %v2215, 1.0
    %v2225 = vsub.f32 %v2218, 1.0
    %2226 = vmatpush.msra.mxu0 0.0
    %2227 = vmatpush.msra.mxu0 0.0
    %2228 = vmatpush.msra.mxu0 0.0
    %2229 = vmatpush.msra.mxu0 0.0
    %2230 = vmatpush.msra.mxu0 0.0
    %2231 = vmatpush.msra.mxu0 0.0
    %2232 = vmatpush.msra.mxu0 0.0
    %2233 = vmatpush.msra.mxu0 0.0
    %2234 = vmatpush.msra.mxu0 0.0
    %2235 = vmatpush.msra.mxu0 0.0
    %2236 = vmatpush.msra.mxu0 %v2166
    %2237 = vmatpush.msra.mxu0 %v2165
    %2238 = vmatpush.msra.mxu0 %v2164
    %2239 = vmatpush.msra.mxu0 %v2163
    %2240 = vmatpush.msra.mxu0 %v2162
    %2241 = vmatpush.msra.mxu0 %v2161
    %2242 = vmatmul.f32.gmra.mxu0 %v2168
    %v2243 = vpop.f32.mrf.mxu0
    %v2244 = vadd.f32 0.0, %v2243
    %2245 = vmatmul.f32.gmra.mxu0 %v2171
    %v2246 = vpop.f32.mrf.mxu0
    %v2247 = vadd.f32 0.0, %v2246
    %2248 = vmatmul.f32.gmra.mxu0 %v2174
    %v2249 = vpop.f32.mrf.mxu0
    %v2250 = vadd.f32 0.0, %v2249
    %2251 = vmatmul.f32.gmra.mxu0 %v2177
    %v2252 = vpop.f32.mrf.mxu0
    %v2253 = vadd.f32 0.0, %v2252
    %2254 = vmatmul.f32.gmra.mxu0 %v2180
    %v2255 = vpop.f32.mrf.mxu0
    %v2256 = vadd.f32 0.0, %v2255
    %2257 = vmatmul.f32.gmra.mxu0 %v2183
    %v2258 = vpop.f32.mrf.mxu0
    %v2259 = vadd.f32 0.0, %v2258
    %2260 = vdwg.mxu0
    %v2261 = vsub.f32 %v2244, 1.0
    %v2262 = vsub.f32 %v2247, 1.0
    %v2263 = vsub.f32 %v2250, 1.0
    %v2264 = vsub.f32 %v2253, 1.0
    %v2265 = vsub.f32 %v2256, 1.0
    %v2266 = vsub.f32 %v2259, 1.0
    %v2267 = vsel %vm1842, %v2083, 0.0
    %v2268 = vsel %vm1842, %v2084, 0.0
    %v2269 = vadd.f32 %v2267, %v2268
    %v2270 = vsel %vm1842, %v2085, 0.0
    %v2271 = vadd.f32 %v2269, %v2270
    %v2272 = vsel %vm1842, %v2086, 0.0
    %v2273 = vadd.f32 %v2271, %v2272
    %v2274 = vsel %vm1842, %v2087, 0.0
    %v2275 = vadd.f32 %v2273, %v2274
    %v2276 = vsel %vm1842, %v2088, 0.0
    %v2277 = vadd.f32 %v2275, %v2276
    %v2278 = vrot.slane %v2277, 4
    %v2279 = vadd.f32 %v2277, %v2278
    %v2280 = vrot.slane %v2279, 2
    %v2281 = vadd.f32 %v2279, %v2280
    %v2282 = vrot.slane %v2281, 1
    %v2283 = vadd.f32 %v2281, %v2282
    %v2284 = vadd.f32 %v2261, %v2283
    %v2285 = vadd.f32 %v2262, %v2283
    %v2286 = vadd.f32 %v2263, %v2283
    %v2287 = vadd.f32 %v2264, %v2283
    %v2288 = vadd.f32 %v2265, %v2283
    %v2289 = vadd.f32 %v2266, %v2283
    %vm2290 = vcmp.lt.f32.partialorder %v2220, 18.0
    %vm2291 = vcmp.lt.f32.partialorder %v2221, 18.0
    %vm2292 = vcmp.lt.f32.partialorder %v2222, 18.0
    %vm2293 = vcmp.lt.f32.partialorder %v2223, 18.0
    %vm2294 = vcmp.lt.f32.partialorder %v2224, 18.0
    %vm2295 = vcmp.lt.f32.partialorder %v2225, 18.0
    %v2296 = vsel %vm2290, 1, 0
    %v2297 = vsel %vm2291, 1, 0
    %v2298 = vsel %vm2292, 1, 0
    %v2299 = vsel %vm2293, 1, 0
    %v2300 = vsel %vm2294, 1, 0
    %v2301 = vsel %vm2295, 1, 0
    %v2302 = vcvt.s32.f32 %v2296
    %v2303 = vcvt.s32.f32 %v2297
    %v2304 = vcvt.s32.f32 %v2298
    %v2305 = vcvt.s32.f32 %v2299
    %v2306 = vcvt.s32.f32 %v2300
    %v2307 = vcvt.s32.f32 %v2301
    %v2308 = vmul.f32 %v2083, %v2302
    %v2309 = vmul.f32 %v2084, %v2303
    %v2310 = vmul.f32 %v2085, %v2304
    %v2311 = vmul.f32 %v2086, %v2305
    %v2312 = vmul.f32 %v2087, %v2306
    %v2313 = vmul.f32 %v2088, %v2307
    %vm2314 = vcmp.lt.f32.partialorder %v2284, 18.0
    %vm2315 = vcmp.lt.f32.partialorder %v2285, 18.0
    %vm2316 = vcmp.lt.f32.partialorder %v2286, 18.0
    %vm2317 = vcmp.lt.f32.partialorder %v2287, 18.0
    %vm2318 = vcmp.lt.f32.partialorder %v2288, 18.0
    %vm2319 = vcmp.lt.f32.partialorder %v2289, 18.0
    %v2320 = vsel %vm2314, 1, 0
    %v2321 = vsel %vm2315, 1, 0
    %v2322 = vsel %vm2316, 1, 0
    %v2323 = vsel %vm2317, 1, 0
    %v2324 = vsel %vm2318, 1, 0
    %v2325 = vsel %vm2319, 1, 0
    %v2326 = vcvt.s32.f32 %v2320
    %v2327 = vcvt.s32.f32 %v2321
    %v2328 = vcvt.s32.f32 %v2322
    %v2329 = vcvt.s32.f32 %v2323
    %v2330 = vcvt.s32.f32 %v2324
    %v2331 = vcvt.s32.f32 %v2325
    %v2332 = vmul.f32 %v2161, %v2326
    %v2333 = vmul.f32 %v2162, %v2327
    %v2334 = vmul.f32 %v2163, %v2328
    %v2335 = vmul.f32 %v2164, %v2329
    %v2336 = vmul.f32 %v2165, %v2330
    %v2337 = vmul.f32 %v2166, %v2331
    %v2338 = vmul.f32 %v2308, %v2220
    %v2339 = vmul.f32 %v2309, %v2221
    %v2340 = vmul.f32 %v2310, %v2222
    %v2341 = vmul.f32 %v2311, %v2223
    %v2342 = vmul.f32 %v2312, %v2224
    %v2343 = vmul.f32 %v2313, %v2225
    %v2344 = vsel %vm1842, %v2338, 0.0
    %2345 = vadd.xlane.f32.xlu0 %v2344
    %v2346 = vpop.xlane.xlu0 %2345
    %v2347 = vsel %vm1842, %v2339, 0.0
    %2348 = vadd.xlane.f32.xlu0 %v2347
    %v2349 = vpop.xlane.xlu0 %2348
    %v2350 = vsel %vm1842, %v2340, 0.0
    %2351 = vadd.xlane.f32.xlu0 %v2350
    %v2352 = vpop.xlane.xlu0 %2351
    %v2353 = vsel %vm1842, %v2341, 0.0
    %2354 = vadd.xlane.f32.xlu0 %v2353
    %v2355 = vpop.xlane.xlu0 %2354
    %v2356 = vsel %vm1842, %v2342, 0.0
    %2357 = vadd.xlane.f32.xlu0 %v2356
    %v2358 = vpop.xlane.xlu0 %2357
    %v2359 = vsel %vm1842, %v2343, 0.0
    %2360 = vadd.xlane.f32.xlu0 %v2359
    %v2361 = vpop.xlane.xlu0 %2360
    %v2362 = vmul.f32 %v2332, %v2284
    %v2363 = vmul.f32 %v2333, %v2285
    %v2364 = vmul.f32 %v2334, %v2286
    %v2365 = vmul.f32 %v2335, %v2287
    %v2366 = vmul.f32 %v2336, %v2288
    %v2367 = vmul.f32 %v2337, %v2289
    %v2368 = vsel %vm1842, %v2362, 0.0
    %2369 = vadd.xlane.f32.xlu0 %v2368
    %v2370 = vpop.xlane.xlu0 %2369
    %v2371 = vsel %vm1842, %v2363, 0.0
    %2372 = vadd.xlane.f32.xlu0 %v2371
    %v2373 = vpop.xlane.xlu0 %2372
    %v2374 = vsel %vm1842, %v2364, 0.0
    %2375 = vadd.xlane.f32.xlu0 %v2374
    %v2376 = vpop.xlane.xlu0 %2375
    %v2377 = vsel %vm1842, %v2365, 0.0
    %2378 = vadd.xlane.f32.xlu0 %v2377
    %v2379 = vpop.xlane.xlu0 %2378
    %v2380 = vsel %vm1842, %v2366, 0.0
    %2381 = vadd.xlane.f32.xlu0 %v2380
    %v2382 = vpop.xlane.xlu0 %2381
    %v2383 = vsel %vm1842, %v2367, 0.0
    %2384 = vadd.xlane.f32.xlu0 %v2383
    %v2385 = vpop.xlane.xlu0 %2384
    %vm2386 = vcmp.eq.f32.partialorder %v248, %v2346
    %vm2387 = vcmp.eq.f32.partialorder %v249, %v2349
    %vm2388 = vcmp.eq.f32.partialorder %v250, %v2352
    %vm2389 = vcmp.eq.f32.partialorder %v251, %v2355
    %vm2390 = vcmp.eq.f32.partialorder %v252, %v2358
    %vm2391 = vcmp.eq.f32.partialorder %v253, %v2361
    %v2392 = vsel %vm2386, 1, 0
    %v2393 = vsel %vm2387, 1, 0
    %v2394 = vsel %vm2388, 1, 0
    %v2395 = vsel %vm2389, 1, 0
    %v2396 = vsel %vm2390, 1, 0
    %v2397 = vsel %vm2391, 1, 0
    %v2398 = vcvt.s32.f32 %v2392
    %v2399 = vcvt.s32.f32 %v2393
    %v2400 = vcvt.s32.f32 %v2394
    %v2401 = vcvt.s32.f32 %v2395
    %v2402 = vcvt.s32.f32 %v2396
    %v2403 = vcvt.s32.f32 %v2397
    %vm2404 = vcmp.eq.f32.partialorder %v248, %v2370
    %vm2405 = vcmp.eq.f32.partialorder %v249, %v2373
    %vm2406 = vcmp.eq.f32.partialorder %v250, %v2376
    %vm2407 = vcmp.eq.f32.partialorder %v251, %v2379
    %vm2408 = vcmp.eq.f32.partialorder %v252, %v2382
    %vm2409 = vcmp.eq.f32.partialorder %v253, %v2385
    %v2410 = vsel %vm2404, 1, 0
    %v2411 = vsel %vm2405, 1, 0
    %v2412 = vsel %vm2406, 1, 0
    %v2413 = vsel %vm2407, 1, 0
    %v2414 = vsel %vm2408, 1, 0
    %v2415 = vsel %vm2409, 1, 0
    %v2416 = vcvt.s32.f32 %v2410
    %v2417 = vcvt.s32.f32 %v2411
    %v2418 = vcvt.s32.f32 %v2412
    %v2419 = vcvt.s32.f32 %v2413
    %v2420 = vcvt.s32.f32 %v2414
    %v2421 = vcvt.s32.f32 %v2415
    %v2422 = vmul.f32 %v1779, %v2056
    %v2423 = vmul.f32 %v1780, %v2061
    %v2424 = vmul.f32 %v1781, %v2066
    %v2425 = vmul.f32 %v1782, %v2071
    %v2426 = vmul.f32 %v1783, %v2076
    %v2427 = vmul.f32 %v1784, %v2081
    %2429 = vset.pattern.permute.xlu0 0
    %2430 = vperm.xlu0 %2429, %v2308
    %v2431 = vpop.permute.xlu0 %2430
    %2434 = vset.pattern.permute.xlu0 0
    %2435 = vperm.xlu0 %2434, %v2309
    %v2436 = vpop.permute.xlu0 %2435
    %2439 = vset.pattern.permute.xlu0 0
    %2440 = vperm.xlu0 %2439, %v2310
    %v2441 = vpop.permute.xlu0 %2440
    %2444 = vset.pattern.permute.xlu0 0
    %2445 = vperm.xlu0 %2444, %v2311
    %v2446 = vpop.permute.xlu0 %2445
    %2449 = vset.pattern.permute.xlu0 0
    %2450 = vperm.xlu0 %2449, %v2312
    %v2451 = vpop.permute.xlu0 %2450
    %2454 = vset.pattern.permute.xlu0 0
    %2455 = vperm.xlu0 %2454, %v2313
    %v2456 = vpop.permute.xlu0 %2455
    %v2458 = vmul.f32 %v2431, %v2398
    %v2459 = vmul.f32 %v2436, %v2399
    %v2460 = vmul.f32 %v2441, %v2400
    %v2461 = vmul.f32 %v2446, %v2401
    %v2462 = vmul.f32 %v2451, %v2402
    %v2463 = vmul.f32 %v2456, %v2403
    %2465 = vset.pattern.permute.xlu0 0
    %2466 = vperm.xlu0 %2465, %v2332
    %v2467 = vpop.permute.xlu0 %2466
    %2470 = vset.pattern.permute.xlu0 0
    %2471 = vperm.xlu0 %2470, %v2333
    %v2472 = vpop.permute.xlu0 %2471
    %2475 = vset.pattern.permute.xlu0 0
    %2476 = vperm.xlu0 %2475, %v2334
    %v2477 = vpop.permute.xlu0 %2476
    %2480 = vset.pattern.permute.xlu0 0
    %2481 = vperm.xlu0 %2480, %v2335
    %v2482 = vpop.permute.xlu0 %2481
    %2485 = vset.pattern.permute.xlu0 0
    %2486 = vperm.xlu0 %2485, %v2336
    %v2487 = vpop.permute.xlu0 %2486
    %2490 = vset.pattern.permute.xlu0 0
    %2491 = vperm.xlu0 %2490, %v2337
    %v2492 = vpop.permute.xlu0 %2491
    %v2494 = vmul.f32 %v2467, %v2416
    %v2495 = vmul.f32 %v2472, %v2417
    %v2496 = vmul.f32 %v2477, %v2418
    %v2497 = vmul.f32 %v2482, %v2419
    %v2498 = vmul.f32 %v2487, %v2420
    %v2499 = vmul.f32 %v2492, %v2421
    %v2500 = vadd.f32 %v2458, %v2494
    %v2501 = vadd.f32 %v2459, %v2495
    %v2502 = vadd.f32 %v2460, %v2496
    %v2503 = vadd.f32 %v2461, %v2497
    %v2504 = vadd.f32 %v2462, %v2498
    %v2505 = vadd.f32 %v2463, %v2499
    %2506 = vxpose.xlu0.b32.start [1/16] %v2500, 128
    %2507 = vxpose.xlu0.b32.cont [2/16] %v2501, 128
    %2508 = vxpose.xlu0.b32.cont [3/16] %v2502, 128
    %2509 = vxpose.xlu0.b32.cont [4/16] %v2503, 128
    %2510 = vxpose.xlu0.b32.cont [5/16] %v2504, 128
    %2511 = vxpose.xlu0.b32.cont [6/16] %v2505, 128
    %2512 = vxpose.xlu0.b32.cont [7/16] 0.0, 128
    %2513 = vxpose.xlu0.b32.cont [8/16] 0.0, 128
    %2514 = vxpose.xlu0.b32.cont [9/16] 0.0, 128
    %2515 = vxpose.xlu0.b32.cont [10/16] 0.0, 128
    %2516 = vxpose.xlu0.b32.cont [11/16] 0.0, 128
    %2517 = vxpose.xlu0.b32.cont [12/16] 0.0, 128
    %2518 = vxpose.xlu0.b32.cont [13/16] 0.0, 128
    %2519 = vxpose.xlu0.b32.cont [14/16] 0.0, 128
    %2520 = vxpose.xlu0.b32.cont [15/16] 0.0, 128
    %2521 = vxpose.xlu0.b32.end [16/16] 0.0, 128
    %v2522 = vpop.trf.xlu0
    %v2523 = vpop.trf.xlu0
    %v2524 = vpop.trf.xlu0
    %v2525 = vpop.trf.xlu0
    %v2526 = vpop.trf.xlu0
    %v2527 = vpop.trf.xlu0
    %v2528 = vpop.trf.xlu0
    %v2529 = vpop.trf.xlu0
    %v2530 = vpop.trf.xlu0
    %v2531 = vpop.trf.xlu0
    %v2532 = vpop.trf.xlu0
    %v2533 = vpop.trf.xlu0
    %v2534 = vpop.trf.xlu0
    %v2535 = vpop.trf.xlu0
    %v2536 = vpop.trf.xlu0
    %v2537 = vpop.trf.xlu0
    %v2539 = vsel %vm125, %v2522, 0
    %v2542 = vsel %vm125, %v2523, 0
    %v2545 = vsel %vm125, %v2524, 0
    %2547 = vmatpush.msra.mxu0 0.0
    %2548 = vmatpush.msra.mxu0 0.0
    %2549 = vmatpush.msra.mxu0 0.0
    %2550 = vmatpush.msra.mxu0 0.0
    %2551 = vmatpush.msra.mxu0 0.0
    %2552 = vmatpush.msra.mxu0 0.0
    %2553 = vmatpush.msra.mxu0 0.0
    %2554 = vmatpush.msra.mxu0 0.0
    %2555 = vmatpush.msra.mxu0 0.0
    %2556 = vmatpush.msra.mxu0 0.0
    %2557 = vmatpush.msra.mxu0 %v2427
    %2558 = vmatpush.msra.mxu0 %v2426
    %2559 = vmatpush.msra.mxu0 %v2425
    %2560 = vmatpush.msra.mxu0 %v2424
    %2561 = vmatpush.msra.mxu0 %v2423
    %2562 = vmatpush.msra.mxu0 %v2422
    %2563 = vmatmul.f32.gmra.mxu0 %v2539
    %v2564 = vpop.f32.mrf.mxu0
    %v2565 = vadd.f32 0.0, %v2564
    %2566 = vmatmul.f32.gmra.mxu0 %v2542
    %v2567 = vpop.f32.mrf.mxu0
    %v2568 = vadd.f32 0.0, %v2567
    %2569 = vmatmul.f32.gmra.mxu0 %v2545
    %v2570 = vpop.f32.mrf.mxu0
    %v2571 = vadd.f32 0.0, %v2570
    %2572 = vdwg.mxu0
    %v2573 = vpack.c.bf16 %v2568, %v2565
    %v2574 = vpack.c.bf16 %v2571, %v2571
    %v2575 = vld [vmem:[%s20] sm:$0xf]
    %v2576 = vld [vmem:[%s20 + $0x4] sm:$0xf]
    %v2577 = vld [vmem:[%s20 + $0x8] sm:$0xf]
    %v2578 = vld [vmem:[%s20 + $0xc] sm:$0xf]
    %v2579 = vld [vmem:[%s21] sm:$0x1]
    %v2581 = vperm.slane %v2579, 0
    %v2587 = vunpack.c.l.b16 %v2575
    %v2588 = vunpack.c.l.b16 %v2576
    %v2589 = vunpack.c.l.b16 %v2577
    %v2590 = vunpack.c.l.b16 %v2578
    %v2591 = vpack.c.b16 %v2588, %v2587
    %v2592 = vpack.c.b16 %v2590, %v2589
    %v2596 = vsel %vm163, %v2573, 0
    %v2599 = vsel %vm163, %v2574, 0
    %2601 = vmatpush.bf16.msra.mxu0 0
    %2602 = vmatpush.bf16.msra.mxu0 0
    %2603 = vmatpush.bf16.msra.mxu0 0
    %2604 = vmatpush.bf16.msra.mxu0 0
    %2605 = vmatpush.bf16.msra.mxu0 0
    %2606 = vmatpush.bf16.msra.mxu0 0
    %2607 = vmatpush.bf16.msra.mxu0 %v2592
    %2608 = vmatpush.bf16.msra.mxu0 %v2591
    %2609 = vmatmul.bf16.gmra.mxu0 %v2596
    %v2610 = vpop.f32.mrf.mxu0
    %v2611 = vadd.f32 %v2581, %v2610
    %v2612 = vpop.f32.mrf.mxu0
    %v2613 = vadd.f32 %v2581, %v2612
    %2614 = vmatmul.bf16.gmra.mxu0 %v2599
    %v2615 = vpop.f32.mrf.mxu0
    %v2616 = vadd.f32 %v2581, %v2615
    %v2617 = vpop.f32.mrf.mxu0
    %2618 = vdwg.mxu0
    %v2619 = vmul.f32 %v2611, 0.5
    %v2620 = vmul.f32 %v2613, 0.5
    %v2621 = vmul.f32 %v2616, 0.5
    %v2622 = vmul.f32 %v2611, 0.70710677
    %v2623 = vmul.f32 %v2613, 0.70710677
    %v2624 = vmul.f32 %v2616, 0.70710677
    %v2625 = vmul.f32 %v2622, %v2622
    %v2626 = vmin.f32 16.0, %v2625
    %v2627 = vmul.f32 %v2626, 2.1237322e-06
    %v2628 = vadd.f32 %v2627, 0.00028619796
    %v2629 = vmul.f32 %v2626, %v2628
    %v2630 = vadd.f32 %v2629, 0.0036580483
    %v2631 = vmul.f32 %v2626, %v2630
    %v2632 = vadd.f32 %v2631, 0.05243302
    %v2633 = vmul.f32 %v2626, %v2632
    %v2634 = vadd.f32 %v2633, 0.18741608
    %v2635 = vmul.f32 %v2626, %v2634
    %v2636 = vadd.f32 %v2635, 1.1283791
    %v2637 = vmul.f32 %v2622, %v2636
    %v2638 = vmul.f32 %v2626, 3.8918573e-05
    %v2639 = vadd.f32 %v2638, 0.001143296
    %v2640 = vmul.f32 %v2626, %v2639
    %v2641 = vadd.f32 %v2640, 0.014752088
    %v2642 = vmul.f32 %v2626, %v2641
    %v2643 = vadd.f32 %v2642, 0.112945676
    %v2644 = vmul.f32 %v2626, %v2643
    %v2645 = vadd.f32 %v2644, 0.4994258
    %v2646 = vmul.f32 %v2626, %v2645
    %v2647 = vadd.f32 %v2646, 1.0
    %v2648 = vrcp.pop %v2647
    %v2649 = vmul.f32 %v2647, %v2648
    %v2650 = vsub.f32 1.0, %v2649
    %v2651 = vmul.f32 %v2648, %v2650
    %v2652 = vadd.f32 %v2648, %v2651
    %vm2653 = vweird.f32 %v2647
    %vm2654 = vweird.f32 %v2648
    %vm2655 = vmor %vm2653, %vm2654
    %v2656 = vsel %vm2655, %v2648, %v2652
    %v2657 = vand.u32 2147483647, %v2647
    %vm2658 = vcmp.eq.f32.partialorder %v2657, 8.507059e+37
    %v2659 = vand.u32 %v2647, 2147483648
    %v2660 = vor.u32 1.1754944e-38, %v2659
    %v2661 = vsel %vm2658, %v2660, %v2656
    %v2662 = vmul.f32 %v2637, %v2661
    %v2663 = vmin.f32 %v2662, 1.0
    %v2664 = vmax.f32 %v2663, -1.0
    %v2665 = vmul.f32 %v2623, %v2623
    %v2666 = vmin.f32 16.0, %v2665
    %v2667 = vmul.f32 %v2666, 2.1237322e-06
    %v2668 = vadd.f32 %v2667, 0.00028619796
    %v2669 = vmul.f32 %v2666, %v2668
    %v2670 = vadd.f32 %v2669, 0.0036580483
    %v2671 = vmul.f32 %v2666, %v2670
    %v2672 = vadd.f32 %v2671, 0.05243302
    %v2673 = vmul.f32 %v2666, %v2672
    %v2674 = vadd.f32 %v2673, 0.18741608
    %v2675 = vmul.f32 %v2666, %v2674
    %v2676 = vadd.f32 %v2675, 1.1283791
    %v2677 = vmul.f32 %v2623, %v2676
    %v2678 = vmul.f32 %v2666, 3.8918573e-05
    %v2679 = vadd.f32 %v2678, 0.001143296
    %v2680 = vmul.f32 %v2666, %v2679
    %v2681 = vadd.f32 %v2680, 0.014752088
    %v2682 = vmul.f32 %v2666, %v2681
    %v2683 = vadd.f32 %v2682, 0.112945676
    %v2684 = vmul.f32 %v2666, %v2683
    %v2685 = vadd.f32 %v2684, 0.4994258
    %v2686 = vmul.f32 %v2666, %v2685
    %v2687 = vadd.f32 %v2686, 1.0
    %v2688 = vrcp.pop %v2687
    %v2689 = vmul.f32 %v2687, %v2688
    %v2690 = vsub.f32 1.0, %v2689
    %v2691 = vmul.f32 %v2688, %v2690
    %v2692 = vadd.f32 %v2688, %v2691
    %vm2693 = vweird.f32 %v2687
    %vm2694 = vweird.f32 %v2688
    %vm2695 = vmor %vm2693, %vm2694
    %v2696 = vsel %vm2695, %v2688, %v2692
    %v2697 = vand.u32 2147483647, %v2687
    %vm2698 = vcmp.eq.f32.partialorder %v2697, 8.507059e+37
    %v2699 = vand.u32 %v2687, 2147483648
    %v2700 = vor.u32 1.1754944e-38, %v2699
    %v2701 = vsel %vm2698, %v2700, %v2696
    %v2702 = vmul.f32 %v2677, %v2701
    %v2703 = vmin.f32 %v2702, 1.0
    %v2704 = vmax.f32 %v2703, -1.0
    %v2705 = vmul.f32 %v2624, %v2624
    %v2706 = vmin.f32 16.0, %v2705
    %v2707 = vmul.f32 %v2706, 2.1237322e-06
    %v2708 = vadd.f32 %v2707, 0.00028619796
    %v2709 = vmul.f32 %v2706, %v2708
    %v2710 = vadd.f32 %v2709, 0.0036580483
    %v2711 = vmul.f32 %v2706, %v2710
    %v2712 = vadd.f32 %v2711, 0.05243302
    %v2713 = vmul.f32 %v2706, %v2712
    %v2714 = vadd.f32 %v2713, 0.18741608
    %v2715 = vmul.f32 %v2706, %v2714
    %v2716 = vadd.f32 %v2715, 1.1283791
    %v2717 = vmul.f32 %v2624, %v2716
    %v2718 = vmul.f32 %v2706, 3.8918573e-05
    %v2719 = vadd.f32 %v2718, 0.001143296
    %v2720 = vmul.f32 %v2706, %v2719
    %v2721 = vadd.f32 %v2720, 0.014752088
    %v2722 = vmul.f32 %v2706, %v2721
    %v2723 = vadd.f32 %v2722, 0.112945676
    %v2724 = vmul.f32 %v2706, %v2723
    %v2725 = vadd.f32 %v2724, 0.4994258
    %v2726 = vmul.f32 %v2706, %v2725
    %v2727 = vadd.f32 %v2726, 1.0
    %v2728 = vrcp.pop %v2727
    %v2729 = vmul.f32 %v2727, %v2728
    %v2730 = vsub.f32 1.0, %v2729
    %v2731 = vmul.f32 %v2728, %v2730
    %v2732 = vadd.f32 %v2728, %v2731
    %vm2733 = vweird.f32 %v2727
    %vm2734 = vweird.f32 %v2728
    %vm2735 = vmor %vm2733, %vm2734
    %v2736 = vsel %vm2735, %v2728, %v2732
    %v2737 = vand.u32 2147483647, %v2727
    %vm2738 = vcmp.eq.f32.partialorder %v2737, 8.507059e+37
    %v2739 = vand.u32 %v2727, 2147483648
    %v2740 = vor.u32 1.1754944e-38, %v2739
    %v2741 = vsel %vm2738, %v2740, %v2736
    %v2742 = vmul.f32 %v2717, %v2741
    %v2743 = vmin.f32 %v2742, 1.0
    %v2744 = vmax.f32 %v2743, -1.0
    %v2745 = vadd.f32 %v2664, 1.0
    %v2746 = vadd.f32 %v2704, 1.0
    %v2747 = vadd.f32 %v2744, 1.0
    %v2748 = vmul.f32 %v2619, %v2745
    %v2749 = vmul.f32 %v2620, %v2746
    %v2750 = vmul.f32 %v2621, %v2747
    %v2751 = vpack.c.bf16 %v2749, %v2748
    %v2752 = vpack.c.bf16 %v2750, %v2750
    %v2753 = vld [vmem:[%s22] sm:$0xf]
    %v2754 = vld [vmem:[%s22 + $0x4] sm:$0xf]
    %v2755 = vld [vmem:[%s22 + $0x8] sm:$0xf]
    %v2756 = vld [vmem:[%s22 + $0xc] sm:$0xf]
    %v2757 = vld [vmem:[%s22 + $0x10] sm:$0xf]
    %v2758 = vld [vmem:[%s22 + $0x14] sm:$0xf]
    %v2759 = vld [vmem:[%s22 + $0x18] sm:$0xf]
    %v2760 = vld [vmem:[%s22 + $0x1c] sm:$0xf]
    %v2761 = vld [vmem:[%s23] sm:$0x1]
    %v2763 = vperm.slane %v2761, 0
    %v2773 = vunpack.c.l.b16 %v2753
    %v2774 = vunpack.c.l.b16 %v2754
    %v2775 = vunpack.c.l.b16 %v2755
    %v2776 = vunpack.c.l.b16 %v2756
    %v2777 = vunpack.c.l.b16 %v2757
    %v2778 = vunpack.c.l.b16 %v2758
    %v2779 = vunpack.c.l.b16 %v2759
    %v2780 = vunpack.c.l.b16 %v2760
    %v2781 = vpack.c.b16 %v2774, %v2773
    %v2782 = vpack.c.b16 %v2776, %v2775
    %v2783 = vpack.c.b16 %v2778, %v2777
    %v2784 = vpack.c.b16 %v2780, %v2779
    %vm2789 = vcmask 523264
    %v2791 = vsel %vm2789, %v2751, 0
    %v2794 = vsel %vm2789, %v2752, 0
    %2796 = vmatpush.bf16.msra.mxu0 0
    %2797 = vmatpush.bf16.msra.mxu0 0
    %2798 = vmatpush.bf16.msra.mxu0 0
    %2799 = vmatpush.bf16.msra.mxu0 0
    %2800 = vmatpush.bf16.msra.mxu0 %v2784
    %2801 = vmatpush.bf16.msra.mxu0 %v2783
    %2802 = vmatpush.bf16.msra.mxu0 %v2782
    %2803 = vmatpush.bf16.msra.mxu0 %v2781
    %2804 = vmatmul.bf16.gmra.mxu0 %v2791
    %v2805 = vpop.f32.mrf.mxu0
    %v2806 = vadd.f32 %v2763, %v2805
    %v2807 = vpop.f32.mrf.mxu0
    %v2808 = vadd.f32 %v2763, %v2807
    %2809 = vmatmul.bf16.gmra.mxu0 %v2794
    %v2810 = vpop.f32.mrf.mxu0
    %v2811 = vadd.f32 %v2763, %v2810
    %v2812 = vpop.f32.mrf.mxu0
    %2813 = vdwg.mxu0
    %v2814 = vmul.f32 %v2308, %v1911
    %v2815 = vmul.f32 %v2309, %v1926
    %v2816 = vmul.f32 %v2310, %v1941
    %v2817 = vmul.f32 %v2311, %v1956
    %v2818 = vmul.f32 %v2312, %v1971
    %v2819 = vmul.f32 %v2313, %v1986
    %2821 = vset.pattern.permute.xlu0 0
    %2822 = vperm.xlu0 %2821, %v2814
    %v2823 = vpop.permute.xlu0 %2822
    %2826 = vset.pattern.permute.xlu0 0
    %2827 = vperm.xlu0 %2826, %v2815
    %v2828 = vpop.permute.xlu0 %2827
    %2831 = vset.pattern.permute.xlu0 0
    %2832 = vperm.xlu0 %2831, %v2816
    %v2833 = vpop.permute.xlu0 %2832
    %2836 = vset.pattern.permute.xlu0 0
    %2837 = vperm.xlu0 %2836, %v2817
    %v2838 = vpop.permute.xlu0 %2837
    %2841 = vset.pattern.permute.xlu0 0
    %2842 = vperm.xlu0 %2841, %v2818
    %v2843 = vpop.permute.xlu0 %2842
    %2846 = vset.pattern.permute.xlu0 0
    %2847 = vperm.xlu0 %2846, %v2819
    %v2848 = vpop.permute.xlu0 %2847
    %v2850 = vmul.f32 %v2823, %v2398
    %v2851 = vmul.f32 %v2828, %v2399
    %v2852 = vmul.f32 %v2833, %v2400
    %v2853 = vmul.f32 %v2838, %v2401
    %v2854 = vmul.f32 %v2843, %v2402
    %v2855 = vmul.f32 %v2848, %v2403
    %v2856 = vmul.f32 %v2332, %v1911
    %v2857 = vmul.f32 %v2333, %v1926
    %v2858 = vmul.f32 %v2334, %v1941
    %v2859 = vmul.f32 %v2335, %v1956
    %v2860 = vmul.f32 %v2336, %v1971
    %v2861 = vmul.f32 %v2337, %v1986
    %2863 = vset.pattern.permute.xlu0 0
    %2864 = vperm.xlu0 %2863, %v2856
    %v2865 = vpop.permute.xlu0 %2864
    %2868 = vset.pattern.permute.xlu0 0
    %2869 = vperm.xlu0 %2868, %v2857
    %v2870 = vpop.permute.xlu0 %2869
    %2873 = vset.pattern.permute.xlu0 0
    %2874 = vperm.xlu0 %2873, %v2858
    %v2875 = vpop.permute.xlu0 %2874
    %2878 = vset.pattern.permute.xlu0 0
    %2879 = vperm.xlu0 %2878, %v2859
    %v2880 = vpop.permute.xlu0 %2879
    %2883 = vset.pattern.permute.xlu0 0
    %2884 = vperm.xlu0 %2883, %v2860
    %v2885 = vpop.permute.xlu0 %2884
    %2888 = vset.pattern.permute.xlu0 0
    %2889 = vperm.xlu0 %2888, %v2861
    %v2890 = vpop.permute.xlu0 %2889
    %v2892 = vmul.f32 %v2865, %v2416
    %v2893 = vmul.f32 %v2870, %v2417
    %v2894 = vmul.f32 %v2875, %v2418
    %v2895 = vmul.f32 %v2880, %v2419
    %v2896 = vmul.f32 %v2885, %v2420
    %v2897 = vmul.f32 %v2890, %v2421
    %v2898 = vadd.f32 %v2850, %v2892
    %v2899 = vadd.f32 %v2851, %v2893
    %v2900 = vadd.f32 %v2852, %v2894
    %v2901 = vadd.f32 %v2853, %v2895
    %v2902 = vadd.f32 %v2854, %v2896
    %v2903 = vadd.f32 %v2855, %v2897
    %2904 = vset.pattern.permute.xlu0 1
    %2905 = vperm.xlu0 %2904, %v2308
    %v2906 = vpop.permute.xlu0 %2905
    %2908 = vset.pattern.permute.xlu0 1
    %2909 = vperm.xlu0 %2908, %v2309
    %v2910 = vpop.permute.xlu0 %2909
    %2912 = vset.pattern.permute.xlu0 1
    %2913 = vperm.xlu0 %2912, %v2310
    %v2914 = vpop.permute.xlu0 %2913
    %2916 = vset.pattern.permute.xlu0 1
    %2917 = vperm.xlu0 %2916, %v2311
    %v2918 = vpop.permute.xlu0 %2917
    %2920 = vset.pattern.permute.xlu0 1
    %2921 = vperm.xlu0 %2920, %v2312
    %v2922 = vpop.permute.xlu0 %2921
    %2924 = vset.pattern.permute.xlu0 1
    %2925 = vperm.xlu0 %2924, %v2313
    %v2926 = vpop.permute.xlu0 %2925
    %v2928 = vmul.f32 %v2906, %v2398
    %v2929 = vmul.f32 %v2910, %v2399
    %v2930 = vmul.f32 %v2914, %v2400
    %v2931 = vmul.f32 %v2918, %v2401
    %v2932 = vmul.f32 %v2922, %v2402
    %v2933 = vmul.f32 %v2926, %v2403
    %2934 = vset.pattern.permute.xlu0 1
    %2935 = vperm.xlu0 %2934, %v2332
    %v2936 = vpop.permute.xlu0 %2935
    %2938 = vset.pattern.permute.xlu0 1
    %2939 = vperm.xlu0 %2938, %v2333
    %v2940 = vpop.permute.xlu0 %2939
    %2942 = vset.pattern.permute.xlu0 1
    %2943 = vperm.xlu0 %2942, %v2334
    %v2944 = vpop.permute.xlu0 %2943
    %2946 = vset.pattern.permute.xlu0 1
    %2947 = vperm.xlu0 %2946, %v2335
    %v2948 = vpop.permute.xlu0 %2947
    %2950 = vset.pattern.permute.xlu0 1
    %2951 = vperm.xlu0 %2950, %v2336
    %v2952 = vpop.permute.xlu0 %2951
    %2954 = vset.pattern.permute.xlu0 1
    %2955 = vperm.xlu0 %2954, %v2337
    %v2956 = vpop.permute.xlu0 %2955
    %v2958 = vmul.f32 %v2936, %v2416
    %v2959 = vmul.f32 %v2940, %v2417
    %v2960 = vmul.f32 %v2944, %v2418
    %v2961 = vmul.f32 %v2948, %v2419
    %v2962 = vmul.f32 %v2952, %v2420
    %v2963 = vmul.f32 %v2956, %v2421
    %v2964 = vadd.f32 %v2928, %v2958
    %v2965 = vadd.f32 %v2929, %v2959
    %v2966 = vadd.f32 %v2930, %v2960
    %v2967 = vadd.f32 %v2931, %v2961
    %v2968 = vadd.f32 %v2932, %v2962
    %v2969 = vadd.f32 %v2933, %v2963
    %2970 = vxpose.xlu0.b32.start [1/16] %v2964, 128
    %2971 = vxpose.xlu0.b32.cont [2/16] %v2965, 128
    %2972 = vxpose.xlu0.b32.cont [3/16] %v2966, 128
    %2973 = vxpose.xlu0.b32.cont [4/16] %v2967, 128
    %2974 = vxpose.xlu0.b32.cont [5/16] %v2968, 128
    %2975 = vxpose.xlu0.b32.cont [6/16] %v2969, 128
    %2976 = vxpose.xlu0.b32.cont [7/16] 0.0, 128
    %2977 = vxpose.xlu0.b32.cont [8/16] 0.0, 128
    %2978 = vxpose.xlu0.b32.cont [9/16] 0.0, 128
    %2979 = vxpose.xlu0.b32.cont [10/16] 0.0, 128
    %2980 = vxpose.xlu0.b32.cont [11/16] 0.0, 128
    %2981 = vxpose.xlu0.b32.cont [12/16] 0.0, 128
    %2982 = vxpose.xlu0.b32.cont [13/16] 0.0, 128
    %2983 = vxpose.xlu0.b32.cont [14/16] 0.0, 128
    %2984 = vxpose.xlu0.b32.cont [15/16] 0.0, 128
    %2985 = vxpose.xlu0.b32.end [16/16] 0.0, 128
    %v2986 = vpop.trf.xlu0
    %v2987 = vpop.trf.xlu0
    %v2988 = vpop.trf.xlu0
    %v2989 = vpop.trf.xlu0
    %v2990 = vpop.trf.xlu0
    %v2991 = vpop.trf.xlu0
    %v2992 = vpop.trf.xlu0
    %v2993 = vpop.trf.xlu0
    %v2994 = vpop.trf.xlu0
    %v2995 = vpop.trf.xlu0
    %v2996 = vpop.trf.xlu0
    %v2997 = vpop.trf.xlu0
    %v2998 = vpop.trf.xlu0
    %v2999 = vpop.trf.xlu0
    %v3000 = vpop.trf.xlu0
    %v3001 = vpop.trf.xlu0
    %v3003 = vsel %vm125, %v2986, 0
    %v3006 = vsel %vm125, %v2987, 0
    %v3009 = vsel %vm125, %v2988, 0
    %3011 = vmatpush.msra.mxu0 0.0
    %3012 = vmatpush.msra.mxu0 0.0
    %3013 = vmatpush.msra.mxu0 0.0
    %3014 = vmatpush.msra.mxu0 0.0
    %3015 = vmatpush.msra.mxu0 0.0
    %3016 = vmatpush.msra.mxu0 0.0
    %3017 = vmatpush.msra.mxu0 0.0
    %3018 = vmatpush.msra.mxu0 0.0
    %3019 = vmatpush.msra.mxu0 0.0
    %3020 = vmatpush.msra.mxu0 0.0
    %3021 = vmatpush.msra.mxu0 %v2427
    %3022 = vmatpush.msra.mxu0 %v2426
    %3023 = vmatpush.msra.mxu0 %v2425
    %3024 = vmatpush.msra.mxu0 %v2424
    %3025 = vmatpush.msra.mxu0 %v2423
    %3026 = vmatpush.msra.mxu0 %v2422
    %3027 = vmatmul.f32.gmra.mxu0 %v3003
    %v3028 = vpop.f32.mrf.mxu0
    %v3029 = vadd.f32 0.0, %v3028
    %3030 = vmatmul.f32.gmra.mxu0 %v3006
    %v3031 = vpop.f32.mrf.mxu0
    %v3032 = vadd.f32 0.0, %v3031
    %3033 = vmatmul.f32.gmra.mxu0 %v3009
    %v3034 = vpop.f32.mrf.mxu0
    %v3035 = vadd.f32 0.0, %v3034
    %3036 = vdwg.mxu0
    %v3037 = vpack.c.bf16 %v3032, %v3029
    %v3038 = vpack.c.bf16 %v3035, %v3035
    %s3039 = scalar_lea.vmem %s20, 16
    %v3040 = vld [vmem:[%s3039] sm:$0xf]
    %v3041 = vld [vmem:[%s3039 + $0x4] sm:$0xf]
    %v3042 = vld [vmem:[%s3039 + $0x8] sm:$0xf]
    %v3043 = vld [vmem:[%s3039 + $0xc] sm:$0xf]
    %s3044 = scalar_lea.vmem %s21, 1
    %v3045 = vld [vmem:[%s3044] sm:$0x1]
    %v3047 = vperm.slane %v3045, 0
    %v3053 = vunpack.c.l.b16 %v3040
    %v3054 = vunpack.c.l.b16 %v3041
    %v3055 = vunpack.c.l.b16 %v3042
    %v3056 = vunpack.c.l.b16 %v3043
    %v3057 = vpack.c.b16 %v3054, %v3053
    %v3058 = vpack.c.b16 %v3056, %v3055
    %v3062 = vsel %vm163, %v3037, 0
    %v3065 = vsel %vm163, %v3038, 0
    %3067 = vmatpush.bf16.msra.mxu0 0
    %3068 = vmatpush.bf16.msra.mxu0 0
    %3069 = vmatpush.bf16.msra.mxu0 0
    %3070 = vmatpush.bf16.msra.mxu0 0
    %3071 = vmatpush.bf16.msra.mxu0 0
    %3072 = vmatpush.bf16.msra.mxu0 0
    %3073 = vmatpush.bf16.msra.mxu0 %v3058
    %3074 = vmatpush.bf16.msra.mxu0 %v3057
    %3075 = vmatmul.bf16.gmra.mxu0 %v3062
    %v3076 = vpop.f32.mrf.mxu0
    %v3077 = vadd.f32 %v3047, %v3076
    %v3078 = vpop.f32.mrf.mxu0
    %v3079 = vadd.f32 %v3047, %v3078
    %3080 = vmatmul.bf16.gmra.mxu0 %v3065
    %v3081 = vpop.f32.mrf.mxu0
    %v3082 = vadd.f32 %v3047, %v3081
    %v3083 = vpop.f32.mrf.mxu0
    %3084 = vdwg.mxu0
    %v3085 = vmul.f32 %v3077, 0.5
    %v3086 = vmul.f32 %v3079, 0.5
    %v3087 = vmul.f32 %v3082, 0.5
    %v3088 = vmul.f32 %v3077, 0.70710677
    %v3089 = vmul.f32 %v3079, 0.70710677
    %v3090 = vmul.f32 %v3082, 0.70710677
    %v3091 = vmul.f32 %v3088, %v3088
    %v3092 = vmin.f32 16.0, %v3091
    %v3093 = vmul.f32 %v3092, 2.1237322e-06
    %v3094 = vadd.f32 %v3093, 0.00028619796
    %v3095 = vmul.f32 %v3092, %v3094
    %v3096 = vadd.f32 %v3095, 0.0036580483
    %v3097 = vmul.f32 %v3092, %v3096
    %v3098 = vadd.f32 %v3097, 0.05243302
    %v3099 = vmul.f32 %v3092, %v3098
    %v3100 = vadd.f32 %v3099, 0.18741608
    %v3101 = vmul.f32 %v3092, %v3100
    %v3102 = vadd.f32 %v3101, 1.1283791
    %v3103 = vmul.f32 %v3088, %v3102
    %v3104 = vmul.f32 %v3092, 3.8918573e-05
    %v3105 = vadd.f32 %v3104, 0.001143296
    %v3106 = vmul.f32 %v3092, %v3105
    %v3107 = vadd.f32 %v3106, 0.014752088
    %v3108 = vmul.f32 %v3092, %v3107
    %v3109 = vadd.f32 %v3108, 0.112945676
    %v3110 = vmul.f32 %v3092, %v3109
    %v3111 = vadd.f32 %v3110, 0.4994258
    %v3112 = vmul.f32 %v3092, %v3111
    %v3113 = vadd.f32 %v3112, 1.0
    %v3114 = vrcp.pop %v3113
    %v3115 = vmul.f32 %v3113, %v3114
    %v3116 = vsub.f32 1.0, %v3115
    %v3117 = vmul.f32 %v3114, %v3116
    %v3118 = vadd.f32 %v3114, %v3117
    %vm3119 = vweird.f32 %v3113
    %vm3120 = vweird.f32 %v3114
    %vm3121 = vmor %vm3119, %vm3120
    %v3122 = vsel %vm3121, %v3114, %v3118
    %v3123 = vand.u32 2147483647, %v3113
    %vm3124 = vcmp.eq.f32.partialorder %v3123, 8.507059e+37
    %v3125 = vand.u32 %v3113, 2147483648
    %v3126 = vor.u32 1.1754944e-38, %v3125
    %v3127 = vsel %vm3124, %v3126, %v3122
    %v3128 = vmul.f32 %v3103, %v3127
    %v3129 = vmin.f32 %v3128, 1.0
    %v3130 = vmax.f32 %v3129, -1.0
    %v3131 = vmul.f32 %v3089, %v3089
    %v3132 = vmin.f32 16.0, %v3131
    %v3133 = vmul.f32 %v3132, 2.1237322e-06
    %v3134 = vadd.f32 %v3133, 0.00028619796
    %v3135 = vmul.f32 %v3132, %v3134
    %v3136 = vadd.f32 %v3135, 0.0036580483
    %v3137 = vmul.f32 %v3132, %v3136
    %v3138 = vadd.f32 %v3137, 0.05243302
    %v3139 = vmul.f32 %v3132, %v3138
    %v3140 = vadd.f32 %v3139, 0.18741608
    %v3141 = vmul.f32 %v3132, %v3140
    %v3142 = vadd.f32 %v3141, 1.1283791
    %v3143 = vmul.f32 %v3089, %v3142
    %v3144 = vmul.f32 %v3132, 3.8918573e-05
    %v3145 = vadd.f32 %v3144, 0.001143296
    %v3146 = vmul.f32 %v3132, %v3145
    %v3147 = vadd.f32 %v3146, 0.014752088
    %v3148 = vmul.f32 %v3132, %v3147
    %v3149 = vadd.f32 %v3148, 0.112945676
    %v3150 = vmul.f32 %v3132, %v3149
    %v3151 = vadd.f32 %v3150, 0.4994258
    %v3152 = vmul.f32 %v3132, %v3151
    %v3153 = vadd.f32 %v3152, 1.0
    %v3154 = vrcp.pop %v3153
    %v3155 = vmul.f32 %v3153, %v3154
    %v3156 = vsub.f32 1.0, %v3155
    %v3157 = vmul.f32 %v3154, %v3156
    %v3158 = vadd.f32 %v3154, %v3157
    %vm3159 = vweird.f32 %v3153
    %vm3160 = vweird.f32 %v3154
    %vm3161 = vmor %vm3159, %vm3160
    %v3162 = vsel %vm3161, %v3154, %v3158
    %v3163 = vand.u32 2147483647, %v3153
    %vm3164 = vcmp.eq.f32.partialorder %v3163, 8.507059e+37
    %v3165 = vand.u32 %v3153, 2147483648
    %v3166 = vor.u32 1.1754944e-38, %v3165
    %v3167 = vsel %vm3164, %v3166, %v3162
    %v3168 = vmul.f32 %v3143, %v3167
    %v3169 = vmin.f32 %v3168, 1.0
    %v3170 = vmax.f32 %v3169, -1.0
    %v3171 = vmul.f32 %v3090, %v3090
    %v3172 = vmin.f32 16.0, %v3171
    %v3173 = vmul.f32 %v3172, 2.1237322e-06
    %v3174 = vadd.f32 %v3173, 0.00028619796
    %v3175 = vmul.f32 %v3172, %v3174
    %v3176 = vadd.f32 %v3175, 0.0036580483
    %v3177 = vmul.f32 %v3172, %v3176
    %v3178 = vadd.f32 %v3177, 0.05243302
    %v3179 = vmul.f32 %v3172, %v3178
    %v3180 = vadd.f32 %v3179, 0.18741608
    %v3181 = vmul.f32 %v3172, %v3180
    %v3182 = vadd.f32 %v3181, 1.1283791
    %v3183 = vmul.f32 %v3090, %v3182
    %v3184 = vmul.f32 %v3172, 3.8918573e-05
    %v3185 = vadd.f32 %v3184, 0.001143296
    %v3186 = vmul.f32 %v3172, %v3185
    %v3187 = vadd.f32 %v3186, 0.014752088
    %v3188 = vmul.f32 %v3172, %v3187
    %v3189 = vadd.f32 %v3188, 0.112945676
    %v3190 = vmul.f32 %v3172, %v3189
    %v3191 = vadd.f32 %v3190, 0.4994258
    %v3192 = vmul.f32 %v3172, %v3191
    %v3193 = vadd.f32 %v3192, 1.0
    %v3194 = vrcp.pop %v3193
    %v3195 = vmul.f32 %v3193, %v3194
    %v3196 = vsub.f32 1.0, %v3195
    %v3197 = vmul.f32 %v3194, %v3196
    %v3198 = vadd.f32 %v3194, %v3197
    %vm3199 = vweird.f32 %v3193
    %vm3200 = vweird.f32 %v3194
    %vm3201 = vmor %vm3199, %vm3200
    %v3202 = vsel %vm3201, %v3194, %v3198
    %v3203 = vand.u32 2147483647, %v3193
    %vm3204 = vcmp.eq.f32.partialorder %v3203, 8.507059e+37
    %v3205 = vand.u32 %v3193, 2147483648
    %v3206 = vor.u32 1.1754944e-38, %v3205
    %v3207 = vsel %vm3204, %v3206, %v3202
    %v3208 = vmul.f32 %v3183, %v3207
    %v3209 = vmin.f32 %v3208, 1.0
    %v3210 = vmax.f32 %v3209, -1.0
    %v3211 = vadd.f32 %v3130, 1.0
    %v3212 = vadd.f32 %v3170, 1.0
    %v3213 = vadd.f32 %v3210, 1.0
    %v3214 = vmul.f32 %v3085, %v3211
    %v3215 = vmul.f32 %v3086, %v3212
    %v3216 = vmul.f32 %v3087, %v3213
    %v3217 = vpack.c.bf16 %v3215, %v3214
    %v3218 = vpack.c.bf16 %v3216, %v3216
    %s3219 = scalar_lea.vmem %s22, 32
    %v3220 = vld [vmem:[%s3219] sm:$0xf]
    %v3221 = vld [vmem:[%s3219 + $0x4] sm:$0xf]
    %v3222 = vld [vmem:[%s3219 + $0x8] sm:$0xf]
    %v3223 = vld [vmem:[%s3219 + $0xc] sm:$0xf]
    %v3224 = vld [vmem:[%s3219 + $0x10] sm:$0xf]
    %v3225 = vld [vmem:[%s3219 + $0x14] sm:$0xf]
    %v3226 = vld [vmem:[%s3219 + $0x18] sm:$0xf]
    %v3227 = vld [vmem:[%s3219 + $0x1c] sm:$0xf]
    %s3228 = scalar_lea.vmem %s23, 1
    %v3229 = vld [vmem:[%s3228] sm:$0x1]
    %v3231 = vperm.slane %v3229, 0
    %v3241 = vunpack.c.l.b16 %v3220
    %v3242 = vunpack.c.l.b16 %v3221
    %v3243 = vunpack.c.l.b16 %v3222
    %v3244 = vunpack.c.l.b16 %v3223
    %v3245 = vunpack.c.l.b16 %v3224
    %v3246 = vunpack.c.l.b16 %v3225
    %v3247 = vunpack.c.l.b16 %v3226
    %v3248 = vunpack.c.l.b16 %v3227
    %v3249 = vpack.c.b16 %v3242, %v3241
    %v3250 = vpack.c.b16 %v3244, %v3243
    %v3251 = vpack.c.b16 %v3246, %v3245
    %v3252 = vpack.c.b16 %v3248, %v3247
    %v3258 = vsel %vm2789, %v3217, 0
    %v3261 = vsel %vm2789, %v3218, 0
    %3263 = vmatpush.bf16.msra.mxu0 0
    %3264 = vmatpush.bf16.msra.mxu0 0
    %3265 = vmatpush.bf16.msra.mxu0 0
    %3266 = vmatpush.bf16.msra.mxu0 0
    %3267 = vmatpush.bf16.msra.mxu0 %v3252
    %3268 = vmatpush.bf16.msra.mxu0 %v3251
    %3269 = vmatpush.bf16.msra.mxu0 %v3250
    %3270 = vmatpush.bf16.msra.mxu0 %v3249
    %3271 = vmatmul.bf16.gmra.mxu0 %v3258
    %v3272 = vpop.f32.mrf.mxu0
    %v3273 = vadd.f32 %v3231, %v3272
    %v3274 = vpop.f32.mrf.mxu0
    %v3275 = vadd.f32 %v3231, %v3274
    %3276 = vmatmul.bf16.gmra.mxu0 %v3261
    %v3277 = vpop.f32.mrf.mxu0
    %v3278 = vadd.f32 %v3231, %v3277
    %v3279 = vpop.f32.mrf.mxu0
    %3280 = vdwg.mxu0
    %3281 = vset.pattern.permute.xlu0 1
    %3282 = vperm.xlu0 %3281, %v2814
    %v3283 = vpop.permute.xlu0 %3282
    %3285 = vset.pattern.permute.xlu0 1
    %3286 = vperm.xlu0 %3285, %v2815
    %v3287 = vpop.permute.xlu0 %3286
    %3289 = vset.pattern.permute.xlu0 1
    %3290 = vperm.xlu0 %3289, %v2816
    %v3291 = vpop.permute.xlu0 %3290
    %3293 = vset.pattern.permute.xlu0 1
    %3294 = vperm.xlu0 %3293, %v2817
    %v3295 = vpop.permute.xlu0 %3294
    %3297 = vset.pattern.permute.xlu0 1
    %3298 = vperm.xlu0 %3297, %v2818
    %v3299 = vpop.permute.xlu0 %3298
    %3301 = vset.pattern.permute.xlu0 1
    %3302 = vperm.xlu0 %3301, %v2819
    %v3303 = vpop.permute.xlu0 %3302
    %v3305 = vmul.f32 %v3283, %v2398
    %v3306 = vmul.f32 %v3287, %v2399
    %v3307 = vmul.f32 %v3291, %v2400
    %v3308 = vmul.f32 %v3295, %v2401
    %v3309 = vmul.f32 %v3299, %v2402
    %v3310 = vmul.f32 %v3303, %v2403
    %3311 = vset.pattern.permute.xlu0 1
    %3312 = vperm.xlu0 %3311, %v2856
    %v3313 = vpop.permute.xlu0 %3312
    %3315 = vset.pattern.permute.xlu0 1
    %3316 = vperm.xlu0 %3315, %v2857
    %v3317 = vpop.permute.xlu0 %3316
    %3319 = vset.pattern.permute.xlu0 1
    %3320 = vperm.xlu0 %3319, %v2858
    %v3321 = vpop.permute.xlu0 %3320
    %3323 = vset.pattern.permute.xlu0 1
    %3324 = vperm.xlu0 %3323, %v2859
    %v3325 = vpop.permute.xlu0 %3324
    %3327 = vset.pattern.permute.xlu0 1
    %3328 = vperm.xlu0 %3327, %v2860
    %v3329 = vpop.permute.xlu0 %3328
    %3331 = vset.pattern.permute.xlu0 1
    %3332 = vperm.xlu0 %3331, %v2861
    %v3333 = vpop.permute.xlu0 %3332
    %v3335 = vmul.f32 %v3313, %v2416
    %v3336 = vmul.f32 %v3317, %v2417
    %v3337 = vmul.f32 %v3321, %v2418
    %v3338 = vmul.f32 %v3325, %v2419
    %v3339 = vmul.f32 %v3329, %v2420
    %v3340 = vmul.f32 %v3333, %v2421
    %v3341 = vadd.f32 %v3305, %v3335
    %v3342 = vadd.f32 %v3306, %v3336
    %v3343 = vadd.f32 %v3307, %v3337
    %v3344 = vadd.f32 %v3308, %v3338
    %v3345 = vadd.f32 %v3309, %v3339
    %v3346 = vadd.f32 %v3310, %v3340
    %v3348 = vsel %vm528, %v3341, 0
    %v3351 = vsel %vm528, %v3342, 0
    %v3354 = vsel %vm528, %v3343, 0
    %v3357 = vsel %vm528, %v3344, 0
    %v3360 = vsel %vm528, %v3345, 0
    %v3363 = vsel %vm528, %v3346, 0
    %3365 = vmatpush.msra.mxu0 0.0
    %3366 = vmatpush.msra.mxu0 0.0
    %3367 = vmatpush.msra.mxu0 0.0
    %3368 = vmatpush.msra.mxu0 0.0
    %3369 = vmatpush.msra.mxu0 0.0
    %3370 = vmatpush.msra.mxu0 0.0
    %3371 = vmatpush.msra.mxu0 0.0
    %3372 = vmatpush.msra.mxu0 0.0
    %3373 = vmatpush.msra.mxu0 0.0
    %3374 = vmatpush.msra.mxu0 0.0
    %3375 = vmatpush.msra.mxu0 0.0
    %3376 = vmatpush.msra.mxu0 0.0
    %3377 = vmatpush.msra.mxu0 0.0
    %3378 = vmatpush.msra.mxu0 %v3278
    %3379 = vmatpush.msra.mxu0 %v3275
    %3380 = vmatpush.msra.mxu0 %v3273
    %3381 = vmatmul.f32.gmra.mxu0 %v3348
    %v3382 = vpop.f32.mrf.mxu0
    %v3383 = vadd.f32 0.0, %v3382
    %3384 = vmatmul.f32.gmra.mxu0 %v3351
    %v3385 = vpop.f32.mrf.mxu0
    %v3386 = vadd.f32 0.0, %v3385
    %3387 = vmatmul.f32.gmra.mxu0 %v3354
    %v3388 = vpop.f32.mrf.mxu0
    %v3389 = vadd.f32 0.0, %v3388
    %3390 = vmatmul.f32.gmra.mxu0 %v3357
    %v3391 = vpop.f32.mrf.mxu0
    %v3392 = vadd.f32 0.0, %v3391
    %3393 = vmatmul.f32.gmra.mxu0 %v3360
    %v3394 = vpop.f32.mrf.mxu0
    %v3395 = vadd.f32 0.0, %v3394
    %3396 = vmatmul.f32.gmra.mxu0 %v3363
    %v3397 = vpop.f32.mrf.mxu0
    %v3398 = vadd.f32 0.0, %v3397
    %3399 = vdwg.mxu0
    %v3401 = vsel %vm528, %v2898, 0
    %v3404 = vsel %vm528, %v2899, 0
    %v3407 = vsel %vm528, %v2900, 0
    %v3410 = vsel %vm528, %v2901, 0
    %v3413 = vsel %vm528, %v2902, 0
    %v3416 = vsel %vm528, %v2903, 0
    %3418 = vmatpush.msra.mxu0 0.0
    %3419 = vmatpush.msra.mxu0 0.0
    %3420 = vmatpush.msra.mxu0 0.0
    %3421 = vmatpush.msra.mxu0 0.0
    %3422 = vmatpush.msra.mxu0 0.0
    %3423 = vmatpush.msra.mxu0 0.0
    %3424 = vmatpush.msra.mxu0 0.0
    %3425 = vmatpush.msra.mxu0 0.0
    %3426 = vmatpush.msra.mxu0 0.0
    %3427 = vmatpush.msra.mxu0 0.0
    %3428 = vmatpush.msra.mxu0 0.0
    %3429 = vmatpush.msra.mxu0 0.0
    %3430 = vmatpush.msra.mxu0 0.0
    %3431 = vmatpush.msra.mxu0 %v2811
    %3432 = vmatpush.msra.mxu0 %v2808
    %3433 = vmatpush.msra.mxu0 %v2806
    %3434 = vmatmul.f32.gmra.mxu0 %v3401
    %v3435 = vpop.f32.mrf.mxu0
    %v3436 = vadd.f32 %v3383, %v3435
    %3437 = vmatmul.f32.gmra.mxu0 %v3404
    %v3438 = vpop.f32.mrf.mxu0
    %v3439 = vadd.f32 %v3386, %v3438
    %3440 = vmatmul.f32.gmra.mxu0 %v3407
    %v3441 = vpop.f32.mrf.mxu0
    %v3442 = vadd.f32 %v3389, %v3441
    %3443 = vmatmul.f32.gmra.mxu0 %v3410
    %v3444 = vpop.f32.mrf.mxu0
    %v3445 = vadd.f32 %v3392, %v3444
    %3446 = vmatmul.f32.gmra.mxu0 %v3413
    %v3447 = vpop.f32.mrf.mxu0
    %v3448 = vadd.f32 %v3395, %v3447
    %3449 = vmatmul.f32.gmra.mxu0 %v3416
    %v3450 = vpop.f32.mrf.mxu0
    %v3451 = vadd.f32 %v3398, %v3450
    %3452 = vdwg.mxu0
    %3453 = vset.pattern.permute.xlu0 2
    %3454 = vperm.xlu0 %3453, %v2308
    %v3455 = vpop.permute.xlu0 %3454
    %3457 = vset.pattern.permute.xlu0 2
    %3458 = vperm.xlu0 %3457, %v2309
    %v3459 = vpop.permute.xlu0 %3458
    %3461 = vset.pattern.permute.xlu0 2
    %3462 = vperm.xlu0 %3461, %v2310
    %v3463 = vpop.permute.xlu0 %3462
    %3465 = vset.pattern.permute.xlu0 2
    %3466 = vperm.xlu0 %3465, %v2311
    %v3467 = vpop.permute.xlu0 %3466
    %3469 = vset.pattern.permute.xlu0 2
    %3470 = vperm.xlu0 %3469, %v2312
    %v3471 = vpop.permute.xlu0 %3470
    %3473 = vset.pattern.permute.xlu0 2
    %3474 = vperm.xlu0 %3473, %v2313
    %v3475 = vpop.permute.xlu0 %3474
    %v3477 = vmul.f32 %v3455, %v2398
    %v3478 = vmul.f32 %v3459, %v2399
    %v3479 = vmul.f32 %v3463, %v2400
    %v3480 = vmul.f32 %v3467, %v2401
    %v3481 = vmul.f32 %v3471, %v2402
    %v3482 = vmul.f32 %v3475, %v2403
    %3483 = vset.pattern.permute.xlu0 2
    %3484 = vperm.xlu0 %3483, %v2332
    %v3485 = vpop.permute.xlu0 %3484
    %3487 = vset.pattern.permute.xlu0 2
    %3488 = vperm.xlu0 %3487, %v2333
    %v3489 = vpop.permute.xlu0 %3488
    %3491 = vset.pattern.permute.xlu0 2
    %3492 = vperm.xlu0 %3491, %v2334
    %v3493 = vpop.permute.xlu0 %3492
    %3495 = vset.pattern.permute.xlu0 2
    %3496 = vperm.xlu0 %3495, %v2335
    %v3497 = vpop.permute.xlu0 %3496
    %3499 = vset.pattern.permute.xlu0 2
    %3500 = vperm.xlu0 %3499, %v2336
    %v3501 = vpop.permute.xlu0 %3500
    %3503 = vset.pattern.permute.xlu0 2
    %3504 = vperm.xlu0 %3503, %v2337
    %v3505 = vpop.permute.xlu0 %3504
    %v3507 = vmul.f32 %v3485, %v2416
    %v3508 = vmul.f32 %v3489, %v2417
    %v3509 = vmul.f32 %v3493, %v2418
    %v3510 = vmul.f32 %v3497, %v2419
    %v3511 = vmul.f32 %v3501, %v2420
    %v3512 = vmul.f32 %v3505, %v2421
    %v3513 = vadd.f32 %v3477, %v3507
    %v3514 = vadd.f32 %v3478, %v3508
    %v3515 = vadd.f32 %v3479, %v3509
    %v3516 = vadd.f32 %v3480, %v3510
    %v3517 = vadd.f32 %v3481, %v3511
    %v3518 = vadd.f32 %v3482, %v3512
    %3519 = vxpose.xlu0.b32.start [1/16] %v3513, 128
    %3520 = vxpose.xlu0.b32.cont [2/16] %v3514, 128
    %3521 = vxpose.xlu0.b32.cont [3/16] %v3515, 128
    %3522 = vxpose.xlu0.b32.cont [4/16] %v3516, 128
    %3523 = vxpose.xlu0.b32.cont [5/16] %v3517, 128
    %3524 = vxpose.xlu0.b32.cont [6/16] %v3518, 128
    %3525 = vxpose.xlu0.b32.cont [7/16] 0.0, 128
    %3526 = vxpose.xlu0.b32.cont [8/16] 0.0, 128
    %3527 = vxpose.xlu0.b32.cont [9/16] 0.0, 128
    %3528 = vxpose.xlu0.b32.cont [10/16] 0.0, 128
    %3529 = vxpose.xlu0.b32.cont [11/16] 0.0, 128
    %3530 = vxpose.xlu0.b32.cont [12/16] 0.0, 128
    %3531 = vxpose.xlu0.b32.cont [13/16] 0.0, 128
    %3532 = vxpose.xlu0.b32.cont [14/16] 0.0, 128
    %3533 = vxpose.xlu0.b32.cont [15/16] 0.0, 128
    %3534 = vxpose.xlu0.b32.end [16/16] 0.0, 128
    %v3535 = vpop.trf.xlu0
    %v3536 = vpop.trf.xlu0
    %v3537 = vpop.trf.xlu0
    %v3538 = vpop.trf.xlu0
    %v3539 = vpop.trf.xlu0
    %v3540 = vpop.trf.xlu0
    %v3541 = vpop.trf.xlu0
    %v3542 = vpop.trf.xlu0
    %v3543 = vpop.trf.xlu0
    %v3544 = vpop.trf.xlu0
    %v3545 = vpop.trf.xlu0
    %v3546 = vpop.trf.xlu0
    %v3547 = vpop.trf.xlu0
    %v3548 = vpop.trf.xlu0
    %v3549 = vpop.trf.xlu0
    %v3550 = vpop.trf.xlu0
    %v3552 = vsel %vm125, %v3535, 0
    %v3555 = vsel %vm125, %v3536, 0
    %v3558 = vsel %vm125, %v3537, 0
    %3560 = vmatpush.msra.mxu0 0.0
    %3561 = vmatpush.msra.mxu0 0.0
    %3562 = vmatpush.msra.mxu0 0.0
    %3563 = vmatpush.msra.mxu0 0.0
    %3564 = vmatpush.msra.mxu0 0.0
    %3565 = vmatpush.msra.mxu0 0.0
    %3566 = vmatpush.msra.mxu0 0.0
    %3567 = vmatpush.msra.mxu0 0.0
    %3568 = vmatpush.msra.mxu0 0.0
    %3569 = vmatpush.msra.mxu0 0.0
    %3570 = vmatpush.msra.mxu0 %v2427
    %3571 = vmatpush.msra.mxu0 %v2426
    %3572 = vmatpush.msra.mxu0 %v2425
    %3573 = vmatpush.msra.mxu0 %v2424
    %3574 = vmatpush.msra.mxu0 %v2423
    %3575 = vmatpush.msra.mxu0 %v2422
    %3576 = vmatmul.f32.gmra.mxu0 %v3552
    %v3577 = vpop.f32.mrf.mxu0
    %v3578 = vadd.f32 0.0, %v3577
    %3579 = vmatmul.f32.gmra.mxu0 %v3555
    %v3580 = vpop.f32.mrf.mxu0
    %v3581 = vadd.f32 0.0, %v3580
    %3582 = vmatmul.f32.gmra.mxu0 %v3558
    %v3583 = vpop.f32.mrf.mxu0
    %v3584 = vadd.f32 0.0, %v3583
    %3585 = vdwg.mxu0
    %v3586 = vpack.c.bf16 %v3581, %v3578
    %v3587 = vpack.c.bf16 %v3584, %v3584
    %s3588 = scalar_lea.vmem %s20, 32
    %v3589 = vld [vmem:[%s3588] sm:$0xf]
    %v3590 = vld [vmem:[%s3588 + $0x4] sm:$0xf]
    %v3591 = vld [vmem:[%s3588 + $0x8] sm:$0xf]
    %v3592 = vld [vmem:[%s3588 + $0xc] sm:$0xf]
    %s3593 = scalar_lea.vmem %s21, 2
    %v3594 = vld [vmem:[%s3593] sm:$0x1]
    %v3596 = vperm.slane %v3594, 0
    %v3602 = vunpack.c.l.b16 %v3589
    %v3603 = vunpack.c.l.b16 %v3590
    %v3604 = vunpack.c.l.b16 %v3591
    %v3605 = vunpack.c.l.b16 %v3592
    %v3606 = vpack.c.b16 %v3603, %v3602
    %v3607 = vpack.c.b16 %v3605, %v3604
    %v3611 = vsel %vm163, %v3586, 0
    %v3614 = vsel %vm163, %v3587, 0
    %3616 = vmatpush.bf16.msra.mxu0 0
    %3617 = vmatpush.bf16.msra.mxu0 0
    %3618 = vmatpush.bf16.msra.mxu0 0
    %3619 = vmatpush.bf16.msra.mxu0 0
    %3620 = vmatpush.bf16.msra.mxu0 0
    %3621 = vmatpush.bf16.msra.mxu0 0
    %3622 = vmatpush.bf16.msra.mxu0 %v3607
    %3623 = vmatpush.bf16.msra.mxu0 %v3606
    %3624 = vmatmul.bf16.gmra.mxu0 %v3611
    %v3625 = vpop.f32.mrf.mxu0
    %v3626 = vadd.f32 %v3596, %v3625
    %v3627 = vpop.f32.mrf.mxu0
    %v3628 = vadd.f32 %v3596, %v3627
    %3629 = vmatmul.bf16.gmra.mxu0 %v3614
    %v3630 = vpop.f32.mrf.mxu0
    %v3631 = vadd.f32 %v3596, %v3630
    %v3632 = vpop.f32.mrf.mxu0
    %3633 = vdwg.mxu0
    %v3634 = vmul.f32 %v3626, 0.5
    %v3635 = vmul.f32 %v3628, 0.5
    %v3636 = vmul.f32 %v3631, 0.5
    %v3637 = vmul.f32 %v3626, 0.70710677
    %v3638 = vmul.f32 %v3628, 0.70710677
    %v3639 = vmul.f32 %v3631, 0.70710677
    %v3640 = vmul.f32 %v3637, %v3637
    %v3641 = vmin.f32 16.0, %v3640
    %v3642 = vmul.f32 %v3641, 2.1237322e-06
    %v3643 = vadd.f32 %v3642, 0.00028619796
    %v3644 = vmul.f32 %v3641, %v3643
    %v3645 = vadd.f32 %v3644, 0.0036580483
    %v3646 = vmul.f32 %v3641, %v3645
    %v3647 = vadd.f32 %v3646, 0.05243302
    %v3648 = vmul.f32 %v3641, %v3647
    %v3649 = vadd.f32 %v3648, 0.18741608
    %v3650 = vmul.f32 %v3641, %v3649
    %v3651 = vadd.f32 %v3650, 1.1283791
    %v3652 = vmul.f32 %v3637, %v3651
    %v3653 = vmul.f32 %v3641, 3.8918573e-05
    %v3654 = vadd.f32 %v3653, 0.001143296
    %v3655 = vmul.f32 %v3641, %v3654
    %v3656 = vadd.f32 %v3655, 0.014752088
    %v3657 = vmul.f32 %v3641, %v3656
    %v3658 = vadd.f32 %v3657, 0.112945676
    %v3659 = vmul.f32 %v3641, %v3658
    %v3660 = vadd.f32 %v3659, 0.4994258
    %v3661 = vmul.f32 %v3641, %v3660
    %v3662 = vadd.f32 %v3661, 1.0
    %v3663 = vrcp.pop %v3662
    %v3664 = vmul.f32 %v3662, %v3663
    %v3665 = vsub.f32 1.0, %v3664
    %v3666 = vmul.f32 %v3663, %v3665
    %v3667 = vadd.f32 %v3663, %v3666
    %vm3668 = vweird.f32 %v3662
    %vm3669 = vweird.f32 %v3663
    %vm3670 = vmor %vm3668, %vm3669
    %v3671 = vsel %vm3670, %v3663, %v3667
    %v3672 = vand.u32 2147483647, %v3662
    %vm3673 = vcmp.eq.f32.partialorder %v3672, 8.507059e+37
    %v3674 = vand.u32 %v3662, 2147483648
    %v3675 = vor.u32 1.1754944e-38, %v3674
    %v3676 = vsel %vm3673, %v3675, %v3671
    %v3677 = vmul.f32 %v3652, %v3676
    %v3678 = vmin.f32 %v3677, 1.0
    %v3679 = vmax.f32 %v3678, -1.0
    %v3680 = vmul.f32 %v3638, %v3638
    %v3681 = vmin.f32 16.0, %v3680
    %v3682 = vmul.f32 %v3681, 2.1237322e-06
    %v3683 = vadd.f32 %v3682, 0.00028619796
    %v3684 = vmul.f32 %v3681, %v3683
    %v3685 = vadd.f32 %v3684, 0.0036580483
    %v3686 = vmul.f32 %v3681, %v3685
    %v3687 = vadd.f32 %v3686, 0.05243302
    %v3688 = vmul.f32 %v3681, %v3687
    %v3689 = vadd.f32 %v3688, 0.18741608
    %v3690 = vmul.f32 %v3681, %v3689
    %v3691 = vadd.f32 %v3690, 1.1283791
    %v3692 = vmul.f32 %v3638, %v3691
    %v3693 = vmul.f32 %v3681, 3.8918573e-05
    %v3694 = vadd.f32 %v3693, 0.001143296
    %v3695 = vmul.f32 %v3681, %v3694
    %v3696 = vadd.f32 %v3695, 0.014752088
    %v3697 = vmul.f32 %v3681, %v3696
    %v3698 = vadd.f32 %v3697, 0.112945676
    %v3699 = vmul.f32 %v3681, %v3698
    %v3700 = vadd.f32 %v3699, 0.4994258
    %v3701 = vmul.f32 %v3681, %v3700
    %v3702 = vadd.f32 %v3701, 1.0
    %v3703 = vrcp.pop %v3702
    %v3704 = vmul.f32 %v3702, %v3703
    %v3705 = vsub.f32 1.0, %v3704
    %v3706 = vmul.f32 %v3703, %v3705
    %v3707 = vadd.f32 %v3703, %v3706
    %vm3708 = vweird.f32 %v3702
    %vm3709 = vweird.f32 %v3703
    %vm3710 = vmor %vm3708, %vm3709
    %v3711 = vsel %vm3710, %v3703, %v3707
    %v3712 = vand.u32 2147483647, %v3702
    %vm3713 = vcmp.eq.f32.partialorder %v3712, 8.507059e+37
    %v3714 = vand.u32 %v3702, 2147483648
    %v3715 = vor.u32 1.1754944e-38, %v3714
    %v3716 = vsel %vm3713, %v3715, %v3711
    %v3717 = vmul.f32 %v3692, %v3716
    %v3718 = vmin.f32 %v3717, 1.0
    %v3719 = vmax.f32 %v3718, -1.0
    %v3720 = vmul.f32 %v3639, %v3639
    %v3721 = vmin.f32 16.0, %v3720
    %v3722 = vmul.f32 %v3721, 2.1237322e-06
    %v3723 = vadd.f32 %v3722, 0.00028619796
    %v3724 = vmul.f32 %v3721, %v3723
    %v3725 = vadd.f32 %v3724, 0.0036580483
    %v3726 = vmul.f32 %v3721, %v3725
    %v3727 = vadd.f32 %v3726, 0.05243302
    %v3728 = vmul.f32 %v3721, %v3727
    %v3729 = vadd.f32 %v3728, 0.18741608
    %v3730 = vmul.f32 %v3721, %v3729
    %v3731 = vadd.f32 %v3730, 1.1283791
    %v3732 = vmul.f32 %v3639, %v3731
    %v3733 = vmul.f32 %v3721, 3.8918573e-05
    %v3734 = vadd.f32 %v3733, 0.001143296
    %v3735 = vmul.f32 %v3721, %v3734
    %v3736 = vadd.f32 %v3735, 0.014752088
    %v3737 = vmul.f32 %v3721, %v3736
    %v3738 = vadd.f32 %v3737, 0.112945676
    %v3739 = vmul.f32 %v3721, %v3738
    %v3740 = vadd.f32 %v3739, 0.4994258
    %v3741 = vmul.f32 %v3721, %v3740
    %v3742 = vadd.f32 %v3741, 1.0
    %v3743 = vrcp.pop %v3742
    %v3744 = vmul.f32 %v3742, %v3743
    %v3745 = vsub.f32 1.0, %v3744
    %v3746 = vmul.f32 %v3743, %v3745
    %v3747 = vadd.f32 %v3743, %v3746
    %vm3748 = vweird.f32 %v3742
    %vm3749 = vweird.f32 %v3743
    %vm3750 = vmor %vm3748, %vm3749
    %v3751 = vsel %vm3750, %v3743, %v3747
    %v3752 = vand.u32 2147483647, %v3742
    %vm3753 = vcmp.eq.f32.partialorder %v3752, 8.507059e+37
    %v3754 = vand.u32 %v3742, 2147483648
    %v3755 = vor.u32 1.1754944e-38, %v3754
    %v3756 = vsel %vm3753, %v3755, %v3751
    %v3757 = vmul.f32 %v3732, %v3756
    %v3758 = vmin.f32 %v3757, 1.0
    %v3759 = vmax.f32 %v3758, -1.0
    %v3760 = vadd.f32 %v3679, 1.0
    %v3761 = vadd.f32 %v3719, 1.0
    %v3762 = vadd.f32 %v3759, 1.0
    %v3763 = vmul.f32 %v3634, %v3760
    %v3764 = vmul.f32 %v3635, %v3761
    %v3765 = vmul.f32 %v3636, %v3762
    %v3766 = vpack.c.bf16 %v3764, %v3763
    %v3767 = vpack.c.bf16 %v3765, %v3765
    %s3768 = scalar_lea.vmem %s22, 64
    %v3769 = vld [vmem:[%s3768] sm:$0xf]
    %v3770 = vld [vmem:[%s3768 + $0x4] sm:$0xf]
    %v3771 = vld [vmem:[%s3768 + $0x8] sm:$0xf]
    %v3772 = vld [vmem:[%s3768 + $0xc] sm:$0xf]
    %v3773 = vld [vmem:[%s3768 + $0x10] sm:$0xf]
    %v3774 = vld [vmem:[%s3768 + $0x14] sm:$0xf]
    %v3775 = vld [vmem:[%s3768 + $0x18] sm:$0xf]
    %v3776 = vld [vmem:[%s3768 + $0x1c] sm:$0xf]
    %s3777 = scalar_lea.vmem %s23, 2
    %v3778 = vld [vmem:[%s3777] sm:$0x1]
    %v3780 = vperm.slane %v3778, 0
    %v3790 = vunpack.c.l.b16 %v3769
    %v3791 = vunpack.c.l.b16 %v3770
    %v3792 = vunpack.c.l.b16 %v3771
    %v3793 = vunpack.c.l.b16 %v3772
    %v3794 = vunpack.c.l.b16 %v3773
    %v3795 = vunpack.c.l.b16 %v3774
    %v3796 = vunpack.c.l.b16 %v3775
    %v3797 = vunpack.c.l.b16 %v3776
    %v3798 = vpack.c.b16 %v3791, %v3790
    %v3799 = vpack.c.b16 %v3793, %v3792
    %v3800 = vpack.c.b16 %v3795, %v3794
    %v3801 = vpack.c.b16 %v3797, %v3796
    %v3807 = vsel %vm2789, %v3766, 0
    %v3810 = vsel %vm2789, %v3767, 0
    %3812 = vmatpush.bf16.msra.mxu0 0
    %3813 = vmatpush.bf16.msra.mxu0 0
    %3814 = vmatpush.bf16.msra.mxu0 0
    %3815 = vmatpush.bf16.msra.mxu0 0
    %3816 = vmatpush.bf16.msra.mxu0 %v3801
    %3817 = vmatpush.bf16.msra.mxu0 %v3800
    %3818 = vmatpush.bf16.msra.mxu0 %v3799
    %3819 = vmatpush.bf16.msra.mxu0 %v3798
    %3820 = vmatmul.bf16.gmra.mxu0 %v3807
    %v3821 = vpop.f32.mrf.mxu0
    %v3822 = vadd.f32 %v3780, %v3821
    %v3823 = vpop.f32.mrf.mxu0
    %v3824 = vadd.f32 %v3780, %v3823
    %3825 = vmatmul.bf16.gmra.mxu0 %v3810
    %v3826 = vpop.f32.mrf.mxu0
    %v3827 = vadd.f32 %v3780, %v3826
    %v3828 = vpop.f32.mrf.mxu0
    %3829 = vdwg.mxu0
    %3830 = vset.pattern.permute.xlu0 2
    %3831 = vperm.xlu0 %3830, %v2814
    %v3832 = vpop.permute.xlu0 %3831
    %3834 = vset.pattern.permute.xlu0 2
    %3835 = vperm.xlu0 %3834, %v2815
    %v3836 = vpop.permute.xlu0 %3835
    %3838 = vset.pattern.permute.xlu0 2
    %3839 = vperm.xlu0 %3838, %v2816
    %v3840 = vpop.permute.xlu0 %3839
    %3842 = vset.pattern.permute.xlu0 2
    %3843 = vperm.xlu0 %3842, %v2817
    %v3844 = vpop.permute.xlu0 %3843
    %3846 = vset.pattern.permute.xlu0 2
    %3847 = vperm.xlu0 %3846, %v2818
    %v3848 = vpop.permute.xlu0 %3847
    %3850 = vset.pattern.permute.xlu0 2
    %3851 = vperm.xlu0 %3850, %v2819
    %v3852 = vpop.permute.xlu0 %3851
    %v3854 = vmul.f32 %v3832, %v2398
    %v3855 = vmul.f32 %v3836, %v2399
    %v3856 = vmul.f32 %v3840, %v2400
    %v3857 = vmul.f32 %v3844, %v2401
    %v3858 = vmul.f32 %v3848, %v2402
    %v3859 = vmul.f32 %v3852, %v2403
    %3860 = vset.pattern.permute.xlu0 2
    %3861 = vperm.xlu0 %3860, %v2856
    %v3862 = vpop.permute.xlu0 %3861
    %3864 = vset.pattern.permute.xlu0 2
    %3865 = vperm.xlu0 %3864, %v2857
    %v3866 = vpop.permute.xlu0 %3865
    %3868 = vset.pattern.permute.xlu0 2
    %3869 = vperm.xlu0 %3868, %v2858
    %v3870 = vpop.permute.xlu0 %3869
    %3872 = vset.pattern.permute.xlu0 2
    %3873 = vperm.xlu0 %3872, %v2859
    %v3874 = vpop.permute.xlu0 %3873
    %3876 = vset.pattern.permute.xlu0 2
    %3877 = vperm.xlu0 %3876, %v2860
    %v3878 = vpop.permute.xlu0 %3877
    %3880 = vset.pattern.permute.xlu0 2
    %3881 = vperm.xlu0 %3880, %v2861
    %v3882 = vpop.permute.xlu0 %3881
    %v3884 = vmul.f32 %v3862, %v2416
    %v3885 = vmul.f32 %v3866, %v2417
    %v3886 = vmul.f32 %v3870, %v2418
    %v3887 = vmul.f32 %v3874, %v2419
    %v3888 = vmul.f32 %v3878, %v2420
    %v3889 = vmul.f32 %v3882, %v2421
    %v3890 = vadd.f32 %v3854, %v3884
    %v3891 = vadd.f32 %v3855, %v3885
    %v3892 = vadd.f32 %v3856, %v3886
    %v3893 = vadd.f32 %v3857, %v3887
    %v3894 = vadd.f32 %v3858, %v3888
    %v3895 = vadd.f32 %v3859, %v3889
    %v3897 = vsel %vm528, %v3890, 0
    %v3900 = vsel %vm528, %v3891, 0
    %v3903 = vsel %vm528, %v3892, 0
    %v3906 = vsel %vm528, %v3893, 0
    %v3909 = vsel %vm528, %v3894, 0
    %v3912 = vsel %vm528, %v3895, 0
    %3914 = vmatpush.msra.mxu0 0.0
    %3915 = vmatpush.msra.mxu0 0.0
    %3916 = vmatpush.msra.mxu0 0.0
    %3917 = vmatpush.msra.mxu0 0.0
    %3918 = vmatpush.msra.mxu0 0.0
    %3919 = vmatpush.msra.mxu0 0.0
    %3920 = vmatpush.msra.mxu0 0.0
    %3921 = vmatpush.msra.mxu0 0.0
    %3922 = vmatpush.msra.mxu0 0.0
    %3923 = vmatpush.msra.mxu0 0.0
    %3924 = vmatpush.msra.mxu0 0.0
    %3925 = vmatpush.msra.mxu0 0.0
    %3926 = vmatpush.msra.mxu0 0.0
    %3927 = vmatpush.msra.mxu0 %v3827
    %3928 = vmatpush.msra.mxu0 %v3824
    %3929 = vmatpush.msra.mxu0 %v3822
    %3930 = vmatmul.f32.gmra.mxu0 %v3897
    %v3931 = vpop.f32.mrf.mxu0
    %v3932 = vadd.f32 0.0, %v3931
    %3933 = vmatmul.f32.gmra.mxu0 %v3900
    %v3934 = vpop.f32.mrf.mxu0
    %v3935 = vadd.f32 0.0, %v3934
    %3936 = vmatmul.f32.gmra.mxu0 %v3903
    %v3937 = vpop.f32.mrf.mxu0
    %v3938 = vadd.f32 0.0, %v3937
    %3939 = vmatmul.f32.gmra.mxu0 %v3906
    %v3940 = vpop.f32.mrf.mxu0
    %v3941 = vadd.f32 0.0, %v3940
    %3942 = vmatmul.f32.gmra.mxu0 %v3909
    %v3943 = vpop.f32.mrf.mxu0
    %v3944 = vadd.f32 0.0, %v3943
    %3945 = vmatmul.f32.gmra.mxu0 %v3912
    %v3946 = vpop.f32.mrf.mxu0
    %v3947 = vadd.f32 0.0, %v3946
    %3948 = vdwg.mxu0
    %v3949 = vadd.f32 %v3436, %v3932
    %v3950 = vadd.f32 %v3439, %v3935
    %v3951 = vadd.f32 %v3442, %v3938
    %v3952 = vadd.f32 %v3445, %v3941
    %v3953 = vadd.f32 %v3448, %v3944
    %v3954 = vadd.f32 %v3451, %v3947
    %3955 = vset.pattern.permute.xlu0 3
    %3956 = vperm.xlu0 %3955, %v2308
    %v3957 = vpop.permute.xlu0 %3956
    %3959 = vset.pattern.permute.xlu0 3
    %3960 = vperm.xlu0 %3959, %v2309
    %v3961 = vpop.permute.xlu0 %3960
    %3963 = vset.pattern.permute.xlu0 3
    %3964 = vperm.xlu0 %3963, %v2310
    %v3965 = vpop.permute.xlu0 %3964
    %3967 = vset.pattern.permute.xlu0 3
    %3968 = vperm.xlu0 %3967, %v2311
    %v3969 = vpop.permute.xlu0 %3968
    %3971 = vset.pattern.permute.xlu0 3
    %3972 = vperm.xlu0 %3971, %v2312
    %v3973 = vpop.permute.xlu0 %3972
    %3975 = vset.pattern.permute.xlu0 3
    %3976 = vperm.xlu0 %3975, %v2313
    %v3977 = vpop.permute.xlu0 %3976
    %v3979 = vmul.f32 %v3957, %v2398
    %v3980 = vmul.f32 %v3961, %v2399
    %v3981 = vmul.f32 %v3965, %v2400
    %v3982 = vmul.f32 %v3969, %v2401
    %v3983 = vmul.f32 %v3973, %v2402
    %v3984 = vmul.f32 %v3977, %v2403
    %3985 = vset.pattern.permute.xlu0 3
    %3986 = vperm.xlu0 %3985, %v2332
    %v3987 = vpop.permute.xlu0 %3986
    %3989 = vset.pattern.permute.xlu0 3
    %3990 = vperm.xlu0 %3989, %v2333
    %v3991 = vpop.permute.xlu0 %3990
    %3993 = vset.pattern.permute.xlu0 3
    %3994 = vperm.xlu0 %3993, %v2334
    %v3995 = vpop.permute.xlu0 %3994
    %3997 = vset.pattern.permute.xlu0 3
    %3998 = vperm.xlu0 %3997, %v2335
    %v3999 = vpop.permute.xlu0 %3998
    %4001 = vset.pattern.permute.xlu0 3
    %4002 = vperm.xlu0 %4001, %v2336
    %v4003 = vpop.permute.xlu0 %4002
    %4005 = vset.pattern.permute.xlu0 3
    %4006 = vperm.xlu0 %4005, %v2337
    %v4007 = vpop.permute.xlu0 %4006
    %v4009 = vmul.f32 %v3987, %v2416
    %v4010 = vmul.f32 %v3991, %v2417
    %v4011 = vmul.f32 %v3995, %v2418
    %v4012 = vmul.f32 %v3999, %v2419
    %v4013 = vmul.f32 %v4003, %v2420
    %v4014 = vmul.f32 %v4007, %v2421
    %v4015 = vadd.f32 %v3979, %v4009
    %v4016 = vadd.f32 %v3980, %v4010
    %v4017 = vadd.f32 %v3981, %v4011
    %v4018 = vadd.f32 %v3982, %v4012
    %v4019 = vadd.f32 %v3983, %v4013
    %v4020 = vadd.f32 %v3984, %v4014
    %4021 = vxpose.xlu0.b32.start [1/16] %v4015, 128
    %4022 = vxpose.xlu0.b32.cont [2/16] %v4016, 128
    %4023 = vxpose.xlu0.b32.cont [3/16] %v4017, 128
    %4024 = vxpose.xlu0.b32.cont [4/16] %v4018, 128
    %4025 = vxpose.xlu0.b32.cont [5/16] %v4019, 128
    %4026 = vxpose.xlu0.b32.cont [6/16] %v4020, 128
    %4027 = vxpose.xlu0.b32.cont [7/16] 0.0, 128
    %4028 = vxpose.xlu0.b32.cont [8/16] 0.0, 128
    %4029 = vxpose.xlu0.b32.cont [9/16] 0.0, 128
    %4030 = vxpose.xlu0.b32.cont [10/16] 0.0, 128
    %4031 = vxpose.xlu0.b32.cont [11/16] 0.0, 128
    %4032 = vxpose.xlu0.b32.cont [12/16] 0.0, 128
    %4033 = vxpose.xlu0.b32.cont [13/16] 0.0, 128
    %4034 = vxpose.xlu0.b32.cont [14/16] 0.0, 128
    %4035 = vxpose.xlu0.b32.cont [15/16] 0.0, 128
    %4036 = vxpose.xlu0.b32.end [16/16] 0.0, 128
    %v4037 = vpop.trf.xlu0
    %v4038 = vpop.trf.xlu0
    %v4039 = vpop.trf.xlu0
    %v4040 = vpop.trf.xlu0
    %v4041 = vpop.trf.xlu0
    %v4042 = vpop.trf.xlu0
    %v4043 = vpop.trf.xlu0
    %v4044 = vpop.trf.xlu0
    %v4045 = vpop.trf.xlu0
    %v4046 = vpop.trf.xlu0
    %v4047 = vpop.trf.xlu0
    %v4048 = vpop.trf.xlu0
    %v4049 = vpop.trf.xlu0
    %v4050 = vpop.trf.xlu0
    %v4051 = vpop.trf.xlu0
    %v4052 = vpop.trf.xlu0
    %v4054 = vsel %vm125, %v4037, 0
    %v4057 = vsel %vm125, %v4038, 0
    %v4060 = vsel %vm125, %v4039, 0
    %4062 = vmatpush.msra.mxu0 0.0
    %4063 = vmatpush.msra.mxu0 0.0
    %4064 = vmatpush.msra.mxu0 0.0
    %4065 = vmatpush.msra.mxu0 0.0
    %4066 = vmatpush.msra.mxu0 0.0
    %4067 = vmatpush.msra.mxu0 0.0
    %4068 = vmatpush.msra.mxu0 0.0
    %4069 = vmatpush.msra.mxu0 0.0
    %4070 = vmatpush.msra.mxu0 0.0
    %4071 = vmatpush.msra.mxu0 0.0
    %4072 = vmatpush.msra.mxu0 %v2427
    %4073 = vmatpush.msra.mxu0 %v2426
    %4074 = vmatpush.msra.mxu0 %v2425
    %4075 = vmatpush.msra.mxu0 %v2424
    %4076 = vmatpush.msra.mxu0 %v2423
    %4077 = vmatpush.msra.mxu0 %v2422
    %4078 = vmatmul.f32.gmra.mxu0 %v4054
    %v4079 = vpop.f32.mrf.mxu0
    %v4080 = vadd.f32 0.0, %v4079
    %4081 = vmatmul.f32.gmra.mxu0 %v4057
    %v4082 = vpop.f32.mrf.mxu0
    %v4083 = vadd.f32 0.0, %v4082
    %4084 = vmatmul.f32.gmra.mxu0 %v4060
    %v4085 = vpop.f32.mrf.mxu0
    %v4086 = vadd.f32 0.0, %v4085
    %4087 = vdwg.mxu0
    %v4088 = vpack.c.bf16 %v4083, %v4080
    %v4089 = vpack.c.bf16 %v4086, %v4086
    %s4090 = scalar_lea.vmem %s20, 48
    %v4091 = vld [vmem:[%s4090] sm:$0xf]
    %v4092 = vld [vmem:[%s4090 + $0x4] sm:$0xf]
    %v4093 = vld [vmem:[%s4090 + $0x8] sm:$0xf]
    %v4094 = vld [vmem:[%s4090 + $0xc] sm:$0xf]
    %s4095 = scalar_lea.vmem %s21, 3
    %v4096 = vld [vmem:[%s4095] sm:$0x1]
    %v4098 = vperm.slane %v4096, 0
    %v4104 = vunpack.c.l.b16 %v4091
    %v4105 = vunpack.c.l.b16 %v4092
    %v4106 = vunpack.c.l.b16 %v4093
    %v4107 = vunpack.c.l.b16 %v4094
    %v4108 = vpack.c.b16 %v4105, %v4104
    %v4109 = vpack.c.b16 %v4107, %v4106
    %v4113 = vsel %vm163, %v4088, 0
    %v4116 = vsel %vm163, %v4089, 0
    %4118 = vmatpush.bf16.msra.mxu0 0
    %4119 = vmatpush.bf16.msra.mxu0 0
    %4120 = vmatpush.bf16.msra.mxu0 0
    %4121 = vmatpush.bf16.msra.mxu0 0
    %4122 = vmatpush.bf16.msra.mxu0 0
    %4123 = vmatpush.bf16.msra.mxu0 0
    %4124 = vmatpush.bf16.msra.mxu0 %v4109
    %4125 = vmatpush.bf16.msra.mxu0 %v4108
    %4126 = vmatmul.bf16.gmra.mxu0 %v4113
    %v4127 = vpop.f32.mrf.mxu0
    %v4128 = vadd.f32 %v4098, %v4127
    %v4129 = vpop.f32.mrf.mxu0
    %v4130 = vadd.f32 %v4098, %v4129
    %4131 = vmatmul.bf16.gmra.mxu0 %v4116
    %v4132 = vpop.f32.mrf.mxu0
    %v4133 = vadd.f32 %v4098, %v4132
    %v4134 = vpop.f32.mrf.mxu0
    %4135 = vdwg.mxu0
    %v4136 = vmul.f32 %v4128, 0.5
    %v4137 = vmul.f32 %v4130, 0.5
    %v4138 = vmul.f32 %v4133, 0.5
    %v4139 = vmul.f32 %v4128, 0.70710677
    %v4140 = vmul.f32 %v4130, 0.70710677
    %v4141 = vmul.f32 %v4133, 0.70710677
    %v4142 = vmul.f32 %v4139, %v4139
    %v4143 = vmin.f32 16.0, %v4142
    %v4144 = vmul.f32 %v4143, 2.1237322e-06
    %v4145 = vadd.f32 %v4144, 0.00028619796
    %v4146 = vmul.f32 %v4143, %v4145
    %v4147 = vadd.f32 %v4146, 0.0036580483
    %v4148 = vmul.f32 %v4143, %v4147
    %v4149 = vadd.f32 %v4148, 0.05243302
    %v4150 = vmul.f32 %v4143, %v4149
    %v4151 = vadd.f32 %v4150, 0.18741608
    %v4152 = vmul.f32 %v4143, %v4151
    %v4153 = vadd.f32 %v4152, 1.1283791
    %v4154 = vmul.f32 %v4139, %v4153
    %v4155 = vmul.f32 %v4143, 3.8918573e-05
    %v4156 = vadd.f32 %v4155, 0.001143296
    %v4157 = vmul.f32 %v4143, %v4156
    %v4158 = vadd.f32 %v4157, 0.014752088
    %v4159 = vmul.f32 %v4143, %v4158
    %v4160 = vadd.f32 %v4159, 0.112945676
    %v4161 = vmul.f32 %v4143, %v4160
    %v4162 = vadd.f32 %v4161, 0.4994258
    %v4163 = vmul.f32 %v4143, %v4162
    %v4164 = vadd.f32 %v4163, 1.0
    %v4165 = vrcp.pop %v4164
    %v4166 = vmul.f32 %v4164, %v4165
    %v4167 = vsub.f32 1.0, %v4166
    %v4168 = vmul.f32 %v4165, %v4167
    %v4169 = vadd.f32 %v4165, %v4168
    %vm4170 = vweird.f32 %v4164
    %vm4171 = vweird.f32 %v4165
    %vm4172 = vmor %vm4170, %vm4171
    %v4173 = vsel %vm4172, %v4165, %v4169
    %v4174 = vand.u32 2147483647, %v4164
    %vm4175 = vcmp.eq.f32.partialorder %v4174, 8.507059e+37
    %v4176 = vand.u32 %v4164, 2147483648
    %v4177 = vor.u32 1.1754944e-38, %v4176
    %v4178 = vsel %vm4175, %v4177, %v4173
    %v4179 = vmul.f32 %v4154, %v4178
    %v4180 = vmin.f32 %v4179, 1.0
    %v4181 = vmax.f32 %v4180, -1.0
    %v4182 = vmul.f32 %v4140, %v4140
    %v4183 = vmin.f32 16.0, %v4182
    %v4184 = vmul.f32 %v4183, 2.1237322e-06
    %v4185 = vadd.f32 %v4184, 0.00028619796
    %v4186 = vmul.f32 %v4183, %v4185
    %v4187 = vadd.f32 %v4186, 0.0036580483
    %v4188 = vmul.f32 %v4183, %v4187
    %v4189 = vadd.f32 %v4188, 0.05243302
    %v4190 = vmul.f32 %v4183, %v4189
    %v4191 = vadd.f32 %v4190, 0.18741608
    %v4192 = vmul.f32 %v4183, %v4191
    %v4193 = vadd.f32 %v4192, 1.1283791
    %v4194 = vmul.f32 %v4140, %v4193
    %v4195 = vmul.f32 %v4183, 3.8918573e-05
    %v4196 = vadd.f32 %v4195, 0.001143296
    %v4197 = vmul.f32 %v4183, %v4196
    %v4198 = vadd.f32 %v4197, 0.014752088
    %v4199 = vmul.f32 %v4183, %v4198
    %v4200 = vadd.f32 %v4199, 0.112945676
    %v4201 = vmul.f32 %v4183, %v4200
    %v4202 = vadd.f32 %v4201, 0.4994258
    %v4203 = vmul.f32 %v4183, %v4202
    %v4204 = vadd.f32 %v4203, 1.0
    %v4205 = vrcp.pop %v4204
    %v4206 = vmul.f32 %v4204, %v4205
    %v4207 = vsub.f32 1.0, %v4206
    %v4208 = vmul.f32 %v4205, %v4207
    %v4209 = vadd.f32 %v4205, %v4208
    %vm4210 = vweird.f32 %v4204
    %vm4211 = vweird.f32 %v4205
    %vm4212 = vmor %vm4210, %vm4211
    %v4213 = vsel %vm4212, %v4205, %v4209
    %v4214 = vand.u32 2147483647, %v4204
    %vm4215 = vcmp.eq.f32.partialorder %v4214, 8.507059e+37
    %v4216 = vand.u32 %v4204, 2147483648
    %v4217 = vor.u32 1.1754944e-38, %v4216
    %v4218 = vsel %vm4215, %v4217, %v4213
    %v4219 = vmul.f32 %v4194, %v4218
    %v4220 = vmin.f32 %v4219, 1.0
    %v4221 = vmax.f32 %v4220, -1.0
    %v4222 = vmul.f32 %v4141, %v4141
    %v4223 = vmin.f32 16.0, %v4222
    %v4224 = vmul.f32 %v4223, 2.1237322e-06
    %v4225 = vadd.f32 %v4224, 0.00028619796
    %v4226 = vmul.f32 %v4223, %v4225
    %v4227 = vadd.f32 %v4226, 0.0036580483
    %v4228 = vmul.f32 %v4223, %v4227
    %v4229 = vadd.f32 %v4228, 0.05243302
    %v4230 = vmul.f32 %v4223, %v4229
    %v4231 = vadd.f32 %v4230, 0.18741608
    %v4232 = vmul.f32 %v4223, %v4231
    %v4233 = vadd.f32 %v4232, 1.1283791
    %v4234 = vmul.f32 %v4141, %v4233
    %v4235 = vmul.f32 %v4223, 3.8918573e-05
    %v4236 = vadd.f32 %v4235, 0.001143296
    %v4237 = vmul.f32 %v4223, %v4236
    %v4238 = vadd.f32 %v4237, 0.014752088
    %v4239 = vmul.f32 %v4223, %v4238
    %v4240 = vadd.f32 %v4239, 0.112945676
    %v4241 = vmul.f32 %v4223, %v4240
    %v4242 = vadd.f32 %v4241, 0.4994258
    %v4243 = vmul.f32 %v4223, %v4242
    %v4244 = vadd.f32 %v4243, 1.0
    %v4245 = vrcp.pop %v4244
    %v4246 = vmul.f32 %v4244, %v4245
    %v4247 = vsub.f32 1.0, %v4246
    %v4248 = vmul.f32 %v4245, %v4247
    %v4249 = vadd.f32 %v4245, %v4248
    %vm4250 = vweird.f32 %v4244
    %vm4251 = vweird.f32 %v4245
    %vm4252 = vmor %vm4250, %vm4251
    %v4253 = vsel %vm4252, %v4245, %v4249
    %v4254 = vand.u32 2147483647, %v4244
    %vm4255 = vcmp.eq.f32.partialorder %v4254, 8.507059e+37
    %v4256 = vand.u32 %v4244, 2147483648
    %v4257 = vor.u32 1.1754944e-38, %v4256
    %v4258 = vsel %vm4255, %v4257, %v4253
    %v4259 = vmul.f32 %v4234, %v4258
    %v4260 = vmin.f32 %v4259, 1.0
    %v4261 = vmax.f32 %v4260, -1.0
    %v4262 = vadd.f32 %v4181, 1.0
    %v4263 = vadd.f32 %v4221, 1.0
    %v4264 = vadd.f32 %v4261, 1.0
    %v4265 = vmul.f32 %v4136, %v4262
    %v4266 = vmul.f32 %v4137, %v4263
    %v4267 = vmul.f32 %v4138, %v4264
    %v4268 = vpack.c.bf16 %v4266, %v4265
    %v4269 = vpack.c.bf16 %v4267, %v4267
    %s4270 = scalar_lea.vmem %s22, 96
    %v4271 = vld [vmem:[%s4270] sm:$0xf]
    %v4272 = vld [vmem:[%s4270 + $0x4] sm:$0xf]
    %v4273 = vld [vmem:[%s4270 + $0x8] sm:$0xf]
    %v4274 = vld [vmem:[%s4270 + $0xc] sm:$0xf]
    %v4275 = vld [vmem:[%s4270 + $0x10] sm:$0xf]
    %v4276 = vld [vmem:[%s4270 + $0x14] sm:$0xf]
    %v4277 = vld [vmem:[%s4270 + $0x18] sm:$0xf]
    %v4278 = vld [vmem:[%s4270 + $0x1c] sm:$0xf]
    %s4279 = scalar_lea.vmem %s23, 3
    %v4280 = vld [vmem:[%s4279] sm:$0x1]
    %v4282 = vperm.slane %v4280, 0
    %v4292 = vunpack.c.l.b16 %v4271
    %v4293 = vunpack.c.l.b16 %v4272
    %v4294 = vunpack.c.l.b16 %v4273
    %v4295 = vunpack.c.l.b16 %v4274
    %v4296 = vunpack.c.l.b16 %v4275
    %v4297 = vunpack.c.l.b16 %v4276
    %v4298 = vunpack.c.l.b16 %v4277
    %v4299 = vunpack.c.l.b16 %v4278
    %v4300 = vpack.c.b16 %v4293, %v4292
    %v4301 = vpack.c.b16 %v4295, %v4294
    %v4302 = vpack.c.b16 %v4297, %v4296
    %v4303 = vpack.c.b16 %v4299, %v4298
    %v4309 = vsel %vm2789, %v4268, 0
    %v4312 = vsel %vm2789, %v4269, 0
    %4314 = vmatpush.bf16.msra.mxu0 0
    %4315 = vmatpush.bf16.msra.mxu0 0
    %4316 = vmatpush.bf16.msra.mxu0 0
    %4317 = vmatpush.bf16.msra.mxu0 0
    %4318 = vmatpush.bf16.msra.mxu0 %v4303
    %4319 = vmatpush.bf16.msra.mxu0 %v4302
    %4320 = vmatpush.bf16.msra.mxu0 %v4301
    %4321 = vmatpush.bf16.msra.mxu0 %v4300
    %4322 = vmatmul.bf16.gmra.mxu0 %v4309
    %v4323 = vpop.f32.mrf.mxu0
    %v4324 = vadd.f32 %v4282, %v4323
    %v4325 = vpop.f32.mrf.mxu0
    %v4326 = vadd.f32 %v4282, %v4325
    %4327 = vmatmul.bf16.gmra.mxu0 %v4312
    %v4328 = vpop.f32.mrf.mxu0
    %v4329 = vadd.f32 %v4282, %v4328
    %v4330 = vpop.f32.mrf.mxu0
    %4331 = vdwg.mxu0
    %4332 = vset.pattern.permute.xlu0 3
    %4333 = vperm.xlu0 %4332, %v2814
    %v4334 = vpop.permute.xlu0 %4333
    %4336 = vset.pattern.permute.xlu0 3
    %4337 = vperm.xlu0 %4336, %v2815
    %v4338 = vpop.permute.xlu0 %4337
    %4340 = vset.pattern.permute.xlu0 3
    %4341 = vperm.xlu0 %4340, %v2816
    %v4342 = vpop.permute.xlu0 %4341
    %4344 = vset.pattern.permute.xlu0 3
    %4345 = vperm.xlu0 %4344, %v2817
    %v4346 = vpop.permute.xlu0 %4345
    %4348 = vset.pattern.permute.xlu0 3
    %4349 = vperm.xlu0 %4348, %v2818
    %v4350 = vpop.permute.xlu0 %4349
    %4352 = vset.pattern.permute.xlu0 3
    %4353 = vperm.xlu0 %4352, %v2819
    %v4354 = vpop.permute.xlu0 %4353
    %v4356 = vmul.f32 %v4334, %v2398
    %v4357 = vmul.f32 %v4338, %v2399
    %v4358 = vmul.f32 %v4342, %v2400
    %v4359 = vmul.f32 %v4346, %v2401
    %v4360 = vmul.f32 %v4350, %v2402
    %v4361 = vmul.f32 %v4354, %v2403
    %4362 = vset.pattern.permute.xlu0 3
    %4363 = vperm.xlu0 %4362, %v2856
    %v4364 = vpop.permute.xlu0 %4363
    %4366 = vset.pattern.permute.xlu0 3
    %4367 = vperm.xlu0 %4366, %v2857
    %v4368 = vpop.permute.xlu0 %4367
    %4370 = vset.pattern.permute.xlu0 3
    %4371 = vperm.xlu0 %4370, %v2858
    %v4372 = vpop.permute.xlu0 %4371
    %4374 = vset.pattern.permute.xlu0 3
    %4375 = vperm.xlu0 %4374, %v2859
    %v4376 = vpop.permute.xlu0 %4375
    %4378 = vset.pattern.permute.xlu0 3
    %4379 = vperm.xlu0 %4378, %v2860
    %v4380 = vpop.permute.xlu0 %4379
    %4382 = vset.pattern.permute.xlu0 3
    %4383 = vperm.xlu0 %4382, %v2861
    %v4384 = vpop.permute.xlu0 %4383
    %v4386 = vmul.f32 %v4364, %v2416
    %v4387 = vmul.f32 %v4368, %v2417
    %v4388 = vmul.f32 %v4372, %v2418
    %v4389 = vmul.f32 %v4376, %v2419
    %v4390 = vmul.f32 %v4380, %v2420
    %v4391 = vmul.f32 %v4384, %v2421
    %v4392 = vadd.f32 %v4356, %v4386
    %v4393 = vadd.f32 %v4357, %v4387
    %v4394 = vadd.f32 %v4358, %v4388
    %v4395 = vadd.f32 %v4359, %v4389
    %v4396 = vadd.f32 %v4360, %v4390
    %v4397 = vadd.f32 %v4361, %v4391
    %v4399 = vsel %vm528, %v4392, 0
    %v4402 = vsel %vm528, %v4393, 0
    %v4405 = vsel %vm528, %v4394, 0
    %v4408 = vsel %vm528, %v4395, 0
    %v4411 = vsel %vm528, %v4396, 0
    %v4414 = vsel %vm528, %v4397, 0
    %4416 = vmatpush.msra.mxu0 0.0
    %4417 = vmatpush.msra.mxu0 0.0
    %4418 = vmatpush.msra.mxu0 0.0
    %4419 = vmatpush.msra.mxu0 0.0
    %4420 = vmatpush.msra.mxu0 0.0
    %4421 = vmatpush.msra.mxu0 0.0
    %4422 = vmatpush.msra.mxu0 0.0
    %4423 = vmatpush.msra.mxu0 0.0
    %4424 = vmatpush.msra.mxu0 0.0
    %4425 = vmatpush.msra.mxu0 0.0
    %4426 = vmatpush.msra.mxu0 0.0
    %4427 = vmatpush.msra.mxu0 0.0
    %4428 = vmatpush.msra.mxu0 0.0
    %4429 = vmatpush.msra.mxu0 %v4329
    %4430 = vmatpush.msra.mxu0 %v4326
    %4431 = vmatpush.msra.mxu0 %v4324
    %4432 = vmatmul.f32.gmra.mxu0 %v4399
    %v4433 = vpop.f32.mrf.mxu0
    %v4434 = vadd.f32 0.0, %v4433
    %4435 = vmatmul.f32.gmra.mxu0 %v4402
    %v4436 = vpop.f32.mrf.mxu0
    %v4437 = vadd.f32 0.0, %v4436
    %4438 = vmatmul.f32.gmra.mxu0 %v4405
    %v4439 = vpop.f32.mrf.mxu0
    %v4440 = vadd.f32 0.0, %v4439
    %4441 = vmatmul.f32.gmra.mxu0 %v4408
    %v4442 = vpop.f32.mrf.mxu0
    %v4443 = vadd.f32 0.0, %v4442
    %4444 = vmatmul.f32.gmra.mxu0 %v4411
    %v4445 = vpop.f32.mrf.mxu0
    %v4446 = vadd.f32 0.0, %v4445
    %4447 = vmatmul.f32.gmra.mxu0 %v4414
    %v4448 = vpop.f32.mrf.mxu0
    %v4449 = vadd.f32 0.0, %v4448
    %4450 = vdwg.mxu0
    %v4451 = vadd.f32 %v3949, %v4434
    %v4452 = vadd.f32 %v3950, %v4437
    %v4453 = vadd.f32 %v3951, %v4440
    %v4454 = vadd.f32 %v3952, %v4443
    %v4455 = vadd.f32 %v3953, %v4446
    %v4456 = vadd.f32 %v3954, %v4449
    %v4457 = vadd.f32 %v1627, %v4451
    %v4458 = vadd.f32 %v1628, %v4452
    %v4459 = vadd.f32 %v1629, %v4453
    %v4460 = vadd.f32 %v1630, %v4454
    %v4461 = vadd.f32 %v1631, %v4455
    %v4462 = vadd.f32 %v1632, %v4456
    %4463 = vst.msk [vmem:[#allocation2] sm:$0xff] %vm163, %v4457
    %4464 = vst.msk [vmem:[#allocation2 + $0x8] sm:$0xff] %vm163, %v4458
    %4465 = vst.msk [vmem:[#allocation2 + $0x10] sm:$0xff] %vm163, %v4459
    %4466 = vst.msk [vmem:[#allocation2 + $0x18] sm:$0xff] %vm163, %v4460
    %4467 = vst.msk [vmem:[#allocation2 + $0x20] sm:$0xff] %vm163, %v4461
    %4468 = vst.msk [vmem:[#allocation2 + $0x28] sm:$0xff] %vm163, %v4462
    %v4469 = vld [vmem:[#allocation2] sm:$0xff]
    %v4470 = vld [vmem:[#allocation2 + $0x8] sm:$0xff]
    %v4471 = vld [vmem:[#allocation2 + $0x10] sm:$0xff]
    %v4472 = vld [vmem:[#allocation2 + $0x18] sm:$0xff]
    %v4473 = vld [vmem:[#allocation2 + $0x20] sm:$0xff]
    %v4474 = vld [vmem:[#allocation2 + $0x28] sm:$0xff]
    %s4475 = scalar_lea.vmem %s15, 1
    %v4476 = vld [vmem:[%s4475] sm:$0x1]
    %s4477 = scalar_lea.vmem %s16, 1
    %v4478 = vld [vmem:[%s4477] sm:$0x1]
    %v4479 = vsel %vm163, %v4469, 0.0
    %4480 = vadd.xlane.f32.xlu0 %v4479
    %v4481 = vpop.xlane.xlu0 %4480
    %v4482 = vsel %vm163, %v4470, 0.0
    %4483 = vadd.xlane.f32.xlu0 %v4482
    %v4484 = vpop.xlane.xlu0 %4483
    %v4485 = vsel %vm163, %v4471, 0.0
    %4486 = vadd.xlane.f32.xlu0 %v4485
    %v4487 = vpop.xlane.xlu0 %4486
    %v4488 = vsel %vm163, %v4472, 0.0
    %4489 = vadd.xlane.f32.xlu0 %v4488
    %v4490 = vpop.xlane.xlu0 %4489
    %v4491 = vsel %vm163, %v4473, 0.0
    %4492 = vadd.xlane.f32.xlu0 %v4491
    %v4493 = vpop.xlane.xlu0 %4492
    %v4494 = vsel %vm163, %v4474, 0.0
    %4495 = vadd.xlane.f32.xlu0 %v4494
    %v4496 = vpop.xlane.xlu0 %4495
    %v4497 = vmul.f32 %v4481, %v291
    %v4498 = vmul.f32 %v4484, %v291
    %v4499 = vmul.f32 %v4487, %v291
    %v4500 = vmul.f32 %v4490, %v291
    %v4501 = vmul.f32 %v4493, %v291
    %v4502 = vmul.f32 %v4496, %v291
    %v4503 = vsub.f32 %v4469, %v4497
    %v4504 = vsub.f32 %v4470, %v4498
    %v4505 = vsub.f32 %v4471, %v4499
    %v4506 = vsub.f32 %v4472, %v4500
    %v4507 = vsub.f32 %v4473, %v4501
    %v4508 = vsub.f32 %v4474, %v4502
    %v4509 = vmul.f32 %v4503, %v4503
    %v4510 = vmul.f32 %v4504, %v4504
    %v4511 = vmul.f32 %v4505, %v4505
    %v4512 = vmul.f32 %v4506, %v4506
    %v4513 = vmul.f32 %v4507, %v4507
    %v4514 = vmul.f32 %v4508, %v4508
    %v4515 = vsel %vm163, %v4509, 0.0
    %4516 = vadd.xlane.f32.xlu0 %v4515
    %v4517 = vpop.xlane.xlu0 %4516
    %v4518 = vsel %vm163, %v4510, 0.0
    %4519 = vadd.xlane.f32.xlu0 %v4518
    %v4520 = vpop.xlane.xlu0 %4519
    %v4521 = vsel %vm163, %v4511, 0.0
    %4522 = vadd.xlane.f32.xlu0 %v4521
    %v4523 = vpop.xlane.xlu0 %4522
    %v4524 = vsel %vm163, %v4512, 0.0
    %4525 = vadd.xlane.f32.xlu0 %v4524
    %v4526 = vpop.xlane.xlu0 %4525
    %v4527 = vsel %vm163, %v4513, 0.0
    %4528 = vadd.xlane.f32.xlu0 %v4527
    %v4529 = vpop.xlane.xlu0 %4528
    %v4530 = vsel %vm163, %v4514, 0.0
    %4531 = vadd.xlane.f32.xlu0 %v4530
    %v4532 = vpop.xlane.xlu0 %4531
    %v4533 = vmul.f32 %v4517, %v291
    %v4534 = vmul.f32 %v4520, %v291
    %v4535 = vmul.f32 %v4523, %v291
    %v4536 = vmul.f32 %v4526, %v291
    %v4537 = vmul.f32 %v4529, %v291
    %v4538 = vmul.f32 %v4532, %v291
    %v4539 = vadd.f32 %v4533, 1e-06
    %v4540 = vadd.f32 %v4534, 1e-06
    %v4541 = vadd.f32 %v4535, 1e-06
    %v4542 = vadd.f32 %v4536, 1e-06
    %v4543 = vadd.f32 %v4537, 1e-06
    %v4544 = vadd.f32 %v4538, 1e-06
    %v4545 = vrsqrt.pop %v4539
    %v4546 = vmul.f32 %v4545, %v4539
    %v4547 = vmul.f32 %v4546, %v4545
    %v4548 = vmul.f32 0.5, %v4547
    %v4549 = vsub.f32 1.5, %v4548
    %v4550 = vmul.f32 %v4545, %v4549
    %vm4551 = vweird.f32 %v4539
    %vm4552 = vweird.f32 %v4545
    %vm4553 = vmor %vm4551, %vm4552
    %v4554 = vsel %vm4553, %v4545, %v4550
    %v4555 = vrsqrt.pop %v4540
    %v4556 = vmul.f32 %v4555, %v4540
    %v4557 = vmul.f32 %v4556, %v4555
    %v4558 = vmul.f32 0.5, %v4557
    %v4559 = vsub.f32 1.5, %v4558
    %v4560 = vmul.f32 %v4555, %v4559
    %vm4561 = vweird.f32 %v4540
    %vm4562 = vweird.f32 %v4555
    %vm4563 = vmor %vm4561, %vm4562
    %v4564 = vsel %vm4563, %v4555, %v4560
    %v4565 = vrsqrt.pop %v4541
    %v4566 = vmul.f32 %v4565, %v4541
    %v4567 = vmul.f32 %v4566, %v4565
    %v4568 = vmul.f32 0.5, %v4567
    %v4569 = vsub.f32 1.5, %v4568
    %v4570 = vmul.f32 %v4565, %v4569
    %vm4571 = vweird.f32 %v4541
    %vm4572 = vweird.f32 %v4565
    %vm4573 = vmor %vm4571, %vm4572
    %v4574 = vsel %vm4573, %v4565, %v4570
    %v4575 = vrsqrt.pop %v4542
    %v4576 = vmul.f32 %v4575, %v4542
    %v4577 = vmul.f32 %v4576, %v4575
    %v4578 = vmul.f32 0.5, %v4577
    %v4579 = vsub.f32 1.5, %v4578
    %v4580 = vmul.f32 %v4575, %v4579
    %vm4581 = vweird.f32 %v4542
    %vm4582 = vweird.f32 %v4575
    %vm4583 = vmor %vm4581, %vm4582
    %v4584 = vsel %vm4583, %v4575, %v4580
    %v4585 = vrsqrt.pop %v4543
    %v4586 = vmul.f32 %v4585, %v4543
    %v4587 = vmul.f32 %v4586, %v4585
    %v4588 = vmul.f32 0.5, %v4587
    %v4589 = vsub.f32 1.5, %v4588
    %v4590 = vmul.f32 %v4585, %v4589
    %vm4591 = vweird.f32 %v4543
    %vm4592 = vweird.f32 %v4585
    %vm4593 = vmor %vm4591, %vm4592
    %v4594 = vsel %vm4593, %v4585, %v4590
    %v4595 = vrsqrt.pop %v4544
    %v4596 = vmul.f32 %v4595, %v4544
    %v4597 = vmul.f32 %v4596, %v4595
    %v4598 = vmul.f32 0.5, %v4597
    %v4599 = vsub.f32 1.5, %v4598
    %v4600 = vmul.f32 %v4595, %v4599
    %vm4601 = vweird.f32 %v4544
    %vm4602 = vweird.f32 %v4595
    %vm4603 = vmor %vm4601, %vm4602
    %v4604 = vsel %vm4603, %v4595, %v4600
    %v4605 = vmul.f32 %v4503, %v4554
    %v4606 = vmul.f32 %v4504, %v4564
    %v4607 = vmul.f32 %v4505, %v4574
    %v4608 = vmul.f32 %v4506, %v4584
    %v4609 = vmul.f32 %v4507, %v4594
    %v4610 = vmul.f32 %v4508, %v4604
    %v4612 = vperm.slane %v4476, 0
    %v4614 = vmul.f32 %v4605, %v4612
    %v4615 = vmul.f32 %v4606, %v4612
    %v4616 = vmul.f32 %v4607, %v4612
    %v4617 = vmul.f32 %v4608, %v4612
    %v4618 = vmul.f32 %v4609, %v4612
    %v4619 = vmul.f32 %v4610, %v4612
    %v4621 = vperm.slane %v4478, 0
    %v4623 = vadd.f32 %v4614, %v4621
    %v4624 = vadd.f32 %v4615, %v4621
    %v4625 = vadd.f32 %v4616, %v4621
    %v4626 = vadd.f32 %v4617, %v4621
    %v4627 = vadd.f32 %v4618, %v4621
    %v4628 = vadd.f32 %v4619, %v4621
    %v4629 = vpack.c.bf16 %v4624, %v4623
    %v4630 = vpack.c.bf16 %v4626, %v4625
    %v4631 = vpack.c.bf16 %v4628, %v4627
    %v4632 = vld [vmem:[%s11] sm:$0xf]
    %v4633 = vld [vmem:[%s11 + $0x4] sm:$0xf]
    %v4634 = vld [vmem:[%s11 + $0x8] sm:$0xf]
    %v4635 = vld [vmem:[%s11 + $0xc] sm:$0xf]
    %v4636 = vld [vmem:[%s12] sm:$0x1]
    %v4638 = vperm.slane %v4636, 0
    %v4644 = vunpack.c.l.b16 %v4632
    %v4645 = vunpack.c.l.b16 %v4633
    %v4646 = vunpack.c.l.b16 %v4634
    %v4647 = vunpack.c.l.b16 %v4635
    %v4648 = vpack.c.b16 %v4645, %v4644
    %v4649 = vpack.c.b16 %v4647, %v4646
    %v4653 = vsel %vm163, %v4629, 0
    %v4656 = vsel %vm163, %v4630, 0
    %v4659 = vsel %vm163, %v4631, 0
    %4661 = vmatpush.bf16.msra.mxu0 0
    %4662 = vmatpush.bf16.msra.mxu0 0
    %4663 = vmatpush.bf16.msra.mxu0 0
    %4664 = vmatpush.bf16.msra.mxu0 0
    %4665 = vmatpush.bf16.msra.mxu0 0
    %4666 = vmatpush.bf16.msra.mxu0 0
    %4667 = vmatpush.bf16.msra.mxu0 %v4649
    %4668 = vmatpush.bf16.msra.mxu0 %v4648
    %4669 = vmatmul.bf16.gmra.mxu0 %v4653
    %v4670 = vpop.f32.mrf.mxu0
    %v4671 = vadd.f32 %v4638, %v4670
    %v4672 = vpop.f32.mrf.mxu0
    %v4673 = vadd.f32 %v4638, %v4672
    %4674 = vmatmul.bf16.gmra.mxu0 %v4656
    %v4675 = vpop.f32.mrf.mxu0
    %v4676 = vadd.f32 %v4638, %v4675
    %v4677 = vpop.f32.mrf.mxu0
    %v4678 = vadd.f32 %v4638, %v4677
    %4679 = vmatmul.bf16.gmra.mxu0 %v4659
    %v4680 = vpop.f32.mrf.mxu0
    %v4681 = vadd.f32 %v4638, %v4680
    %v4682 = vpop.f32.mrf.mxu0
    %v4683 = vadd.f32 %v4638, %v4682
    %4684 = vdwg.mxu0
    %v4685 = vpack.c.bf16 %v4673, %v4671
    %v4686 = vpack.c.bf16 %v4676, %v4676
    %4689 = vrot.lane.b32.xlu0 %v4685, 96
    %v4690 = vpop.permute.xlu0 %4689
    %4691 = vrot.lane.b32.xlu0 %v4686, 96
    %v4692 = vpop.permute.xlu0 %4691
    %v4694 = vsel %vm488, %v4685, 0
    %v4697 = vsel %vm488, %v4686, 0
    %v4700 = vsel %vm488, %v4690, 0
    %v4703 = vsel %vm488, %v4692, 0
    %4705 = vmatpush.bf16.xpose.msra.mxu0 0
    %4706 = vmatpush.bf16.xpose.msra.mxu0 0
    %4707 = vmatpush.bf16.xpose.msra.mxu0 0
    %4708 = vmatpush.bf16.xpose.msra.mxu0 0
    %4709 = vmatpush.bf16.xpose.msra.mxu0 0
    %4710 = vmatpush.bf16.xpose.msra.mxu0 0
    %4711 = vmatpush.bf16.xpose.msra.mxu0 %v4703
    %4712 = vmatpush.bf16.xpose.msra.mxu0 %v4700
    %4713 = vmatmul.bf16.gmra.mxu0 %v4694
    %v4714 = vpop.f32.mrf.mxu0
    %v4715 = vadd.f32 0.0, %v4714
    %v4716 = vpop.f32.mrf.mxu0
    %v4717 = vadd.f32 0.0, %v4716
    %4718 = vmatmul.bf16.gmra.mxu0 %v4697
    %v4719 = vpop.f32.mrf.mxu0
    %v4720 = vadd.f32 0.0, %v4719
    %v4721 = vpop.f32.mrf.mxu0
    %4722 = vdwg.mxu0
    %v4723 = vmul.f32 %v4715, 0.35355338
    %v4724 = vmul.f32 %v4717, 0.35355338
    %v4725 = vmul.f32 %v4720, 0.35355338
    %v4726 = vadd.f32 %v4723, %v523
    %v4727 = vadd.f32 %v4724, %v523
    %v4728 = vadd.f32 %v4725, %v523
    %v4729 = vsel %vm528, %v4726, -inf
    %4730 = vmax.xlane.f32.xlu0 %v4729
    %v4731 = vpop.xlane.xlu0 %4730
    %v4732 = vsel %vm528, %v4727, -inf
    %4733 = vmax.xlane.f32.xlu0 %v4732
    %v4734 = vpop.xlane.xlu0 %4733
    %v4735 = vsel %vm528, %v4728, -inf
    %4736 = vmax.xlane.f32.xlu0 %v4735
    %v4737 = vpop.xlane.xlu0 %4736
    %v4738 = vsub.f32 %v4726, %v4731
    %v4739 = vsub.f32 %v4727, %v4734
    %v4740 = vsub.f32 %v4728, %v4737
    %v4741 = vmul.f32 %v4738, 1.442695
    %v4742 = vpow.pop %v4741
    %v4743 = vmul.f32 %v4739, 1.442695
    %v4744 = vpow.pop %v4743
    %v4745 = vmul.f32 %v4740, 1.442695
    %v4746 = vpow.pop %v4745
    %v4747 = vsel %vm528, %v4742, 0.0
    %4748 = vadd.xlane.f32.xlu0 %v4747
    %v4749 = vpop.xlane.xlu0 %4748
    %v4750 = vsel %vm528, %v4744, 0.0
    %4751 = vadd.xlane.f32.xlu0 %v4750
    %v4752 = vpop.xlane.xlu0 %4751
    %v4753 = vsel %vm528, %v4746, 0.0
    %4754 = vadd.xlane.f32.xlu0 %v4753
    %v4755 = vpop.xlane.xlu0 %4754
    %v4756 = vrcp.pop %v4749
    %v4757 = vrcp.pop %v4752
    %v4758 = vrcp.pop %v4755
    %v4759 = vmul.f32 %v4742, %v4756
    %v4760 = vmul.f32 %v4744, %v4757
    %v4761 = vmul.f32 %v4746, %v4758
    %v4762 = vpack.c.bf16 %v4760, %v4759
    %v4763 = vpack.c.bf16 %v4761, %v4761
    %4764 = vrot.lane.b32.xlu0 %v4685, 64
    %v4765 = vpop.permute.xlu0 %4764
    %4766 = vrot.lane.b32.xlu0 %v4686, 64
    %v4767 = vpop.permute.xlu0 %4766
    %v4770 = vsel %vm528, %v4762, 0
    %v4773 = vsel %vm528, %v4763, 0
    %v4776 = vsel %vm575, %v4767, 0
    %4778 = vmatpush.bf16.msra.mxu0 0
    %4779 = vmatpush.bf16.msra.mxu0 0
    %4780 = vmatpush.bf16.msra.mxu0 0
    %4781 = vmatpush.bf16.msra.mxu0 0
    %4782 = vmatpush.bf16.msra.mxu0 0
    %4783 = vmatpush.bf16.msra.mxu0 0
    %4784 = vmatpush.bf16.msra.mxu0 %v4776
    %4785 = vmatpush.bf16.msra.mxu0 %v4765
    %4786 = vmatmul.bf16.gmra.mxu0 %v4770
    %v4787 = vpop.f32.mrf.mxu0
    %v4788 = vadd.f32 0.0, %v4787
    %v4789 = vpop.f32.mrf.mxu0
    %v4790 = vadd.f32 0.0, %v4789
    %4791 = vmatmul.bf16.gmra.mxu0 %v4773
    %v4792 = vpop.f32.mrf.mxu0
    %v4793 = vadd.f32 0.0, %v4792
    %v4794 = vpop.f32.mrf.mxu0
    %4795 = vdwg.mxu0
    %v4796 = vpack.c.bf16 %v4790, %v4788
    %v4797 = vpack.c.bf16 %v4793, %v4793
    %4798 = vrot.lane.b32.xlu0 %v4685, 120
    %v4799 = vpop.permute.xlu0 %4798
    %4800 = vrot.lane.b32.xlu0 %v4686, 120
    %v4801 = vpop.permute.xlu0 %4800
    %4802 = vrot.lane.b32.xlu0 %v4685, 88
    %v4803 = vpop.permute.xlu0 %4802
    %4804 = vrot.lane.b32.xlu0 %v4686, 88
    %v4805 = vpop.permute.xlu0 %4804
    %v4807 = vsel %vm488, %v4799, 0
    %v4810 = vsel %vm488, %v4801, 0
    %v4813 = vsel %vm488, %v4803, 0
    %v4816 = vsel %vm488, %v4805, 0
    %4818 = vmatpush.bf16.xpose.msra.mxu0 0
    %4819 = vmatpush.bf16.xpose.msra.mxu0 0
    %4820 = vmatpush.bf16.xpose.msra.mxu0 0
    %4821 = vmatpush.bf16.xpose.msra.mxu0 0
    %4822 = vmatpush.bf16.xpose.msra.mxu0 0
    %4823 = vmatpush.bf16.xpose.msra.mxu0 0
    %4824 = vmatpush.bf16.xpose.msra.mxu0 %v4816
    %4825 = vmatpush.bf16.xpose.msra.mxu0 %v4813
    %4826 = vmatmul.bf16.gmra.mxu0 %v4807
    %v4827 = vpop.f32.mrf.mxu0
    %v4828 = vadd.f32 0.0, %v4827
    %v4829 = vpop.f32.mrf.mxu0
    %v4830 = vadd.f32 0.0, %v4829
    %4831 = vmatmul.bf16.gmra.mxu0 %v4810
    %v4832 = vpop.f32.mrf.mxu0
    %v4833 = vadd.f32 0.0, %v4832
    %v4834 = vpop.f32.mrf.mxu0
    %4835 = vdwg.mxu0
    %v4836 = vmul.f32 %v4828, 0.35355338
    %v4837 = vmul.f32 %v4830, 0.35355338
    %v4838 = vmul.f32 %v4833, 0.35355338
    %v4839 = vadd.f32 %v4836, %v523
    %v4840 = vadd.f32 %v4837, %v523
    %v4841 = vadd.f32 %v4838, %v523
    %v4842 = vsel %vm528, %v4839, -inf
    %4843 = vmax.xlane.f32.xlu0 %v4842
    %v4844 = vpop.xlane.xlu0 %4843
    %v4845 = vsel %vm528, %v4840, -inf
    %4846 = vmax.xlane.f32.xlu0 %v4845
    %v4847 = vpop.xlane.xlu0 %4846
    %v4848 = vsel %vm528, %v4841, -inf
    %4849 = vmax.xlane.f32.xlu0 %v4848
    %v4850 = vpop.xlane.xlu0 %4849
    %v4851 = vsub.f32 %v4839, %v4844
    %v4852 = vsub.f32 %v4840, %v4847
    %v4853 = vsub.f32 %v4841, %v4850
    %v4854 = vmul.f32 %v4851, 1.442695
    %v4855 = vpow.pop %v4854
    %v4856 = vmul.f32 %v4852, 1.442695
    %v4857 = vpow.pop %v4856
    %v4858 = vmul.f32 %v4853, 1.442695
    %v4859 = vpow.pop %v4858
    %v4860 = vsel %vm528, %v4855, 0.0
    %4861 = vadd.xlane.f32.xlu0 %v4860
    %v4862 = vpop.xlane.xlu0 %4861
    %v4863 = vsel %vm528, %v4857, 0.0
    %4864 = vadd.xlane.f32.xlu0 %v4863
    %v4865 = vpop.xlane.xlu0 %4864
    %v4866 = vsel %vm528, %v4859, 0.0
    %4867 = vadd.xlane.f32.xlu0 %v4866
    %v4868 = vpop.xlane.xlu0 %4867
    %v4869 = vrcp.pop %v4862
    %v4870 = vrcp.pop %v4865
    %v4871 = vrcp.pop %v4868
    %v4872 = vmul.f32 %v4855, %v4869
    %v4873 = vmul.f32 %v4857, %v4870
    %v4874 = vmul.f32 %v4859, %v4871
    %v4875 = vpack.c.bf16 %v4873, %v4872
    %v4876 = vpack.c.bf16 %v4874, %v4874
    %4877 = vrot.lane.b32.xlu0 %v4685, 56
    %v4878 = vpop.permute.xlu0 %4877
    %4879 = vrot.lane.b32.xlu0 %v4686, 56
    %v4880 = vpop.permute.xlu0 %4879
    %v4883 = vsel %vm528, %v4875, 0
    %v4886 = vsel %vm528, %v4876, 0
    %v4889 = vsel %vm575, %v4880, 0
    %4891 = vmatpush.bf16.msra.mxu0 0
    %4892 = vmatpush.bf16.msra.mxu0 0
    %4893 = vmatpush.bf16.msra.mxu0 0
    %4894 = vmatpush.bf16.msra.mxu0 0
    %4895 = vmatpush.bf16.msra.mxu0 0
    %4896 = vmatpush.bf16.msra.mxu0 0
    %4897 = vmatpush.bf16.msra.mxu0 %v4889
    %4898 = vmatpush.bf16.msra.mxu0 %v4878
    %4899 = vmatmul.bf16.gmra.mxu0 %v4883
    %v4900 = vpop.f32.mrf.mxu0
    %v4901 = vadd.f32 0.0, %v4900
    %v4902 = vpop.f32.mrf.mxu0
    %v4903 = vadd.f32 0.0, %v4902
    %4904 = vmatmul.bf16.gmra.mxu0 %v4886
    %v4905 = vpop.f32.mrf.mxu0
    %v4906 = vadd.f32 0.0, %v4905
    %v4907 = vpop.f32.mrf.mxu0
    %4908 = vdwg.mxu0
    %v4909 = vpack.c.bf16 %v4903, %v4901
    %v4910 = vpack.c.bf16 %v4906, %v4906
    %v4912 = vsel %vm488, %v4909, 0
    %v4915 = vsel %vm488, %v4910, 0
    %4917 = vmatpush.bf16.msra.mxu0 0
    %4918 = vmatpush.bf16.msra.mxu0 0
    %4919 = vmatpush.bf16.msra.mxu0 0
    %4920 = vmatpush.bf16.msra.mxu0 0
    %4921 = vmatpush.bf16.msra.mxu0 0
    %4922 = vmatpush.bf16.msra.mxu0 0
    %4923 = vmatpush.bf16.msra.mxu0 0
    %4924 = vmatpush.bf16.msra.mxu0 %v719
    %4925 = vmatmul.bf16.gmra.mxu0 %v4912
    %v4926 = vpop.f32.mrf.mxu0
    %v4927 = vadd.f32 0.0, %v4926
    %v4928 = vpop.f32.mrf.mxu0
    %v4929 = vadd.f32 0.0, %v4928
    %4930 = vmatmul.bf16.gmra.mxu0 %v4915
    %v4931 = vpop.f32.mrf.mxu0
    %v4932 = vadd.f32 0.0, %v4931
    %v4933 = vpop.f32.mrf.mxu0
    %4934 = vdwg.mxu0
    %v4936 = vsel %vm488, %v4796, 0
    %v4939 = vsel %vm488, %v4797, 0
    %4941 = vmatpush.bf16.msra.mxu0 0
    %4942 = vmatpush.bf16.msra.mxu0 0
    %4943 = vmatpush.bf16.msra.mxu0 0
    %4944 = vmatpush.bf16.msra.mxu0 0
    %4945 = vmatpush.bf16.msra.mxu0 0
    %4946 = vmatpush.bf16.msra.mxu0 0
    %4947 = vmatpush.bf16.msra.mxu0 0
    %4948 = vmatpush.bf16.msra.mxu0 %v746
    %4949 = vmatmul.bf16.gmra.mxu0 %v4936
    %v4950 = vpop.f32.mrf.mxu0
    %v4951 = vadd.f32 %v4927, %v4950
    %v4952 = vpop.f32.mrf.mxu0
    %v4953 = vadd.f32 %v4929, %v4952
    %4954 = vmatmul.bf16.gmra.mxu0 %v4939
    %v4955 = vpop.f32.mrf.mxu0
    %v4956 = vadd.f32 %v4932, %v4955
    %v4957 = vpop.f32.mrf.mxu0
    %4958 = vdwg.mxu0
    %4959 = vrot.lane.b32.xlu0 %v4685, 112
    %v4960 = vpop.permute.xlu0 %4959
    %4961 = vrot.lane.b32.xlu0 %v4686, 112
    %v4962 = vpop.permute.xlu0 %4961
    %4963 = vrot.lane.b32.xlu0 %v4685, 80
    %v4964 = vpop.permute.xlu0 %4963
    %4965 = vrot.lane.b32.xlu0 %v4686, 80
    %v4966 = vpop.permute.xlu0 %4965
    %v4968 = vsel %vm488, %v4960, 0
    %v4971 = vsel %vm488, %v4962, 0
    %v4974 = vsel %vm488, %v4964, 0
    %v4977 = vsel %vm488, %v4966, 0
    %4979 = vmatpush.bf16.xpose.msra.mxu0 0
    %4980 = vmatpush.bf16.xpose.msra.mxu0 0
    %4981 = vmatpush.bf16.xpose.msra.mxu0 0
    %4982 = vmatpush.bf16.xpose.msra.mxu0 0
    %4983 = vmatpush.bf16.xpose.msra.mxu0 0
    %4984 = vmatpush.bf16.xpose.msra.mxu0 0
    %4985 = vmatpush.bf16.xpose.msra.mxu0 %v4977
    %4986 = vmatpush.bf16.xpose.msra.mxu0 %v4974
    %4987 = vmatmul.bf16.gmra.mxu0 %v4968
    %v4988 = vpop.f32.mrf.mxu0
    %v4989 = vadd.f32 0.0, %v4988
    %v4990 = vpop.f32.mrf.mxu0
    %v4991 = vadd.f32 0.0, %v4990
    %4992 = vmatmul.bf16.gmra.mxu0 %v4971
    %v4993 = vpop.f32.mrf.mxu0
    %v4994 = vadd.f32 0.0, %v4993
    %v4995 = vpop.f32.mrf.mxu0
    %4996 = vdwg.mxu0
    %v4997 = vmul.f32 %v4989, 0.35355338
    %v4998 = vmul.f32 %v4991, 0.35355338
    %v4999 = vmul.f32 %v4994, 0.35355338
    %v5000 = vadd.f32 %v4997, %v523
    %v5001 = vadd.f32 %v4998, %v523
    %v5002 = vadd.f32 %v4999, %v523
    %v5003 = vsel %vm528, %v5000, -inf
    %5004 = vmax.xlane.f32.xlu0 %v5003
    %v5005 = vpop.xlane.xlu0 %5004
    %v5006 = vsel %vm528, %v5001, -inf
    %5007 = vmax.xlane.f32.xlu0 %v5006
    %v5008 = vpop.xlane.xlu0 %5007
    %v5009 = vsel %vm528, %v5002, -inf
    %5010 = vmax.xlane.f32.xlu0 %v5009
    %v5011 = vpop.xlane.xlu0 %5010
    %v5012 = vsub.f32 %v5000, %v5005
    %v5013 = vsub.f32 %v5001, %v5008
    %v5014 = vsub.f32 %v5002, %v5011
    %v5015 = vmul.f32 %v5012, 1.442695
    %v5016 = vpow.pop %v5015
    %v5017 = vmul.f32 %v5013, 1.442695
    %v5018 = vpow.pop %v5017
    %v5019 = vmul.f32 %v5014, 1.442695
    %v5020 = vpow.pop %v5019
    %v5021 = vsel %vm528, %v5016, 0.0
    %5022 = vadd.xlane.f32.xlu0 %v5021
    %v5023 = vpop.xlane.xlu0 %5022
    %v5024 = vsel %vm528, %v5018, 0.0
    %5025 = vadd.xlane.f32.xlu0 %v5024
    %v5026 = vpop.xlane.xlu0 %5025
    %v5027 = vsel %vm528, %v5020, 0.0
    %5028 = vadd.xlane.f32.xlu0 %v5027
    %v5029 = vpop.xlane.xlu0 %5028
    %v5030 = vrcp.pop %v5023
    %v5031 = vrcp.pop %v5026
    %v5032 = vrcp.pop %v5029
    %v5033 = vmul.f32 %v5016, %v5030
    %v5034 = vmul.f32 %v5018, %v5031
    %v5035 = vmul.f32 %v5020, %v5032
    %v5036 = vpack.c.bf16 %v5034, %v5033
    %v5037 = vpack.c.bf16 %v5035, %v5035
    %5038 = vrot.lane.b32.xlu0 %v4685, 48
    %v5039 = vpop.permute.xlu0 %5038
    %5040 = vrot.lane.b32.xlu0 %v4686, 48
    %v5041 = vpop.permute.xlu0 %5040
    %v5044 = vsel %vm528, %v5036, 0
    %v5047 = vsel %vm528, %v5037, 0
    %v5050 = vsel %vm575, %v5041, 0
    %5052 = vmatpush.bf16.msra.mxu0 0
    %5053 = vmatpush.bf16.msra.mxu0 0
    %5054 = vmatpush.bf16.msra.mxu0 0
    %5055 = vmatpush.bf16.msra.mxu0 0
    %5056 = vmatpush.bf16.msra.mxu0 0
    %5057 = vmatpush.bf16.msra.mxu0 0
    %5058 = vmatpush.bf16.msra.mxu0 %v5050
    %5059 = vmatpush.bf16.msra.mxu0 %v5039
    %5060 = vmatmul.bf16.gmra.mxu0 %v5044
    %v5061 = vpop.f32.mrf.mxu0
    %v5062 = vadd.f32 0.0, %v5061
    %v5063 = vpop.f32.mrf.mxu0
    %v5064 = vadd.f32 0.0, %v5063
    %5065 = vmatmul.bf16.gmra.mxu0 %v5047
    %v5066 = vpop.f32.mrf.mxu0
    %v5067 = vadd.f32 0.0, %v5066
    %v5068 = vpop.f32.mrf.mxu0
    %5069 = vdwg.mxu0
    %v5070 = vpack.c.bf16 %v5064, %v5062
    %v5071 = vpack.c.bf16 %v5067, %v5067
    %v5073 = vsel %vm488, %v5070, 0
    %v5076 = vsel %vm488, %v5071, 0
    %5078 = vmatpush.bf16.msra.mxu0 0
    %5079 = vmatpush.bf16.msra.mxu0 0
    %5080 = vmatpush.bf16.msra.mxu0 0
    %5081 = vmatpush.bf16.msra.mxu0 0
    %5082 = vmatpush.bf16.msra.mxu0 0
    %5083 = vmatpush.bf16.msra.mxu0 0
    %5084 = vmatpush.bf16.msra.mxu0 0
    %5085 = vmatpush.bf16.msra.mxu0 %v886
    %5086 = vmatmul.bf16.gmra.mxu0 %v5073
    %v5087 = vpop.f32.mrf.mxu0
    %v5088 = vadd.f32 0.0, %v5087
    %v5089 = vpop.f32.mrf.mxu0
    %v5090 = vadd.f32 0.0, %v5089
    %5091 = vmatmul.bf16.gmra.mxu0 %v5076
    %v5092 = vpop.f32.mrf.mxu0
    %v5093 = vadd.f32 0.0, %v5092
    %v5094 = vpop.f32.mrf.mxu0
    %5095 = vdwg.mxu0
    %v5096 = vadd.f32 %v4951, %v5088
    %v5097 = vadd.f32 %v4953, %v5090
    %v5098 = vadd.f32 %v4956, %v5093
    %5099 = vrot.lane.b32.xlu0 %v4685, 104
    %v5100 = vpop.permute.xlu0 %5099
    %5101 = vrot.lane.b32.xlu0 %v4686, 104
    %v5102 = vpop.permute.xlu0 %5101
    %5103 = vrot.lane.b32.xlu0 %v4685, 72
    %v5104 = vpop.permute.xlu0 %5103
    %5105 = vrot.lane.b32.xlu0 %v4686, 72
    %v5106 = vpop.permute.xlu0 %5105
    %v5108 = vsel %vm488, %v5100, 0
    %v5111 = vsel %vm488, %v5102, 0
    %v5114 = vsel %vm488, %v5104, 0
    %v5117 = vsel %vm488, %v5106, 0
    %5119 = vmatpush.bf16.xpose.msra.mxu0 0
    %5120 = vmatpush.bf16.xpose.msra.mxu0 0
    %5121 = vmatpush.bf16.xpose.msra.mxu0 0
    %5122 = vmatpush.bf16.xpose.msra.mxu0 0
    %5123 = vmatpush.bf16.xpose.msra.mxu0 0
    %5124 = vmatpush.bf16.xpose.msra.mxu0 0
    %5125 = vmatpush.bf16.xpose.msra.mxu0 %v5117
    %5126 = vmatpush.bf16.xpose.msra.mxu0 %v5114
    %5127 = vmatmul.bf16.gmra.mxu0 %v5108
    %v5128 = vpop.f32.mrf.mxu0
    %v5129 = vadd.f32 0.0, %v5128
    %v5130 = vpop.f32.mrf.mxu0
    %v5131 = vadd.f32 0.0, %v5130
    %5132 = vmatmul.bf16.gmra.mxu0 %v5111
    %v5133 = vpop.f32.mrf.mxu0
    %v5134 = vadd.f32 0.0, %v5133
    %v5135 = vpop.f32.mrf.mxu0
    %5136 = vdwg.mxu0
    %v5137 = vmul.f32 %v5129, 0.35355338
    %v5138 = vmul.f32 %v5131, 0.35355338
    %v5139 = vmul.f32 %v5134, 0.35355338
    %v5140 = vadd.f32 %v5137, %v523
    %v5141 = vadd.f32 %v5138, %v523
    %v5142 = vadd.f32 %v5139, %v523
    %v5143 = vsel %vm528, %v5140, -inf
    %5144 = vmax.xlane.f32.xlu0 %v5143
    %v5145 = vpop.xlane.xlu0 %5144
    %v5146 = vsel %vm528, %v5141, -inf
    %5147 = vmax.xlane.f32.xlu0 %v5146
    %v5148 = vpop.xlane.xlu0 %5147
    %v5149 = vsel %vm528, %v5142, -inf
    %5150 = vmax.xlane.f32.xlu0 %v5149
    %v5151 = vpop.xlane.xlu0 %5150
    %v5152 = vsub.f32 %v5140, %v5145
    %v5153 = vsub.f32 %v5141, %v5148
    %v5154 = vsub.f32 %v5142, %v5151
    %v5155 = vmul.f32 %v5152, 1.442695
    %v5156 = vpow.pop %v5155
    %v5157 = vmul.f32 %v5153, 1.442695
    %v5158 = vpow.pop %v5157
    %v5159 = vmul.f32 %v5154, 1.442695
    %v5160 = vpow.pop %v5159
    %v5161 = vsel %vm528, %v5156, 0.0
    %5162 = vadd.xlane.f32.xlu0 %v5161
    %v5163 = vpop.xlane.xlu0 %5162
    %v5164 = vsel %vm528, %v5158, 0.0
    %5165 = vadd.xlane.f32.xlu0 %v5164
    %v5166 = vpop.xlane.xlu0 %5165
    %v5167 = vsel %vm528, %v5160, 0.0
    %5168 = vadd.xlane.f32.xlu0 %v5167
    %v5169 = vpop.xlane.xlu0 %5168
    %v5170 = vrcp.pop %v5163
    %v5171 = vrcp.pop %v5166
    %v5172 = vrcp.pop %v5169
    %v5173 = vmul.f32 %v5156, %v5170
    %v5174 = vmul.f32 %v5158, %v5171
    %v5175 = vmul.f32 %v5160, %v5172
    %v5176 = vpack.c.bf16 %v5174, %v5173
    %v5177 = vpack.c.bf16 %v5175, %v5175
    %5178 = vrot.lane.b32.xlu0 %v4685, 40
    %v5179 = vpop.permute.xlu0 %5178
    %5180 = vrot.lane.b32.xlu0 %v4686, 40
    %v5181 = vpop.permute.xlu0 %5180
    %v5184 = vsel %vm528, %v5176, 0
    %v5187 = vsel %vm528, %v5177, 0
    %v5190 = vsel %vm575, %v5181, 0
    %5192 = vmatpush.bf16.msra.mxu0 0
    %5193 = vmatpush.bf16.msra.mxu0 0
    %5194 = vmatpush.bf16.msra.mxu0 0
    %5195 = vmatpush.bf16.msra.mxu0 0
    %5196 = vmatpush.bf16.msra.mxu0 0
    %5197 = vmatpush.bf16.msra.mxu0 0
    %5198 = vmatpush.bf16.msra.mxu0 %v5190
    %5199 = vmatpush.bf16.msra.mxu0 %v5179
    %5200 = vmatmul.bf16.gmra.mxu0 %v5184
    %v5201 = vpop.f32.mrf.mxu0
    %v5202 = vadd.f32 0.0, %v5201
    %v5203 = vpop.f32.mrf.mxu0
    %v5204 = vadd.f32 0.0, %v5203
    %5205 = vmatmul.bf16.gmra.mxu0 %v5187
    %v5206 = vpop.f32.mrf.mxu0
    %v5207 = vadd.f32 0.0, %v5206
    %v5208 = vpop.f32.mrf.mxu0
    %5209 = vdwg.mxu0
    %v5210 = vpack.c.bf16 %v5204, %v5202
    %v5211 = vpack.c.bf16 %v5207, %v5207
    %v5213 = vsel %vm488, %v5210, 0
    %v5216 = vsel %vm488, %v5211, 0
    %5218 = vmatpush.bf16.msra.mxu0 0
    %5219 = vmatpush.bf16.msra.mxu0 0
    %5220 = vmatpush.bf16.msra.mxu0 0
    %5221 = vmatpush.bf16.msra.mxu0 0
    %5222 = vmatpush.bf16.msra.mxu0 0
    %5223 = vmatpush.bf16.msra.mxu0 0
    %5224 = vmatpush.bf16.msra.mxu0 0
    %5225 = vmatpush.bf16.msra.mxu0 %v1029
    %5226 = vmatmul.bf16.gmra.mxu0 %v5213
    %v5227 = vpop.f32.mrf.mxu0
    %v5228 = vadd.f32 0.0, %v5227
    %v5229 = vpop.f32.mrf.mxu0
    %v5230 = vadd.f32 0.0, %v5229
    %5231 = vmatmul.bf16.gmra.mxu0 %v5216
    %v5232 = vpop.f32.mrf.mxu0
    %v5233 = vadd.f32 0.0, %v5232
    %v5234 = vpop.f32.mrf.mxu0
    %5235 = vdwg.mxu0
    %v5236 = vadd.f32 %v5096, %v5228
    %v5237 = vadd.f32 %v5097, %v5230
    %v5238 = vadd.f32 %v5098, %v5233
    %v5239 = vadd.f32 %v4469, %v5236
    %v5240 = vadd.f32 %v4470, %v5237
    %v5241 = vadd.f32 %v4471, %v5238
    %v5242 = vadd.f32 %v5239, %v1056
    %v5243 = vadd.f32 %v5240, %v1056
    %v5244 = vadd.f32 %v5241, %v1056
    %5245 = vst.msk [vmem:[#allocation2] sm:$0xff] %vm163, %v5242
    %5246 = vst.msk [vmem:[#allocation2 + $0x8] sm:$0xff] %vm163, %v5243
    %5247 = vst.msk [vmem:[#allocation2 + $0x10] sm:$0xff] %vm163, %v5244
    %v5248 = vpack.c.bf16 %v4681, %v4678
    %v5249 = vpack.c.bf16 %v4683, %v4683
    %5252 = vrot.lane.b32.xlu0 %v5248, 96
    %v5253 = vpop.permute.xlu0 %5252
    %5254 = vrot.lane.b32.xlu0 %v5249, 96
    %v5255 = vpop.permute.xlu0 %5254
    %v5257 = vsel %vm488, %v5248, 0
    %v5260 = vsel %vm488, %v5249, 0
    %v5263 = vsel %vm488, %v5253, 0
    %v5266 = vsel %vm488, %v5255, 0
    %5268 = vmatpush.bf16.xpose.msra.mxu0 0
    %5269 = vmatpush.bf16.xpose.msra.mxu0 0
    %5270 = vmatpush.bf16.xpose.msra.mxu0 0
    %5271 = vmatpush.bf16.xpose.msra.mxu0 0
    %5272 = vmatpush.bf16.xpose.msra.mxu0 0
    %5273 = vmatpush.bf16.xpose.msra.mxu0 0
    %5274 = vmatpush.bf16.xpose.msra.mxu0 %v5266
    %5275 = vmatpush.bf16.xpose.msra.mxu0 %v5263
    %5276 = vmatmul.bf16.gmra.mxu0 %v5257
    %v5277 = vpop.f32.mrf.mxu0
    %v5278 = vadd.f32 0.0, %v5277
    %v5279 = vpop.f32.mrf.mxu0
    %v5280 = vadd.f32 0.0, %v5279
    %5281 = vmatmul.bf16.gmra.mxu0 %v5260
    %v5282 = vpop.f32.mrf.mxu0
    %v5283 = vadd.f32 0.0, %v5282
    %v5284 = vpop.f32.mrf.mxu0
    %5285 = vdwg.mxu0
    %v5286 = vmul.f32 %v5278, 0.35355338
    %v5287 = vmul.f32 %v5280, 0.35355338
    %v5288 = vmul.f32 %v5283, 0.35355338
    %v5289 = vadd.f32 %v5286, %v523
    %v5290 = vadd.f32 %v5287, %v523
    %v5291 = vadd.f32 %v5288, %v523
    %v5292 = vsel %vm528, %v5289, -inf
    %5293 = vmax.xlane.f32.xlu0 %v5292
    %v5294 = vpop.xlane.xlu0 %5293
    %v5295 = vsel %vm528, %v5290, -inf
    %5296 = vmax.xlane.f32.xlu0 %v5295
    %v5297 = vpop.xlane.xlu0 %5296
    %v5298 = vsel %vm528, %v5291, -inf
    %5299 = vmax.xlane.f32.xlu0 %v5298
    %v5300 = vpop.xlane.xlu0 %5299
    %v5301 = vsub.f32 %v5289, %v5294
    %v5302 = vsub.f32 %v5290, %v5297
    %v5303 = vsub.f32 %v5291, %v5300
    %v5304 = vmul.f32 %v5301, 1.442695
    %v5305 = vpow.pop %v5304
    %v5306 = vmul.f32 %v5302, 1.442695
    %v5307 = vpow.pop %v5306
    %v5308 = vmul.f32 %v5303, 1.442695
    %v5309 = vpow.pop %v5308
    %v5310 = vsel %vm528, %v5305, 0.0
    %5311 = vadd.xlane.f32.xlu0 %v5310
    %v5312 = vpop.xlane.xlu0 %5311
    %v5313 = vsel %vm528, %v5307, 0.0
    %5314 = vadd.xlane.f32.xlu0 %v5313
    %v5315 = vpop.xlane.xlu0 %5314
    %v5316 = vsel %vm528, %v5309, 0.0
    %5317 = vadd.xlane.f32.xlu0 %v5316
    %v5318 = vpop.xlane.xlu0 %5317
    %v5319 = vrcp.pop %v5312
    %v5320 = vrcp.pop %v5315
    %v5321 = vrcp.pop %v5318
    %v5322 = vmul.f32 %v5305, %v5319
    %v5323 = vmul.f32 %v5307, %v5320
    %v5324 = vmul.f32 %v5309, %v5321
    %v5325 = vpack.c.bf16 %v5323, %v5322
    %v5326 = vpack.c.bf16 %v5324, %v5324
    %5327 = vrot.lane.b32.xlu0 %v5248, 64
    %v5328 = vpop.permute.xlu0 %5327
    %5329 = vrot.lane.b32.xlu0 %v5249, 64
    %v5330 = vpop.permute.xlu0 %5329
    %v5333 = vsel %vm528, %v5325, 0
    %v5336 = vsel %vm528, %v5326, 0
    %v5339 = vsel %vm575, %v5330, 0
    %5341 = vmatpush.bf16.msra.mxu0 0
    %5342 = vmatpush.bf16.msra.mxu0 0
    %5343 = vmatpush.bf16.msra.mxu0 0
    %5344 = vmatpush.bf16.msra.mxu0 0
    %5345 = vmatpush.bf16.msra.mxu0 0
    %5346 = vmatpush.bf16.msra.mxu0 0
    %5347 = vmatpush.bf16.msra.mxu0 %v5339
    %5348 = vmatpush.bf16.msra.mxu0 %v5328
    %5349 = vmatmul.bf16.gmra.mxu0 %v5333
    %v5350 = vpop.f32.mrf.mxu0
    %v5351 = vadd.f32 0.0, %v5350
    %v5352 = vpop.f32.mrf.mxu0
    %v5353 = vadd.f32 0.0, %v5352
    %5354 = vmatmul.bf16.gmra.mxu0 %v5336
    %v5355 = vpop.f32.mrf.mxu0
    %v5356 = vadd.f32 0.0, %v5355
    %v5357 = vpop.f32.mrf.mxu0
    %5358 = vdwg.mxu0
    %v5359 = vpack.c.bf16 %v5353, %v5351
    %v5360 = vpack.c.bf16 %v5356, %v5356
    %5361 = vrot.lane.b32.xlu0 %v5248, 120
    %v5362 = vpop.permute.xlu0 %5361
    %5363 = vrot.lane.b32.xlu0 %v5249, 120
    %v5364 = vpop.permute.xlu0 %5363
    %5365 = vrot.lane.b32.xlu0 %v5248, 88
    %v5366 = vpop.permute.xlu0 %5365
    %5367 = vrot.lane.b32.xlu0 %v5249, 88
    %v5368 = vpop.permute.xlu0 %5367
    %v5370 = vsel %vm488, %v5362, 0
    %v5373 = vsel %vm488, %v5364, 0
    %v5376 = vsel %vm488, %v5366, 0
    %v5379 = vsel %vm488, %v5368, 0
    %5381 = vmatpush.bf16.xpose.msra.mxu0 0
    %5382 = vmatpush.bf16.xpose.msra.mxu0 0
    %5383 = vmatpush.bf16.xpose.msra.mxu0 0
    %5384 = vmatpush.bf16.xpose.msra.mxu0 0
    %5385 = vmatpush.bf16.xpose.msra.mxu0 0
    %5386 = vmatpush.bf16.xpose.msra.mxu0 0
    %5387 = vmatpush.bf16.xpose.msra.mxu0 %v5379
    %5388 = vmatpush.bf16.xpose.msra.mxu0 %v5376
    %5389 = vmatmul.bf16.gmra.mxu0 %v5370
    %v5390 = vpop.f32.mrf.mxu0
    %v5391 = vadd.f32 0.0, %v5390
    %v5392 = vpop.f32.mrf.mxu0
    %v5393 = vadd.f32 0.0, %v5392
    %5394 = vmatmul.bf16.gmra.mxu0 %v5373
    %v5395 = vpop.f32.mrf.mxu0
    %v5396 = vadd.f32 0.0, %v5395
    %v5397 = vpop.f32.mrf.mxu0
    %5398 = vdwg.mxu0
    %v5399 = vmul.f32 %v5391, 0.35355338
    %v5400 = vmul.f32 %v5393, 0.35355338
    %v5401 = vmul.f32 %v5396, 0.35355338
    %v5402 = vadd.f32 %v5399, %v523
    %v5403 = vadd.f32 %v5400, %v523
    %v5404 = vadd.f32 %v5401, %v523
    %v5405 = vsel %vm528, %v5402, -inf
    %5406 = vmax.xlane.f32.xlu0 %v5405
    %v5407 = vpop.xlane.xlu0 %5406
    %v5408 = vsel %vm528, %v5403, -inf
    %5409 = vmax.xlane.f32.xlu0 %v5408
    %v5410 = vpop.xlane.xlu0 %5409
    %v5411 = vsel %vm528, %v5404, -inf
    %5412 = vmax.xlane.f32.xlu0 %v5411
    %v5413 = vpop.xlane.xlu0 %5412
    %v5414 = vsub.f32 %v5402, %v5407
    %v5415 = vsub.f32 %v5403, %v5410
    %v5416 = vsub.f32 %v5404, %v5413
    %v5417 = vmul.f32 %v5414, 1.442695
    %v5418 = vpow.pop %v5417
    %v5419 = vmul.f32 %v5415, 1.442695
    %v5420 = vpow.pop %v5419
    %v5421 = vmul.f32 %v5416, 1.442695
    %v5422 = vpow.pop %v5421
    %v5423 = vsel %vm528, %v5418, 0.0
    %5424 = vadd.xlane.f32.xlu0 %v5423
    %v5425 = vpop.xlane.xlu0 %5424
    %v5426 = vsel %vm528, %v5420, 0.0
    %5427 = vadd.xlane.f32.xlu0 %v5426
    %v5428 = vpop.xlane.xlu0 %5427
    %v5429 = vsel %vm528, %v5422, 0.0
    %5430 = vadd.xlane.f32.xlu0 %v5429
    %v5431 = vpop.xlane.xlu0 %5430
    %v5432 = vrcp.pop %v5425
    %v5433 = vrcp.pop %v5428
    %v5434 = vrcp.pop %v5431
    %v5435 = vmul.f32 %v5418, %v5432
    %v5436 = vmul.f32 %v5420, %v5433
    %v5437 = vmul.f32 %v5422, %v5434
    %v5438 = vpack.c.bf16 %v5436, %v5435
    %v5439 = vpack.c.bf16 %v5437, %v5437
    %5440 = vrot.lane.b32.xlu0 %v5248, 56
    %v5441 = vpop.permute.xlu0 %5440
    %5442 = vrot.lane.b32.xlu0 %v5249, 56
    %v5443 = vpop.permute.xlu0 %5442
    %v5446 = vsel %vm528, %v5438, 0
    %v5449 = vsel %vm528, %v5439, 0
    %v5452 = vsel %vm575, %v5443, 0
    %5454 = vmatpush.bf16.msra.mxu0 0
    %5455 = vmatpush.bf16.msra.mxu0 0
    %5456 = vmatpush.bf16.msra.mxu0 0
    %5457 = vmatpush.bf16.msra.mxu0 0
    %5458 = vmatpush.bf16.msra.mxu0 0
    %5459 = vmatpush.bf16.msra.mxu0 0
    %5460 = vmatpush.bf16.msra.mxu0 %v5452
    %5461 = vmatpush.bf16.msra.mxu0 %v5441
    %5462 = vmatmul.bf16.gmra.mxu0 %v5446
    %v5463 = vpop.f32.mrf.mxu0
    %v5464 = vadd.f32 0.0, %v5463
    %v5465 = vpop.f32.mrf.mxu0
    %v5466 = vadd.f32 0.0, %v5465
    %5467 = vmatmul.bf16.gmra.mxu0 %v5449
    %v5468 = vpop.f32.mrf.mxu0
    %v5469 = vadd.f32 0.0, %v5468
    %v5470 = vpop.f32.mrf.mxu0
    %5471 = vdwg.mxu0
    %v5472 = vpack.c.bf16 %v5466, %v5464
    %v5473 = vpack.c.bf16 %v5469, %v5469
    %v5475 = vsel %vm488, %v5472, 0
    %v5478 = vsel %vm488, %v5473, 0
    %5480 = vmatpush.bf16.msra.mxu0 0
    %5481 = vmatpush.bf16.msra.mxu0 0
    %5482 = vmatpush.bf16.msra.mxu0 0
    %5483 = vmatpush.bf16.msra.mxu0 0
    %5484 = vmatpush.bf16.msra.mxu0 0
    %5485 = vmatpush.bf16.msra.mxu0 0
    %5486 = vmatpush.bf16.msra.mxu0 0
    %5487 = vmatpush.bf16.msra.mxu0 %v719
    %5488 = vmatmul.bf16.gmra.mxu0 %v5475
    %v5489 = vpop.f32.mrf.mxu0
    %v5490 = vadd.f32 0.0, %v5489
    %v5491 = vpop.f32.mrf.mxu0
    %v5492 = vadd.f32 0.0, %v5491
    %5493 = vmatmul.bf16.gmra.mxu0 %v5478
    %v5494 = vpop.f32.mrf.mxu0
    %v5495 = vadd.f32 0.0, %v5494
    %v5496 = vpop.f32.mrf.mxu0
    %5497 = vdwg.mxu0
    %v5499 = vsel %vm488, %v5359, 0
    %v5502 = vsel %vm488, %v5360, 0
    %5504 = vmatpush.bf16.msra.mxu0 0
    %5505 = vmatpush.bf16.msra.mxu0 0
    %5506 = vmatpush.bf16.msra.mxu0 0
    %5507 = vmatpush.bf16.msra.mxu0 0
    %5508 = vmatpush.bf16.msra.mxu0 0
    %5509 = vmatpush.bf16.msra.mxu0 0
    %5510 = vmatpush.bf16.msra.mxu0 0
    %5511 = vmatpush.bf16.msra.mxu0 %v746
    %5512 = vmatmul.bf16.gmra.mxu0 %v5499
    %v5513 = vpop.f32.mrf.mxu0
    %v5514 = vadd.f32 %v5490, %v5513
    %v5515 = vpop.f32.mrf.mxu0
    %v5516 = vadd.f32 %v5492, %v5515
    %5517 = vmatmul.bf16.gmra.mxu0 %v5502
    %v5518 = vpop.f32.mrf.mxu0
    %v5519 = vadd.f32 %v5495, %v5518
    %v5520 = vpop.f32.mrf.mxu0
    %5521 = vdwg.mxu0
    %5522 = vrot.lane.b32.xlu0 %v5248, 112
    %v5523 = vpop.permute.xlu0 %5522
    %5524 = vrot.lane.b32.xlu0 %v5249, 112
    %v5525 = vpop.permute.xlu0 %5524
    %5526 = vrot.lane.b32.xlu0 %v5248, 80
    %v5527 = vpop.permute.xlu0 %5526
    %5528 = vrot.lane.b32.xlu0 %v5249, 80
    %v5529 = vpop.permute.xlu0 %5528
    %v5531 = vsel %vm488, %v5523, 0
    %v5534 = vsel %vm488, %v5525, 0
    %v5537 = vsel %vm488, %v5527, 0
    %v5540 = vsel %vm488, %v5529, 0
    %5542 = vmatpush.bf16.xpose.msra.mxu0 0
    %5543 = vmatpush.bf16.xpose.msra.mxu0 0
    %5544 = vmatpush.bf16.xpose.msra.mxu0 0
    %5545 = vmatpush.bf16.xpose.msra.mxu0 0
    %5546 = vmatpush.bf16.xpose.msra.mxu0 0
    %5547 = vmatpush.bf16.xpose.msra.mxu0 0
    %5548 = vmatpush.bf16.xpose.msra.mxu0 %v5540
    %5549 = vmatpush.bf16.xpose.msra.mxu0 %v5537
    %5550 = vmatmul.bf16.gmra.mxu0 %v5531
    %v5551 = vpop.f32.mrf.mxu0
    %v5552 = vadd.f32 0.0, %v5551
    %v5553 = vpop.f32.mrf.mxu0
    %v5554 = vadd.f32 0.0, %v5553
    %5555 = vmatmul.bf16.gmra.mxu0 %v5534
    %v5556 = vpop.f32.mrf.mxu0
    %v5557 = vadd.f32 0.0, %v5556
    %v5558 = vpop.f32.mrf.mxu0
    %5559 = vdwg.mxu0
    %v5560 = vmul.f32 %v5552, 0.35355338
    %v5561 = vmul.f32 %v5554, 0.35355338
    %v5562 = vmul.f32 %v5557, 0.35355338
    %v5563 = vadd.f32 %v5560, %v523
    %v5564 = vadd.f32 %v5561, %v523
    %v5565 = vadd.f32 %v5562, %v523
    %v5566 = vsel %vm528, %v5563, -inf
    %5567 = vmax.xlane.f32.xlu0 %v5566
    %v5568 = vpop.xlane.xlu0 %5567
    %v5569 = vsel %vm528, %v5564, -inf
    %5570 = vmax.xlane.f32.xlu0 %v5569
    %v5571 = vpop.xlane.xlu0 %5570
    %v5572 = vsel %vm528, %v5565, -inf
    %5573 = vmax.xlane.f32.xlu0 %v5572
    %v5574 = vpop.xlane.xlu0 %5573
    %v5575 = vsub.f32 %v5563, %v5568
    %v5576 = vsub.f32 %v5564, %v5571
    %v5577 = vsub.f32 %v5565, %v5574
    %v5578 = vmul.f32 %v5575, 1.442695
    %v5579 = vpow.pop %v5578
    %v5580 = vmul.f32 %v5576, 1.442695
    %v5581 = vpow.pop %v5580
    %v5582 = vmul.f32 %v5577, 1.442695
    %v5583 = vpow.pop %v5582
    %v5584 = vsel %vm528, %v5579, 0.0
    %5585 = vadd.xlane.f32.xlu0 %v5584
    %v5586 = vpop.xlane.xlu0 %5585
    %v5587 = vsel %vm528, %v5581, 0.0
    %5588 = vadd.xlane.f32.xlu0 %v5587
    %v5589 = vpop.xlane.xlu0 %5588
    %v5590 = vsel %vm528, %v5583, 0.0
    %5591 = vadd.xlane.f32.xlu0 %v5590
    %v5592 = vpop.xlane.xlu0 %5591
    %v5593 = vrcp.pop %v5586
    %v5594 = vrcp.pop %v5589
    %v5595 = vrcp.pop %v5592
    %v5596 = vmul.f32 %v5579, %v5593
    %v5597 = vmul.f32 %v5581, %v5594
    %v5598 = vmul.f32 %v5583, %v5595
    %v5599 = vpack.c.bf16 %v5597, %v5596
    %v5600 = vpack.c.bf16 %v5598, %v5598
    %5601 = vrot.lane.b32.xlu0 %v5248, 48
    %v5602 = vpop.permute.xlu0 %5601
    %5603 = vrot.lane.b32.xlu0 %v5249, 48
    %v5604 = vpop.permute.xlu0 %5603
    %v5607 = vsel %vm528, %v5599, 0
    %v5610 = vsel %vm528, %v5600, 0
    %v5613 = vsel %vm575, %v5604, 0
    %5615 = vmatpush.bf16.msra.mxu0 0
    %5616 = vmatpush.bf16.msra.mxu0 0
    %5617 = vmatpush.bf16.msra.mxu0 0
    %5618 = vmatpush.bf16.msra.mxu0 0
    %5619 = vmatpush.bf16.msra.mxu0 0
    %5620 = vmatpush.bf16.msra.mxu0 0
    %5621 = vmatpush.bf16.msra.mxu0 %v5613
    %5622 = vmatpush.bf16.msra.mxu0 %v5602
    %5623 = vmatmul.bf16.gmra.mxu0 %v5607
    %v5624 = vpop.f32.mrf.mxu0
    %v5625 = vadd.f32 0.0, %v5624
    %v5626 = vpop.f32.mrf.mxu0
    %v5627 = vadd.f32 0.0, %v5626
    %5628 = vmatmul.bf16.gmra.mxu0 %v5610
    %v5629 = vpop.f32.mrf.mxu0
    %v5630 = vadd.f32 0.0, %v5629
    %v5631 = vpop.f32.mrf.mxu0
    %5632 = vdwg.mxu0
    %v5633 = vpack.c.bf16 %v5627, %v5625
    %v5634 = vpack.c.bf16 %v5630, %v5630
    %v5636 = vsel %vm488, %v5633, 0
    %v5639 = vsel %vm488, %v5634, 0
    %5641 = vmatpush.bf16.msra.mxu0 0
    %5642 = vmatpush.bf16.msra.mxu0 0
    %5643 = vmatpush.bf16.msra.mxu0 0
    %5644 = vmatpush.bf16.msra.mxu0 0
    %5645 = vmatpush.bf16.msra.mxu0 0
    %5646 = vmatpush.bf16.msra.mxu0 0
    %5647 = vmatpush.bf16.msra.mxu0 0
    %5648 = vmatpush.bf16.msra.mxu0 %v886
    %5649 = vmatmul.bf16.gmra.mxu0 %v5636
    %v5650 = vpop.f32.mrf.mxu0
    %v5651 = vadd.f32 0.0, %v5650
    %v5652 = vpop.f32.mrf.mxu0
    %v5653 = vadd.f32 0.0, %v5652
    %5654 = vmatmul.bf16.gmra.mxu0 %v5639
    %v5655 = vpop.f32.mrf.mxu0
    %v5656 = vadd.f32 0.0, %v5655
    %v5657 = vpop.f32.mrf.mxu0
    %5658 = vdwg.mxu0
    %v5659 = vadd.f32 %v5514, %v5651
    %v5660 = vadd.f32 %v5516, %v5653
    %v5661 = vadd.f32 %v5519, %v5656
    %5662 = vrot.lane.b32.xlu0 %v5248, 104
    %v5663 = vpop.permute.xlu0 %5662
    %5664 = vrot.lane.b32.xlu0 %v5249, 104
    %v5665 = vpop.permute.xlu0 %5664
    %5666 = vrot.lane.b32.xlu0 %v5248, 72
    %v5667 = vpop.permute.xlu0 %5666
    %5668 = vrot.lane.b32.xlu0 %v5249, 72
    %v5669 = vpop.permute.xlu0 %5668
    %v5671 = vsel %vm488, %v5663, 0
    %v5674 = vsel %vm488, %v5665, 0
    %v5677 = vsel %vm488, %v5667, 0
    %v5680 = vsel %vm488, %v5669, 0
    %5682 = vmatpush.bf16.xpose.msra.mxu0 0
    %5683 = vmatpush.bf16.xpose.msra.mxu0 0
    %5684 = vmatpush.bf16.xpose.msra.mxu0 0
    %5685 = vmatpush.bf16.xpose.msra.mxu0 0
    %5686 = vmatpush.bf16.xpose.msra.mxu0 0
    %5687 = vmatpush.bf16.xpose.msra.mxu0 0
    %5688 = vmatpush.bf16.xpose.msra.mxu0 %v5680
    %5689 = vmatpush.bf16.xpose.msra.mxu0 %v5677
    %5690 = vmatmul.bf16.gmra.mxu0 %v5671
    %v5691 = vpop.f32.mrf.mxu0
    %v5692 = vadd.f32 0.0, %v5691
    %v5693 = vpop.f32.mrf.mxu0
    %v5694 = vadd.f32 0.0, %v5693
    %5695 = vmatmul.bf16.gmra.mxu0 %v5674
    %v5696 = vpop.f32.mrf.mxu0
    %v5697 = vadd.f32 0.0, %v5696
    %v5698 = vpop.f32.mrf.mxu0
    %5699 = vdwg.mxu0
    %v5700 = vmul.f32 %v5692, 0.35355338
    %v5701 = vmul.f32 %v5694, 0.35355338
    %v5702 = vmul.f32 %v5697, 0.35355338
    %v5703 = vadd.f32 %v5700, %v523
    %v5704 = vadd.f32 %v5701, %v523
    %v5705 = vadd.f32 %v5702, %v523
    %v5706 = vsel %vm528, %v5703, -inf
    %5707 = vmax.xlane.f32.xlu0 %v5706
    %v5708 = vpop.xlane.xlu0 %5707
    %v5709 = vsel %vm528, %v5704, -inf
    %5710 = vmax.xlane.f32.xlu0 %v5709
    %v5711 = vpop.xlane.xlu0 %5710
    %v5712 = vsel %vm528, %v5705, -inf
    %5713 = vmax.xlane.f32.xlu0 %v5712
    %v5714 = vpop.xlane.xlu0 %5713
    %v5715 = vsub.f32 %v5703, %v5708
    %v5716 = vsub.f32 %v5704, %v5711
    %v5717 = vsub.f32 %v5705, %v5714
    %v5718 = vmul.f32 %v5715, 1.442695
    %v5719 = vpow.pop %v5718
    %v5720 = vmul.f32 %v5716, 1.442695
    %v5721 = vpow.pop %v5720
    %v5722 = vmul.f32 %v5717, 1.442695
    %v5723 = vpow.pop %v5722
    %v5724 = vsel %vm528, %v5719, 0.0
    %5725 = vadd.xlane.f32.xlu0 %v5724
    %v5726 = vpop.xlane.xlu0 %5725
    %v5727 = vsel %vm528, %v5721, 0.0
    %5728 = vadd.xlane.f32.xlu0 %v5727
    %v5729 = vpop.xlane.xlu0 %5728
    %v5730 = vsel %vm528, %v5723, 0.0
    %5731 = vadd.xlane.f32.xlu0 %v5730
    %v5732 = vpop.xlane.xlu0 %5731
    %v5733 = vrcp.pop %v5726
    %v5734 = vrcp.pop %v5729
    %v5735 = vrcp.pop %v5732
    %v5736 = vmul.f32 %v5719, %v5733
    %v5737 = vmul.f32 %v5721, %v5734
    %v5738 = vmul.f32 %v5723, %v5735
    %v5739 = vpack.c.bf16 %v5737, %v5736
    %v5740 = vpack.c.bf16 %v5738, %v5738
    %5741 = vrot.lane.b32.xlu0 %v5248, 40
    %v5742 = vpop.permute.xlu0 %5741
    %5743 = vrot.lane.b32.xlu0 %v5249, 40
    %v5744 = vpop.permute.xlu0 %5743
    %v5747 = vsel %vm528, %v5739, 0
    %v5750 = vsel %vm528, %v5740, 0
    %v5753 = vsel %vm575, %v5744, 0
    %5755 = vmatpush.bf16.msra.mxu0 0
    %5756 = vmatpush.bf16.msra.mxu0 0
    %5757 = vmatpush.bf16.msra.mxu0 0
    %5758 = vmatpush.bf16.msra.mxu0 0
    %5759 = vmatpush.bf16.msra.mxu0 0
    %5760 = vmatpush.bf16.msra.mxu0 0
    %5761 = vmatpush.bf16.msra.mxu0 %v5753
    %5762 = vmatpush.bf16.msra.mxu0 %v5742
    %5763 = vmatmul.bf16.gmra.mxu0 %v5747
    %v5764 = vpop.f32.mrf.mxu0
    %v5765 = vadd.f32 0.0, %v5764
    %v5766 = vpop.f32.mrf.mxu0
    %v5767 = vadd.f32 0.0, %v5766
    %5768 = vmatmul.bf16.gmra.mxu0 %v5750
    %v5769 = vpop.f32.mrf.mxu0
    %v5770 = vadd.f32 0.0, %v5769
    %v5771 = vpop.f32.mrf.mxu0
    %5772 = vdwg.mxu0
    %v5773 = vpack.c.bf16 %v5767, %v5765
    %v5774 = vpack.c.bf16 %v5770, %v5770
    %v5776 = vsel %vm488, %v5773, 0
    %v5779 = vsel %vm488, %v5774, 0
    %5781 = vmatpush.bf16.msra.mxu0 0
    %5782 = vmatpush.bf16.msra.mxu0 0
    %5783 = vmatpush.bf16.msra.mxu0 0
    %5784 = vmatpush.bf16.msra.mxu0 0
    %5785 = vmatpush.bf16.msra.mxu0 0
    %5786 = vmatpush.bf16.msra.mxu0 0
    %5787 = vmatpush.bf16.msra.mxu0 0
    %5788 = vmatpush.bf16.msra.mxu0 %v1029
    %5789 = vmatmul.bf16.gmra.mxu0 %v5776
    %v5790 = vpop.f32.mrf.mxu0
    %v5791 = vadd.f32 0.0, %v5790
    %v5792 = vpop.f32.mrf.mxu0
    %v5793 = vadd.f32 0.0, %v5792
    %5794 = vmatmul.bf16.gmra.mxu0 %v5779
    %v5795 = vpop.f32.mrf.mxu0
    %v5796 = vadd.f32 0.0, %v5795
    %v5797 = vpop.f32.mrf.mxu0
    %5798 = vdwg.mxu0
    %v5799 = vadd.f32 %v5659, %v5791
    %v5800 = vadd.f32 %v5660, %v5793
    %v5801 = vadd.f32 %v5661, %v5796
    %v5802 = vadd.f32 %v4472, %v5799
    %v5803 = vadd.f32 %v4473, %v5800
    %v5804 = vadd.f32 %v4474, %v5801
    %v5805 = vadd.f32 %v5802, %v1056
    %v5806 = vadd.f32 %v5803, %v1056
    %v5807 = vadd.f32 %v5804, %v1056
    %5808 = vst.msk [vmem:[#allocation2 + $0x18] sm:$0xff] %vm163, %v5805
    %5809 = vst.msk [vmem:[#allocation2 + $0x20] sm:$0xff] %vm163, %v5806
    %5810 = vst.msk [vmem:[#allocation2 + $0x28] sm:$0xff] %vm163, %v5807
    %v5811 = vld [vmem:[#allocation2] sm:$0xff]
    %v5812 = vld [vmem:[#allocation2 + $0x8] sm:$0xff]
    %v5813 = vld [vmem:[#allocation2 + $0x10] sm:$0xff]
    %v5814 = vld [vmem:[#allocation2 + $0x18] sm:$0xff]
    %v5815 = vld [vmem:[#allocation2 + $0x20] sm:$0xff]
    %v5816 = vld [vmem:[#allocation2 + $0x28] sm:$0xff]
    %s5817 = scalar_lea.vmem %s17, 1
    %v5818 = vld [vmem:[%s5817] sm:$0x1]
    %s5819 = scalar_lea.vmem %s18, 1
    %v5820 = vld [vmem:[%s5819] sm:$0x1]
    %v5821 = vsel %vm163, %v5811, 0.0
    %5822 = vadd.xlane.f32.xlu0 %v5821
    %v5823 = vpop.xlane.xlu0 %5822
    %v5824 = vsel %vm163, %v5812, 0.0
    %5825 = vadd.xlane.f32.xlu0 %v5824
    %v5826 = vpop.xlane.xlu0 %5825
    %v5827 = vsel %vm163, %v5813, 0.0
    %5828 = vadd.xlane.f32.xlu0 %v5827
    %v5829 = vpop.xlane.xlu0 %5828
    %v5830 = vsel %vm163, %v5814, 0.0
    %5831 = vadd.xlane.f32.xlu0 %v5830
    %v5832 = vpop.xlane.xlu0 %5831
    %v5833 = vsel %vm163, %v5815, 0.0
    %5834 = vadd.xlane.f32.xlu0 %v5833
    %v5835 = vpop.xlane.xlu0 %5834
    %v5836 = vsel %vm163, %v5816, 0.0
    %5837 = vadd.xlane.f32.xlu0 %v5836
    %v5838 = vpop.xlane.xlu0 %5837
    %v5839 = vmul.f32 %v5823, %v291
    %v5840 = vmul.f32 %v5826, %v291
    %v5841 = vmul.f32 %v5829, %v291
    %v5842 = vmul.f32 %v5832, %v291
    %v5843 = vmul.f32 %v5835, %v291
    %v5844 = vmul.f32 %v5838, %v291
    %v5845 = vsub.f32 %v5811, %v5839
    %v5846 = vsub.f32 %v5812, %v5840
    %v5847 = vsub.f32 %v5813, %v5841
    %v5848 = vsub.f32 %v5814, %v5842
    %v5849 = vsub.f32 %v5815, %v5843
    %v5850 = vsub.f32 %v5816, %v5844
    %v5851 = vmul.f32 %v5845, %v5845
    %v5852 = vmul.f32 %v5846, %v5846
    %v5853 = vmul.f32 %v5847, %v5847
    %v5854 = vmul.f32 %v5848, %v5848
    %v5855 = vmul.f32 %v5849, %v5849
    %v5856 = vmul.f32 %v5850, %v5850
    %v5857 = vsel %vm163, %v5851, 0.0
    %5858 = vadd.xlane.f32.xlu0 %v5857
    %v5859 = vpop.xlane.xlu0 %5858
    %v5860 = vsel %vm163, %v5852, 0.0
    %5861 = vadd.xlane.f32.xlu0 %v5860
    %v5862 = vpop.xlane.xlu0 %5861
    %v5863 = vsel %vm163, %v5853, 0.0
    %5864 = vadd.xlane.f32.xlu0 %v5863
    %v5865 = vpop.xlane.xlu0 %5864
    %v5866 = vsel %vm163, %v5854, 0.0
    %5867 = vadd.xlane.f32.xlu0 %v5866
    %v5868 = vpop.xlane.xlu0 %5867
    %v5869 = vsel %vm163, %v5855, 0.0
    %5870 = vadd.xlane.f32.xlu0 %v5869
    %v5871 = vpop.xlane.xlu0 %5870
    %v5872 = vsel %vm163, %v5856, 0.0
    %5873 = vadd.xlane.f32.xlu0 %v5872
    %v5874 = vpop.xlane.xlu0 %5873
    %v5875 = vmul.f32 %v5859, %v291
    %v5876 = vmul.f32 %v5862, %v291
    %v5877 = vmul.f32 %v5865, %v291
    %v5878 = vmul.f32 %v5868, %v291
    %v5879 = vmul.f32 %v5871, %v291
    %v5880 = vmul.f32 %v5874, %v291
    %v5881 = vadd.f32 %v5875, 1e-06
    %v5882 = vadd.f32 %v5876, 1e-06
    %v5883 = vadd.f32 %v5877, 1e-06
    %v5884 = vadd.f32 %v5878, 1e-06
    %v5885 = vadd.f32 %v5879, 1e-06
    %v5886 = vadd.f32 %v5880, 1e-06
    %v5887 = vrsqrt.pop %v5881
    %v5888 = vmul.f32 %v5887, %v5881
    %v5889 = vmul.f32 %v5888, %v5887
    %v5890 = vmul.f32 0.5, %v5889
    %v5891 = vsub.f32 1.5, %v5890
    %v5892 = vmul.f32 %v5887, %v5891
    %vm5893 = vweird.f32 %v5881
    %vm5894 = vweird.f32 %v5887
    %vm5895 = vmor %vm5893, %vm5894
    %v5896 = vsel %vm5895, %v5887, %v5892
    %v5897 = vrsqrt.pop %v5882
    %v5898 = vmul.f32 %v5897, %v5882
    %v5899 = vmul.f32 %v5898, %v5897
    %v5900 = vmul.f32 0.5, %v5899
    %v5901 = vsub.f32 1.5, %v5900
    %v5902 = vmul.f32 %v5897, %v5901
    %vm5903 = vweird.f32 %v5882
    %vm5904 = vweird.f32 %v5897
    %vm5905 = vmor %vm5903, %vm5904
    %v5906 = vsel %vm5905, %v5897, %v5902
    %v5907 = vrsqrt.pop %v5883
    %v5908 = vmul.f32 %v5907, %v5883
    %v5909 = vmul.f32 %v5908, %v5907
    %v5910 = vmul.f32 0.5, %v5909
    %v5911 = vsub.f32 1.5, %v5910
    %v5912 = vmul.f32 %v5907, %v5911
    %vm5913 = vweird.f32 %v5883
    %vm5914 = vweird.f32 %v5907
    %vm5915 = vmor %vm5913, %vm5914
    %v5916 = vsel %vm5915, %v5907, %v5912
    %v5917 = vrsqrt.pop %v5884
    %v5918 = vmul.f32 %v5917, %v5884
    %v5919 = vmul.f32 %v5918, %v5917
    %v5920 = vmul.f32 0.5, %v5919
    %v5921 = vsub.f32 1.5, %v5920
    %v5922 = vmul.f32 %v5917, %v5921
    %vm5923 = vweird.f32 %v5884
    %vm5924 = vweird.f32 %v5917
    %vm5925 = vmor %vm5923, %vm5924
    %v5926 = vsel %vm5925, %v5917, %v5922
    %v5927 = vrsqrt.pop %v5885
    %v5928 = vmul.f32 %v5927, %v5885
    %v5929 = vmul.f32 %v5928, %v5927
    %v5930 = vmul.f32 0.5, %v5929
    %v5931 = vsub.f32 1.5, %v5930
    %v5932 = vmul.f32 %v5927, %v5931
    %vm5933 = vweird.f32 %v5885
    %vm5934 = vweird.f32 %v5927
    %vm5935 = vmor %vm5933, %vm5934
    %v5936 = vsel %vm5935, %v5927, %v5932
    %v5937 = vrsqrt.pop %v5886
    %v5938 = vmul.f32 %v5937, %v5886
    %v5939 = vmul.f32 %v5938, %v5937
    %v5940 = vmul.f32 0.5, %v5939
    %v5941 = vsub.f32 1.5, %v5940
    %v5942 = vmul.f32 %v5937, %v5941
    %vm5943 = vweird.f32 %v5886
    %vm5944 = vweird.f32 %v5937
    %vm5945 = vmor %vm5943, %vm5944
    %v5946 = vsel %vm5945, %v5937, %v5942
    %v5947 = vmul.f32 %v5845, %v5896
    %v5948 = vmul.f32 %v5846, %v5906
    %v5949 = vmul.f32 %v5847, %v5916
    %v5950 = vmul.f32 %v5848, %v5926
    %v5951 = vmul.f32 %v5849, %v5936
    %v5952 = vmul.f32 %v5850, %v5946
    %v5954 = vperm.slane %v5818, 0
    %v5956 = vmul.f32 %v5947, %v5954
    %v5957 = vmul.f32 %v5948, %v5954
    %v5958 = vmul.f32 %v5949, %v5954
    %v5959 = vmul.f32 %v5950, %v5954
    %v5960 = vmul.f32 %v5951, %v5954
    %v5961 = vmul.f32 %v5952, %v5954
    %v5963 = vperm.slane %v5820, 0
    %v5965 = vadd.f32 %v5956, %v5963
    %v5966 = vadd.f32 %v5957, %v5963
    %v5967 = vadd.f32 %v5958, %v5963
    %v5968 = vadd.f32 %v5959, %v5963
    %v5969 = vadd.f32 %v5960, %v5963
    %v5970 = vadd.f32 %v5961, %v5963
    %s5971 = scalar_lea.vmem %s19, 32
    %v5972 = vld [vmem:[%s5971] sm:$0xff]
    %v5973 = vld [vmem:[%s5971 + $0x8] sm:$0xff]
    %v5974 = vld [vmem:[%s5971 + $0x10] sm:$0xff]
    %v5975 = vld [vmem:[%s5971 + $0x18] sm:$0xff]
    %v5977 = vsel %vm163, %v5965, 0
    %v5980 = vsel %vm163, %v5966, 0
    %v5983 = vsel %vm163, %v5967, 0
    %v5986 = vsel %vm163, %v5968, 0
    %v5989 = vsel %vm163, %v5969, 0
    %v5992 = vsel %vm163, %v5970, 0
    %5994 = vmatpush.msra.mxu0 0.0
    %5995 = vmatpush.msra.mxu0 0.0
    %5996 = vmatpush.msra.mxu0 0.0
    %5997 = vmatpush.msra.mxu0 0.0
    %5998 = vmatpush.msra.mxu0 0.0
    %5999 = vmatpush.msra.mxu0 0.0
    %6000 = vmatpush.msra.mxu0 0.0
    %6001 = vmatpush.msra.mxu0 0.0
    %6002 = vmatpush.msra.mxu0 0.0
    %6003 = vmatpush.msra.mxu0 0.0
    %6004 = vmatpush.msra.mxu0 0.0
    %6005 = vmatpush.msra.mxu0 0.0
    %6006 = vmatpush.msra.mxu0 %v5975
    %6007 = vmatpush.msra.mxu0 %v5974
    %6008 = vmatpush.msra.mxu0 %v5973
    %6009 = vmatpush.msra.mxu0 %v5972
    %6010 = vmatmul.f32.gmra.mxu0 %v5977
    %v6011 = vpop.f32.mrf.mxu0
    %v6012 = vadd.f32 0.0, %v6011
    %6013 = vmatmul.f32.gmra.mxu0 %v5980
    %v6014 = vpop.f32.mrf.mxu0
    %v6015 = vadd.f32 0.0, %v6014
    %6016 = vmatmul.f32.gmra.mxu0 %v5983
    %v6017 = vpop.f32.mrf.mxu0
    %v6018 = vadd.f32 0.0, %v6017
    %6019 = vmatmul.f32.gmra.mxu0 %v5986
    %v6020 = vpop.f32.mrf.mxu0
    %v6021 = vadd.f32 0.0, %v6020
    %6022 = vmatmul.f32.gmra.mxu0 %v5989
    %v6023 = vpop.f32.mrf.mxu0
    %v6024 = vadd.f32 0.0, %v6023
    %6025 = vmatmul.f32.gmra.mxu0 %v5992
    %v6026 = vpop.f32.mrf.mxu0
    %v6027 = vadd.f32 0.0, %v6026
    %6028 = vdwg.mxu0
    %v6029 = vsel %vm1842, %v6012, -inf
    %6030 = vmax.xlane.f32.xlu0 %v6029
    %v6031 = vpop.xlane.xlu0 %6030
    %v6032 = vsel %vm1842, %v6015, -inf
    %6033 = vmax.xlane.f32.xlu0 %v6032
    %v6034 = vpop.xlane.xlu0 %6033
    %v6035 = vsel %vm1842, %v6018, -inf
    %6036 = vmax.xlane.f32.xlu0 %v6035
    %v6037 = vpop.xlane.xlu0 %6036
    %v6038 = vsel %vm1842, %v6021, -inf
    %6039 = vmax.xlane.f32.xlu0 %v6038
    %v6040 = vpop.xlane.xlu0 %6039
    %v6041 = vsel %vm1842, %v6024, -inf
    %6042 = vmax.xlane.f32.xlu0 %v6041
    %v6043 = vpop.xlane.xlu0 %6042
    %v6044 = vsel %vm1842, %v6027, -inf
    %6045 = vmax.xlane.f32.xlu0 %v6044
    %v6046 = vpop.xlane.xlu0 %6045
    %v6047 = vsub.f32 %v6012, %v6031
    %v6048 = vsub.f32 %v6015, %v6034
    %v6049 = vsub.f32 %v6018, %v6037
    %v6050 = vsub.f32 %v6021, %v6040
    %v6051 = vsub.f32 %v6024, %v6043
    %v6052 = vsub.f32 %v6027, %v6046
    %v6053 = vmul.f32 %v6047, 1.442695
    %v6054 = vpow.pop %v6053
    %v6055 = vmul.f32 %v6048, 1.442695
    %v6056 = vpow.pop %v6055
    %v6057 = vmul.f32 %v6049, 1.442695
    %v6058 = vpow.pop %v6057
    %v6059 = vmul.f32 %v6050, 1.442695
    %v6060 = vpow.pop %v6059
    %v6061 = vmul.f32 %v6051, 1.442695
    %v6062 = vpow.pop %v6061
    %v6063 = vmul.f32 %v6052, 1.442695
    %v6064 = vpow.pop %v6063
    %v6065 = vsel %vm1842, %v6054, 0.0
    %6066 = vadd.xlane.f32.xlu0 %v6065
    %v6067 = vpop.xlane.xlu0 %6066
    %v6068 = vsel %vm1842, %v6056, 0.0
    %6069 = vadd.xlane.f32.xlu0 %v6068
    %v6070 = vpop.xlane.xlu0 %6069
    %v6071 = vsel %vm1842, %v6058, 0.0
    %6072 = vadd.xlane.f32.xlu0 %v6071
    %v6073 = vpop.xlane.xlu0 %6072
    %v6074 = vsel %vm1842, %v6060, 0.0
    %6075 = vadd.xlane.f32.xlu0 %v6074
    %v6076 = vpop.xlane.xlu0 %6075
    %v6077 = vsel %vm1842, %v6062, 0.0
    %6078 = vadd.xlane.f32.xlu0 %v6077
    %v6079 = vpop.xlane.xlu0 %6078
    %v6080 = vsel %vm1842, %v6064, 0.0
    %6081 = vadd.xlane.f32.xlu0 %v6080
    %v6082 = vpop.xlane.xlu0 %6081
    %v6083 = vrcp.pop %v6067
    %v6084 = vmul.f32 %v6067, %v6083
    %v6085 = vsub.f32 1.0, %v6084
    %v6086 = vmul.f32 %v6083, %v6085
    %v6087 = vadd.f32 %v6083, %v6086
    %vm6088 = vweird.f32 %v6067
    %vm6089 = vweird.f32 %v6083
    %vm6090 = vmor %vm6088, %vm6089
    %v6091 = vsel %vm6090, %v6083, %v6087
    %v6092 = vand.u32 2147483647, %v6067
    %vm6093 = vcmp.eq.f32.partialorder %v6092, 8.507059e+37
    %v6094 = vand.u32 %v6067, 2147483648
    %v6095 = vor.u32 1.1754944e-38, %v6094
    %v6096 = vsel %vm6093, %v6095, %v6091
    %v6097 = vmul.f32 %v6054, %v6096
    %v6098 = vrcp.pop %v6070
    %v6099 = vmul.f32 %v6070, %v6098
    %v6100 = vsub.f32 1.0, %v6099
    %v6101 = vmul.f32 %v6098, %v6100
    %v6102 = vadd.f32 %v6098, %v6101
    %vm6103 = vweird.f32 %v6070
    %vm6104 = vweird.f32 %v6098
    %vm6105 = vmor %vm6103, %vm6104
    %v6106 = vsel %vm6105, %v6098, %v6102
    %v6107 = vand.u32 2147483647, %v6070
    %vm6108 = vcmp.eq.f32.partialorder %v6107, 8.507059e+37
    %v6109 = vand.u32 %v6070, 2147483648
    %v6110 = vor.u32 1.1754944e-38, %v6109
    %v6111 = vsel %vm6108, %v6110, %v6106
    %v6112 = vmul.f32 %v6056, %v6111
    %v6113 = vrcp.pop %v6073
    %v6114 = vmul.f32 %v6073, %v6113
    %v6115 = vsub.f32 1.0, %v6114
    %v6116 = vmul.f32 %v6113, %v6115
    %v6117 = vadd.f32 %v6113, %v6116
    %vm6118 = vweird.f32 %v6073
    %vm6119 = vweird.f32 %v6113
    %vm6120 = vmor %vm6118, %vm6119
    %v6121 = vsel %vm6120, %v6113, %v6117
    %v6122 = vand.u32 2147483647, %v6073
    %vm6123 = vcmp.eq.f32.partialorder %v6122, 8.507059e+37
    %v6124 = vand.u32 %v6073, 2147483648
    %v6125 = vor.u32 1.1754944e-38, %v6124
    %v6126 = vsel %vm6123, %v6125, %v6121
    %v6127 = vmul.f32 %v6058, %v6126
    %v6128 = vrcp.pop %v6076
    %v6129 = vmul.f32 %v6076, %v6128
    %v6130 = vsub.f32 1.0, %v6129
    %v6131 = vmul.f32 %v6128, %v6130
    %v6132 = vadd.f32 %v6128, %v6131
    %vm6133 = vweird.f32 %v6076
    %vm6134 = vweird.f32 %v6128
    %vm6135 = vmor %vm6133, %vm6134
    %v6136 = vsel %vm6135, %v6128, %v6132
    %v6137 = vand.u32 2147483647, %v6076
    %vm6138 = vcmp.eq.f32.partialorder %v6137, 8.507059e+37
    %v6139 = vand.u32 %v6076, 2147483648
    %v6140 = vor.u32 1.1754944e-38, %v6139
    %v6141 = vsel %vm6138, %v6140, %v6136
    %v6142 = vmul.f32 %v6060, %v6141
    %v6143 = vrcp.pop %v6079
    %v6144 = vmul.f32 %v6079, %v6143
    %v6145 = vsub.f32 1.0, %v6144
    %v6146 = vmul.f32 %v6143, %v6145
    %v6147 = vadd.f32 %v6143, %v6146
    %vm6148 = vweird.f32 %v6079
    %vm6149 = vweird.f32 %v6143
    %vm6150 = vmor %vm6148, %vm6149
    %v6151 = vsel %vm6150, %v6143, %v6147
    %v6152 = vand.u32 2147483647, %v6079
    %vm6153 = vcmp.eq.f32.partialorder %v6152, 8.507059e+37
    %v6154 = vand.u32 %v6079, 2147483648
    %v6155 = vor.u32 1.1754944e-38, %v6154
    %v6156 = vsel %vm6153, %v6155, %v6151
    %v6157 = vmul.f32 %v6062, %v6156
    %v6158 = vrcp.pop %v6082
    %v6159 = vmul.f32 %v6082, %v6158
    %v6160 = vsub.f32 1.0, %v6159
    %v6161 = vmul.f32 %v6158, %v6160
    %v6162 = vadd.f32 %v6158, %v6161
    %vm6163 = vweird.f32 %v6082
    %vm6164 = vweird.f32 %v6158
    %vm6165 = vmor %vm6163, %vm6164
    %v6166 = vsel %vm6165, %v6158, %v6162
    %v6167 = vand.u32 2147483647, %v6082
    %vm6168 = vcmp.eq.f32.partialorder %v6167, 8.507059e+37
    %v6169 = vand.u32 %v6082, 2147483648
    %v6170 = vor.u32 1.1754944e-38, %v6169
    %v6171 = vsel %vm6168, %v6170, %v6166
    %v6172 = vmul.f32 %v6064, %v6171
    %v6173 = vsel %vm1842, %v6097, -inf
    %6174 = vmax.xlane.f32.xlu0 %v6173
    %v6175 = vpop.xlane.xlu0 %6174
    %v6176 = vsel %vm1842, %v6112, -inf
    %6177 = vmax.xlane.f32.xlu0 %v6176
    %v6178 = vpop.xlane.xlu0 %6177
    %v6179 = vsel %vm1842, %v6127, -inf
    %6180 = vmax.xlane.f32.xlu0 %v6179
    %v6181 = vpop.xlane.xlu0 %6180
    %v6182 = vsel %vm1842, %v6142, -inf
    %6183 = vmax.xlane.f32.xlu0 %v6182
    %v6184 = vpop.xlane.xlu0 %6183
    %v6185 = vsel %vm1842, %v6157, -inf
    %6186 = vmax.xlane.f32.xlu0 %v6185
    %v6187 = vpop.xlane.xlu0 %6186
    %v6188 = vsel %vm1842, %v6172, -inf
    %6189 = vmax.xlane.f32.xlu0 %v6188
    %v6190 = vpop.xlane.xlu0 %6189
    %vm6191 = vcmp.eq.f32.partialorder %v6097, %v6175
    %vm6192 = vcmp.eq.f32.partialorder %v6112, %v6178
    %vm6193 = vcmp.eq.f32.partialorder %v6127, %v6181
    %vm6194 = vcmp.eq.f32.partialorder %v6142, %v6184
    %vm6195 = vcmp.eq.f32.partialorder %v6157, %v6187
    %vm6196 = vcmp.eq.f32.partialorder %v6172, %v6190
    %v6197 = vsel %vm6191, %v242, 4.0
    %v6198 = vsel %vm6192, %v243, 4.0
    %v6199 = vsel %vm6193, %v244, 4.0
    %v6200 = vsel %vm6194, %v245, 4.0
    %v6201 = vsel %vm6195, %v246, 4.0
    %v6202 = vsel %vm6196, %v247, 4.0
    %v6203 = vsel %vm1842, %v6197, inf
    %6204 = vmin.xlane.f32.xlu0 %v6203
    %v6205 = vpop.xlane.xlu0 %6204
    %v6206 = vsel %vm1842, %v6198, inf
    %6207 = vmin.xlane.f32.xlu0 %v6206
    %v6208 = vpop.xlane.xlu0 %6207
    %v6209 = vsel %vm1842, %v6199, inf
    %6210 = vmin.xlane.f32.xlu0 %v6209
    %v6211 = vpop.xlane.xlu0 %6210
    %v6212 = vsel %vm1842, %v6200, inf
    %6213 = vmin.xlane.f32.xlu0 %v6212
    %v6214 = vpop.xlane.xlu0 %6213
    %v6215 = vsel %vm1842, %v6201, inf
    %6216 = vmin.xlane.f32.xlu0 %v6215
    %v6217 = vpop.xlane.xlu0 %6216
    %v6218 = vsel %vm1842, %v6202, inf
    %6219 = vmin.xlane.f32.xlu0 %v6218
    %v6220 = vpop.xlane.xlu0 %6219
    %vm6221 = vcmp.eq.f32.partialorder %v242, %v6205
    %vm6222 = vcmp.eq.f32.partialorder %v243, %v6208
    %vm6223 = vcmp.eq.f32.partialorder %v244, %v6211
    %vm6224 = vcmp.eq.f32.partialorder %v245, %v6214
    %vm6225 = vcmp.eq.f32.partialorder %v246, %v6217
    %vm6226 = vcmp.eq.f32.partialorder %v247, %v6220
    %v6227 = vsel %vm6221, 1, 0
    %v6228 = vsel %vm6222, 1, 0
    %v6229 = vsel %vm6223, 1, 0
    %v6230 = vsel %vm6224, 1, 0
    %v6231 = vsel %vm6225, 1, 0
    %v6232 = vsel %vm6226, 1, 0
    %v6233 = vcvt.s32.f32 %v6227
    %v6234 = vcvt.s32.f32 %v6228
    %v6235 = vcvt.s32.f32 %v6229
    %v6236 = vcvt.s32.f32 %v6230
    %v6237 = vcvt.s32.f32 %v6231
    %v6238 = vcvt.s32.f32 %v6232
    %v6239 = vmul.f32 %v6233, %v2056
    %v6240 = vmul.f32 %v6234, %v2061
    %v6241 = vmul.f32 %v6235, %v2066
    %v6242 = vmul.f32 %v6236, %v2071
    %v6243 = vmul.f32 %v6237, %v2076
    %v6244 = vmul.f32 %v6238, %v2081
    %v6245 = vsel %vm6221, -1.0, %v6097
    %v6246 = vsel %vm6222, -1.0, %v6112
    %v6247 = vsel %vm6223, -1.0, %v6127
    %v6248 = vsel %vm6224, -1.0, %v6142
    %v6249 = vsel %vm6225, -1.0, %v6157
    %v6250 = vsel %vm6226, -1.0, %v6172
    %v6251 = vsel %vm1842, %v6245, -inf
    %6252 = vmax.xlane.f32.xlu0 %v6251
    %v6253 = vpop.xlane.xlu0 %6252
    %v6254 = vsel %vm1842, %v6246, -inf
    %6255 = vmax.xlane.f32.xlu0 %v6254
    %v6256 = vpop.xlane.xlu0 %6255
    %v6257 = vsel %vm1842, %v6247, -inf
    %6258 = vmax.xlane.f32.xlu0 %v6257
    %v6259 = vpop.xlane.xlu0 %6258
    %v6260 = vsel %vm1842, %v6248, -inf
    %6261 = vmax.xlane.f32.xlu0 %v6260
    %v6262 = vpop.xlane.xlu0 %6261
    %v6263 = vsel %vm1842, %v6249, -inf
    %6264 = vmax.xlane.f32.xlu0 %v6263
    %v6265 = vpop.xlane.xlu0 %6264
    %v6266 = vsel %vm1842, %v6250, -inf
    %6267 = vmax.xlane.f32.xlu0 %v6266
    %v6268 = vpop.xlane.xlu0 %6267
    %vm6269 = vcmp.eq.f32.partialorder %v6245, %v6253
    %vm6270 = vcmp.eq.f32.partialorder %v6246, %v6256
    %vm6271 = vcmp.eq.f32.partialorder %v6247, %v6259
    %vm6272 = vcmp.eq.f32.partialorder %v6248, %v6262
    %vm6273 = vcmp.eq.f32.partialorder %v6249, %v6265
    %vm6274 = vcmp.eq.f32.partialorder %v6250, %v6268
    %v6275 = vsel %vm6269, %v242, 4.0
    %v6276 = vsel %vm6270, %v243, 4.0
    %v6277 = vsel %vm6271, %v244, 4.0
    %v6278 = vsel %vm6272, %v245, 4.0
    %v6279 = vsel %vm6273, %v246, 4.0
    %v6280 = vsel %vm6274, %v247, 4.0
    %v6281 = vsel %vm1842, %v6275, inf
    %6282 = vmin.xlane.f32.xlu0 %v6281
    %v6283 = vpop.xlane.xlu0 %6282
    %v6284 = vsel %vm1842, %v6276, inf
    %6285 = vmin.xlane.f32.xlu0 %v6284
    %v6286 = vpop.xlane.xlu0 %6285
    %v6287 = vsel %vm1842, %v6277, inf
    %6288 = vmin.xlane.f32.xlu0 %v6287
    %v6289 = vpop.xlane.xlu0 %6288
    %v6290 = vsel %vm1842, %v6278, inf
    %6291 = vmin.xlane.f32.xlu0 %v6290
    %v6292 = vpop.xlane.xlu0 %6291
    %v6293 = vsel %vm1842, %v6279, inf
    %6294 = vmin.xlane.f32.xlu0 %v6293
    %v6295 = vpop.xlane.xlu0 %6294
    %v6296 = vsel %vm1842, %v6280, inf
    %6297 = vmin.xlane.f32.xlu0 %v6296
    %v6298 = vpop.xlane.xlu0 %6297
    %vm6299 = vcmp.eq.f32.partialorder %v242, %v6283
    %vm6300 = vcmp.eq.f32.partialorder %v243, %v6286
    %vm6301 = vcmp.eq.f32.partialorder %v244, %v6289
    %vm6302 = vcmp.eq.f32.partialorder %v245, %v6292
    %vm6303 = vcmp.eq.f32.partialorder %v246, %v6295
    %vm6304 = vcmp.eq.f32.partialorder %v247, %v6298
    %v6305 = vsel %vm6299, 1, 0
    %v6306 = vsel %vm6300, 1, 0
    %v6307 = vsel %vm6301, 1, 0
    %v6308 = vsel %vm6302, 1, 0
    %v6309 = vsel %vm6303, 1, 0
    %v6310 = vsel %vm6304, 1, 0
    %v6311 = vcvt.s32.f32 %v6305
    %v6312 = vcvt.s32.f32 %v6306
    %v6313 = vcvt.s32.f32 %v6307
    %v6314 = vcvt.s32.f32 %v6308
    %v6315 = vcvt.s32.f32 %v6309
    %v6316 = vcvt.s32.f32 %v6310
    %v6317 = vmul.f32 %v6311, %v2056
    %v6318 = vmul.f32 %v6312, %v2061
    %v6319 = vmul.f32 %v6313, %v2066
    %v6320 = vmul.f32 %v6314, %v2071
    %v6321 = vmul.f32 %v6315, %v2076
    %v6322 = vmul.f32 %v6316, %v2081
    %6323 = vmatpush.msra.mxu0 0.0
    %6324 = vmatpush.msra.mxu0 0.0
    %6325 = vmatpush.msra.mxu0 0.0
    %6326 = vmatpush.msra.mxu0 0.0
    %6327 = vmatpush.msra.mxu0 0.0
    %6328 = vmatpush.msra.mxu0 0.0
    %6329 = vmatpush.msra.mxu0 0.0
    %6330 = vmatpush.msra.mxu0 0.0
    %6331 = vmatpush.msra.mxu0 0.0
    %6332 = vmatpush.msra.mxu0 0.0
    %6333 = vmatpush.msra.mxu0 %v6244
    %6334 = vmatpush.msra.mxu0 %v6243
    %6335 = vmatpush.msra.mxu0 %v6242
    %6336 = vmatpush.msra.mxu0 %v6241
    %6337 = vmatpush.msra.mxu0 %v6240
    %6338 = vmatpush.msra.mxu0 %v6239
    %6339 = vmatmul.f32.gmra.mxu0 %v2168
    %v6340 = vpop.f32.mrf.mxu0
    %v6341 = vadd.f32 0.0, %v6340
    %6342 = vmatmul.f32.gmra.mxu0 %v2171
    %v6343 = vpop.f32.mrf.mxu0
    %v6344 = vadd.f32 0.0, %v6343
    %6345 = vmatmul.f32.gmra.mxu0 %v2174
    %v6346 = vpop.f32.mrf.mxu0
    %v6347 = vadd.f32 0.0, %v6346
    %6348 = vmatmul.f32.gmra.mxu0 %v2177
    %v6349 = vpop.f32.mrf.mxu0
    %v6350 = vadd.f32 0.0, %v6349
    %6351 = vmatmul.f32.gmra.mxu0 %v2180
    %v6352 = vpop.f32.mrf.mxu0
    %v6353 = vadd.f32 0.0, %v6352
    %6354 = vmatmul.f32.gmra.mxu0 %v2183
    %v6355 = vpop.f32.mrf.mxu0
    %v6356 = vadd.f32 0.0, %v6355
    %6357 = vdwg.mxu0
    %v6358 = vsub.f32 %v6341, 1.0
    %v6359 = vsub.f32 %v6344, 1.0
    %v6360 = vsub.f32 %v6347, 1.0
    %v6361 = vsub.f32 %v6350, 1.0
    %v6362 = vsub.f32 %v6353, 1.0
    %v6363 = vsub.f32 %v6356, 1.0
    %6364 = vmatpush.msra.mxu0 0.0
    %6365 = vmatpush.msra.mxu0 0.0
    %6366 = vmatpush.msra.mxu0 0.0
    %6367 = vmatpush.msra.mxu0 0.0
    %6368 = vmatpush.msra.mxu0 0.0
    %6369 = vmatpush.msra.mxu0 0.0
    %6370 = vmatpush.msra.mxu0 0.0
    %6371 = vmatpush.msra.mxu0 0.0
    %6372 = vmatpush.msra.mxu0 0.0
    %6373 = vmatpush.msra.mxu0 0.0
    %6374 = vmatpush.msra.mxu0 %v6322
    %6375 = vmatpush.msra.mxu0 %v6321
    %6376 = vmatpush.msra.mxu0 %v6320
    %6377 = vmatpush.msra.mxu0 %v6319
    %6378 = vmatpush.msra.mxu0 %v6318
    %6379 = vmatpush.msra.mxu0 %v6317
    %6380 = vmatmul.f32.gmra.mxu0 %v2168
    %v6381 = vpop.f32.mrf.mxu0
    %v6382 = vadd.f32 0.0, %v6381
    %6383 = vmatmul.f32.gmra.mxu0 %v2171
    %v6384 = vpop.f32.mrf.mxu0
    %v6385 = vadd.f32 0.0, %v6384
    %6386 = vmatmul.f32.gmra.mxu0 %v2174
    %v6387 = vpop.f32.mrf.mxu0
    %v6388 = vadd.f32 0.0, %v6387
    %6389 = vmatmul.f32.gmra.mxu0 %v2177
    %v6390 = vpop.f32.mrf.mxu0
    %v6391 = vadd.f32 0.0, %v6390
    %6392 = vmatmul.f32.gmra.mxu0 %v2180
    %v6393 = vpop.f32.mrf.mxu0
    %v6394 = vadd.f32 0.0, %v6393
    %6395 = vmatmul.f32.gmra.mxu0 %v2183
    %v6396 = vpop.f32.mrf.mxu0
    %v6397 = vadd.f32 0.0, %v6396
    %6398 = vdwg.mxu0
    %v6399 = vsub.f32 %v6382, 1.0
    %v6400 = vsub.f32 %v6385, 1.0
    %v6401 = vsub.f32 %v6388, 1.0
    %v6402 = vsub.f32 %v6391, 1.0
    %v6403 = vsub.f32 %v6394, 1.0
    %v6404 = vsub.f32 %v6397, 1.0
    %v6405 = vsel %vm1842, %v6239, 0.0
    %v6406 = vsel %vm1842, %v6240, 0.0
    %v6407 = vadd.f32 %v6405, %v6406
    %v6408 = vsel %vm1842, %v6241, 0.0
    %v6409 = vadd.f32 %v6407, %v6408
    %v6410 = vsel %vm1842, %v6242, 0.0
    %v6411 = vadd.f32 %v6409, %v6410
    %v6412 = vsel %vm1842, %v6243, 0.0
    %v6413 = vadd.f32 %v6411, %v6412
    %v6414 = vsel %vm1842, %v6244, 0.0
    %v6415 = vadd.f32 %v6413, %v6414
    %v6416 = vrot.slane %v6415, 4
    %v6417 = vadd.f32 %v6415, %v6416
    %v6418 = vrot.slane %v6417, 2
    %v6419 = vadd.f32 %v6417, %v6418
    %v6420 = vrot.slane %v6419, 1
    %v6421 = vadd.f32 %v6419, %v6420
    %v6422 = vadd.f32 %v6399, %v6421
    %v6423 = vadd.f32 %v6400, %v6421
    %v6424 = vadd.f32 %v6401, %v6421
    %v6425 = vadd.f32 %v6402, %v6421
    %v6426 = vadd.f32 %v6403, %v6421
    %v6427 = vadd.f32 %v6404, %v6421
    %vm6428 = vcmp.lt.f32.partialorder %v6358, 18.0
    %vm6429 = vcmp.lt.f32.partialorder %v6359, 18.0
    %vm6430 = vcmp.lt.f32.partialorder %v6360, 18.0
    %vm6431 = vcmp.lt.f32.partialorder %v6361, 18.0
    %vm6432 = vcmp.lt.f32.partialorder %v6362, 18.0
    %vm6433 = vcmp.lt.f32.partialorder %v6363, 18.0
    %v6434 = vsel %vm6428, 1, 0
    %v6435 = vsel %vm6429, 1, 0
    %v6436 = vsel %vm6430, 1, 0
    %v6437 = vsel %vm6431, 1, 0
    %v6438 = vsel %vm6432, 1, 0
    %v6439 = vsel %vm6433, 1, 0
    %v6440 = vcvt.s32.f32 %v6434
    %v6441 = vcvt.s32.f32 %v6435
    %v6442 = vcvt.s32.f32 %v6436
    %v6443 = vcvt.s32.f32 %v6437
    %v6444 = vcvt.s32.f32 %v6438
    %v6445 = vcvt.s32.f32 %v6439
    %v6446 = vmul.f32 %v6239, %v6440
    %v6447 = vmul.f32 %v6240, %v6441
    %v6448 = vmul.f32 %v6241, %v6442
    %v6449 = vmul.f32 %v6242, %v6443
    %v6450 = vmul.f32 %v6243, %v6444
    %v6451 = vmul.f32 %v6244, %v6445
    %vm6452 = vcmp.lt.f32.partialorder %v6422, 18.0
    %vm6453 = vcmp.lt.f32.partialorder %v6423, 18.0
    %vm6454 = vcmp.lt.f32.partialorder %v6424, 18.0
    %vm6455 = vcmp.lt.f32.partialorder %v6425, 18.0
    %vm6456 = vcmp.lt.f32.partialorder %v6426, 18.0
    %vm6457 = vcmp.lt.f32.partialorder %v6427, 18.0
    %v6458 = vsel %vm6452, 1, 0
    %v6459 = vsel %vm6453, 1, 0
    %v6460 = vsel %vm6454, 1, 0
    %v6461 = vsel %vm6455, 1, 0
    %v6462 = vsel %vm6456, 1, 0
    %v6463 = vsel %vm6457, 1, 0
    %v6464 = vcvt.s32.f32 %v6458
    %v6465 = vcvt.s32.f32 %v6459
    %v6466 = vcvt.s32.f32 %v6460
    %v6467 = vcvt.s32.f32 %v6461
    %v6468 = vcvt.s32.f32 %v6462
    %v6469 = vcvt.s32.f32 %v6463
    %v6470 = vmul.f32 %v6317, %v6464
    %v6471 = vmul.f32 %v6318, %v6465
    %v6472 = vmul.f32 %v6319, %v6466
    %v6473 = vmul.f32 %v6320, %v6467
    %v6474 = vmul.f32 %v6321, %v6468
    %v6475 = vmul.f32 %v6322, %v6469
    %v6476 = vmul.f32 %v6446, %v6358
    %v6477 = vmul.f32 %v6447, %v6359
    %v6478 = vmul.f32 %v6448, %v6360
    %v6479 = vmul.f32 %v6449, %v6361
    %v6480 = vmul.f32 %v6450, %v6362
    %v6481 = vmul.f32 %v6451, %v6363
    %v6482 = vsel %vm1842, %v6476, 0.0
    %6483 = vadd.xlane.f32.xlu0 %v6482
    %v6484 = vpop.xlane.xlu0 %6483
    %v6485 = vsel %vm1842, %v6477, 0.0
    %6486 = vadd.xlane.f32.xlu0 %v6485
    %v6487 = vpop.xlane.xlu0 %6486
    %v6488 = vsel %vm1842, %v6478, 0.0
    %6489 = vadd.xlane.f32.xlu0 %v6488
    %v6490 = vpop.xlane.xlu0 %6489
    %v6491 = vsel %vm1842, %v6479, 0.0
    %6492 = vadd.xlane.f32.xlu0 %v6491
    %v6493 = vpop.xlane.xlu0 %6492
    %v6494 = vsel %vm1842, %v6480, 0.0
    %6495 = vadd.xlane.f32.xlu0 %v6494
    %v6496 = vpop.xlane.xlu0 %6495
    %v6497 = vsel %vm1842, %v6481, 0.0
    %6498 = vadd.xlane.f32.xlu0 %v6497
    %v6499 = vpop.xlane.xlu0 %6498
    %v6500 = vmul.f32 %v6470, %v6422
    %v6501 = vmul.f32 %v6471, %v6423
    %v6502 = vmul.f32 %v6472, %v6424
    %v6503 = vmul.f32 %v6473, %v6425
    %v6504 = vmul.f32 %v6474, %v6426
    %v6505 = vmul.f32 %v6475, %v6427
    %v6506 = vsel %vm1842, %v6500, 0.0
    %6507 = vadd.xlane.f32.xlu0 %v6506
    %v6508 = vpop.xlane.xlu0 %6507
    %v6509 = vsel %vm1842, %v6501, 0.0
    %6510 = vadd.xlane.f32.xlu0 %v6509
    %v6511 = vpop.xlane.xlu0 %6510
    %v6512 = vsel %vm1842, %v6502, 0.0
    %6513 = vadd.xlane.f32.xlu0 %v6512
    %v6514 = vpop.xlane.xlu0 %6513
    %v6515 = vsel %vm1842, %v6503, 0.0
    %6516 = vadd.xlane.f32.xlu0 %v6515
    %v6517 = vpop.xlane.xlu0 %6516
    %v6518 = vsel %vm1842, %v6504, 0.0
    %6519 = vadd.xlane.f32.xlu0 %v6518
    %v6520 = vpop.xlane.xlu0 %6519
    %v6521 = vsel %vm1842, %v6505, 0.0
    %6522 = vadd.xlane.f32.xlu0 %v6521
    %v6523 = vpop.xlane.xlu0 %6522
    %vm6524 = vcmp.eq.f32.partialorder %v248, %v6484
    %vm6525 = vcmp.eq.f32.partialorder %v249, %v6487
    %vm6526 = vcmp.eq.f32.partialorder %v250, %v6490
    %vm6527 = vcmp.eq.f32.partialorder %v251, %v6493
    %vm6528 = vcmp.eq.f32.partialorder %v252, %v6496
    %vm6529 = vcmp.eq.f32.partialorder %v253, %v6499
    %v6530 = vsel %vm6524, 1, 0
    %v6531 = vsel %vm6525, 1, 0
    %v6532 = vsel %vm6526, 1, 0
    %v6533 = vsel %vm6527, 1, 0
    %v6534 = vsel %vm6528, 1, 0
    %v6535 = vsel %vm6529, 1, 0
    %v6536 = vcvt.s32.f32 %v6530
    %v6537 = vcvt.s32.f32 %v6531
    %v6538 = vcvt.s32.f32 %v6532
    %v6539 = vcvt.s32.f32 %v6533
    %v6540 = vcvt.s32.f32 %v6534
    %v6541 = vcvt.s32.f32 %v6535
    %vm6542 = vcmp.eq.f32.partialorder %v248, %v6508
    %vm6543 = vcmp.eq.f32.partialorder %v249, %v6511
    %vm6544 = vcmp.eq.f32.partialorder %v250, %v6514
    %vm6545 = vcmp.eq.f32.partialorder %v251, %v6517
    %vm6546 = vcmp.eq.f32.partialorder %v252, %v6520
    %vm6547 = vcmp.eq.f32.partialorder %v253, %v6523
    %v6548 = vsel %vm6542, 1, 0
    %v6549 = vsel %vm6543, 1, 0
    %v6550 = vsel %vm6544, 1, 0
    %v6551 = vsel %vm6545, 1, 0
    %v6552 = vsel %vm6546, 1, 0
    %v6553 = vsel %vm6547, 1, 0
    %v6554 = vcvt.s32.f32 %v6548
    %v6555 = vcvt.s32.f32 %v6549
    %v6556 = vcvt.s32.f32 %v6550
    %v6557 = vcvt.s32.f32 %v6551
    %v6558 = vcvt.s32.f32 %v6552
    %v6559 = vcvt.s32.f32 %v6553
    %v6560 = vmul.f32 %v5965, %v2056
    %v6561 = vmul.f32 %v5966, %v2061
    %v6562 = vmul.f32 %v5967, %v2066
    %v6563 = vmul.f32 %v5968, %v2071
    %v6564 = vmul.f32 %v5969, %v2076
    %v6565 = vmul.f32 %v5970, %v2081
    %6567 = vset.pattern.permute.xlu0 0
    %6568 = vperm.xlu0 %6567, %v6446
    %v6569 = vpop.permute.xlu0 %6568
    %6572 = vset.pattern.permute.xlu0 0
    %6573 = vperm.xlu0 %6572, %v6447
    %v6574 = vpop.permute.xlu0 %6573
    %6577 = vset.pattern.permute.xlu0 0
    %6578 = vperm.xlu0 %6577, %v6448
    %v6579 = vpop.permute.xlu0 %6578
    %6582 = vset.pattern.permute.xlu0 0
    %6583 = vperm.xlu0 %6582, %v6449
    %v6584 = vpop.permute.xlu0 %6583
    %6587 = vset.pattern.permute.xlu0 0
    %6588 = vperm.xlu0 %6587, %v6450
    %v6589 = vpop.permute.xlu0 %6588
    %6592 = vset.pattern.permute.xlu0 0
    %6593 = vperm.xlu0 %6592, %v6451
    %v6594 = vpop.permute.xlu0 %6593
    %v6596 = vmul.f32 %v6569, %v6536
    %v6597 = vmul.f32 %v6574, %v6537
    %v6598 = vmul.f32 %v6579, %v6538
    %v6599 = vmul.f32 %v6584, %v6539
    %v6600 = vmul.f32 %v6589, %v6540
    %v6601 = vmul.f32 %v6594, %v6541
    %6603 = vset.pattern.permute.xlu0 0
    %6604 = vperm.xlu0 %6603, %v6470
    %v6605 = vpop.permute.xlu0 %6604
    %6608 = vset.pattern.permute.xlu0 0
    %6609 = vperm.xlu0 %6608, %v6471
    %v6610 = vpop.permute.xlu0 %6609
    %6613 = vset.pattern.permute.xlu0 0
    %6614 = vperm.xlu0 %6613, %v6472
    %v6615 = vpop.permute.xlu0 %6614
    %6618 = vset.pattern.permute.xlu0 0
    %6619 = vperm.xlu0 %6618, %v6473
    %v6620 = vpop.permute.xlu0 %6619
    %6623 = vset.pattern.permute.xlu0 0
    %6624 = vperm.xlu0 %6623, %v6474
    %v6625 = vpop.permute.xlu0 %6624
    %6628 = vset.pattern.permute.xlu0 0
    %6629 = vperm.xlu0 %6628, %v6475
    %v6630 = vpop.permute.xlu0 %6629
    %v6632 = vmul.f32 %v6605, %v6554
    %v6633 = vmul.f32 %v6610, %v6555
    %v6634 = vmul.f32 %v6615, %v6556
    %v6635 = vmul.f32 %v6620, %v6557
    %v6636 = vmul.f32 %v6625, %v6558
    %v6637 = vmul.f32 %v6630, %v6559
    %v6638 = vadd.f32 %v6596, %v6632
    %v6639 = vadd.f32 %v6597, %v6633
    %v6640 = vadd.f32 %v6598, %v6634
    %v6641 = vadd.f32 %v6599, %v6635
    %v6642 = vadd.f32 %v6600, %v6636
    %v6643 = vadd.f32 %v6601, %v6637
    %6644 = vxpose.xlu0.b32.start [1/16] %v6638, 128
    %6645 = vxpose.xlu0.b32.cont [2/16] %v6639, 128
    %6646 = vxpose.xlu0.b32.cont [3/16] %v6640, 128
    %6647 = vxpose.xlu0.b32.cont [4/16] %v6641, 128
    %6648 = vxpose.xlu0.b32.cont [5/16] %v6642, 128
    %6649 = vxpose.xlu0.b32.cont [6/16] %v6643, 128
    %6650 = vxpose.xlu0.b32.cont [7/16] 0.0, 128
    %6651 = vxpose.xlu0.b32.cont [8/16] 0.0, 128
    %6652 = vxpose.xlu0.b32.cont [9/16] 0.0, 128
    %6653 = vxpose.xlu0.b32.cont [10/16] 0.0, 128
    %6654 = vxpose.xlu0.b32.cont [11/16] 0.0, 128
    %6655 = vxpose.xlu0.b32.cont [12/16] 0.0, 128
    %6656 = vxpose.xlu0.b32.cont [13/16] 0.0, 128
    %6657 = vxpose.xlu0.b32.cont [14/16] 0.0, 128
    %6658 = vxpose.xlu0.b32.cont [15/16] 0.0, 128
    %6659 = vxpose.xlu0.b32.end [16/16] 0.0, 128
    %v6660 = vpop.trf.xlu0
    %v6661 = vpop.trf.xlu0
    %v6662 = vpop.trf.xlu0
    %v6663 = vpop.trf.xlu0
    %v6664 = vpop.trf.xlu0
    %v6665 = vpop.trf.xlu0
    %v6666 = vpop.trf.xlu0
    %v6667 = vpop.trf.xlu0
    %v6668 = vpop.trf.xlu0
    %v6669 = vpop.trf.xlu0
    %v6670 = vpop.trf.xlu0
    %v6671 = vpop.trf.xlu0
    %v6672 = vpop.trf.xlu0
    %v6673 = vpop.trf.xlu0
    %v6674 = vpop.trf.xlu0
    %v6675 = vpop.trf.xlu0
    %v6677 = vsel %vm125, %v6660, 0
    %v6680 = vsel %vm125, %v6661, 0
    %v6683 = vsel %vm125, %v6662, 0
    %6685 = vmatpush.msra.mxu0 0.0
    %6686 = vmatpush.msra.mxu0 0.0
    %6687 = vmatpush.msra.mxu0 0.0
    %6688 = vmatpush.msra.mxu0 0.0
    %6689 = vmatpush.msra.mxu0 0.0
    %6690 = vmatpush.msra.mxu0 0.0
    %6691 = vmatpush.msra.mxu0 0.0
    %6692 = vmatpush.msra.mxu0 0.0
    %6693 = vmatpush.msra.mxu0 0.0
    %6694 = vmatpush.msra.mxu0 0.0
    %6695 = vmatpush.msra.mxu0 %v6565
    %6696 = vmatpush.msra.mxu0 %v6564
    %6697 = vmatpush.msra.mxu0 %v6563
    %6698 = vmatpush.msra.mxu0 %v6562
    %6699 = vmatpush.msra.mxu0 %v6561
    %6700 = vmatpush.msra.mxu0 %v6560
    %6701 = vmatmul.f32.gmra.mxu0 %v6677
    %v6702 = vpop.f32.mrf.mxu0
    %v6703 = vadd.f32 0.0, %v6702
    %6704 = vmatmul.f32.gmra.mxu0 %v6680
    %v6705 = vpop.f32.mrf.mxu0
    %v6706 = vadd.f32 0.0, %v6705
    %6707 = vmatmul.f32.gmra.mxu0 %v6683
    %v6708 = vpop.f32.mrf.mxu0
    %v6709 = vadd.f32 0.0, %v6708
    %6710 = vdwg.mxu0
    %v6711 = vpack.c.bf16 %v6706, %v6703
    %v6712 = vpack.c.bf16 %v6709, %v6709
    %v6713 = vld [vmem:[%s20] sm:$0xf]
    %v6714 = vld [vmem:[%s20 + $0x4] sm:$0xf]
    %v6715 = vld [vmem:[%s20 + $0x8] sm:$0xf]
    %v6716 = vld [vmem:[%s20 + $0xc] sm:$0xf]
    %v6717 = vld [vmem:[%s21] sm:$0x1]
    %v6719 = vperm.slane %v6717, 0
    %v6725 = vunpack.c.l.b16 %v6713
    %v6726 = vunpack.c.l.b16 %v6714
    %v6727 = vunpack.c.l.b16 %v6715
    %v6728 = vunpack.c.l.b16 %v6716
    %v6729 = vpack.c.b16 %v6726, %v6725
    %v6730 = vpack.c.b16 %v6728, %v6727
    %v6734 = vsel %vm163, %v6711, 0
    %v6737 = vsel %vm163, %v6712, 0
    %6739 = vmatpush.bf16.msra.mxu0 0
    %6740 = vmatpush.bf16.msra.mxu0 0
    %6741 = vmatpush.bf16.msra.mxu0 0
    %6742 = vmatpush.bf16.msra.mxu0 0
    %6743 = vmatpush.bf16.msra.mxu0 0
    %6744 = vmatpush.bf16.msra.mxu0 0
    %6745 = vmatpush.bf16.msra.mxu0 %v6730
    %6746 = vmatpush.bf16.msra.mxu0 %v6729
    %6747 = vmatmul.bf16.gmra.mxu0 %v6734
    %v6748 = vpop.f32.mrf.mxu0
    %v6749 = vadd.f32 %v6719, %v6748
    %v6750 = vpop.f32.mrf.mxu0
    %v6751 = vadd.f32 %v6719, %v6750
    %6752 = vmatmul.bf16.gmra.mxu0 %v6737
    %v6753 = vpop.f32.mrf.mxu0
    %v6754 = vadd.f32 %v6719, %v6753
    %v6755 = vpop.f32.mrf.mxu0
    %6756 = vdwg.mxu0
    %v6757 = vmul.f32 %v6749, 0.5
    %v6758 = vmul.f32 %v6751, 0.5
    %v6759 = vmul.f32 %v6754, 0.5
    %v6760 = vmul.f32 %v6749, 0.70710677
    %v6761 = vmul.f32 %v6751, 0.70710677
    %v6762 = vmul.f32 %v6754, 0.70710677
    %v6763 = vmul.f32 %v6760, %v6760
    %v6764 = vmin.f32 16.0, %v6763
    %v6765 = vmul.f32 %v6764, 2.1237322e-06
    %v6766 = vadd.f32 %v6765, 0.00028619796
    %v6767 = vmul.f32 %v6764, %v6766
    %v6768 = vadd.f32 %v6767, 0.0036580483
    %v6769 = vmul.f32 %v6764, %v6768
    %v6770 = vadd.f32 %v6769, 0.05243302
    %v6771 = vmul.f32 %v6764, %v6770
    %v6772 = vadd.f32 %v6771, 0.18741608
    %v6773 = vmul.f32 %v6764, %v6772
    %v6774 = vadd.f32 %v6773, 1.1283791
    %v6775 = vmul.f32 %v6760, %v6774
    %v6776 = vmul.f32 %v6764, 3.8918573e-05
    %v6777 = vadd.f32 %v6776, 0.001143296
    %v6778 = vmul.f32 %v6764, %v6777
    %v6779 = vadd.f32 %v6778, 0.014752088
    %v6780 = vmul.f32 %v6764, %v6779
    %v6781 = vadd.f32 %v6780, 0.112945676
    %v6782 = vmul.f32 %v6764, %v6781
    %v6783 = vadd.f32 %v6782, 0.4994258
    %v6784 = vmul.f32 %v6764, %v6783
    %v6785 = vadd.f32 %v6784, 1.0
    %v6786 = vrcp.pop %v6785
    %v6787 = vmul.f32 %v6785, %v6786
    %v6788 = vsub.f32 1.0, %v6787
    %v6789 = vmul.f32 %v6786, %v6788
    %v6790 = vadd.f32 %v6786, %v6789
    %vm6791 = vweird.f32 %v6785
    %vm6792 = vweird.f32 %v6786
    %vm6793 = vmor %vm6791, %vm6792
    %v6794 = vsel %vm6793, %v6786, %v6790
    %v6795 = vand.u32 2147483647, %v6785
    %vm6796 = vcmp.eq.f32.partialorder %v6795, 8.507059e+37
    %v6797 = vand.u32 %v6785, 2147483648
    %v6798 = vor.u32 1.1754944e-38, %v6797
    %v6799 = vsel %vm6796, %v6798, %v6794
    %v6800 = vmul.f32 %v6775, %v6799
    %v6801 = vmin.f32 %v6800, 1.0
    %v6802 = vmax.f32 %v6801, -1.0
    %v6803 = vmul.f32 %v6761, %v6761
    %v6804 = vmin.f32 16.0, %v6803
    %v6805 = vmul.f32 %v6804, 2.1237322e-06
    %v6806 = vadd.f32 %v6805, 0.00028619796
    %v6807 = vmul.f32 %v6804, %v6806
    %v6808 = vadd.f32 %v6807, 0.0036580483
    %v6809 = vmul.f32 %v6804, %v6808
    %v6810 = vadd.f32 %v6809, 0.05243302
    %v6811 = vmul.f32 %v6804, %v6810
    %v6812 = vadd.f32 %v6811, 0.18741608
    %v6813 = vmul.f32 %v6804, %v6812
    %v6814 = vadd.f32 %v6813, 1.1283791
    %v6815 = vmul.f32 %v6761, %v6814
    %v6816 = vmul.f32 %v6804, 3.8918573e-05
    %v6817 = vadd.f32 %v6816, 0.001143296
    %v6818 = vmul.f32 %v6804, %v6817
    %v6819 = vadd.f32 %v6818, 0.014752088
    %v6820 = vmul.f32 %v6804, %v6819
    %v6821 = vadd.f32 %v6820, 0.112945676
    %v6822 = vmul.f32 %v6804, %v6821
    %v6823 = vadd.f32 %v6822, 0.4994258
    %v6824 = vmul.f32 %v6804, %v6823
    %v6825 = vadd.f32 %v6824, 1.0
    %v6826 = vrcp.pop %v6825
    %v6827 = vmul.f32 %v6825, %v6826
    %v6828 = vsub.f32 1.0, %v6827
    %v6829 = vmul.f32 %v6826, %v6828
    %v6830 = vadd.f32 %v6826, %v6829
    %vm6831 = vweird.f32 %v6825
    %vm6832 = vweird.f32 %v6826
    %vm6833 = vmor %vm6831, %vm6832
    %v6834 = vsel %vm6833, %v6826, %v6830
    %v6835 = vand.u32 2147483647, %v6825
    %vm6836 = vcmp.eq.f32.partialorder %v6835, 8.507059e+37
    %v6837 = vand.u32 %v6825, 2147483648
    %v6838 = vor.u32 1.1754944e-38, %v6837
    %v6839 = vsel %vm6836, %v6838, %v6834
    %v6840 = vmul.f32 %v6815, %v6839
    %v6841 = vmin.f32 %v6840, 1.0
    %v6842 = vmax.f32 %v6841, -1.0
    %v6843 = vmul.f32 %v6762, %v6762
    %v6844 = vmin.f32 16.0, %v6843
    %v6845 = vmul.f32 %v6844, 2.1237322e-06
    %v6846 = vadd.f32 %v6845, 0.00028619796
    %v6847 = vmul.f32 %v6844, %v6846
    %v6848 = vadd.f32 %v6847, 0.0036580483
    %v6849 = vmul.f32 %v6844, %v6848
    %v6850 = vadd.f32 %v6849, 0.05243302
    %v6851 = vmul.f32 %v6844, %v6850
    %v6852 = vadd.f32 %v6851, 0.18741608
    %v6853 = vmul.f32 %v6844, %v6852
    %v6854 = vadd.f32 %v6853, 1.1283791
    %v6855 = vmul.f32 %v6762, %v6854
    %v6856 = vmul.f32 %v6844, 3.8918573e-05
    %v6857 = vadd.f32 %v6856, 0.001143296
    %v6858 = vmul.f32 %v6844, %v6857
    %v6859 = vadd.f32 %v6858, 0.014752088
    %v6860 = vmul.f32 %v6844, %v6859
    %v6861 = vadd.f32 %v6860, 0.112945676
    %v6862 = vmul.f32 %v6844, %v6861
    %v6863 = vadd.f32 %v6862, 0.4994258
    %v6864 = vmul.f32 %v6844, %v6863
    %v6865 = vadd.f32 %v6864, 1.0
    %v6866 = vrcp.pop %v6865
    %v6867 = vmul.f32 %v6865, %v6866
    %v6868 = vsub.f32 1.0, %v6867
    %v6869 = vmul.f32 %v6866, %v6868
    %v6870 = vadd.f32 %v6866, %v6869
    %vm6871 = vweird.f32 %v6865
    %vm6872 = vweird.f32 %v6866
    %vm6873 = vmor %vm6871, %vm6872
    %v6874 = vsel %vm6873, %v6866, %v6870
    %v6875 = vand.u32 2147483647, %v6865
    %vm6876 = vcmp.eq.f32.partialorder %v6875, 8.507059e+37
    %v6877 = vand.u32 %v6865, 2147483648
    %v6878 = vor.u32 1.1754944e-38, %v6877
    %v6879 = vsel %vm6876, %v6878, %v6874
    %v6880 = vmul.f32 %v6855, %v6879
    %v6881 = vmin.f32 %v6880, 1.0
    %v6882 = vmax.f32 %v6881, -1.0
    %v6883 = vadd.f32 %v6802, 1.0
    %v6884 = vadd.f32 %v6842, 1.0
    %v6885 = vadd.f32 %v6882, 1.0
    %v6886 = vmul.f32 %v6757, %v6883
    %v6887 = vmul.f32 %v6758, %v6884
    %v6888 = vmul.f32 %v6759, %v6885
    %v6889 = vpack.c.bf16 %v6887, %v6886
    %v6890 = vpack.c.bf16 %v6888, %v6888
    %v6891 = vld [vmem:[%s22] sm:$0xf]
    %v6892 = vld [vmem:[%s22 + $0x4] sm:$0xf]
    %v6893 = vld [vmem:[%s22 + $0x8] sm:$0xf]
    %v6894 = vld [vmem:[%s22 + $0xc] sm:$0xf]
    %v6895 = vld [vmem:[%s22 + $0x10] sm:$0xf]
    %v6896 = vld [vmem:[%s22 + $0x14] sm:$0xf]
    %v6897 = vld [vmem:[%s22 + $0x18] sm:$0xf]
    %v6898 = vld [vmem:[%s22 + $0x1c] sm:$0xf]
    %v6899 = vld [vmem:[%s23] sm:$0x1]
    %v6901 = vperm.slane %v6899, 0
    %v6911 = vunpack.c.l.b16 %v6891
    %v6912 = vunpack.c.l.b16 %v6892
    %v6913 = vunpack.c.l.b16 %v6893
    %v6914 = vunpack.c.l.b16 %v6894
    %v6915 = vunpack.c.l.b16 %v6895
    %v6916 = vunpack.c.l.b16 %v6896
    %v6917 = vunpack.c.l.b16 %v6897
    %v6918 = vunpack.c.l.b16 %v6898
    %v6919 = vpack.c.b16 %v6912, %v6911
    %v6920 = vpack.c.b16 %v6914, %v6913
    %v6921 = vpack.c.b16 %v6916, %v6915
    %v6922 = vpack.c.b16 %v6918, %v6917
    %v6928 = vsel %vm2789, %v6889, 0
    %v6931 = vsel %vm2789, %v6890, 0
    %6933 = vmatpush.bf16.msra.mxu0 0
    %6934 = vmatpush.bf16.msra.mxu0 0
    %6935 = vmatpush.bf16.msra.mxu0 0
    %6936 = vmatpush.bf16.msra.mxu0 0
    %6937 = vmatpush.bf16.msra.mxu0 %v6922
    %6938 = vmatpush.bf16.msra.mxu0 %v6921
    %6939 = vmatpush.bf16.msra.mxu0 %v6920
    %6940 = vmatpush.bf16.msra.mxu0 %v6919
    %6941 = vmatmul.bf16.gmra.mxu0 %v6928
    %v6942 = vpop.f32.mrf.mxu0
    %v6943 = vadd.f32 %v6901, %v6942
    %v6944 = vpop.f32.mrf.mxu0
    %v6945 = vadd.f32 %v6901, %v6944
    %6946 = vmatmul.bf16.gmra.mxu0 %v6931
    %v6947 = vpop.f32.mrf.mxu0
    %v6948 = vadd.f32 %v6901, %v6947
    %v6949 = vpop.f32.mrf.mxu0
    %6950 = vdwg.mxu0
    %v6951 = vmul.f32 %v6446, %v6097
    %v6952 = vmul.f32 %v6447, %v6112
    %v6953 = vmul.f32 %v6448, %v6127
    %v6954 = vmul.f32 %v6449, %v6142
    %v6955 = vmul.f32 %v6450, %v6157
    %v6956 = vmul.f32 %v6451, %v6172
    %6958 = vset.pattern.permute.xlu0 0
    %6959 = vperm.xlu0 %6958, %v6951
    %v6960 = vpop.permute.xlu0 %6959
    %6963 = vset.pattern.permute.xlu0 0
    %6964 = vperm.xlu0 %6963, %v6952
    %v6965 = vpop.permute.xlu0 %6964
    %6968 = vset.pattern.permute.xlu0 0
    %6969 = vperm.xlu0 %6968, %v6953
    %v6970 = vpop.permute.xlu0 %6969
    %6973 = vset.pattern.permute.xlu0 0
    %6974 = vperm.xlu0 %6973, %v6954
    %v6975 = vpop.permute.xlu0 %6974
    %6978 = vset.pattern.permute.xlu0 0
    %6979 = vperm.xlu0 %6978, %v6955
    %v6980 = vpop.permute.xlu0 %6979
    %6983 = vset.pattern.permute.xlu0 0
    %6984 = vperm.xlu0 %6983, %v6956
    %v6985 = vpop.permute.xlu0 %6984
    %v6987 = vmul.f32 %v6960, %v6536
    %v6988 = vmul.f32 %v6965, %v6537
    %v6989 = vmul.f32 %v6970, %v6538
    %v6990 = vmul.f32 %v6975, %v6539
    %v6991 = vmul.f32 %v6980, %v6540
    %v6992 = vmul.f32 %v6985, %v6541
    %v6993 = vmul.f32 %v6470, %v6097
    %v6994 = vmul.f32 %v6471, %v6112
    %v6995 = vmul.f32 %v6472, %v6127
    %v6996 = vmul.f32 %v6473, %v6142
    %v6997 = vmul.f32 %v6474, %v6157
    %v6998 = vmul.f32 %v6475, %v6172
    %7000 = vset.pattern.permute.xlu0 0
    %7001 = vperm.xlu0 %7000, %v6993
    %v7002 = vpop.permute.xlu0 %7001
    %7005 = vset.pattern.permute.xlu0 0
    %7006 = vperm.xlu0 %7005, %v6994
    %v7007 = vpop.permute.xlu0 %7006
    %7010 = vset.pattern.permute.xlu0 0
    %7011 = vperm.xlu0 %7010, %v6995
    %v7012 = vpop.permute.xlu0 %7011
    %7015 = vset.pattern.permute.xlu0 0
    %7016 = vperm.xlu0 %7015, %v6996
    %v7017 = vpop.permute.xlu0 %7016
    %7020 = vset.pattern.permute.xlu0 0
    %7021 = vperm.xlu0 %7020, %v6997
    %v7022 = vpop.permute.xlu0 %7021
    %7025 = vset.pattern.permute.xlu0 0
    %7026 = vperm.xlu0 %7025, %v6998
    %v7027 = vpop.permute.xlu0 %7026
    %v7029 = vmul.f32 %v7002, %v6554
    %v7030 = vmul.f32 %v7007, %v6555
    %v7031 = vmul.f32 %v7012, %v6556
    %v7032 = vmul.f32 %v7017, %v6557
    %v7033 = vmul.f32 %v7022, %v6558
    %v7034 = vmul.f32 %v7027, %v6559
    %v7035 = vadd.f32 %v6987, %v7029
    %v7036 = vadd.f32 %v6988, %v7030
    %v7037 = vadd.f32 %v6989, %v7031
    %v7038 = vadd.f32 %v6990, %v7032
    %v7039 = vadd.f32 %v6991, %v7033
    %v7040 = vadd.f32 %v6992, %v7034
    %7041 = vset.pattern.permute.xlu0 1
    %7042 = vperm.xlu0 %7041, %v6446
    %v7043 = vpop.permute.xlu0 %7042
    %7045 = vset.pattern.permute.xlu0 1
    %7046 = vperm.xlu0 %7045, %v6447
    %v7047 = vpop.permute.xlu0 %7046
    %7049 = vset.pattern.permute.xlu0 1
    %7050 = vperm.xlu0 %7049, %v6448
    %v7051 = vpop.permute.xlu0 %7050
    %7053 = vset.pattern.permute.xlu0 1
    %7054 = vperm.xlu0 %7053, %v6449
    %v7055 = vpop.permute.xlu0 %7054
    %7057 = vset.pattern.permute.xlu0 1
    %7058 = vperm.xlu0 %7057, %v6450
    %v7059 = vpop.permute.xlu0 %7058
    %7061 = vset.pattern.permute.xlu0 1
    %7062 = vperm.xlu0 %7061, %v6451
    %v7063 = vpop.permute.xlu0 %7062
    %v7065 = vmul.f32 %v7043, %v6536
    %v7066 = vmul.f32 %v7047, %v6537
    %v7067 = vmul.f32 %v7051, %v6538
    %v7068 = vmul.f32 %v7055, %v6539
    %v7069 = vmul.f32 %v7059, %v6540
    %v7070 = vmul.f32 %v7063, %v6541
    %7071 = vset.pattern.permute.xlu0 1
    %7072 = vperm.xlu0 %7071, %v6470
    %v7073 = vpop.permute.xlu0 %7072
    %7075 = vset.pattern.permute.xlu0 1
    %7076 = vperm.xlu0 %7075, %v6471
    %v7077 = vpop.permute.xlu0 %7076
    %7079 = vset.pattern.permute.xlu0 1
    %7080 = vperm.xlu0 %7079, %v6472
    %v7081 = vpop.permute.xlu0 %7080
    %7083 = vset.pattern.permute.xlu0 1
    %7084 = vperm.xlu0 %7083, %v6473
    %v7085 = vpop.permute.xlu0 %7084
    %7087 = vset.pattern.permute.xlu0 1
    %7088 = vperm.xlu0 %7087, %v6474
    %v7089 = vpop.permute.xlu0 %7088
    %7091 = vset.pattern.permute.xlu0 1
    %7092 = vperm.xlu0 %7091, %v6475
    %v7093 = vpop.permute.xlu0 %7092
    %v7095 = vmul.f32 %v7073, %v6554
    %v7096 = vmul.f32 %v7077, %v6555
    %v7097 = vmul.f32 %v7081, %v6556
    %v7098 = vmul.f32 %v7085, %v6557
    %v7099 = vmul.f32 %v7089, %v6558
    %v7100 = vmul.f32 %v7093, %v6559
    %v7101 = vadd.f32 %v7065, %v7095
    %v7102 = vadd.f32 %v7066, %v7096
    %v7103 = vadd.f32 %v7067, %v7097
    %v7104 = vadd.f32 %v7068, %v7098
    %v7105 = vadd.f32 %v7069, %v7099
    %v7106 = vadd.f32 %v7070, %v7100
    %7107 = vxpose.xlu0.b32.start [1/16] %v7101, 128
    %7108 = vxpose.xlu0.b32.cont [2/16] %v7102, 128
    %7109 = vxpose.xlu0.b32.cont [3/16] %v7103, 128
    %7110 = vxpose.xlu0.b32.cont [4/16] %v7104, 128
    %7111 = vxpose.xlu0.b32.cont [5/16] %v7105, 128
    %7112 = vxpose.xlu0.b32.cont [6/16] %v7106, 128
    %7113 = vxpose.xlu0.b32.cont [7/16] 0.0, 128
    %7114 = vxpose.xlu0.b32.cont [8/16] 0.0, 128
    %7115 = vxpose.xlu0.b32.cont [9/16] 0.0, 128
    %7116 = vxpose.xlu0.b32.cont [10/16] 0.0, 128
    %7117 = vxpose.xlu0.b32.cont [11/16] 0.0, 128
    %7118 = vxpose.xlu0.b32.cont [12/16] 0.0, 128
    %7119 = vxpose.xlu0.b32.cont [13/16] 0.0, 128
    %7120 = vxpose.xlu0.b32.cont [14/16] 0.0, 128
    %7121 = vxpose.xlu0.b32.cont [15/16] 0.0, 128
    %7122 = vxpose.xlu0.b32.end [16/16] 0.0, 128
    %v7123 = vpop.trf.xlu0
    %v7124 = vpop.trf.xlu0
    %v7125 = vpop.trf.xlu0
    %v7126 = vpop.trf.xlu0
    %v7127 = vpop.trf.xlu0
    %v7128 = vpop.trf.xlu0
    %v7129 = vpop.trf.xlu0
    %v7130 = vpop.trf.xlu0
    %v7131 = vpop.trf.xlu0
    %v7132 = vpop.trf.xlu0
    %v7133 = vpop.trf.xlu0
    %v7134 = vpop.trf.xlu0
    %v7135 = vpop.trf.xlu0
    %v7136 = vpop.trf.xlu0
    %v7137 = vpop.trf.xlu0
    %v7138 = vpop.trf.xlu0
    %v7140 = vsel %vm125, %v7123, 0
    %v7143 = vsel %vm125, %v7124, 0
    %v7146 = vsel %vm125, %v7125, 0
    %7148 = vmatpush.msra.mxu0 0.0
    %7149 = vmatpush.msra.mxu0 0.0
    %7150 = vmatpush.msra.mxu0 0.0
    %7151 = vmatpush.msra.mxu0 0.0
    %7152 = vmatpush.msra.mxu0 0.0
    %7153 = vmatpush.msra.mxu0 0.0
    %7154 = vmatpush.msra.mxu0 0.0
    %7155 = vmatpush.msra.mxu0 0.0
    %7156 = vmatpush.msra.mxu0 0.0
    %7157 = vmatpush.msra.mxu0 0.0
    %7158 = vmatpush.msra.mxu0 %v6565
    %7159 = vmatpush.msra.mxu0 %v6564
    %7160 = vmatpush.msra.mxu0 %v6563
    %7161 = vmatpush.msra.mxu0 %v6562
    %7162 = vmatpush.msra.mxu0 %v6561
    %7163 = vmatpush.msra.mxu0 %v6560
    %7164 = vmatmul.f32.gmra.mxu0 %v7140
    %v7165 = vpop.f32.mrf.mxu0
    %v7166 = vadd.f32 0.0, %v7165
    %7167 = vmatmul.f32.gmra.mxu0 %v7143
    %v7168 = vpop.f32.mrf.mxu0
    %v7169 = vadd.f32 0.0, %v7168
    %7170 = vmatmul.f32.gmra.mxu0 %v7146
    %v7171 = vpop.f32.mrf.mxu0
    %v7172 = vadd.f32 0.0, %v7171
    %7173 = vdwg.mxu0
    %v7174 = vpack.c.bf16 %v7169, %v7166
    %v7175 = vpack.c.bf16 %v7172, %v7172
    %v7176 = vld [vmem:[%s3039] sm:$0xf]
    %v7177 = vld [vmem:[%s3039 + $0x4] sm:$0xf]
    %v7178 = vld [vmem:[%s3039 + $0x8] sm:$0xf]
    %v7179 = vld [vmem:[%s3039 + $0xc] sm:$0xf]
    %v7180 = vld [vmem:[%s3044] sm:$0x1]
    %v7182 = vperm.slane %v7180, 0
    %v7188 = vunpack.c.l.b16 %v7176
    %v7189 = vunpack.c.l.b16 %v7177
    %v7190 = vunpack.c.l.b16 %v7178
    %v7191 = vunpack.c.l.b16 %v7179
    %v7192 = vpack.c.b16 %v7189, %v7188
    %v7193 = vpack.c.b16 %v7191, %v7190
    %v7197 = vsel %vm163, %v7174, 0
    %v7200 = vsel %vm163, %v7175, 0
    %7202 = vmatpush.bf16.msra.mxu0 0
    %7203 = vmatpush.bf16.msra.mxu0 0
    %7204 = vmatpush.bf16.msra.mxu0 0
    %7205 = vmatpush.bf16.msra.mxu0 0
    %7206 = vmatpush.bf16.msra.mxu0 0
    %7207 = vmatpush.bf16.msra.mxu0 0
    %7208 = vmatpush.bf16.msra.mxu0 %v7193
    %7209 = vmatpush.bf16.msra.mxu0 %v7192
    %7210 = vmatmul.bf16.gmra.mxu0 %v7197
    %v7211 = vpop.f32.mrf.mxu0
    %v7212 = vadd.f32 %v7182, %v7211
    %v7213 = vpop.f32.mrf.mxu0
    %v7214 = vadd.f32 %v7182, %v7213
    %7215 = vmatmul.bf16.gmra.mxu0 %v7200
    %v7216 = vpop.f32.mrf.mxu0
    %v7217 = vadd.f32 %v7182, %v7216
    %v7218 = vpop.f32.mrf.mxu0
    %7219 = vdwg.mxu0
    %v7220 = vmul.f32 %v7212, 0.5
    %v7221 = vmul.f32 %v7214, 0.5
    %v7222 = vmul.f32 %v7217, 0.5
    %v7223 = vmul.f32 %v7212, 0.70710677
    %v7224 = vmul.f32 %v7214, 0.70710677
    %v7225 = vmul.f32 %v7217, 0.70710677
    %v7226 = vmul.f32 %v7223, %v7223
    %v7227 = vmin.f32 16.0, %v7226
    %v7228 = vmul.f32 %v7227, 2.1237322e-06
    %v7229 = vadd.f32 %v7228, 0.00028619796
    %v7230 = vmul.f32 %v7227, %v7229
    %v7231 = vadd.f32 %v7230, 0.0036580483
    %v7232 = vmul.f32 %v7227, %v7231
    %v7233 = vadd.f32 %v7232, 0.05243302
    %v7234 = vmul.f32 %v7227, %v7233
    %v7235 = vadd.f32 %v7234, 0.18741608
    %v7236 = vmul.f32 %v7227, %v7235
    %v7237 = vadd.f32 %v7236, 1.1283791
    %v7238 = vmul.f32 %v7223, %v7237
    %v7239 = vmul.f32 %v7227, 3.8918573e-05
    %v7240 = vadd.f32 %v7239, 0.001143296
    %v7241 = vmul.f32 %v7227, %v7240
    %v7242 = vadd.f32 %v7241, 0.014752088
    %v7243 = vmul.f32 %v7227, %v7242
    %v7244 = vadd.f32 %v7243, 0.112945676
    %v7245 = vmul.f32 %v7227, %v7244
    %v7246 = vadd.f32 %v7245, 0.4994258
    %v7247 = vmul.f32 %v7227, %v7246
    %v7248 = vadd.f32 %v7247, 1.0
    %v7249 = vrcp.pop %v7248
    %v7250 = vmul.f32 %v7248, %v7249
    %v7251 = vsub.f32 1.0, %v7250
    %v7252 = vmul.f32 %v7249, %v7251
    %v7253 = vadd.f32 %v7249, %v7252
    %vm7254 = vweird.f32 %v7248
    %vm7255 = vweird.f32 %v7249
    %vm7256 = vmor %vm7254, %vm7255
    %v7257 = vsel %vm7256, %v7249, %v7253
    %v7258 = vand.u32 2147483647, %v7248
    %vm7259 = vcmp.eq.f32.partialorder %v7258, 8.507059e+37
    %v7260 = vand.u32 %v7248, 2147483648
    %v7261 = vor.u32 1.1754944e-38, %v7260
    %v7262 = vsel %vm7259, %v7261, %v7257
    %v7263 = vmul.f32 %v7238, %v7262
    %v7264 = vmin.f32 %v7263, 1.0
    %v7265 = vmax.f32 %v7264, -1.0
    %v7266 = vmul.f32 %v7224, %v7224
    %v7267 = vmin.f32 16.0, %v7266
    %v7268 = vmul.f32 %v7267, 2.1237322e-06
    %v7269 = vadd.f32 %v7268, 0.00028619796
    %v7270 = vmul.f32 %v7267, %v7269
    %v7271 = vadd.f32 %v7270, 0.0036580483
    %v7272 = vmul.f32 %v7267, %v7271
    %v7273 = vadd.f32 %v7272, 0.05243302
    %v7274 = vmul.f32 %v7267, %v7273
    %v7275 = vadd.f32 %v7274, 0.18741608
    %v7276 = vmul.f32 %v7267, %v7275
    %v7277 = vadd.f32 %v7276, 1.1283791
    %v7278 = vmul.f32 %v7224, %v7277
    %v7279 = vmul.f32 %v7267, 3.8918573e-05
    %v7280 = vadd.f32 %v7279, 0.001143296
    %v7281 = vmul.f32 %v7267, %v7280
    %v7282 = vadd.f32 %v7281, 0.014752088
    %v7283 = vmul.f32 %v7267, %v7282
    %v7284 = vadd.f32 %v7283, 0.112945676
    %v7285 = vmul.f32 %v7267, %v7284
    %v7286 = vadd.f32 %v7285, 0.4994258
    %v7287 = vmul.f32 %v7267, %v7286
    %v7288 = vadd.f32 %v7287, 1.0
    %v7289 = vrcp.pop %v7288
    %v7290 = vmul.f32 %v7288, %v7289
    %v7291 = vsub.f32 1.0, %v7290
    %v7292 = vmul.f32 %v7289, %v7291
    %v7293 = vadd.f32 %v7289, %v7292
    %vm7294 = vweird.f32 %v7288
    %vm7295 = vweird.f32 %v7289
    %vm7296 = vmor %vm7294, %vm7295
    %v7297 = vsel %vm7296, %v7289, %v7293
    %v7298 = vand.u32 2147483647, %v7288
    %vm7299 = vcmp.eq.f32.partialorder %v7298, 8.507059e+37
    %v7300 = vand.u32 %v7288, 2147483648
    %v7301 = vor.u32 1.1754944e-38, %v7300
    %v7302 = vsel %vm7299, %v7301, %v7297
    %v7303 = vmul.f32 %v7278, %v7302
    %v7304 = vmin.f32 %v7303, 1.0
    %v7305 = vmax.f32 %v7304, -1.0
    %v7306 = vmul.f32 %v7225, %v7225
    %v7307 = vmin.f32 16.0, %v7306
    %v7308 = vmul.f32 %v7307, 2.1237322e-06
    %v7309 = vadd.f32 %v7308, 0.00028619796
    %v7310 = vmul.f32 %v7307, %v7309
    %v7311 = vadd.f32 %v7310, 0.0036580483
    %v7312 = vmul.f32 %v7307, %v7311
    %v7313 = vadd.f32 %v7312, 0.05243302
    %v7314 = vmul.f32 %v7307, %v7313
    %v7315 = vadd.f32 %v7314, 0.18741608
    %v7316 = vmul.f32 %v7307, %v7315
    %v7317 = vadd.f32 %v7316, 1.1283791
    %v7318 = vmul.f32 %v7225, %v7317
    %v7319 = vmul.f32 %v7307, 3.8918573e-05
    %v7320 = vadd.f32 %v7319, 0.001143296
    %v7321 = vmul.f32 %v7307, %v7320
    %v7322 = vadd.f32 %v7321, 0.014752088
    %v7323 = vmul.f32 %v7307, %v7322
    %v7324 = vadd.f32 %v7323, 0.112945676
    %v7325 = vmul.f32 %v7307, %v7324
    %v7326 = vadd.f32 %v7325, 0.4994258
    %v7327 = vmul.f32 %v7307, %v7326
    %v7328 = vadd.f32 %v7327, 1.0
    %v7329 = vrcp.pop %v7328
    %v7330 = vmul.f32 %v7328, %v7329
    %v7331 = vsub.f32 1.0, %v7330
    %v7332 = vmul.f32 %v7329, %v7331
    %v7333 = vadd.f32 %v7329, %v7332
    %vm7334 = vweird.f32 %v7328
    %vm7335 = vweird.f32 %v7329
    %vm7336 = vmor %vm7334, %vm7335
    %v7337 = vsel %vm7336, %v7329, %v7333
    %v7338 = vand.u32 2147483647, %v7328
    %vm7339 = vcmp.eq.f32.partialorder %v7338, 8.507059e+37
    %v7340 = vand.u32 %v7328, 2147483648
    %v7341 = vor.u32 1.1754944e-38, %v7340
    %v7342 = vsel %vm7339, %v7341, %v7337
    %v7343 = vmul.f32 %v7318, %v7342
    %v7344 = vmin.f32 %v7343, 1.0
    %v7345 = vmax.f32 %v7344, -1.0
    %v7346 = vadd.f32 %v7265, 1.0
    %v7347 = vadd.f32 %v7305, 1.0
    %v7348 = vadd.f32 %v7345, 1.0
    %v7349 = vmul.f32 %v7220, %v7346
    %v7350 = vmul.f32 %v7221, %v7347
    %v7351 = vmul.f32 %v7222, %v7348
    %v7352 = vpack.c.bf16 %v7350, %v7349
    %v7353 = vpack.c.bf16 %v7351, %v7351
    %v7354 = vld [vmem:[%s3219] sm:$0xf]
    %v7355 = vld [vmem:[%s3219 + $0x4] sm:$0xf]
    %v7356 = vld [vmem:[%s3219 + $0x8] sm:$0xf]
    %v7357 = vld [vmem:[%s3219 + $0xc] sm:$0xf]
    %v7358 = vld [vmem:[%s3219 + $0x10] sm:$0xf]
    %v7359 = vld [vmem:[%s3219 + $0x14] sm:$0xf]
    %v7360 = vld [vmem:[%s3219 + $0x18] sm:$0xf]
    %v7361 = vld [vmem:[%s3219 + $0x1c] sm:$0xf]
    %v7362 = vld [vmem:[%s3228] sm:$0x1]
    %v7364 = vperm.slane %v7362, 0
    %v7374 = vunpack.c.l.b16 %v7354
    %v7375 = vunpack.c.l.b16 %v7355
    %v7376 = vunpack.c.l.b16 %v7356
    %v7377 = vunpack.c.l.b16 %v7357
    %v7378 = vunpack.c.l.b16 %v7358
    %v7379 = vunpack.c.l.b16 %v7359
    %v7380 = vunpack.c.l.b16 %v7360
    %v7381 = vunpack.c.l.b16 %v7361
    %v7382 = vpack.c.b16 %v7375, %v7374
    %v7383 = vpack.c.b16 %v7377, %v7376
    %v7384 = vpack.c.b16 %v7379, %v7378
    %v7385 = vpack.c.b16 %v7381, %v7380
    %v7391 = vsel %vm2789, %v7352, 0
    %v7394 = vsel %vm2789, %v7353, 0
    %7396 = vmatpush.bf16.msra.mxu0 0
    %7397 = vmatpush.bf16.msra.mxu0 0
    %7398 = vmatpush.bf16.msra.mxu0 0
    %7399 = vmatpush.bf16.msra.mxu0 0
    %7400 = vmatpush.bf16.msra.mxu0 %v7385
    %7401 = vmatpush.bf16.msra.mxu0 %v7384
    %7402 = vmatpush.bf16.msra.mxu0 %v7383
    %7403 = vmatpush.bf16.msra.mxu0 %v7382
    %7404 = vmatmul.bf16.gmra.mxu0 %v7391
    %v7405 = vpop.f32.mrf.mxu0
    %v7406 = vadd.f32 %v7364, %v7405
    %v7407 = vpop.f32.mrf.mxu0
    %v7408 = vadd.f32 %v7364, %v7407
    %7409 = vmatmul.bf16.gmra.mxu0 %v7394
    %v7410 = vpop.f32.mrf.mxu0
    %v7411 = vadd.f32 %v7364, %v7410
    %v7412 = vpop.f32.mrf.mxu0
    %7413 = vdwg.mxu0
    %7414 = vset.pattern.permute.xlu0 1
    %7415 = vperm.xlu0 %7414, %v6951
    %v7416 = vpop.permute.xlu0 %7415
    %7418 = vset.pattern.permute.xlu0 1
    %7419 = vperm.xlu0 %7418, %v6952
    %v7420 = vpop.permute.xlu0 %7419
    %7422 = vset.pattern.permute.xlu0 1
    %7423 = vperm.xlu0 %7422, %v6953
    %v7424 = vpop.permute.xlu0 %7423
    %7426 = vset.pattern.permute.xlu0 1
    %7427 = vperm.xlu0 %7426, %v6954
    %v7428 = vpop.permute.xlu0 %7427
    %7430 = vset.pattern.permute.xlu0 1
    %7431 = vperm.xlu0 %7430, %v6955
    %v7432 = vpop.permute.xlu0 %7431
    %7434 = vset.pattern.permute.xlu0 1
    %7435 = vperm.xlu0 %7434, %v6956
    %v7436 = vpop.permute.xlu0 %7435
    %v7438 = vmul.f32 %v7416, %v6536
    %v7439 = vmul.f32 %v7420, %v6537
    %v7440 = vmul.f32 %v7424, %v6538
    %v7441 = vmul.f32 %v7428, %v6539
    %v7442 = vmul.f32 %v7432, %v6540
    %v7443 = vmul.f32 %v7436, %v6541
    %7444 = vset.pattern.permute.xlu0 1
    %7445 = vperm.xlu0 %7444, %v6993
    %v7446 = vpop.permute.xlu0 %7445
    %7448 = vset.pattern.permute.xlu0 1
    %7449 = vperm.xlu0 %7448, %v6994
    %v7450 = vpop.permute.xlu0 %7449
    %7452 = vset.pattern.permute.xlu0 1
    %7453 = vperm.xlu0 %7452, %v6995
    %v7454 = vpop.permute.xlu0 %7453
    %7456 = vset.pattern.permute.xlu0 1
    %7457 = vperm.xlu0 %7456, %v6996
    %v7458 = vpop.permute.xlu0 %7457
    %7460 = vset.pattern.permute.xlu0 1
    %7461 = vperm.xlu0 %7460, %v6997
    %v7462 = vpop.permute.xlu0 %7461
    %7464 = vset.pattern.permute.xlu0 1
    %7465 = vperm.xlu0 %7464, %v6998
    %v7466 = vpop.permute.xlu0 %7465
    %v7468 = vmul.f32 %v7446, %v6554
    %v7469 = vmul.f32 %v7450, %v6555
    %v7470 = vmul.f32 %v7454, %v6556
    %v7471 = vmul.f32 %v7458, %v6557
    %v7472 = vmul.f32 %v7462, %v6558
    %v7473 = vmul.f32 %v7466, %v6559
    %v7474 = vadd.f32 %v7438, %v7468
    %v7475 = vadd.f32 %v7439, %v7469
    %v7476 = vadd.f32 %v7440, %v7470
    %v7477 = vadd.f32 %v7441, %v7471
    %v7478 = vadd.f32 %v7442, %v7472
    %v7479 = vadd.f32 %v7443, %v7473
    %v7481 = vsel %vm528, %v7474, 0
    %v7484 = vsel %vm528, %v7475, 0
    %v7487 = vsel %vm528, %v7476, 0
    %v7490 = vsel %vm528, %v7477, 0
    %v7493 = vsel %vm528, %v7478, 0
    %v7496 = vsel %vm528, %v7479, 0
    %7498 = vmatpush.msra.mxu0 0.0
    %7499 = vmatpush.msra.mxu0 0.0
    %7500 = vmatpush.msra.mxu0 0.0
    %7501 = vmatpush.msra.mxu0 0.0
    %7502 = vmatpush.msra.mxu0 0.0
    %7503 = vmatpush.msra.mxu0 0.0
    %7504 = vmatpush.msra.mxu0 0.0
    %7505 = vmatpush.msra.mxu0 0.0
    %7506 = vmatpush.msra.mxu0 0.0
    %7507 = vmatpush.msra.mxu0 0.0
    %7508 = vmatpush.msra.mxu0 0.0
    %7509 = vmatpush.msra.mxu0 0.0
    %7510 = vmatpush.msra.mxu0 0.0
    %7511 = vmatpush.msra.mxu0 %v7411
    %7512 = vmatpush.msra.mxu0 %v7408
    %7513 = vmatpush.msra.mxu0 %v7406
    %7514 = vmatmul.f32.gmra.mxu0 %v7481
    %v7515 = vpop.f32.mrf.mxu0
    %v7516 = vadd.f32 0.0, %v7515
    %7517 = vmatmul.f32.gmra.mxu0 %v7484
    %v7518 = vpop.f32.mrf.mxu0
    %v7519 = vadd.f32 0.0, %v7518
    %7520 = vmatmul.f32.gmra.mxu0 %v7487
    %v7521 = vpop.f32.mrf.mxu0
    %v7522 = vadd.f32 0.0, %v7521
    %7523 = vmatmul.f32.gmra.mxu0 %v7490
    %v7524 = vpop.f32.mrf.mxu0
    %v7525 = vadd.f32 0.0, %v7524
    %7526 = vmatmul.f32.gmra.mxu0 %v7493
    %v7527 = vpop.f32.mrf.mxu0
    %v7528 = vadd.f32 0.0, %v7527
    %7529 = vmatmul.f32.gmra.mxu0 %v7496
    %v7530 = vpop.f32.mrf.mxu0
    %v7531 = vadd.f32 0.0, %v7530
    %7532 = vdwg.mxu0
    %v7534 = vsel %vm528, %v7035, 0
    %v7537 = vsel %vm528, %v7036, 0
    %v7540 = vsel %vm528, %v7037, 0
    %v7543 = vsel %vm528, %v7038, 0
    %v7546 = vsel %vm528, %v7039, 0
    %v7549 = vsel %vm528, %v7040, 0
    %7551 = vmatpush.msra.mxu0 0.0
    %7552 = vmatpush.msra.mxu0 0.0
    %7553 = vmatpush.msra.mxu0 0.0
    %7554 = vmatpush.msra.mxu0 0.0
    %7555 = vmatpush.msra.mxu0 0.0
    %7556 = vmatpush.msra.mxu0 0.0
    %7557 = vmatpush.msra.mxu0 0.0
    %7558 = vmatpush.msra.mxu0 0.0
    %7559 = vmatpush.msra.mxu0 0.0
    %7560 = vmatpush.msra.mxu0 0.0
    %7561 = vmatpush.msra.mxu0 0.0
    %7562 = vmatpush.msra.mxu0 0.0
    %7563 = vmatpush.msra.mxu0 0.0
    %7564 = vmatpush.msra.mxu0 %v6948
    %7565 = vmatpush.msra.mxu0 %v6945
    %7566 = vmatpush.msra.mxu0 %v6943
    %7567 = vmatmul.f32.gmra.mxu0 %v7534
    %v7568 = vpop.f32.mrf.mxu0
    %v7569 = vadd.f32 %v7516, %v7568
    %7570 = vmatmul.f32.gmra.mxu0 %v7537
    %v7571 = vpop.f32.mrf.mxu0
    %v7572 = vadd.f32 %v7519, %v7571
    %7573 = vmatmul.f32.gmra.mxu0 %v7540
    %v7574 = vpop.f32.mrf.mxu0
    %v7575 = vadd.f32 %v7522, %v7574
    %7576 = vmatmul.f32.gmra.mxu0 %v7543
    %v7577 = vpop.f32.mrf.mxu0
    %v7578 = vadd.f32 %v7525, %v7577
    %7579 = vmatmul.f32.gmra.mxu0 %v7546
    %v7580 = vpop.f32.mrf.mxu0
    %v7581 = vadd.f32 %v7528, %v7580
    %7582 = vmatmul.f32.gmra.mxu0 %v7549
    %v7583 = vpop.f32.mrf.mxu0
    %v7584 = vadd.f32 %v7531, %v7583
    %7585 = vdwg.mxu0
    %7586 = vset.pattern.permute.xlu0 2
    %7587 = vperm.xlu0 %7586, %v6446
    %v7588 = vpop.permute.xlu0 %7587
    %7590 = vset.pattern.permute.xlu0 2
    %7591 = vperm.xlu0 %7590, %v6447
    %v7592 = vpop.permute.xlu0 %7591
    %7594 = vset.pattern.permute.xlu0 2
    %7595 = vperm.xlu0 %7594, %v6448
    %v7596 = vpop.permute.xlu0 %7595
    %7598 = vset.pattern.permute.xlu0 2
    %7599 = vperm.xlu0 %7598, %v6449
    %v7600 = vpop.permute.xlu0 %7599
    %7602 = vset.pattern.permute.xlu0 2
    %7603 = vperm.xlu0 %7602, %v6450
    %v7604 = vpop.permute.xlu0 %7603
    %7606 = vset.pattern.permute.xlu0 2
    %7607 = vperm.xlu0 %7606, %v6451
    %v7608 = vpop.permute.xlu0 %7607
    %v7610 = vmul.f32 %v7588, %v6536
    %v7611 = vmul.f32 %v7592, %v6537
    %v7612 = vmul.f32 %v7596, %v6538
    %v7613 = vmul.f32 %v7600, %v6539
    %v7614 = vmul.f32 %v7604, %v6540
    %v7615 = vmul.f32 %v7608, %v6541
    %7616 = vset.pattern.permute.xlu0 2
    %7617 = vperm.xlu0 %7616, %v6470
    %v7618 = vpop.permute.xlu0 %7617
    %7620 = vset.pattern.permute.xlu0 2
    %7621 = vperm.xlu0 %7620, %v6471
    %v7622 = vpop.permute.xlu0 %7621
    %7624 = vset.pattern.permute.xlu0 2
    %7625 = vperm.xlu0 %7624, %v6472
    %v7626 = vpop.permute.xlu0 %7625
    %7628 = vset.pattern.permute.xlu0 2
    %7629 = vperm.xlu0 %7628, %v6473
    %v7630 = vpop.permute.xlu0 %7629
    %7632 = vset.pattern.permute.xlu0 2
    %7633 = vperm.xlu0 %7632, %v6474
    %v7634 = vpop.permute.xlu0 %7633
    %7636 = vset.pattern.permute.xlu0 2
    %7637 = vperm.xlu0 %7636, %v6475
    %v7638 = vpop.permute.xlu0 %7637
    %v7640 = vmul.f32 %v7618, %v6554
    %v7641 = vmul.f32 %v7622, %v6555
    %v7642 = vmul.f32 %v7626, %v6556
    %v7643 = vmul.f32 %v7630, %v6557
    %v7644 = vmul.f32 %v7634, %v6558
    %v7645 = vmul.f32 %v7638, %v6559
    %v7646 = vadd.f32 %v7610, %v7640
    %v7647 = vadd.f32 %v7611, %v7641
    %v7648 = vadd.f32 %v7612, %v7642
    %v7649 = vadd.f32 %v7613, %v7643
    %v7650 = vadd.f32 %v7614, %v7644
    %v7651 = vadd.f32 %v7615, %v7645
    %7652 = vxpose.xlu0.b32.start [1/16] %v7646, 128
    %7653 = vxpose.xlu0.b32.cont [2/16] %v7647, 128
    %7654 = vxpose.xlu0.b32.cont [3/16] %v7648, 128
    %7655 = vxpose.xlu0.b32.cont [4/16] %v7649, 128
    %7656 = vxpose.xlu0.b32.cont [5/16] %v7650, 128
    %7657 = vxpose.xlu0.b32.cont [6/16] %v7651, 128
    %7658 = vxpose.xlu0.b32.cont [7/16] 0.0, 128
    %7659 = vxpose.xlu0.b32.cont [8/16] 0.0, 128
    %7660 = vxpose.xlu0.b32.cont [9/16] 0.0, 128
    %7661 = vxpose.xlu0.b32.cont [10/16] 0.0, 128
    %7662 = vxpose.xlu0.b32.cont [11/16] 0.0, 128
    %7663 = vxpose.xlu0.b32.cont [12/16] 0.0, 128
    %7664 = vxpose.xlu0.b32.cont [13/16] 0.0, 128
    %7665 = vxpose.xlu0.b32.cont [14/16] 0.0, 128
    %7666 = vxpose.xlu0.b32.cont [15/16] 0.0, 128
    %7667 = vxpose.xlu0.b32.end [16/16] 0.0, 128
    %v7668 = vpop.trf.xlu0
    %v7669 = vpop.trf.xlu0
    %v7670 = vpop.trf.xlu0
    %v7671 = vpop.trf.xlu0
    %v7672 = vpop.trf.xlu0
    %v7673 = vpop.trf.xlu0
    %v7674 = vpop.trf.xlu0
    %v7675 = vpop.trf.xlu0
    %v7676 = vpop.trf.xlu0
    %v7677 = vpop.trf.xlu0
    %v7678 = vpop.trf.xlu0
    %v7679 = vpop.trf.xlu0
    %v7680 = vpop.trf.xlu0
    %v7681 = vpop.trf.xlu0
    %v7682 = vpop.trf.xlu0
    %v7683 = vpop.trf.xlu0
    %v7685 = vsel %vm125, %v7668, 0
    %v7688 = vsel %vm125, %v7669, 0
    %v7691 = vsel %vm125, %v7670, 0
    %7693 = vmatpush.msra.mxu0 0.0
    %7694 = vmatpush.msra.mxu0 0.0
    %7695 = vmatpush.msra.mxu0 0.0
    %7696 = vmatpush.msra.mxu0 0.0
    %7697 = vmatpush.msra.mxu0 0.0
    %7698 = vmatpush.msra.mxu0 0.0
    %7699 = vmatpush.msra.mxu0 0.0
    %7700 = vmatpush.msra.mxu0 0.0
    %7701 = vmatpush.msra.mxu0 0.0
    %7702 = vmatpush.msra.mxu0 0.0
    %7703 = vmatpush.msra.mxu0 %v6565
    %7704 = vmatpush.msra.mxu0 %v6564
    %7705 = vmatpush.msra.mxu0 %v6563
    %7706 = vmatpush.msra.mxu0 %v6562
    %7707 = vmatpush.msra.mxu0 %v6561
    %7708 = vmatpush.msra.mxu0 %v6560
    %7709 = vmatmul.f32.gmra.mxu0 %v7685
    %v7710 = vpop.f32.mrf.mxu0
    %v7711 = vadd.f32 0.0, %v7710
    %7712 = vmatmul.f32.gmra.mxu0 %v7688
    %v7713 = vpop.f32.mrf.mxu0
    %v7714 = vadd.f32 0.0, %v7713
    %7715 = vmatmul.f32.gmra.mxu0 %v7691
    %v7716 = vpop.f32.mrf.mxu0
    %v7717 = vadd.f32 0.0, %v7716
    %7718 = vdwg.mxu0
    %v7719 = vpack.c.bf16 %v7714, %v7711
    %v7720 = vpack.c.bf16 %v7717, %v7717
    %v7721 = vld [vmem:[%s3588] sm:$0xf]
    %v7722 = vld [vmem:[%s3588 + $0x4] sm:$0xf]
    %v7723 = vld [vmem:[%s3588 + $0x8] sm:$0xf]
    %v7724 = vld [vmem:[%s3588 + $0xc] sm:$0xf]
    %v7725 = vld [vmem:[%s3593] sm:$0x1]
    %v7727 = vperm.slane %v7725, 0
    %v7733 = vunpack.c.l.b16 %v7721
    %v7734 = vunpack.c.l.b16 %v7722
    %v7735 = vunpack.c.l.b16 %v7723
    %v7736 = vunpack.c.l.b16 %v7724
    %v7737 = vpack.c.b16 %v7734, %v7733
    %v7738 = vpack.c.b16 %v7736, %v7735
    %v7742 = vsel %vm163, %v7719, 0
    %v7745 = vsel %vm163, %v7720, 0
    %7747 = vmatpush.bf16.msra.mxu0 0
    %7748 = vmatpush.bf16.msra.mxu0 0
    %7749 = vmatpush.bf16.msra.mxu0 0
    %7750 = vmatpush.bf16.msra.mxu0 0
    %7751 = vmatpush.bf16.msra.mxu0 0
    %7752 = vmatpush.bf16.msra.mxu0 0
    %7753 = vmatpush.bf16.msra.mxu0 %v7738
    %7754 = vmatpush.bf16.msra.mxu0 %v7737
    %7755 = vmatmul.bf16.gmra.mxu0 %v7742
    %v7756 = vpop.f32.mrf.mxu0
    %v7757 = vadd.f32 %v7727, %v7756
    %v7758 = vpop.f32.mrf.mxu0
    %v7759 = vadd.f32 %v7727, %v7758
    %7760 = vmatmul.bf16.gmra.mxu0 %v7745
    %v7761 = vpop.f32.mrf.mxu0
    %v7762 = vadd.f32 %v7727, %v7761
    %v7763 = vpop.f32.mrf.mxu0
    %7764 = vdwg.mxu0
    %v7765 = vmul.f32 %v7757, 0.5
    %v7766 = vmul.f32 %v7759, 0.5
    %v7767 = vmul.f32 %v7762, 0.5
    %v7768 = vmul.f32 %v7757, 0.70710677
    %v7769 = vmul.f32 %v7759, 0.70710677
    %v7770 = vmul.f32 %v7762, 0.70710677
    %v7771 = vmul.f32 %v7768, %v7768
    %v7772 = vmin.f32 16.0, %v7771
    %v7773 = vmul.f32 %v7772, 2.1237322e-06
    %v7774 = vadd.f32 %v7773, 0.00028619796
    %v7775 = vmul.f32 %v7772, %v7774
    %v7776 = vadd.f32 %v7775, 0.0036580483
    %v7777 = vmul.f32 %v7772, %v7776
    %v7778 = vadd.f32 %v7777, 0.05243302
    %v7779 = vmul.f32 %v7772, %v7778
    %v7780 = vadd.f32 %v7779, 0.18741608
    %v7781 = vmul.f32 %v7772, %v7780
    %v7782 = vadd.f32 %v7781, 1.1283791
    %v7783 = vmul.f32 %v7768, %v7782
    %v7784 = vmul.f32 %v7772, 3.8918573e-05
    %v7785 = vadd.f32 %v7784, 0.001143296
    %v7786 = vmul.f32 %v7772, %v7785
    %v7787 = vadd.f32 %v7786, 0.014752088
    %v7788 = vmul.f32 %v7772, %v7787
    %v7789 = vadd.f32 %v7788, 0.112945676
    %v7790 = vmul.f32 %v7772, %v7789
    %v7791 = vadd.f32 %v7790, 0.4994258
    %v7792 = vmul.f32 %v7772, %v7791
    %v7793 = vadd.f32 %v7792, 1.0
    %v7794 = vrcp.pop %v7793
    %v7795 = vmul.f32 %v7793, %v7794
    %v7796 = vsub.f32 1.0, %v7795
    %v7797 = vmul.f32 %v7794, %v7796
    %v7798 = vadd.f32 %v7794, %v7797
    %vm7799 = vweird.f32 %v7793
    %vm7800 = vweird.f32 %v7794
    %vm7801 = vmor %vm7799, %vm7800
    %v7802 = vsel %vm7801, %v7794, %v7798
    %v7803 = vand.u32 2147483647, %v7793
    %vm7804 = vcmp.eq.f32.partialorder %v7803, 8.507059e+37
    %v7805 = vand.u32 %v7793, 2147483648
    %v7806 = vor.u32 1.1754944e-38, %v7805
    %v7807 = vsel %vm7804, %v7806, %v7802
    %v7808 = vmul.f32 %v7783, %v7807
    %v7809 = vmin.f32 %v7808, 1.0
    %v7810 = vmax.f32 %v7809, -1.0
    %v7811 = vmul.f32 %v7769, %v7769
    %v7812 = vmin.f32 16.0, %v7811
    %v7813 = vmul.f32 %v7812, 2.1237322e-06
    %v7814 = vadd.f32 %v7813, 0.00028619796
    %v7815 = vmul.f32 %v7812, %v7814
    %v7816 = vadd.f32 %v7815, 0.0036580483
    %v7817 = vmul.f32 %v7812, %v7816
    %v7818 = vadd.f32 %v7817, 0.05243302
    %v7819 = vmul.f32 %v7812, %v7818
    %v7820 = vadd.f32 %v7819, 0.18741608
    %v7821 = vmul.f32 %v7812, %v7820
    %v7822 = vadd.f32 %v7821, 1.1283791
    %v7823 = vmul.f32 %v7769, %v7822
    %v7824 = vmul.f32 %v7812, 3.8918573e-05
    %v7825 = vadd.f32 %v7824, 0.001143296
    %v7826 = vmul.f32 %v7812, %v7825
    %v7827 = vadd.f32 %v7826, 0.014752088
    %v7828 = vmul.f32 %v7812, %v7827
    %v7829 = vadd.f32 %v7828, 0.112945676
    %v7830 = vmul.f32 %v7812, %v7829
    %v7831 = vadd.f32 %v7830, 0.4994258
    %v7832 = vmul.f32 %v7812, %v7831
    %v7833 = vadd.f32 %v7832, 1.0
    %v7834 = vrcp.pop %v7833
    %v7835 = vmul.f32 %v7833, %v7834
    %v7836 = vsub.f32 1.0, %v7835
    %v7837 = vmul.f32 %v7834, %v7836
    %v7838 = vadd.f32 %v7834, %v7837
    %vm7839 = vweird.f32 %v7833
    %vm7840 = vweird.f32 %v7834
    %vm7841 = vmor %vm7839, %vm7840
    %v7842 = vsel %vm7841, %v7834, %v7838
    %v7843 = vand.u32 2147483647, %v7833
    %vm7844 = vcmp.eq.f32.partialorder %v7843, 8.507059e+37
    %v7845 = vand.u32 %v7833, 2147483648
    %v7846 = vor.u32 1.1754944e-38, %v7845
    %v7847 = vsel %vm7844, %v7846, %v7842
    %v7848 = vmul.f32 %v7823, %v7847
    %v7849 = vmin.f32 %v7848, 1.0
    %v7850 = vmax.f32 %v7849, -1.0
    %v7851 = vmul.f32 %v7770, %v7770
    %v7852 = vmin.f32 16.0, %v7851
    %v7853 = vmul.f32 %v7852, 2.1237322e-06
    %v7854 = vadd.f32 %v7853, 0.00028619796
    %v7855 = vmul.f32 %v7852, %v7854
    %v7856 = vadd.f32 %v7855, 0.0036580483
    %v7857 = vmul.f32 %v7852, %v7856
    %v7858 = vadd.f32 %v7857, 0.05243302
    %v7859 = vmul.f32 %v7852, %v7858
    %v7860 = vadd.f32 %v7859, 0.18741608
    %v7861 = vmul.f32 %v7852, %v7860
    %v7862 = vadd.f32 %v7861, 1.1283791
    %v7863 = vmul.f32 %v7770, %v7862
    %v7864 = vmul.f32 %v7852, 3.8918573e-05
    %v7865 = vadd.f32 %v7864, 0.001143296
    %v7866 = vmul.f32 %v7852, %v7865
    %v7867 = vadd.f32 %v7866, 0.014752088
    %v7868 = vmul.f32 %v7852, %v7867
    %v7869 = vadd.f32 %v7868, 0.112945676
    %v7870 = vmul.f32 %v7852, %v7869
    %v7871 = vadd.f32 %v7870, 0.4994258
    %v7872 = vmul.f32 %v7852, %v7871
    %v7873 = vadd.f32 %v7872, 1.0
    %v7874 = vrcp.pop %v7873
    %v7875 = vmul.f32 %v7873, %v7874
    %v7876 = vsub.f32 1.0, %v7875
    %v7877 = vmul.f32 %v7874, %v7876
    %v7878 = vadd.f32 %v7874, %v7877
    %vm7879 = vweird.f32 %v7873
    %vm7880 = vweird.f32 %v7874
    %vm7881 = vmor %vm7879, %vm7880
    %v7882 = vsel %vm7881, %v7874, %v7878
    %v7883 = vand.u32 2147483647, %v7873
    %vm7884 = vcmp.eq.f32.partialorder %v7883, 8.507059e+37
    %v7885 = vand.u32 %v7873, 2147483648
    %v7886 = vor.u32 1.1754944e-38, %v7885
    %v7887 = vsel %vm7884, %v7886, %v7882
    %v7888 = vmul.f32 %v7863, %v7887
    %v7889 = vmin.f32 %v7888, 1.0
    %v7890 = vmax.f32 %v7889, -1.0
    %v7891 = vadd.f32 %v7810, 1.0
    %v7892 = vadd.f32 %v7850, 1.0
    %v7893 = vadd.f32 %v7890, 1.0
    %v7894 = vmul.f32 %v7765, %v7891
    %v7895 = vmul.f32 %v7766, %v7892
    %v7896 = vmul.f32 %v7767, %v7893
    %v7897 = vpack.c.bf16 %v7895, %v7894
    %v7898 = vpack.c.bf16 %v7896, %v7896
    %v7899 = vld [vmem:[%s3768] sm:$0xf]
    %v7900 = vld [vmem:[%s3768 + $0x4] sm:$0xf]
    %v7901 = vld [vmem:[%s3768 + $0x8] sm:$0xf]
    %v7902 = vld [vmem:[%s3768 + $0xc] sm:$0xf]
    %v7903 = vld [vmem:[%s3768 + $0x10] sm:$0xf]
    %v7904 = vld [vmem:[%s3768 + $0x14] sm:$0xf]
    %v7905 = vld [vmem:[%s3768 + $0x18] sm:$0xf]
    %v7906 = vld [vmem:[%s3768 + $0x1c] sm:$0xf]
    %v7907 = vld [vmem:[%s3777] sm:$0x1]
    %v7909 = vperm.slane %v7907, 0
    %v7919 = vunpack.c.l.b16 %v7899
    %v7920 = vunpack.c.l.b16 %v7900
    %v7921 = vunpack.c.l.b16 %v7901
    %v7922 = vunpack.c.l.b16 %v7902
    %v7923 = vunpack.c.l.b16 %v7903
    %v7924 = vunpack.c.l.b16 %v7904
    %v7925 = vunpack.c.l.b16 %v7905
    %v7926 = vunpack.c.l.b16 %v7906
    %v7927 = vpack.c.b16 %v7920, %v7919
    %v7928 = vpack.c.b16 %v7922, %v7921
    %v7929 = vpack.c.b16 %v7924, %v7923
    %v7930 = vpack.c.b16 %v7926, %v7925
    %v7936 = vsel %vm2789, %v7897, 0
    %v7939 = vsel %vm2789, %v7898, 0
    %7941 = vmatpush.bf16.msra.mxu0 0
    %7942 = vmatpush.bf16.msra.mxu0 0
    %7943 = vmatpush.bf16.msra.mxu0 0
    %7944 = vmatpush.bf16.msra.mxu0 0
    %7945 = vmatpush.bf16.msra.mxu0 %v7930
    %7946 = vmatpush.bf16.msra.mxu0 %v7929
    %7947 = vmatpush.bf16.msra.mxu0 %v7928
    %7948 = vmatpush.bf16.msra.mxu0 %v7927
    %7949 = vmatmul.bf16.gmra.mxu0 %v7936
    %v7950 = vpop.f32.mrf.mxu0
    %v7951 = vadd.f32 %v7909, %v7950
    %v7952 = vpop.f32.mrf.mxu0
    %v7953 = vadd.f32 %v7909, %v7952
    %7954 = vmatmul.bf16.gmra.mxu0 %v7939
    %v7955 = vpop.f32.mrf.mxu0
    %v7956 = vadd.f32 %v7909, %v7955
    %v7957 = vpop.f32.mrf.mxu0
    %7958 = vdwg.mxu0
    %7959 = vset.pattern.permute.xlu0 2
    %7960 = vperm.xlu0 %7959, %v6951
    %v7961 = vpop.permute.xlu0 %7960
    %7963 = vset.pattern.permute.xlu0 2
    %7964 = vperm.xlu0 %7963, %v6952
    %v7965 = vpop.permute.xlu0 %7964
    %7967 = vset.pattern.permute.xlu0 2
    %7968 = vperm.xlu0 %7967, %v6953
    %v7969 = vpop.permute.xlu0 %7968
    %7971 = vset.pattern.permute.xlu0 2
    %7972 = vperm.xlu0 %7971, %v6954
    %v7973 = vpop.permute.xlu0 %7972
    %7975 = vset.pattern.permute.xlu0 2
    %7976 = vperm.xlu0 %7975, %v6955
    %v7977 = vpop.permute.xlu0 %7976
    %7979 = vset.pattern.permute.xlu0 2
    %7980 = vperm.xlu0 %7979, %v6956
    %v7981 = vpop.permute.xlu0 %7980
    %v7983 = vmul.f32 %v7961, %v6536
    %v7984 = vmul.f32 %v7965, %v6537
    %v7985 = vmul.f32 %v7969, %v6538
    %v7986 = vmul.f32 %v7973, %v6539
    %v7987 = vmul.f32 %v7977, %v6540
    %v7988 = vmul.f32 %v7981, %v6541
    %7989 = vset.pattern.permute.xlu0 2
    %7990 = vperm.xlu0 %7989, %v6993
    %v7991 = vpop.permute.xlu0 %7990
    %7993 = vset.pattern.permute.xlu0 2
    %7994 = vperm.xlu0 %7993, %v6994
    %v7995 = vpop.permute.xlu0 %7994
    %7997 = vset.pattern.permute.xlu0 2
    %7998 = vperm.xlu0 %7997, %v6995
    %v7999 = vpop.permute.xlu0 %7998
    %8001 = vset.pattern.permute.xlu0 2
    %8002 = vperm.xlu0 %8001, %v6996
    %v8003 = vpop.permute.xlu0 %8002
    %8005 = vset.pattern.permute.xlu0 2
    %8006 = vperm.xlu0 %8005, %v6997
    %v8007 = vpop.permute.xlu0 %8006
    %8009 = vset.pattern.permute.xlu0 2
    %8010 = vperm.xlu0 %8009, %v6998
    %v8011 = vpop.permute.xlu0 %8010
    %v8013 = vmul.f32 %v7991, %v6554
    %v8014 = vmul.f32 %v7995, %v6555
    %v8015 = vmul.f32 %v7999, %v6556
    %v8016 = vmul.f32 %v8003, %v6557
    %v8017 = vmul.f32 %v8007, %v6558
    %v8018 = vmul.f32 %v8011, %v6559
    %v8019 = vadd.f32 %v7983, %v8013
    %v8020 = vadd.f32 %v7984, %v8014
    %v8021 = vadd.f32 %v7985, %v8015
    %v8022 = vadd.f32 %v7986, %v8016
    %v8023 = vadd.f32 %v7987, %v8017
    %v8024 = vadd.f32 %v7988, %v8018
    %v8026 = vsel %vm528, %v8019, 0
    %v8029 = vsel %vm528, %v8020, 0
    %v8032 = vsel %vm528, %v8021, 0
    %v8035 = vsel %vm528, %v8022, 0
    %v8038 = vsel %vm528, %v8023, 0
    %v8041 = vsel %vm528, %v8024, 0
    %8043 = vmatpush.msra.mxu0 0.0
    %8044 = vmatpush.msra.mxu0 0.0
    %8045 = vmatpush.msra.mxu0 0.0
    %8046 = vmatpush.msra.mxu0 0.0
    %8047 = vmatpush.msra.mxu0 0.0
    %8048 = vmatpush.msra.mxu0 0.0
    %8049 = vmatpush.msra.mxu0 0.0
    %8050 = vmatpush.msra.mxu0 0.0
    %8051 = vmatpush.msra.mxu0 0.0
    %8052 = vmatpush.msra.mxu0 0.0
    %8053 = vmatpush.msra.mxu0 0.0
    %8054 = vmatpush.msra.mxu0 0.0
    %8055 = vmatpush.msra.mxu0 0.0
    %8056 = vmatpush.msra.mxu0 %v7956
    %8057 = vmatpush.msra.mxu0 %v7953
    %8058 = vmatpush.msra.mxu0 %v7951
    %8059 = vmatmul.f32.gmra.mxu0 %v8026
    %v8060 = vpop.f32.mrf.mxu0
    %v8061 = vadd.f32 0.0, %v8060
    %8062 = vmatmul.f32.gmra.mxu0 %v8029
    %v8063 = vpop.f32.mrf.mxu0
    %v8064 = vadd.f32 0.0, %v8063
    %8065 = vmatmul.f32.gmra.mxu0 %v8032
    %v8066 = vpop.f32.mrf.mxu0
    %v8067 = vadd.f32 0.0, %v8066
    %8068 = vmatmul.f32.gmra.mxu0 %v8035
    %v8069 = vpop.f32.mrf.mxu0
    %v8070 = vadd.f32 0.0, %v8069
    %8071 = vmatmul.f32.gmra.mxu0 %v8038
    %v8072 = vpop.f32.mrf.mxu0
    %v8073 = vadd.f32 0.0, %v8072
    %8074 = vmatmul.f32.gmra.mxu0 %v8041
    %v8075 = vpop.f32.mrf.mxu0
    %v8076 = vadd.f32 0.0, %v8075
    %8077 = vdwg.mxu0
    %v8078 = vadd.f32 %v7569, %v8061
    %v8079 = vadd.f32 %v7572, %v8064
    %v8080 = vadd.f32 %v7575, %v8067
    %v8081 = vadd.f32 %v7578, %v8070
    %v8082 = vadd.f32 %v7581, %v8073
    %v8083 = vadd.f32 %v7584, %v8076
    %8084 = vset.pattern.permute.xlu0 3
    %8085 = vperm.xlu0 %8084, %v6446
    %v8086 = vpop.permute.xlu0 %8085
    %8088 = vset.pattern.permute.xlu0 3
    %8089 = vperm.xlu0 %8088, %v6447
    %v8090 = vpop.permute.xlu0 %8089
    %8092 = vset.pattern.permute.xlu0 3
    %8093 = vperm.xlu0 %8092, %v6448
    %v8094 = vpop.permute.xlu0 %8093
    %8096 = vset.pattern.permute.xlu0 3
    %8097 = vperm.xlu0 %8096, %v6449
    %v8098 = vpop.permute.xlu0 %8097
    %8100 = vset.pattern.permute.xlu0 3
    %8101 = vperm.xlu0 %8100, %v6450
    %v8102 = vpop.permute.xlu0 %8101
    %8104 = vset.pattern.permute.xlu0 3
    %8105 = vperm.xlu0 %8104, %v6451
    %v8106 = vpop.permute.xlu0 %8105
    %v8108 = vmul.f32 %v8086, %v6536
    %v8109 = vmul.f32 %v8090, %v6537
    %v8110 = vmul.f32 %v8094, %v6538
    %v8111 = vmul.f32 %v8098, %v6539
    %v8112 = vmul.f32 %v8102, %v6540
    %v8113 = vmul.f32 %v8106, %v6541
    %8114 = vset.pattern.permute.xlu0 3
    %8115 = vperm.xlu0 %8114, %v6470
    %v8116 = vpop.permute.xlu0 %8115
    %8118 = vset.pattern.permute.xlu0 3
    %8119 = vperm.xlu0 %8118, %v6471
    %v8120 = vpop.permute.xlu0 %8119
    %8122 = vset.pattern.permute.xlu0 3
    %8123 = vperm.xlu0 %8122, %v6472
    %v8124 = vpop.permute.xlu0 %8123
    %8126 = vset.pattern.permute.xlu0 3
    %8127 = vperm.xlu0 %8126, %v6473
    %v8128 = vpop.permute.xlu0 %8127
    %8130 = vset.pattern.permute.xlu0 3
    %8131 = vperm.xlu0 %8130, %v6474
    %v8132 = vpop.permute.xlu0 %8131
    %8134 = vset.pattern.permute.xlu0 3
    %8135 = vperm.xlu0 %8134, %v6475
    %v8136 = vpop.permute.xlu0 %8135
    %v8138 = vmul.f32 %v8116, %v6554
    %v8139 = vmul.f32 %v8120, %v6555
    %v8140 = vmul.f32 %v8124, %v6556
    %v8141 = vmul.f32 %v8128, %v6557
    %v8142 = vmul.f32 %v8132, %v6558
    %v8143 = vmul.f32 %v8136, %v6559
    %v8144 = vadd.f32 %v8108, %v8138
    %v8145 = vadd.f32 %v8109, %v8139
    %v8146 = vadd.f32 %v8110, %v8140
    %v8147 = vadd.f32 %v8111, %v8141
    %v8148 = vadd.f32 %v8112, %v8142
    %v8149 = vadd.f32 %v8113, %v8143
    %8150 = vxpose.xlu0.b32.start [1/16] %v8144, 128
    %8151 = vxpose.xlu0.b32.cont [2/16] %v8145, 128
    %8152 = vxpose.xlu0.b32.cont [3/16] %v8146, 128
    %8153 = vxpose.xlu0.b32.cont [4/16] %v8147, 128
    %8154 = vxpose.xlu0.b32.cont [5/16] %v8148, 128
    %8155 = vxpose.xlu0.b32.cont [6/16] %v8149, 128
    %8156 = vxpose.xlu0.b32.cont [7/16] 0.0, 128
    %8157 = vxpose.xlu0.b32.cont [8/16] 0.0, 128
    %8158 = vxpose.xlu0.b32.cont [9/16] 0.0, 128
    %8159 = vxpose.xlu0.b32.cont [10/16] 0.0, 128
    %8160 = vxpose.xlu0.b32.cont [11/16] 0.0, 128
    %8161 = vxpose.xlu0.b32.cont [12/16] 0.0, 128
    %8162 = vxpose.xlu0.b32.cont [13/16] 0.0, 128
    %8163 = vxpose.xlu0.b32.cont [14/16] 0.0, 128
    %8164 = vxpose.xlu0.b32.cont [15/16] 0.0, 128
    %8165 = vxpose.xlu0.b32.end [16/16] 0.0, 128
    %v8166 = vpop.trf.xlu0
    %v8167 = vpop.trf.xlu0
    %v8168 = vpop.trf.xlu0
    %v8169 = vpop.trf.xlu0
    %v8170 = vpop.trf.xlu0
    %v8171 = vpop.trf.xlu0
    %v8172 = vpop.trf.xlu0
    %v8173 = vpop.trf.xlu0
    %v8174 = vpop.trf.xlu0
    %v8175 = vpop.trf.xlu0
    %v8176 = vpop.trf.xlu0
    %v8177 = vpop.trf.xlu0
    %v8178 = vpop.trf.xlu0
    %v8179 = vpop.trf.xlu0
    %v8180 = vpop.trf.xlu0
    %v8181 = vpop.trf.xlu0
    %v8183 = vsel %vm125, %v8166, 0
    %v8186 = vsel %vm125, %v8167, 0
    %v8189 = vsel %vm125, %v8168, 0
    %8191 = vmatpush.msra.mxu0 0.0
    %8192 = vmatpush.msra.mxu0 0.0
    %8193 = vmatpush.msra.mxu0 0.0
    %8194 = vmatpush.msra.mxu0 0.0
    %8195 = vmatpush.msra.mxu0 0.0
    %8196 = vmatpush.msra.mxu0 0.0
    %8197 = vmatpush.msra.mxu0 0.0
    %8198 = vmatpush.msra.mxu0 0.0
    %8199 = vmatpush.msra.mxu0 0.0
    %8200 = vmatpush.msra.mxu0 0.0
    %8201 = vmatpush.msra.mxu0 %v6565
    %8202 = vmatpush.msra.mxu0 %v6564
    %8203 = vmatpush.msra.mxu0 %v6563
    %8204 = vmatpush.msra.mxu0 %v6562
    %8205 = vmatpush.msra.mxu0 %v6561
    %8206 = vmatpush.msra.mxu0 %v6560
    %8207 = vmatmul.f32.gmra.mxu0 %v8183
    %v8208 = vpop.f32.mrf.mxu0
    %v8209 = vadd.f32 0.0, %v8208
    %8210 = vmatmul.f32.gmra.mxu0 %v8186
    %v8211 = vpop.f32.mrf.mxu0
    %v8212 = vadd.f32 0.0, %v8211
    %8213 = vmatmul.f32.gmra.mxu0 %v8189
    %v8214 = vpop.f32.mrf.mxu0
    %v8215 = vadd.f32 0.0, %v8214
    %8216 = vdwg.mxu0
    %v8217 = vpack.c.bf16 %v8212, %v8209
    %v8218 = vpack.c.bf16 %v8215, %v8215
    %v8219 = vld [vmem:[%s4090] sm:$0xf]
    %v8220 = vld [vmem:[%s4090 + $0x4] sm:$0xf]
    %v8221 = vld [vmem:[%s4090 + $0x8] sm:$0xf]
    %v8222 = vld [vmem:[%s4090 + $0xc] sm:$0xf]
    %v8223 = vld [vmem:[%s4095] sm:$0x1]
    %v8225 = vperm.slane %v8223, 0
    %v8231 = vunpack.c.l.b16 %v8219
    %v8232 = vunpack.c.l.b16 %v8220
    %v8233 = vunpack.c.l.b16 %v8221
    %v8234 = vunpack.c.l.b16 %v8222
    %v8235 = vpack.c.b16 %v8232, %v8231
    %v8236 = vpack.c.b16 %v8234, %v8233
    %v8240 = vsel %vm163, %v8217, 0
    %v8243 = vsel %vm163, %v8218, 0
    %8245 = vmatpush.bf16.msra.mxu0 0
    %8246 = vmatpush.bf16.msra.mxu0 0
    %8247 = vmatpush.bf16.msra.mxu0 0
    %8248 = vmatpush.bf16.msra.mxu0 0
    %8249 = vmatpush.bf16.msra.mxu0 0
    %8250 = vmatpush.bf16.msra.mxu0 0
    %8251 = vmatpush.bf16.msra.mxu0 %v8236
    %8252 = vmatpush.bf16.msra.mxu0 %v8235
    %8253 = vmatmul.bf16.gmra.mxu0 %v8240
    %v8254 = vpop.f32.mrf.mxu0
    %v8255 = vadd.f32 %v8225, %v8254
    %v8256 = vpop.f32.mrf.mxu0
    %v8257 = vadd.f32 %v8225, %v8256
    %8258 = vmatmul.bf16.gmra.mxu0 %v8243
    %v8259 = vpop.f32.mrf.mxu0
    %v8260 = vadd.f32 %v8225, %v8259
    %v8261 = vpop.f32.mrf.mxu0
    %8262 = vdwg.mxu0
    %v8263 = vmul.f32 %v8255, 0.5
    %v8264 = vmul.f32 %v8257, 0.5
    %v8265 = vmul.f32 %v8260, 0.5
    %v8266 = vmul.f32 %v8255, 0.70710677
    %v8267 = vmul.f32 %v8257, 0.70710677
    %v8268 = vmul.f32 %v8260, 0.70710677
    %v8269 = vmul.f32 %v8266, %v8266
    %v8270 = vmin.f32 16.0, %v8269
    %v8271 = vmul.f32 %v8270, 2.1237322e-06
    %v8272 = vadd.f32 %v8271, 0.00028619796
    %v8273 = vmul.f32 %v8270, %v8272
    %v8274 = vadd.f32 %v8273, 0.0036580483
    %v8275 = vmul.f32 %v8270, %v8274
    %v8276 = vadd.f32 %v8275, 0.05243302
    %v8277 = vmul.f32 %v8270, %v8276
    %v8278 = vadd.f32 %v8277, 0.18741608
    %v8279 = vmul.f32 %v8270, %v8278
    %v8280 = vadd.f32 %v8279, 1.1283791
    %v8281 = vmul.f32 %v8266, %v8280
    %v8282 = vmul.f32 %v8270, 3.8918573e-05
    %v8283 = vadd.f32 %v8282, 0.001143296
    %v8284 = vmul.f32 %v8270, %v8283
    %v8285 = vadd.f32 %v8284, 0.014752088
    %v8286 = vmul.f32 %v8270, %v8285
    %v8287 = vadd.f32 %v8286, 0.112945676
    %v8288 = vmul.f32 %v8270, %v8287
    %v8289 = vadd.f32 %v8288, 0.4994258
    %v8290 = vmul.f32 %v8270, %v8289
    %v8291 = vadd.f32 %v8290, 1.0
    %v8292 = vrcp.pop %v8291
    %v8293 = vmul.f32 %v8291, %v8292
    %v8294 = vsub.f32 1.0, %v8293
    %v8295 = vmul.f32 %v8292, %v8294
    %v8296 = vadd.f32 %v8292, %v8295
    %vm8297 = vweird.f32 %v8291
    %vm8298 = vweird.f32 %v8292
    %vm8299 = vmor %vm8297, %vm8298
    %v8300 = vsel %vm8299, %v8292, %v8296
    %v8301 = vand.u32 2147483647, %v8291
    %vm8302 = vcmp.eq.f32.partialorder %v8301, 8.507059e+37
    %v8303 = vand.u32 %v8291, 2147483648
    %v8304 = vor.u32 1.1754944e-38, %v8303
    %v8305 = vsel %vm8302, %v8304, %v8300
    %v8306 = vmul.f32 %v8281, %v8305
    %v8307 = vmin.f32 %v8306, 1.0
    %v8308 = vmax.f32 %v8307, -1.0
    %v8309 = vmul.f32 %v8267, %v8267
    %v8310 = vmin.f32 16.0, %v8309
    %v8311 = vmul.f32 %v8310, 2.1237322e-06
    %v8312 = vadd.f32 %v8311, 0.00028619796
    %v8313 = vmul.f32 %v8310, %v8312
    %v8314 = vadd.f32 %v8313, 0.0036580483
    %v8315 = vmul.f32 %v8310, %v8314
    %v8316 = vadd.f32 %v8315, 0.05243302
    %v8317 = vmul.f32 %v8310, %v8316
    %v8318 = vadd.f32 %v8317, 0.18741608
    %v8319 = vmul.f32 %v8310, %v8318
    %v8320 = vadd.f32 %v8319, 1.1283791
    %v8321 = vmul.f32 %v8267, %v8320
    %v8322 = vmul.f32 %v8310, 3.8918573e-05
    %v8323 = vadd.f32 %v8322, 0.001143296
    %v8324 = vmul.f32 %v8310, %v8323
    %v8325 = vadd.f32 %v8324, 0.014752088
    %v8326 = vmul.f32 %v8310, %v8325
    %v8327 = vadd.f32 %v8326, 0.112945676
    %v8328 = vmul.f32 %v8310, %v8327
    %v8329 = vadd.f32 %v8328, 0.4994258
    %v8330 = vmul.f32 %v8310, %v8329
    %v8331 = vadd.f32 %v8330, 1.0
    %v8332 = vrcp.pop %v8331
    %v8333 = vmul.f32 %v8331, %v8332
    %v8334 = vsub.f32 1.0, %v8333
    %v8335 = vmul.f32 %v8332, %v8334
    %v8336 = vadd.f32 %v8332, %v8335
    %vm8337 = vweird.f32 %v8331
    %vm8338 = vweird.f32 %v8332
    %vm8339 = vmor %vm8337, %vm8338
    %v8340 = vsel %vm8339, %v8332, %v8336
    %v8341 = vand.u32 2147483647, %v8331
    %vm8342 = vcmp.eq.f32.partialorder %v8341, 8.507059e+37
    %v8343 = vand.u32 %v8331, 2147483648
    %v8344 = vor.u32 1.1754944e-38, %v8343
    %v8345 = vsel %vm8342, %v8344, %v8340
    %v8346 = vmul.f32 %v8321, %v8345
    %v8347 = vmin.f32 %v8346, 1.0
    %v8348 = vmax.f32 %v8347, -1.0
    %v8349 = vmul.f32 %v8268, %v8268
    %v8350 = vmin.f32 16.0, %v8349
    %v8351 = vmul.f32 %v8350, 2.1237322e-06
    %v8352 = vadd.f32 %v8351, 0.00028619796
    %v8353 = vmul.f32 %v8350, %v8352
    %v8354 = vadd.f32 %v8353, 0.0036580483
    %v8355 = vmul.f32 %v8350, %v8354
    %v8356 = vadd.f32 %v8355, 0.05243302
    %v8357 = vmul.f32 %v8350, %v8356
    %v8358 = vadd.f32 %v8357, 0.18741608
    %v8359 = vmul.f32 %v8350, %v8358
    %v8360 = vadd.f32 %v8359, 1.1283791
    %v8361 = vmul.f32 %v8268, %v8360
    %v8362 = vmul.f32 %v8350, 3.8918573e-05
    %v8363 = vadd.f32 %v8362, 0.001143296
    %v8364 = vmul.f32 %v8350, %v8363
    %v8365 = vadd.f32 %v8364, 0.014752088
    %v8366 = vmul.f32 %v8350, %v8365
    %v8367 = vadd.f32 %v8366, 0.112945676
    %v8368 = vmul.f32 %v8350, %v8367
    %v8369 = vadd.f32 %v8368, 0.4994258
    %v8370 = vmul.f32 %v8350, %v8369
    %v8371 = vadd.f32 %v8370, 1.0
    %v8372 = vrcp.pop %v8371
    %v8373 = vmul.f32 %v8371, %v8372
    %v8374 = vsub.f32 1.0, %v8373
    %v8375 = vmul.f32 %v8372, %v8374
    %v8376 = vadd.f32 %v8372, %v8375
    %vm8377 = vweird.f32 %v8371
    %vm8378 = vweird.f32 %v8372
    %vm8379 = vmor %vm8377, %vm8378
    %v8380 = vsel %vm8379, %v8372, %v8376
    %v8381 = vand.u32 2147483647, %v8371
    %vm8382 = vcmp.eq.f32.partialorder %v8381, 8.507059e+37
    %v8383 = vand.u32 %v8371, 2147483648
    %v8384 = vor.u32 1.1754944e-38, %v8383
    %v8385 = vsel %vm8382, %v8384, %v8380
    %v8386 = vmul.f32 %v8361, %v8385
    %v8387 = vmin.f32 %v8386, 1.0
    %v8388 = vmax.f32 %v8387, -1.0
    %v8389 = vadd.f32 %v8308, 1.0
    %v8390 = vadd.f32 %v8348, 1.0
    %v8391 = vadd.f32 %v8388, 1.0
    %v8392 = vmul.f32 %v8263, %v8389
    %v8393 = vmul.f32 %v8264, %v8390
    %v8394 = vmul.f32 %v8265, %v8391
    %v8395 = vpack.c.bf16 %v8393, %v8392
    %v8396 = vpack.c.bf16 %v8394, %v8394
    %v8397 = vld [vmem:[%s4270] sm:$0xf]
    %v8398 = vld [vmem:[%s4270 + $0x4] sm:$0xf]
    %v8399 = vld [vmem:[%s4270 + $0x8] sm:$0xf]
    %v8400 = vld [vmem:[%s4270 + $0xc] sm:$0xf]
    %v8401 = vld [vmem:[%s4270 + $0x10] sm:$0xf]
    %v8402 = vld [vmem:[%s4270 + $0x14] sm:$0xf]
    %v8403 = vld [vmem:[%s4270 + $0x18] sm:$0xf]
    %v8404 = vld [vmem:[%s4270 + $0x1c] sm:$0xf]
    %v8405 = vld [vmem:[%s4279] sm:$0x1]
    %v8407 = vperm.slane %v8405, 0
    %v8417 = vunpack.c.l.b16 %v8397
    %v8418 = vunpack.c.l.b16 %v8398
    %v8419 = vunpack.c.l.b16 %v8399
    %v8420 = vunpack.c.l.b16 %v8400
    %v8421 = vunpack.c.l.b16 %v8401
    %v8422 = vunpack.c.l.b16 %v8402
    %v8423 = vunpack.c.l.b16 %v8403
    %v8424 = vunpack.c.l.b16 %v8404
    %v8425 = vpack.c.b16 %v8418, %v8417
    %v8426 = vpack.c.b16 %v8420, %v8419
    %v8427 = vpack.c.b16 %v8422, %v8421
    %v8428 = vpack.c.b16 %v8424, %v8423
    %v8434 = vsel %vm2789, %v8395, 0
    %v8437 = vsel %vm2789, %v8396, 0
    %8439 = vmatpush.bf16.msra.mxu0 0
    %8440 = vmatpush.bf16.msra.mxu0 0
    %8441 = vmatpush.bf16.msra.mxu0 0
    %8442 = vmatpush.bf16.msra.mxu0 0
    %8443 = vmatpush.bf16.msra.mxu0 %v8428
    %8444 = vmatpush.bf16.msra.mxu0 %v8427
    %8445 = vmatpush.bf16.msra.mxu0 %v8426
    %8446 = vmatpush.bf16.msra.mxu0 %v8425
    %8447 = vmatmul.bf16.gmra.mxu0 %v8434
    %v8448 = vpop.f32.mrf.mxu0
    %v8449 = vadd.f32 %v8407, %v8448
    %v8450 = vpop.f32.mrf.mxu0
    %v8451 = vadd.f32 %v8407, %v8450
    %8452 = vmatmul.bf16.gmra.mxu0 %v8437
    %v8453 = vpop.f32.mrf.mxu0
    %v8454 = vadd.f32 %v8407, %v8453
    %v8455 = vpop.f32.mrf.mxu0
    %8456 = vdwg.mxu0
    %8457 = vset.pattern.permute.xlu0 3
    %8458 = vperm.xlu0 %8457, %v6951
    %v8459 = vpop.permute.xlu0 %8458
    %8461 = vset.pattern.permute.xlu0 3
    %8462 = vperm.xlu0 %8461, %v6952
    %v8463 = vpop.permute.xlu0 %8462
    %8465 = vset.pattern.permute.xlu0 3
    %8466 = vperm.xlu0 %8465, %v6953
    %v8467 = vpop.permute.xlu0 %8466
    %8469 = vset.pattern.permute.xlu0 3
    %8470 = vperm.xlu0 %8469, %v6954
    %v8471 = vpop.permute.xlu0 %8470
    %8473 = vset.pattern.permute.xlu0 3
    %8474 = vperm.xlu0 %8473, %v6955
    %v8475 = vpop.permute.xlu0 %8474
    %8477 = vset.pattern.permute.xlu0 3
    %8478 = vperm.xlu0 %8477, %v6956
    %v8479 = vpop.permute.xlu0 %8478
    %v8481 = vmul.f32 %v8459, %v6536
    %v8482 = vmul.f32 %v8463, %v6537
    %v8483 = vmul.f32 %v8467, %v6538
    %v8484 = vmul.f32 %v8471, %v6539
    %v8485 = vmul.f32 %v8475, %v6540
    %v8486 = vmul.f32 %v8479, %v6541
    %8487 = vset.pattern.permute.xlu0 3
    %8488 = vperm.xlu0 %8487, %v6993
    %v8489 = vpop.permute.xlu0 %8488
    %8491 = vset.pattern.permute.xlu0 3
    %8492 = vperm.xlu0 %8491, %v6994
    %v8493 = vpop.permute.xlu0 %8492
    %8495 = vset.pattern.permute.xlu0 3
    %8496 = vperm.xlu0 %8495, %v6995
    %v8497 = vpop.permute.xlu0 %8496
    %8499 = vset.pattern.permute.xlu0 3
    %8500 = vperm.xlu0 %8499, %v6996
    %v8501 = vpop.permute.xlu0 %8500
    %8503 = vset.pattern.permute.xlu0 3
    %8504 = vperm.xlu0 %8503, %v6997
    %v8505 = vpop.permute.xlu0 %8504
    %8507 = vset.pattern.permute.xlu0 3
    %8508 = vperm.xlu0 %8507, %v6998
    %v8509 = vpop.permute.xlu0 %8508
    %v8511 = vmul.f32 %v8489, %v6554
    %v8512 = vmul.f32 %v8493, %v6555
    %v8513 = vmul.f32 %v8497, %v6556
    %v8514 = vmul.f32 %v8501, %v6557
    %v8515 = vmul.f32 %v8505, %v6558
    %v8516 = vmul.f32 %v8509, %v6559
    %v8517 = vadd.f32 %v8481, %v8511
    %v8518 = vadd.f32 %v8482, %v8512
    %v8519 = vadd.f32 %v8483, %v8513
    %v8520 = vadd.f32 %v8484, %v8514
    %v8521 = vadd.f32 %v8485, %v8515
    %v8522 = vadd.f32 %v8486, %v8516
    %v8524 = vsel %vm528, %v8517, 0
    %v8527 = vsel %vm528, %v8518, 0
    %v8530 = vsel %vm528, %v8519, 0
    %v8533 = vsel %vm528, %v8520, 0
    %v8536 = vsel %vm528, %v8521, 0
    %v8539 = vsel %vm528, %v8522, 0
    %8541 = vmatpush.msra.mxu0 0.0
    %8542 = vmatpush.msra.mxu0 0.0
    %8543 = vmatpush.msra.mxu0 0.0
    %8544 = vmatpush.msra.mxu0 0.0
    %8545 = vmatpush.msra.mxu0 0.0
    %8546 = vmatpush.msra.mxu0 0.0
    %8547 = vmatpush.msra.mxu0 0.0
    %8548 = vmatpush.msra.mxu0 0.0
    %8549 = vmatpush.msra.mxu0 0.0
    %8550 = vmatpush.msra.mxu0 0.0
    %8551 = vmatpush.msra.mxu0 0.0
    %8552 = vmatpush.msra.mxu0 0.0
    %8553 = vmatpush.msra.mxu0 0.0
    %8554 = vmatpush.msra.mxu0 %v8454
    %8555 = vmatpush.msra.mxu0 %v8451
    %8556 = vmatpush.msra.mxu0 %v8449
    %8557 = vmatmul.f32.gmra.mxu0 %v8524
    %v8558 = vpop.f32.mrf.mxu0
    %v8559 = vadd.f32 0.0, %v8558
    %8560 = vmatmul.f32.gmra.mxu0 %v8527
    %v8561 = vpop.f32.mrf.mxu0
    %v8562 = vadd.f32 0.0, %v8561
    %8563 = vmatmul.f32.gmra.mxu0 %v8530
    %v8564 = vpop.f32.mrf.mxu0
    %v8565 = vadd.f32 0.0, %v8564
    %8566 = vmatmul.f32.gmra.mxu0 %v8533
    %v8567 = vpop.f32.mrf.mxu0
    %v8568 = vadd.f32 0.0, %v8567
    %8569 = vmatmul.f32.gmra.mxu0 %v8536
    %v8570 = vpop.f32.mrf.mxu0
    %v8571 = vadd.f32 0.0, %v8570
    %8572 = vmatmul.f32.gmra.mxu0 %v8539
    %v8573 = vpop.f32.mrf.mxu0
    %v8574 = vadd.f32 0.0, %v8573
    %8575 = vdwg.mxu0
    %v8576 = vadd.f32 %v8078, %v8559
    %v8577 = vadd.f32 %v8079, %v8562
    %v8578 = vadd.f32 %v8080, %v8565
    %v8579 = vadd.f32 %v8081, %v8568
    %v8580 = vadd.f32 %v8082, %v8571
    %v8581 = vadd.f32 %v8083, %v8574
    %v8582 = vadd.f32 %v5811, %v8576
    %v8583 = vadd.f32 %v5812, %v8577
    %v8584 = vadd.f32 %v5813, %v8578
    %v8585 = vadd.f32 %v5814, %v8579
    %v8586 = vadd.f32 %v5815, %v8580
    %v8587 = vadd.f32 %v5816, %v8581
    %8588 = vst.msk [vmem:[#allocation2] sm:$0xff] %vm163, %v8582
    %8589 = vst.msk [vmem:[#allocation2 + $0x8] sm:$0xff] %vm163, %v8583
    %8590 = vst.msk [vmem:[#allocation2 + $0x10] sm:$0xff] %vm163, %v8584
    %8591 = vst.msk [vmem:[#allocation2 + $0x18] sm:$0xff] %vm163, %v8585
    %8592 = vst.msk [vmem:[#allocation2 + $0x20] sm:$0xff] %vm163, %v8586
    %8593 = vst.msk [vmem:[#allocation2 + $0x28] sm:$0xff] %vm163, %v8587
    %v8594 = vld [vmem:[#allocation2] sm:$0xff]
    %v8595 = vld [vmem:[#allocation2 + $0x8] sm:$0xff]
    %v8596 = vld [vmem:[#allocation2 + $0x10] sm:$0xff]
    %v8597 = vld [vmem:[#allocation2 + $0x18] sm:$0xff]
    %v8598 = vld [vmem:[#allocation2 + $0x20] sm:$0xff]
    %v8599 = vld [vmem:[#allocation2 + $0x28] sm:$0xff]
    %v8600 = vld [vmem:[%s24] sm:$0x1]
    %v8601 = vld [vmem:[%s25] sm:$0x1]
    %v8602 = vsel %vm163, %v8594, 0.0
    %8603 = vadd.xlane.f32.xlu0 %v8602
    %v8604 = vpop.xlane.xlu0 %8603
    %v8605 = vsel %vm163, %v8595, 0.0
    %8606 = vadd.xlane.f32.xlu0 %v8605
    %v8607 = vpop.xlane.xlu0 %8606
    %v8608 = vsel %vm163, %v8596, 0.0
    %8609 = vadd.xlane.f32.xlu0 %v8608
    %v8610 = vpop.xlane.xlu0 %8609
    %v8611 = vsel %vm163, %v8597, 0.0
    %8612 = vadd.xlane.f32.xlu0 %v8611
    %v8613 = vpop.xlane.xlu0 %8612
    %v8614 = vsel %vm163, %v8598, 0.0
    %8615 = vadd.xlane.f32.xlu0 %v8614
    %v8616 = vpop.xlane.xlu0 %8615
    %v8617 = vsel %vm163, %v8599, 0.0
    %8618 = vadd.xlane.f32.xlu0 %v8617
    %v8619 = vpop.xlane.xlu0 %8618
    %v8620 = vmul.f32 %v8604, %v291
    %v8621 = vmul.f32 %v8607, %v291
    %v8622 = vmul.f32 %v8610, %v291
    %v8623 = vmul.f32 %v8613, %v291
    %v8624 = vmul.f32 %v8616, %v291
    %v8625 = vmul.f32 %v8619, %v291
    %v8626 = vsub.f32 %v8594, %v8620
    %v8627 = vsub.f32 %v8595, %v8621
    %v8628 = vsub.f32 %v8596, %v8622
    %v8629 = vsub.f32 %v8597, %v8623
    %v8630 = vsub.f32 %v8598, %v8624
    %v8631 = vsub.f32 %v8599, %v8625
    %v8632 = vmul.f32 %v8626, %v8626
    %v8633 = vmul.f32 %v8627, %v8627
    %v8634 = vmul.f32 %v8628, %v8628
    %v8635 = vmul.f32 %v8629, %v8629
    %v8636 = vmul.f32 %v8630, %v8630
    %v8637 = vmul.f32 %v8631, %v8631
    %v8638 = vsel %vm163, %v8632, 0.0
    %8639 = vadd.xlane.f32.xlu0 %v8638
    %v8640 = vpop.xlane.xlu0 %8639
    %v8641 = vsel %vm163, %v8633, 0.0
    %8642 = vadd.xlane.f32.xlu0 %v8641
    %v8643 = vpop.xlane.xlu0 %8642
    %v8644 = vsel %vm163, %v8634, 0.0
    %8645 = vadd.xlane.f32.xlu0 %v8644
    %v8646 = vpop.xlane.xlu0 %8645
    %v8647 = vsel %vm163, %v8635, 0.0
    %8648 = vadd.xlane.f32.xlu0 %v8647
    %v8649 = vpop.xlane.xlu0 %8648
    %v8650 = vsel %vm163, %v8636, 0.0
    %8651 = vadd.xlane.f32.xlu0 %v8650
    %v8652 = vpop.xlane.xlu0 %8651
    %v8653 = vsel %vm163, %v8637, 0.0
    %8654 = vadd.xlane.f32.xlu0 %v8653
    %v8655 = vpop.xlane.xlu0 %8654
    %v8656 = vmul.f32 %v8640, %v291
    %v8657 = vmul.f32 %v8643, %v291
    %v8658 = vmul.f32 %v8646, %v291
    %v8659 = vmul.f32 %v8649, %v291
    %v8660 = vmul.f32 %v8652, %v291
    %v8661 = vmul.f32 %v8655, %v291
    %v8662 = vadd.f32 %v8656, 1e-06
    %v8663 = vadd.f32 %v8657, 1e-06
    %v8664 = vadd.f32 %v8658, 1e-06
    %v8665 = vadd.f32 %v8659, 1e-06
    %v8666 = vadd.f32 %v8660, 1e-06
    %v8667 = vadd.f32 %v8661, 1e-06
    %v8668 = vrsqrt.pop %v8662
    %v8669 = vmul.f32 %v8668, %v8662
    %v8670 = vmul.f32 %v8669, %v8668
    %v8671 = vmul.f32 0.5, %v8670
    %v8672 = vsub.f32 1.5, %v8671
    %v8673 = vmul.f32 %v8668, %v8672
    %vm8674 = vweird.f32 %v8662
    %vm8675 = vweird.f32 %v8668
    %vm8676 = vmor %vm8674, %vm8675
    %v8677 = vsel %vm8676, %v8668, %v8673
    %v8678 = vrsqrt.pop %v8663
    %v8679 = vmul.f32 %v8678, %v8663
    %v8680 = vmul.f32 %v8679, %v8678
    %v8681 = vmul.f32 0.5, %v8680
    %v8682 = vsub.f32 1.5, %v8681
    %v8683 = vmul.f32 %v8678, %v8682
    %vm8684 = vweird.f32 %v8663
    %vm8685 = vweird.f32 %v8678
    %vm8686 = vmor %vm8684, %vm8685
    %v8687 = vsel %vm8686, %v8678, %v8683
    %v8688 = vrsqrt.pop %v8664
    %v8689 = vmul.f32 %v8688, %v8664
    %v8690 = vmul.f32 %v8689, %v8688
    %v8691 = vmul.f32 0.5, %v8690
    %v8692 = vsub.f32 1.5, %v8691
    %v8693 = vmul.f32 %v8688, %v8692
    %vm8694 = vweird.f32 %v8664
    %vm8695 = vweird.f32 %v8688
    %vm8696 = vmor %vm8694, %vm8695
    %v8697 = vsel %vm8696, %v8688, %v8693
    %v8698 = vrsqrt.pop %v8665
    %v8699 = vmul.f32 %v8698, %v8665
    %v8700 = vmul.f32 %v8699, %v8698
    %v8701 = vmul.f32 0.5, %v8700
    %v8702 = vsub.f32 1.5, %v8701
    %v8703 = vmul.f32 %v8698, %v8702
    %vm8704 = vweird.f32 %v8665
    %vm8705 = vweird.f32 %v8698
    %vm8706 = vmor %vm8704, %vm8705
    %v8707 = vsel %vm8706, %v8698, %v8703
    %v8708 = vrsqrt.pop %v8666
    %v8709 = vmul.f32 %v8708, %v8666
    %v8710 = vmul.f32 %v8709, %v8708
    %v8711 = vmul.f32 0.5, %v8710
    %v8712 = vsub.f32 1.5, %v8711
    %v8713 = vmul.f32 %v8708, %v8712
    %vm8714 = vweird.f32 %v8666
    %vm8715 = vweird.f32 %v8708
    %vm8716 = vmor %vm8714, %vm8715
    %v8717 = vsel %vm8716, %v8708, %v8713
    %v8718 = vrsqrt.pop %v8667
    %v8719 = vmul.f32 %v8718, %v8667
    %v8720 = vmul.f32 %v8719, %v8718
    %v8721 = vmul.f32 0.5, %v8720
    %v8722 = vsub.f32 1.5, %v8721
    %v8723 = vmul.f32 %v8718, %v8722
    %vm8724 = vweird.f32 %v8667
    %vm8725 = vweird.f32 %v8718
    %vm8726 = vmor %vm8724, %vm8725
    %v8727 = vsel %vm8726, %v8718, %v8723
    %v8728 = vmul.f32 %v8626, %v8677
    %v8729 = vmul.f32 %v8627, %v8687
    %v8730 = vmul.f32 %v8628, %v8697
    %v8731 = vmul.f32 %v8629, %v8707
    %v8732 = vmul.f32 %v8630, %v8717
    %v8733 = vmul.f32 %v8631, %v8727
    %v8735 = vperm.slane %v8600, 0
    %v8737 = vmul.f32 %v8728, %v8735
    %v8738 = vmul.f32 %v8729, %v8735
    %v8739 = vmul.f32 %v8730, %v8735
    %v8740 = vmul.f32 %v8731, %v8735
    %v8741 = vmul.f32 %v8732, %v8735
    %v8742 = vmul.f32 %v8733, %v8735
    %v8744 = vperm.slane %v8601, 0
    %v8746 = vadd.f32 %v8737, %v8744
    %v8747 = vadd.f32 %v8738, %v8744
    %v8748 = vadd.f32 %v8739, %v8744
    %v8749 = vadd.f32 %v8740, %v8744
    %v8750 = vadd.f32 %v8741, %v8744
    %v8751 = vadd.f32 %v8742, %v8744
    %v8752 = vld [vmem:[%s8] sm:$0x3]
    %v8754 = vsel %vm125, %v8752, 0
    %8756 = vmatpush.msra.mxu0 0.0
    %8757 = vmatpush.msra.mxu0 0.0
    %8758 = vmatpush.msra.mxu0 0.0
    %8759 = vmatpush.msra.mxu0 0.0
    %8760 = vmatpush.msra.mxu0 0.0
    %8761 = vmatpush.msra.mxu0 0.0
    %8762 = vmatpush.msra.mxu0 0.0
    %8763 = vmatpush.msra.mxu0 0.0
    %8764 = vmatpush.msra.mxu0 0.0
    %8765 = vmatpush.msra.mxu0 0.0
    %8766 = vmatpush.msra.mxu0 %v8751
    %8767 = vmatpush.msra.mxu0 %v8750
    %8768 = vmatpush.msra.mxu0 %v8749
    %8769 = vmatpush.msra.mxu0 %v8748
    %8770 = vmatpush.msra.mxu0 %v8747
    %8771 = vmatpush.msra.mxu0 %v8746
    %8772 = vmatmul.f32.gmra.mxu0 %v8754
    %v8773 = vpop.f32.mrf.mxu0
    %v8774 = vadd.f32 0.0, %v8773
    %8775 = vdwg.mxu0
    %v8776 = vpack.c.bf16 %v8774, %v8774
    %v8777 = vld [vmem:[%s26] sm:$0xf]
    %v8778 = vld [vmem:[%s26 + $0x4] sm:$0xf]
    %v8779 = vld [vmem:[%s26 + $0x8] sm:$0xf]
    %v8780 = vld [vmem:[%s26 + $0xc] sm:$0xf]
    %v8781 = vld [vmem:[%s27] sm:$0x1]
    %v8783 = vperm.slane %v8781, 0
    %v8789 = vunpack.c.l.b16 %v8777
    %v8790 = vunpack.c.l.b16 %v8778
    %v8791 = vunpack.c.l.b16 %v8779
    %v8792 = vunpack.c.l.b16 %v8780
    %v8793 = vpack.c.b16 %v8790, %v8789
    %v8794 = vpack.c.b16 %v8792, %v8791
    %v8798 = vsel %vm163, %v8776, 0
    %8800 = vmatpush.bf16.msra.mxu0 0
    %8801 = vmatpush.bf16.msra.mxu0 0
    %8802 = vmatpush.bf16.msra.mxu0 0
    %8803 = vmatpush.bf16.msra.mxu0 0
    %8804 = vmatpush.bf16.msra.mxu0 0
    %8805 = vmatpush.bf16.msra.mxu0 0
    %8806 = vmatpush.bf16.msra.mxu0 %v8794
    %8807 = vmatpush.bf16.msra.mxu0 %v8793
    %8808 = vmatmul.bf16.gmra.mxu0 %v8798
    %v8809 = vpop.f32.mrf.mxu0
    %v8810 = vadd.f32 %v8783, %v8809
    %v8811 = vpop.f32.mrf.mxu0
    %8812 = vdwg.mxu0
    %vm8813 = vcmask 74752
    %8814 = vst.msk [vmem:[#allocation3] sm:$0x3] %vm8813, %v8810
    // Predicated region
    $region114: #{widenet_forward.1} parent=1 // pred_check
      _
    $region115: #{widenet_forward.1} parent=1 // pred_check_branch
      %8816 = sbr.rel (0) target = $region117
    $region116: #{widenet_forward.1} parent=1 // pred_region
      %8818 = vsyncadd [#allocation4], 0
      %s8820 = sshll.u32 [#allocation3], 4
      %s8821 = int_to_ptr.vmem [resolvable:$true] %s8820
      %s8822 = sshll.u32 %s28, 4
      %s8823 = int_to_ptr.hbm [resolvable:$true] %s8822
      %8825 = dma.vmem_to_hbm [thread:$0]  %s8821, 32, %s8823, [#allocation4]
    $region117: #{widenet_forward.1} parent=1 // pred_fallthru
      _
    // Predicated region
    $region118: #{widenet_forward.1} parent=1 // pred_check
      _
    $region119: #{widenet_forward.1} parent=1 // pred_check_branch
      %8827 = sbr.rel (0) target = $region121
    $region120: #{widenet_forward.1} parent=1 // pred_region
      %8829 = dma.done [#allocation4], 32
    $region121: #{widenet_forward.1} parent=1 // pred_fallthru
      _
    %8830 = vsyncpa [#allocation4], 1

</llo_original>
